<compile_context>
chip_gen: v7x
topology: tpu7x:2x2x1
jax: 0.10.0
libtpu: 0.0.40
codegen_flags: <defaults>
</compile_context>

<pallas_src>
import functools

import jax
import jax.numpy as jnp
from jax.experimental import pallas as pl
from jax.experimental.pallas import tpu as pltpu


# ----------------------------- helpers --------------------------------------

def _round_up(x, m):
    return (x + m - 1) // m * m


def _pad2d(a, rows, cols):
    return jnp.pad(a, ((0, rows - a.shape[0]), (0, cols - a.shape[1])))


def _pad1d(a, cols):
    return jnp.pad(a, (0, cols - a.shape[0]))


def _branch_block(shape):
    """BlockSpec selecting branch `i` along a leading (squeezed) axis."""
    zeros = (0,) * len(shape)
    return pl.BlockSpec((None,) + tuple(shape), lambda i, z=zeros: (i,) + z)


def _full_block(shape):
    """BlockSpec covering the whole array, same block for every grid step."""
    zeros = (0,) * len(shape)
    return pl.BlockSpec(tuple(shape), lambda i, z=zeros: z)


# ----------------------------- fused Pallas kernel ---------------------------

def _gng_kernel(adj_ref, x_ref, pool_ref, invc_ref,
                w1_ref, b1_ref, w2_ref, b2_ref, w3_ref, b3_ref,
                wg1_ref, bg1_ref, wg2_ref, bg2_ref,
                cw1_ref, cb1_ref, cw2_ref, cb2_ref, cw3_ref, cb3_ref,
                out_ref, emb_sc):
    """One grid step = one GNN branch, fully fused:
       3x(GCNConv+ReLU) -> MXU sum-pool * 1/count (f32) -> FC+ReLU -> FC,
       embedding stored into the persistent VMEM concat scratch; the last
       grid step additionally runs the 3 classifier linears in-kernel."""
    f32, bf16 = jnp.float32, jnp.bfloat16
    i = pl.program_id(0)

    a = adj_ref[...]                     # [N, N]  bf16 (sym-normalized A + I)
    h = x_ref[...]                       # [N, F]  bf16

    def gcn_relu(h, w_ref, b_ref):
        # relu(A @ (X @ W) + b) ordered as (A @ X) @ W  (f_out >= f_in here)
        ah = jnp.dot(a, h, preferred_element_type=f32)
        y = jnp.dot(ah.astype(bf16), w_ref[...],
                    preferred_element_type=f32) + b_ref[...]
        return jnp.maximum(y, 0.0).astype(bf16)

    h = gcn_relu(h, w1_ref, b1_ref)      # [N, 128]
    h = gcn_relu(h, w2_ref, b2_ref)      # [N, 128]
    h = gcn_relu(h, w3_ref, b3_ref)      # [N, 256]

    # global mean pool: exact bf16 one-hot sum-pool on MXU + f32 1/count scale
    pooled = jnp.dot(pool_ref[...], h, preferred_element_type=f32) * invc_ref[...]

    g1 = jnp.dot(pooled.astype(bf16), wg1_ref[...],
                 preferred_element_type=f32) + bg1_ref[...]             # [B, 1024]
    g1 = jnp.maximum(g1, 0.0).astype(bf16)
    emb = jnp.dot(g1, wg2_ref[...],
                  preferred_element_type=f32) + bg2_ref[...]            # [B, 128]
    emb = emb.astype(emb_sc.dtype)

    d = emb.shape[-1]                    # output_dim = 128

    # concat(xd, xt) materialized directly in the persistent VMEM scratch
    # (static, lane-aligned stores; branch 0 = drug, branch 1 = protein).
    @pl.when(i == 0)
    def _():
        emb_sc[:, 0:d] = emb

    @pl.when(i > 0)
    def _():
        emb_sc[:, d:2 * d] = emb

    # classifier epilogue, only on the last branch: no 2nd pallas_call and no
    # HBM round-trip of the embeddings.
    @pl.when(i == pl.num_programs(0) - 1)
    def _():
        xj = emb_sc[...].astype(bf16)                                    # [B, 256]
        z = jnp.dot(xj, cw1_ref[...], preferred_element_type=f32) + cb1_ref[...]
        z = jnp.maximum(z, 0.0).astype(bf16)                             # [B, 1024]
        z = jnp.dot(z, cw2_ref[...], preferred_element_type=f32) + cb2_ref[...]
        z = jnp.maximum(z, 0.0).astype(bf16)                             # [B, 512]
        o = jnp.dot(z, cw3_ref[...], preferred_element_type=f32) + cb3_ref[...]
        out_ref[...] = o                                                 # [B, nout_pad]


# ----------------------------- pallas_call wrapper ---------------------------

def gng_forward(branch_p, cls_p, adj, x, pool, invc, *, batch_size):
    nb = adj.shape[0]                        # 2 branches (drug, protein)
    bpad = pool.shape[1]
    out_dim = branch_p["wg2"].shape[-1]      # 128
    nout = cls_p["w3"].shape[-1]             # lane-padded n_output

    branch_args = (adj, x, pool, invc,
                   branch_p["w1"], branch_p["b1"],
                   branch_p["w2"], branch_p["b2"],
                   branch_p["w3"], branch_p["b3"],
                   branch_p["wg1"], branch_p["bg1"],
                   branch_p["wg2"], branch_p["bg2"])
    cls_args = (cls_p["w1"], cls_p["b1"],
                cls_p["w2"], cls_p["b2"],
                cls_p["w3"], cls_p["b3"])

    in_specs = ([_branch_block(a.shape[1:]) for a in branch_args]
                + [_full_block(a.shape) for a in cls_args])

    out = pl.pallas_call(
        _gng_kernel,
        out_shape=jax.ShapeDtypeStruct((bpad, nout), jnp.float32),
        grid=(nb,),
        in_specs=in_specs,
        out_specs=pl.BlockSpec((bpad, nout), lambda i: (0, 0)),
        scratch_shapes=[pltpu.VMEM((bpad, nb * out_dim), jnp.float32)],
        compiler_params=pltpu.CompilerParams(
            # "arbitrary": the concat scratch is carried across the two grid
            # steps and the classifier epilogue reads both halves, so the
            # branch axis must run sequentially on one core.
            dimension_semantics=("arbitrary",),
            # Plenty for demo shapes. Scaling to big graphs: raise toward
            # ~100 MiB on v5e/v6e; keep <= ~48 MiB on v7x (64 MiB physical)
            # and tile the GCN over node-row blocks of A instead.
            # TODO(synk): for very large NPAD, single-buffer adj
            # (pipeline_mode) or row-tile A to fit v7x VMEM.
            vmem_limit_bytes=32 << 20),
    )(*branch_args, *cls_args)
    return out[:batch_size, 0]               # .squeeze(1) of the real batch


# ------------------------------ JAX glue (graph prep) ------------------------

def normalized_adj(edge_index, num_nodes):
    """Dense GCN normalization: D^{-1/2} (A + I) D^{-1/2}."""
    src, dst = edge_index
    a = jnp.zeros((num_nodes, num_nodes), jnp.float32)
    a = a.at[dst, src].add(1.0)
    a = a.at[src, dst].add(1.0)                  # symmetric edges
    a = jnp.minimum(a, 1.0)                      # de-duplicate
    eye = jnp.eye(num_nodes, dtype=jnp.float32)
    a = a * (1.0 - eye) + eye                    # exactly-one self loop (PyG)
    deg = a.sum(axis=1)
    dinv = jnp.where(deg > 0, 1.0 / jnp.sqrt(deg), 0.0)
    return dinv[:, None] * a * dinv[None, :]


def pool_matrices(batch, num_graphs):
    """Un-normalized one-hot pool matrix (exact in bf16) + f32 1/count."""
    onehot = (batch[None, :] == jnp.arange(num_graphs)[:, None]).astype(jnp.float32)
    counts = onehot.sum(axis=1, keepdims=True)
    inv = 1.0 / jnp.maximum(counts, 1.0)
    return onehot, inv


# ------------------------------ params ---------------------------------------

def init_linear(key, in_dim, out_dim, scale=None):
    k1, k2 = jax.random.split(key)
    if scale is None:
        scale = 1.0 / jnp.sqrt(jnp.float32(in_dim))
    w = jax.random.normal(k1, (in_dim, out_dim), jnp.float32) * scale
    b = jax.random.normal(k2, (out_dim,), jnp.float32) * 0.01
    return w, b


def init_params(key, num_features_mol=55, num_features_pro=41, output_dim=128,
                n_output=1):
    names_dims = [
        ("mol_conv1", num_features_mol, num_features_mol),
        ("mol_conv2", num_features_mol, num_features_mol * 2),
        ("mol_conv3", num_features_mol * 2, num_features_mol * 4),
        ("pro_conv1", num_features_pro, num_features_pro),
        ("pro_conv2", num_features_pro, num_features_pro * 2),
        ("pro_conv3", num_features_pro * 2, num_features_pro * 4),
        ("mol_fc_g1", num_features_mol * 4, 1024),
        ("mol_fc_g2", 1024, output_dim),
        ("pro_fc_g1", num_features_pro * 4, 1024),
        ("pro_fc_g2", 1024, output_dim),
        ("cls1", 2 * output_dim, 1024),          # jdim = 256 for joint='concat'
        ("cls2", 1024, 512),
        ("cls3", 512, n_output),
    ]
    params = {}
    keys = jax.random.split(key, len(names_dims))
    for k, (name, din, dout) in zip(keys, names_dims):
        params[name] = init_linear(k, din, dout)
    return params


def prepare_branch_params(params, fpad=128, f3pad=256, hidden=1024, out_dim=128):
    """Zero-pad lane dims to 128/256, stack [mol, pro], cast weights to bf16."""
    bf16, f32 = jnp.bfloat16, jnp.float32

    def stack_w(mol, pro, rows, cols):
        return jnp.stack([_pad2d(params[mol][0], rows, cols),
                          _pad2d(params[pro][0], rows, cols)]).astype(bf16)

    def stack_b(mol, pro, cols):
        return jnp.stack([_pad1d(params[mol][1], cols).reshape(1, cols),
                          _pad1d(params[pro][1], cols).reshape(1, cols)]).astype(f32)

    return dict(
        w1=stack_w("mol_conv1", "pro_conv1", fpad, fpad),
        b1=stack_b("mol_conv1", "pro_conv1", fpad),
        w2=stack_w("mol_conv2", "pro_conv2", fpad, fpad),
        b2=stack_b("mol_conv2", "pro_conv2", fpad),
        w3=stack_w("mol_conv3", "pro_conv3", fpad, f3pad),
        b3=stack_b("mol_conv3", "pro_conv3", f3pad),
        wg1=stack_w("mol_fc_g1", "pro_fc_g1", f3pad, hidden),
        bg1=stack_b("mol_fc_g1", "pro_fc_g1", hidden),
        wg2=stack_w("mol_fc_g2", "pro_fc_g2", hidden, out_dim),
        bg2=stack_b("mol_fc_g2", "pro_fc_g2", out_dim),
    )


def prepare_cls_params(params, nout_pad=128):
    bf16, f32 = jnp.bfloat16, jnp.float32
    w1, b1 = params["cls1"]
    w2, b2 = params["cls2"]
    w3, b3 = params["cls3"]
    return dict(
        w1=w1.astype(bf16), b1=b1.reshape(1, -1).astype(f32),
        w2=w2.astype(bf16), b2=b2.reshape(1, -1).astype(f32),
        w3=_pad2d(w3, w3.shape[0], nout_pad).astype(bf16),
        b3=_pad1d(b3, nout_pad).reshape(1, -1).astype(f32),
    )


def prepare_graph_inputs(xd, adj_d, pool_d, inv_d, xt, adj_t, pool_t, inv_t,
                         npad, bpad, fpad=128):
    bf16, f32 = jnp.bfloat16, jnp.float32
    x = jnp.stack([_pad2d(xd, npad, fpad),
                   _pad2d(xt, npad, fpad)]).astype(bf16)
    adj = jnp.stack([_pad2d(adj_d, npad, npad),
                     _pad2d(adj_t, npad, npad)]).astype(bf16)
    pool = jnp.stack([_pad2d(pool_d, bpad, npad),
                      _pad2d(pool_t, bpad, npad)]).astype(bf16)   # 0/1 exact
    invc = jnp.stack([_pad2d(inv_d, bpad, 1),
                      _pad2d(inv_t, bpad, 1)]).astype(f32)
    return adj, x, pool, invc


# ------------------------------ pure-JAX reference ----------------------------

def reference_forward(params, xd, adj_d, pool_d, xt, adj_t, pool_t):
    def gcn(a, x, w, b):
        return jnp.maximum(a @ (x @ w) + b, 0.0)

    def lin(x, w, b, relu=False):
        y = x @ w + b
        return jnp.maximum(y, 0.0) if relu else y

    hd = gcn(adj_d, xd, *params["mol_conv1"])
    hd = gcn(adj_d, hd, *params["mol_conv2"])
    hd = gcn(adj_d, hd, *params["mol_conv3"])
    ht = gcn(adj_t, xt, *params["pro_conv1"])
    ht = gcn(adj_t, ht, *params["pro_conv2"])
    ht = gcn(adj_t, ht, *params["pro_conv3"])
    hd = pool_d @ hd
    hd = lin(hd, *params["mol_fc_g1"], relu=True)
    hd = lin(hd, *params["mol_fc_g2"])
    ht = pool_t @ ht
    ht = lin(ht, *params["pro_fc_g1"], relu=True)
    ht = lin(ht, *params["pro_fc_g2"])
    xj = jnp.concatenate([hd, ht], axis=1)       # joint = 'concat'
    h = lin(xj, *params["cls1"], relu=True)
    h = lin(h, *params["cls2"], relu=True)
    return lin(h, *params["cls3"])[:, 0]


# ------------------------------- main -----------------------------------------

if __name__ == "__main__":
    key = jax.random.PRNGKey(0)
    k_par, k_xd, k_xt, k_y = jax.random.split(key, 4)

    B = 2                        # number of graph pairs (small demo)
    NUM_FEAT_MOL, NUM_FEAT_PRO = 55, 41
    ND_PER, NT_PER = 12, 16      # nodes per drug / protein graph
    ND, NT = B * ND_PER, B * NT_PER
    # Hardware-aligned padding: NPAD is the lane dim of adj/pool and the K dim
    # of the GCN contraction -> multiple of 128; BPAD -> multiple of 16 so bf16
    # sublane tiles are full.
    NPAD = _round_up(max(ND, NT), 128)
    BPAD = _round_up(B, 16)

    params = init_params(k_par)

    # node features
    xd = jax.random.normal(k_xd, (ND, NUM_FEAT_MOL), jnp.float32)
    xt = jax.random.normal(k_xt, (NT, NUM_FEAT_PRO), jnp.float32)

    # batch assignment vectors
    xd_batch = jnp.repeat(jnp.arange(B), ND_PER)
    xt_batch = jnp.repeat(jnp.arange(B), NT_PER)

    # simple ring edges within each graph (deterministic, respects batch bounds)
    def ring_edges(nodes_per, num_graphs):
        src, dst = [], []
        for g in range(num_graphs):
            off = g * nodes_per
            for i in range(nodes_per):
                src.append(off + i)
                dst.append(off + (i + 1) % nodes_per)
        return jnp.array(src, jnp.int32), jnp.array(dst, jnp.int32)

    xd_ei = ring_edges(ND_PER, B)
    xt_ei = ring_edges(NT_PER, B)

    adj_d = normalized_adj(xd_ei, ND)
    adj_t = normalized_adj(xt_ei, NT)
    pool_d, inv_d = pool_matrices(xd_batch, B)
    pool_t, inv_t = pool_matrices(xt_batch, B)

    # one-time padding / stacking / bf16 cast (outside jit, done once)
    branch_p = prepare_branch_params(params)
    cls_p = prepare_cls_params(params)
    adj_s, x_s, pool_s, invc_s = prepare_graph_inputs(
        xd, adj_d, pool_d, inv_d, xt, adj_t, pool_t, inv_t, NPAD, BPAD)

    y = jax.random.normal(k_y, (B,), jnp.float32)   # passes through untouched
    # TODO(synk): dropout layers are identity (inference mode); training-mode
    # dropout would need pltpu.prng_* inside the fused kernel.

    fwd = jax.jit(functools.partial(gng_forward, batch_size=B))
    out = jax.block_until_ready(fwd(branch_p, cls_p, adj_s, x_s, pool_s, invc_s))

    assert out.shape == (B,), out.shape
    assert bool(jnp.all(jnp.isfinite(out)))

    # sanity check vs. the pure-JAX f32 reference (loose tol: bf16 matmuls)
    ref = reference_forward(params, xd, adj_d, pool_d * inv_d,
                            xt, adj_t, pool_t * inv_t)
    assert jnp.allclose(out, ref, atol=0.25, rtol=0.25), (out, ref)

    # (out, y) is the module's return pair; y passes through untouched.
    print("KERNEL_OK")
</pallas_src>

<mosaic_0001>
module attributes {stable_mosaic.version = 11 : i64} {
  func.func @_gng_kernel(%arg0: i32, %arg1: memref<1x128x128xbf16, #tpu.memory_space<vmem>>, %arg2: memref<1x128x128xbf16, #tpu.memory_space<vmem>>, %arg3: memref<1x16x128xbf16, #tpu.memory_space<vmem>>, %arg4: memref<1x16x1xf32, #tpu.memory_space<vmem>>, %arg5: memref<1x128x128xbf16, #tpu.memory_space<vmem>>, %arg6: memref<1x1x128xf32, #tpu.memory_space<vmem>>, %arg7: memref<1x128x128xbf16, #tpu.memory_space<vmem>>, %arg8: memref<1x1x128xf32, #tpu.memory_space<vmem>>, %arg9: memref<1x128x256xbf16, #tpu.memory_space<vmem>>, %arg10: memref<1x1x256xf32, #tpu.memory_space<vmem>>, %arg11: memref<1x256x1024xbf16, #tpu.memory_space<vmem>>, %arg12: memref<1x1x1024xf32, #tpu.memory_space<vmem>>, %arg13: memref<1x1024x128xbf16, #tpu.memory_space<vmem>>, %arg14: memref<1x1x128xf32, #tpu.memory_space<vmem>>, %arg15: memref<256x1024xbf16, #tpu.memory_space<vmem>>, %arg16: memref<1x1024xf32, #tpu.memory_space<vmem>>, %arg17: memref<1024x512xbf16, #tpu.memory_space<vmem>>, %arg18: memref<1x512xf32, #tpu.memory_space<vmem>>, %arg19: memref<512x128xbf16, #tpu.memory_space<vmem>>, %arg20: memref<1x128xf32, #tpu.memory_space<vmem>>, %arg21: memref<16x128xf32, #tpu.memory_space<vmem>>, %arg22: memref<16x256xf32, #tpu.memory_space<vmem>>) attributes {dimension_semantics = [#tpu.dimension_semantics<arbitrary>], iteration_bounds = array<i64: 2>, scalar_prefetch = 0 : i64, scratch_operands = 1 : i64, tpu.core_type = #tpu.core_type<tc>, window_params = [{transform_indices = @transform_0, window_bounds = array<i64: 1, 128, 128>}, {transform_indices = @transform_1, window_bounds = array<i64: 1, 128, 128>}, {transform_indices = @transform_2, window_bounds = array<i64: 1, 16, 128>}, {transform_indices = @transform_3, window_bounds = array<i64: 1, 16, 1>}, {transform_indices = @transform_4, window_bounds = array<i64: 1, 128, 128>}, {transform_indices = @transform_5, window_bounds = array<i64: 1, 1, 128>}, {transform_indices = @transform_6, window_bounds = array<i64: 1, 128, 128>}, {transform_indices = @transform_7, window_bounds = array<i64: 1, 1, 128>}, {transform_indices = @transform_8, window_bounds = array<i64: 1, 128, 256>}, {transform_indices = @transform_9, window_bounds = array<i64: 1, 1, 256>}, {transform_indices = @transform_10, window_bounds = array<i64: 1, 256, 1024>}, {transform_indices = @transform_11, window_bounds = array<i64: 1, 1, 1024>}, {transform_indices = @transform_12, window_bounds = array<i64: 1, 1024, 128>}, {transform_indices = @transform_13, window_bounds = array<i64: 1, 1, 128>}, {pipeline_mode = #tpu.pipeline_mode<synchronous>, transform_indices = @transform_14, window_bounds = array<i64: 256, 1024>}, {pipeline_mode = #tpu.pipeline_mode<synchronous>, transform_indices = @transform_15, window_bounds = array<i64: 1, 1024>}, {pipeline_mode = #tpu.pipeline_mode<synchronous>, transform_indices = @transform_16, window_bounds = array<i64: 1024, 512>}, {pipeline_mode = #tpu.pipeline_mode<synchronous>, transform_indices = @transform_17, window_bounds = array<i64: 1, 512>}, {pipeline_mode = #tpu.pipeline_mode<synchronous>, transform_indices = @transform_18, window_bounds = array<i64: 512, 128>}, {pipeline_mode = #tpu.pipeline_mode<synchronous>, transform_indices = @transform_19, window_bounds = array<i64: 1, 128>}, {pipeline_mode = #tpu.pipeline_mode<synchronous>, transform_indices = @transform_20, window_bounds = array<i64: 16, 128>}]} {
    %c0 = arith.constant 0 : index
    %c0_0 = arith.constant 0 : index
    %c0_1 = arith.constant 0 : index
    %0 = vector.load %arg1[%c0, %c0_0, %c0_1] : memref<1x128x128xbf16, #tpu.memory_space<vmem>>, vector<1x128x128xbf16>
    %1 = vector.shape_cast %0 : vector<1x128x128xbf16> to vector<128x128xbf16>
    %c0_2 = arith.constant 0 : index
    %c0_3 = arith.constant 0 : index
    %c0_4 = arith.constant 0 : index
    %2 = vector.load %arg2[%c0_2, %c0_3, %c0_4] : memref<1x128x128xbf16, #tpu.memory_space<vmem>>, vector<1x128x128xbf16>
    %3 = vector.shape_cast %2 : vector<1x128x128xbf16> to vector<128x128xbf16>
    %cst = arith.constant dense<0.000000e+00> : vector<128x128xf32>
    %4 = tpu.matmul %1, %3, %cst {dimension_numbers = #tpu.dot_dimension_numbers<[1], [0], [0], [1], [0, 0, 1, 1], [], []>} : vector<128x128xbf16>, vector<128x128xbf16>, vector<128x128xf32> -> vector<128x128xf32>
    %5 = arith.truncf %4 : vector<128x128xf32> to vector<128x128xbf16>
    %c0_5 = arith.constant 0 : index
    %c0_6 = arith.constant 0 : index
    %c0_7 = arith.constant 0 : index
    %6 = vector.load %arg5[%c0_5, %c0_6, %c0_7] : memref<1x128x128xbf16, #tpu.memory_space<vmem>>, vector<1x128x128xbf16>
    %7 = vector.shape_cast %6 : vector<1x128x128xbf16> to vector<128x128xbf16>
    %cst_8 = arith.constant dense<0.000000e+00> : vector<128x128xf32>
    %8 = tpu.matmul %5, %7, %cst_8 {dimension_numbers = #tpu.dot_dimension_numbers<[1], [0], [0], [1], [0, 0, 1, 1], [], []>} : vector<128x128xbf16>, vector<128x128xbf16>, vector<128x128xf32> -> vector<128x128xf32>
    %c0_9 = arith.constant 0 : index
    %c0_10 = arith.constant 0 : index
    %c0_11 = arith.constant 0 : index
    %9 = vector.load %arg6[%c0_9, %c0_10, %c0_11] : memref<1x1x128xf32, #tpu.memory_space<vmem>>, vector<1x1x128xf32>
    %10 = vector.shape_cast %9 : vector<1x1x128xf32> to vector<1x128xf32>
    %11 = vector.broadcast %10 : vector<1x128xf32> to vector<128x128xf32>
    %12 = arith.addf %8, %11 : vector<128x128xf32>
    %cst_12 = arith.constant 0.000000e+00 : f32
    %13 = vector.broadcast %cst_12 : f32 to vector<128x128xf32>
    %14 = arith.maximumf %12, %13 : vector<128x128xf32>
    %15 = arith.truncf %14 : vector<128x128xf32> to vector<128x128xbf16>
    %cst_13 = arith.constant dense<0.000000e+00> : vector<128x128xf32>
    %16 = tpu.matmul %1, %15, %cst_13 {dimension_numbers = #tpu.dot_dimension_numbers<[1], [0], [0], [1], [0, 0, 1, 1], [], []>} : vector<128x128xbf16>, vector<128x128xbf16>, vector<128x128xf32> -> vector<128x128xf32>
    %17 = arith.truncf %16 : vector<128x128xf32> to vector<128x128xbf16>
    %c0_14 = arith.constant 0 : index
    %c0_15 = arith.constant 0 : index
    %c0_16 = arith.constant 0 : index
    %18 = vector.load %arg7[%c0_14, %c0_15, %c0_16] : memref<1x128x128xbf16, #tpu.memory_space<vmem>>, vector<1x128x128xbf16>
    %19 = vector.shape_cast %18 : vector<1x128x128xbf16> to vector<128x128xbf16>
    %cst_17 = arith.constant dense<0.000000e+00> : vector<128x128xf32>
    %20 = tpu.matmul %17, %19, %cst_17 {dimension_numbers = #tpu.dot_dimension_numbers<[1], [0], [0], [1], [0, 0, 1, 1], [], []>} : vector<128x128xbf16>, vector<128x128xbf16>, vector<128x128xf32> -> vector<128x128xf32>
    %c0_18 = arith.constant 0 : index
    %c0_19 = arith.constant 0 : index
    %c0_20 = arith.constant 0 : index
    %21 = vector.load %arg8[%c0_18, %c0_19, %c0_20] : memref<1x1x128xf32, #tpu.memory_space<vmem>>, vector<1x1x128xf32>
    %22 = vector.shape_cast %21 : vector<1x1x128xf32> to vector<1x128xf32>
    %23 = vector.broadcast %22 : vector<1x128xf32> to vector<128x128xf32>
    %24 = arith.addf %20, %23 : vector<128x128xf32>
    %cst_21 = arith.constant 0.000000e+00 : f32
    %25 = vector.broadcast %cst_21 : f32 to vector<128x128xf32>
    %26 = arith.maximumf %24, %25 : vector<128x128xf32>
    %27 = arith.truncf %26 : vector<128x128xf32> to vector<128x128xbf16>
    %cst_22 = arith.constant dense<0.000000e+00> : vector<128x128xf32>
    %28 = tpu.matmul %1, %27, %cst_22 {dimension_numbers = #tpu.dot_dimension_numbers<[1], [0], [0], [1], [0, 0, 1, 1], [], []>} : vector<128x128xbf16>, vector<128x128xbf16>, vector<128x128xf32> -> vector<128x128xf32>
    %29 = arith.truncf %28 : vector<128x128xf32> to vector<128x128xbf16>
    %c0_23 = arith.constant 0 : index
    %c0_24 = arith.constant 0 : index
    %c0_25 = arith.constant 0 : index
    %30 = vector.load %arg9[%c0_23, %c0_24, %c0_25] : memref<1x128x256xbf16, #tpu.memory_space<vmem>>, vector<1x128x256xbf16>
    %31 = vector.shape_cast %30 : vector<1x128x256xbf16> to vector<128x256xbf16>
    %cst_26 = arith.constant dense<0.000000e+00> : vector<128x256xf32>
    %32 = tpu.matmul %29, %31, %cst_26 {dimension_numbers = #tpu.dot_dimension_numbers<[1], [0], [0], [1], [0, 0, 1, 1], [], []>} : vector<128x128xbf16>, vector<128x256xbf16>, vector<128x256xf32> -> vector<128x256xf32>
    %c0_27 = arith.constant 0 : index
    %c0_28 = arith.constant 0 : index
    %c0_29 = arith.constant 0 : index
    %33 = vector.load %arg10[%c0_27, %c0_28, %c0_29] : memref<1x1x256xf32, #tpu.memory_space<vmem>>, vector<1x1x256xf32>
    %34 = vector.shape_cast %33 : vector<1x1x256xf32> to vector<1x256xf32>
    %35 = vector.broadcast %34 : vector<1x256xf32> to vector<128x256xf32>
    %36 = arith.addf %32, %35 : vector<128x256xf32>
    %cst_30 = arith.constant 0.000000e+00 : f32
    %37 = vector.broadcast %cst_30 : f32 to vector<128x256xf32>
    %38 = arith.maximumf %36, %37 : vector<128x256xf32>
    %39 = arith.truncf %38 : vector<128x256xf32> to vector<128x256xbf16>
    %c0_31 = arith.constant 0 : index
    %c0_32 = arith.constant 0 : index
    %c0_33 = arith.constant 0 : index
    %40 = vector.load %arg3[%c0_31, %c0_32, %c0_33] : memref<1x16x128xbf16, #tpu.memory_space<vmem>>, vector<1x16x128xbf16>
    %41 = vector.shape_cast %40 : vector<1x16x128xbf16> to vector<16x128xbf16>
    %cst_34 = arith.constant dense<0.000000e+00> : vector<16x256xf32>
    %42 = tpu.matmul %41, %39, %cst_34 {dimension_numbers = #tpu.dot_dimension_numbers<[1], [0], [0], [1], [0, 0, 1, 1], [], []>} : vector<16x128xbf16>, vector<128x256xbf16>, vector<16x256xf32> -> vector<16x256xf32>
    %c0_35 = arith.constant 0 : index
    %c0_36 = arith.constant 0 : index
    %c0_37 = arith.constant 0 : index
    %43 = vector.load %arg4[%c0_35, %c0_36, %c0_37] : memref<1x16x1xf32, #tpu.memory_space<vmem>>, vector<1x16x1xf32>
    %44 = vector.shape_cast %43 : vector<1x16x1xf32> to vector<16x1xf32>
    %45 = vector.broadcast %44 : vector<16x1xf32> to vector<16x256xf32>
    %46 = arith.mulf %42, %45 : vector<16x256xf32>
    %47 = arith.truncf %46 : vector<16x256xf32> to vector<16x256xbf16>
    %c0_38 = arith.constant 0 : index
    %c0_39 = arith.constant 0 : index
    %c0_40 = arith.constant 0 : index
    %48 = vector.load %arg11[%c0_38, %c0_39, %c0_40] : memref<1x256x1024xbf16, #tpu.memory_space<vmem>>, vector<1x256x1024xbf16>
    %49 = vector.shape_cast %48 : vector<1x256x1024xbf16> to vector<256x1024xbf16>
    %cst_41 = arith.constant dense<0.000000e+00> : vector<16x1024xf32>
    %50 = tpu.matmul %47, %49, %cst_41 {dimension_numbers = #tpu.dot_dimension_numbers<[1], [0], [0], [1], [0, 0, 1, 1], [], []>} : vector<16x256xbf16>, vector<256x1024xbf16>, vector<16x1024xf32> -> vector<16x1024xf32>
    %c0_42 = arith.constant 0 : index
    %c0_43 = arith.constant 0 : index
    %c0_44 = arith.constant 0 : index
    %51 = vector.load %arg12[%c0_42, %c0_43, %c0_44] : memref<1x1x1024xf32, #tpu.memory_space<vmem>>, vector<1x1x1024xf32>
    %52 = vector.shape_cast %51 : vector<1x1x1024xf32> to vector<1x1024xf32>
    %53 = vector.broadcast %52 : vector<1x1024xf32> to vector<16x1024xf32>
    %54 = arith.addf %50, %53 : vector<16x1024xf32>
    %cst_45 = arith.constant 0.000000e+00 : f32
    %55 = vector.broadcast %cst_45 : f32 to vector<16x1024xf32>
    %56 = arith.maximumf %54, %55 : vector<16x1024xf32>
    %57 = arith.truncf %56 : vector<16x1024xf32> to vector<16x1024xbf16>
    %c0_46 = arith.constant 0 : index
    %c0_47 = arith.constant 0 : index
    %c0_48 = arith.constant 0 : index
    %58 = vector.load %arg13[%c0_46, %c0_47, %c0_48] : memref<1x1024x128xbf16, #tpu.memory_space<vmem>>, vector<1x1024x128xbf16>
    %59 = vector.shape_cast %58 : vector<1x1024x128xbf16> to vector<1024x128xbf16>
    %cst_49 = arith.constant dense<0.000000e+00> : vector<16x128xf32>
    %60 = tpu.matmul %57, %59, %cst_49 {dimension_numbers = #tpu.dot_dimension_numbers<[1], [0], [0], [1], [0, 0, 1, 1], [], []>} : vector<16x1024xbf16>, vector<1024x128xbf16>, vector<16x128xf32> -> vector<16x128xf32>
    %c0_50 = arith.constant 0 : index
    %c0_51 = arith.constant 0 : index
    %c0_52 = arith.constant 0 : index
    %61 = vector.load %arg14[%c0_50, %c0_51, %c0_52] : memref<1x1x128xf32, #tpu.memory_space<vmem>>, vector<1x1x128xf32>
    %62 = vector.shape_cast %61 : vector<1x1x128xf32> to vector<1x128xf32>
    %63 = vector.broadcast %62 : vector<1x128xf32> to vector<16x128xf32>
    %64 = arith.addf %60, %63 : vector<16x128xf32>
    %c0_i32 = arith.constant 0 : i32
    %65 = arith.cmpi eq, %arg0, %c0_i32 : i32
    %66 = arith.extui %65 : i1 to i32
    %c0_i32_53 = arith.constant 0 : i32
    %67 = arith.cmpi ne, %66, %c0_i32_53 : i32
    scf.if %67 {
      %c0_57 = arith.constant 0 : index
      %c0_58 = arith.constant 0 : index
      %74 = vector.load %arg22[%c0_57, %c0_58] : memref<16x256xf32, #tpu.memory_space<vmem>>, vector<16x128xf32>
      tpu.vector_store %arg22[%c0_57, %c0_58], %64 {strides = array<i32>} : memref<16x256xf32, #tpu.memory_space<vmem>>, vector<16x128xf32>,
    } else {
    }
    %c0_i32_54 = arith.constant 0 : i32
    %68 = arith.cmpi sgt, %arg0, %c0_i32_54 : i32
    %69 = arith.extui %68 : i1 to i32
    %c0_i32_55 = arith.constant 0 : i32
    %70 = arith.cmpi ne, %69, %c0_i32_55 : i32
    scf.if %70 {
      %c0_57 = arith.constant 0 : index
      %c128 = arith.constant 128 : index
      %74 = vector.load %arg22[%c0_57, %c128] : memref<16x256xf32, #tpu.memory_space<vmem>>, vector<16x128xf32>
      tpu.vector_store %arg22[%c0_57, %c128], %64 {strides = array<i32>} : memref<16x256xf32, #tpu.memory_space<vmem>>, vector<16x128xf32>,
    } else {
    }
    %c1_i32 = arith.constant 1 : i32
    %71 = arith.cmpi eq, %arg0, %c1_i32 : i32
    %72 = arith.extui %71 : i1 to i32
    %c0_i32_56 = arith.constant 0 : i32
    %73 = arith.cmpi ne, %72, %c0_i32_56 : i32
    scf.if %73 {
      %c0_57 = arith.constant 0 : index
      %c0_58 = arith.constant 0 : index
      %74 = vector.load %arg22[%c0_57, %c0_58] : memref<16x256xf32, #tpu.memory_space<vmem>>, vector<16x256xf32>
      %75 = arith.truncf %74 : vector<16x256xf32> to vector<16x256xbf16>
      %c0_59 = arith.constant 0 : index
      %c0_60 = arith.constant 0 : index
      %76 = vector.load %arg15[%c0_59, %c0_60] : memref<256x1024xbf16, #tpu.memory_space<vmem>>, vector<256x1024xbf16>
      %cst_61 = arith.constant dense<0.000000e+00> : vector<16x1024xf32>
      %77 = tpu.matmul %75, %76, %cst_61 {dimension_numbers = #tpu.dot_dimension_numbers<[1], [0], [0], [1], [0, 0, 1, 1], [], []>} : vector<16x256xbf16>, vector<256x1024xbf16>, vector<16x1024xf32> -> vector<16x1024xf32>
      %c0_62 = arith.constant 0 : index
      %c0_63 = arith.constant 0 : index
      %78 = vector.load %arg16[%c0_62, %c0_63] : memref<1x1024xf32, #tpu.memory_space<vmem>>, vector<1x1024xf32>
      %79 = vector.broadcast %78 : vector<1x1024xf32> to vector<16x1024xf32>
      %80 = arith.addf %77, %79 : vector<16x1024xf32>
      %cst_64 = arith.constant 0.000000e+00 : f32
      %81 = vector.broadcast %cst_64 : f32 to vector<16x1024xf32>
      %82 = arith.maximumf %80, %81 : vector<16x1024xf32>
      %83 = arith.truncf %82 : vector<16x1024xf32> to vector<16x1024xbf16>
      %c0_65 = arith.constant 0 : index
      %c0_66 = arith.constant 0 : index
      %84 = vector.load %arg17[%c0_65, %c0_66] : memref<1024x512xbf16, #tpu.memory_space<vmem>>, vector<1024x512xbf16>
      %cst_67 = arith.constant dense<0.000000e+00> : vector<16x512xf32>
      %85 = tpu.matmul %83, %84, %cst_67 {dimension_numbers = #tpu.dot_dimension_numbers<[1], [0], [0], [1], [0, 0, 1, 1], [], []>} : vector<16x1024xbf16>, vector<1024x512xbf16>, vector<16x512xf32> -> vector<16x512xf32>
      %c0_68 = arith.constant 0 : index
      %c0_69 = arith.constant 0 : index
      %86 = vector.load %arg18[%c0_68, %c0_69] : memref<1x512xf32, #tpu.memory_space<vmem>>, vector<1x512xf32>
      %87 = vector.broadcast %86 : vector<1x512xf32> to vector<16x512xf32>
      %88 = arith.addf %85, %87 : vector<16x512xf32>
      %cst_70 = arith.constant 0.000000e+00 : f32
      %89 = vector.broadcast %cst_70 : f32 to vector<16x512xf32>
      %90 = arith.maximumf %88, %89 : vector<16x512xf32>
      %91 = arith.truncf %90 : vector<16x512xf32> to vector<16x512xbf16>
      %c0_71 = arith.constant 0 : index
      %c0_72 = arith.constant 0 : index
      %92 = vector.load %arg19[%c0_71, %c0_72] : memref<512x128xbf16, #tpu.memory_space<vmem>>, vector<512x128xbf16>
      %cst_73 = arith.constant dense<0.000000e+00> : vector<16x128xf32>
      %93 = tpu.matmul %91, %92, %cst_73 {dimension_numbers = #tpu.dot_dimension_numbers<[1], [0], [0], [1], [0, 0, 1, 1], [], []>} : vector<16x512xbf16>, vector<512x128xbf16>, vector<16x128xf32> -> vector<16x128xf32>
      %c0_74 = arith.constant 0 : index
      %c0_75 = arith.constant 0 : index
      %94 = vector.load %arg20[%c0_74, %c0_75] : memref<1x128xf32, #tpu.memory_space<vmem>>, vector<1x128xf32>
      %95 = vector.broadcast %94 : vector<1x128xf32> to vector<16x128xf32>
      %96 = arith.addf %93, %95 : vector<16x128xf32>
      %c0_76 = arith.constant 0 : index
      %c0_77 = arith.constant 0 : index
      %97 = vector.load %arg21[%c0_76, %c0_77] : memref<16x128xf32, #tpu.memory_space<vmem>>, vector<16x128xf32>
      tpu.vector_store %arg21[%c0_76, %c0_77], %96 {strides = array<i32>} : memref<16x128xf32, #tpu.memory_space<vmem>>, vector<16x128xf32>,
    } else {
    }
    return
  }
  func.func @transform_0(%arg0: i32) -> (i32, i32, i32) {
    %c0_i32 = arith.constant 0 : i32
    %c0_i32_0 = arith.constant 0 : i32
    %c0_i32_1 = arith.constant 0 : i32
    return %arg0, %c0_i32, %c0_i32_0 : i32, i32, i32
  }
  func.func @transform_1(%arg0: i32) -> (i32, i32, i32) {
    %c0_i32 = arith.constant 0 : i32
    %c0_i32_0 = arith.constant 0 : i32
    %c0_i32_1 = arith.constant 0 : i32
    return %arg0, %c0_i32, %c0_i32_0 : i32, i32, i32
  }
  func.func @transform_2(%arg0: i32) -> (i32, i32, i32) {
    %c0_i32 = arith.constant 0 : i32
    %c0_i32_0 = arith.constant 0 : i32
    %c0_i32_1 = arith.constant 0 : i32
    return %arg0, %c0_i32, %c0_i32_0 : i32, i32, i32
  }
  func.func @transform_3(%arg0: i32) -> (i32, i32, i32) {
    %c0_i32 = arith.constant 0 : i32
    %c0_i32_0 = arith.constant 0 : i32
    %c0_i32_1 = arith.constant 0 : i32
    return %arg0, %c0_i32, %c0_i32_0 : i32, i32, i32
  }
  func.func @transform_4(%arg0: i32) -> (i32, i32, i32) {
    %c0_i32 = arith.constant 0 : i32
    %c0_i32_0 = arith.constant 0 : i32
    %c0_i32_1 = arith.constant 0 : i32
    return %arg0, %c0_i32, %c0_i32_0 : i32, i32, i32
  }
  func.func @transform_5(%arg0: i32) -> (i32, i32, i32) {
    %c0_i32 = arith.constant 0 : i32
    %c0_i32_0 = arith.constant 0 : i32
    %c0_i32_1 = arith.constant 0 : i32
    return %arg0, %c0_i32, %c0_i32_0 : i32, i32, i32
  }
  func.func @transform_6(%arg0: i32) -> (i32, i32, i32) {
    %c0_i32 = arith.constant 0 : i32
    %c0_i32_0 = arith.constant 0 : i32
    %c0_i32_1 = arith.constant 0 : i32
    return %arg0, %c0_i32, %c0_i32_0 : i32, i32, i32
  }
  func.func @transform_7(%arg0: i32) -> (i32, i32, i32) {
    %c0_i32 = arith.constant 0 : i32
    %c0_i32_0 = arith.constant 0 : i32
    %c0_i32_1 = arith.constant 0 : i32
    return %arg0, %c0_i32, %c0_i32_0 : i32, i32, i32
  }
  func.func @transform_8(%arg0: i32) -> (i32, i32, i32) {
    %c0_i32 = arith.constant 0 : i32
    %c0_i32_0 = arith.constant 0 : i32
    %c0_i32_1 = arith.constant 0 : i32
    return %arg0, %c0_i32, %c0_i32_0 : i32, i32, i32
  }
  func.func @transform_9(%arg0: i32) -> (i32, i32, i32) {
    %c0_i32 = arith.constant 0 : i32
    %c0_i32_0 = arith.constant 0 : i32
    %c0_i32_1 = arith.constant 0 : i32
    return %arg0, %c0_i32, %c0_i32_0 : i32, i32, i32
  }
  func.func @transform_10(%arg0: i32) -> (i32, i32, i32) {
    %c0_i32 = arith.constant 0 : i32
    %c0_i32_0 = arith.constant 0 : i32
    %c0_i32_1 = arith.constant 0 : i32
    return %arg0, %c0_i32, %c0_i32_0 : i32, i32, i32
  }
  func.func @transform_11(%arg0: i32) -> (i32, i32, i32) {
    %c0_i32 = arith.constant 0 : i32
    %c0_i32_0 = arith.constant 0 : i32
    %c0_i32_1 = arith.constant 0 : i32
    return %arg0, %c0_i32, %c0_i32_0 : i32, i32, i32
  }
  func.func @transform_12(%arg0: i32) -> (i32, i32, i32) {
    %c0_i32 = arith.constant 0 : i32
    %c0_i32_0 = arith.constant 0 : i32
    %c0_i32_1 = arith.constant 0 : i32
    return %arg0, %c0_i32, %c0_i32_0 : i32, i32, i32
  }
  func.func @transform_13(%arg0: i32) -> (i32, i32, i32) {
    %c0_i32 = arith.constant 0 : i32
    %c0_i32_0 = arith.constant 0 : i32
    %c0_i32_1 = arith.constant 0 : i32
    return %arg0, %c0_i32, %c0_i32_0 : i32, i32, i32
  }
  func.func @transform_14(%arg0: i32) -> (i32, i32) {
    %c0_i32 = arith.constant 0 : i32
    %c0_i32_0 = arith.constant 0 : i32
    %c0_i32_1 = arith.constant 0 : i32
    return %c0_i32, %c0_i32_0 : i32, i32
  }
  func.func @transform_15(%arg0: i32) -> (i32, i32) {
    %c0_i32 = arith.constant 0 : i32
    %c0_i32_0 = arith.constant 0 : i32
    %c0_i32_1 = arith.constant 0 : i32
    return %c0_i32, %c0_i32_0 : i32, i32
  }
  func.func @transform_16(%arg0: i32) -> (i32, i32) {
    %c0_i32 = arith.constant 0 : i32
    %c0_i32_0 = arith.constant 0 : i32
    %c0_i32_1 = arith.constant 0 : i32
    return %c0_i32, %c0_i32_0 : i32, i32
  }
  func.func @transform_17(%arg0: i32) -> (i32, i32) {
    %c0_i32 = arith.constant 0 : i32
    %c0_i32_0 = arith.constant 0 : i32
    %c0_i32_1 = arith.constant 0 : i32
    return %c0_i32, %c0_i32_0 : i32, i32
  }
  func.func @transform_18(%arg0: i32) -> (i32, i32) {
    %c0_i32 = arith.constant 0 : i32
    %c0_i32_0 = arith.constant 0 : i32
    %c0_i32_1 = arith.constant 0 : i32
    return %c0_i32, %c0_i32_0 : i32, i32
  }
  func.func @transform_19(%arg0: i32) -> (i32, i32) {
    %c0_i32 = arith.constant 0 : i32
    %c0_i32_0 = arith.constant 0 : i32
    %c0_i32_1 = arith.constant 0 : i32
    return %c0_i32, %c0_i32_0 : i32, i32
  }
  func.func @transform_20(%arg0: i32) -> (i32, i32) {
    %c0_i32 = arith.constant 0 : i32
    %c0_i32_0 = arith.constant 0 : i32
    %c0_i32_1 = arith.constant 0 : i32
    return %c0_i32, %c0_i32_0 : i32, i32
  }
}

</mosaic_0001>

<llo_original>
// kernel: gng_forward.1
$region0: #{gng_forward.1}
  #allocation0 [shape = 'u32[]', space=smem, size = 0x4, offset = 0x4, fixed_abs, tag = 'smem constant byte address 0x4 - core index']
  #allocation1 [shape = 'u32[144,128]{1,0:T(1,128)}', space=vmem, size = 0x12000, scoped, tag = 'internal scratch']
  #allocation2 [shape = 'f32[16,256]{1,0:T(8,128)}', space=vmem, size = 0x4000, scoped, tag = 'scratch operand']
  %s0 = inlined_call_operand.hbm [shape: bf16[2,128,128], index: 0, kind: input, shape index: {}]
  %s1 = inlined_call_operand.hbm [shape: bf16[2,128,128], index: 1, kind: input, shape index: {}]
  %s2 = inlined_call_operand.vmem [shape: bf16[2,16,128], index: 2, kind: input, shape index: {}]
  %s3 = inlined_call_operand.vmem [shape: f32[2,16,1], index: 3, kind: input, shape index: {}]
  %s4 = inlined_call_operand.hbm [shape: bf16[2,128,128], index: 4, kind: input, shape index: {}]
  %s5 = inlined_call_operand.hbm [shape: f32[2,1,128], index: 5, kind: input, shape index: {}]
  %s6 = inlined_call_operand.hbm [shape: bf16[2,128,128], index: 6, kind: input, shape index: {}]
  %s7 = inlined_call_operand.hbm [shape: f32[2,1,128], index: 7, kind: input, shape index: {}]
  %s8 = inlined_call_operand.hbm [shape: bf16[2,128,256], index: 8, kind: input, shape index: {}]
  %s9 = inlined_call_operand.hbm [shape: f32[2,1,256], index: 9, kind: input, shape index: {}]
  %s10 = inlined_call_operand.hbm [shape: bf16[2,256,1024], index: 10, kind: input, shape index: {}]
  %s11 = inlined_call_operand.vmem [shape: f32[2,1,1024], index: 11, kind: input, shape index: {}]
  %s12 = inlined_call_operand.hbm [shape: bf16[2,1024,128], index: 12, kind: input, shape index: {}]
  %s13 = inlined_call_operand.vmem [shape: f32[2,1,128], index: 13, kind: input, shape index: {}]
  %s14 = inlined_call_operand.hbm [shape: bf16[256,1024], index: 14, kind: input, shape index: {}]
  %s15 = inlined_call_operand.vmem [shape: f32[1,1024], index: 15, kind: input, shape index: {}]
  %s16 = inlined_call_operand.hbm [shape: bf16[1024,512], index: 16, kind: input, shape index: {}]
  %s17 = inlined_call_operand.vmem [shape: f32[1,512], index: 17, kind: input, shape index: {}]
  %s18 = inlined_call_operand.hbm [shape: bf16[512,128], index: 18, kind: input, shape index: {}]
  %s19 = inlined_call_operand.vmem [shape: f32[1,128], index: 19, kind: input, shape index: {}]
  %s20 = inlined_call_operand.vmem [shape: f32[16,128], index: 20, kind: output, shape index: {}]
  %s21 = sld [smem:[#allocation0]]
  $region177: #{gng_forward.1} parent=0
    _
  %s23 = ssub.s32 1, %s21
  %s24 = scalar_select 0, %s23, %s21
  $region1: #{gng_forward.1} parent=0
    #allocation3 [shape = 'u8[65536]{0}', space=vmem, size = 0x10000, scoped, tag = 'input window, operand 0']
    #allocation4 [shape = 's32[2]{0}', space=sflag, size = 0x8, scoped, tag = 'scoped memory for gng_forward.1']
    #allocation5 [shape = 'u8[65536]{0}', space=vmem, size = 0x10000, scoped, tag = 'input window, operand 1']
    #allocation6 [shape = 's32[2]{0}', space=sflag, size = 0x8, scoped, tag = 'scoped memory for gng_forward.1']
    #allocation7 [shape = 'u8[65536]{0}', space=vmem, size = 0x10000, scoped, tag = 'input window, operand 4']
    #allocation8 [shape = 'u8[1024]{0}', space=vmem, size = 0x400, scoped, tag = 'input window, operand 5']
    #allocation9 [shape = 's32[2]{0}', space=sflag, size = 0x8, scoped, tag = 'scoped memory for gng_forward.1']
    #allocation10 [shape = 'u8[65536]{0}', space=vmem, size = 0x10000, scoped, tag = 'input window, operand 6']
    #allocation11 [shape = 'u8[1024]{0}', space=vmem, size = 0x400, scoped, tag = 'input window, operand 7']
    #allocation12 [shape = 's32[2]{0}', space=sflag, size = 0x8, scoped, tag = 'scoped memory for gng_forward.1']
    #allocation13 [shape = 'u8[131072]{0}', space=vmem, size = 0x20000, scoped, tag = 'input window, operand 8']
    #allocation14 [shape = 'u8[2048]{0}', space=vmem, size = 0x800, scoped, tag = 'input window, operand 9']
    #allocation15 [shape = 's32[2]{0}', space=sflag, size = 0x8, scoped, tag = 'scoped memory for gng_forward.1']
    #allocation16 [shape = 'u8[1048576]{0}', space=vmem, size = 0x100000, scoped, tag = 'input window, operand 10']
    #allocation17 [shape = 'u8[524288]{0}', space=vmem, size = 0x80000, scoped, tag = 'input window, operand 12']
    #allocation18 [shape = 's32[2]{0}', space=sflag, size = 0x8, scoped, tag = 'scoped memory for gng_forward.1']
    #allocation19 [shape = 'u8[524288]{0}', space=vmem, size = 0x80000, scoped, tag = 'input window, operand 14, single buffered']
    #allocation20 [shape = 'u8[1048576]{0}', space=vmem, size = 0x100000, scoped, tag = 'input window, operand 16, single buffered']
    #allocation21 [shape = 's32[1]{0}', space=sflag, size = 0x4, scoped, tag = 'scoped memory for gng_forward.1']
    #allocation22 [shape = 'u8[131072]{0}', space=vmem, size = 0x20000, scoped, tag = 'input window, operand 18, single buffered']
    %25 = vsyncpa [#allocation4], 0
    %s26 = scalar_lea.sflag [#allocation4], 1
    %27 = vsyncpa %s26, 0
    %28 = vsyncpa [#allocation6], 0
    %s29 = scalar_lea.sflag [#allocation6], 1
    %30 = vsyncpa %s29, 0
    %31 = vsyncpa [#allocation9], 0
    %s32 = scalar_lea.sflag [#allocation9], 1
    %33 = vsyncpa %s32, 0
    %34 = vsyncpa [#allocation12], 0
    %s35 = scalar_lea.sflag [#allocation12], 1
    %36 = vsyncpa %s35, 0
    %37 = vsyncpa [#allocation15], 0
    %s38 = scalar_lea.sflag [#allocation15], 1
    %39 = vsyncpa %s38, 0
    %40 = vsyncpa [#allocation18], 0
    %s41 = scalar_lea.sflag [#allocation18], 1
    %42 = vsyncpa %s41, 0
    %43 = vsyncpa [#allocation21], 0
    loop: start=0, step=1, limit=4
    $region2: #{gng_forward.1} parent=1 // loop_pre_header
      _
    $region3: #{gng_forward.1} parent=1 // loop_header
      %s45 = sphi 0, %s49
      %p46 = scmp.ge.s32.totalorder %s45, 4
      %s55 = sphi 0, %s57
      %s58 = sphi 0, %s55
      %s59 = sphi 0, %s58
      %s75 = sphi 0, %s59
      %s81 = sphi 0, %s83
      %s84 = sphi 0, %s81
      %s85 = sphi 0, %s84
      %s101 = sphi 0, %s85
      %s107 = sphi 0, %s109
      %s110 = sphi 0, %s107
      %s111 = sphi 0, %s110
      %s127 = sphi 0, %s111
      %s133 = sphi 0, %s135
      %s136 = sphi 0, %s133
      %s137 = sphi 0, %s136
      %s153 = sphi 0, %s137
      %s159 = sphi 0, %s161
      %s162 = sphi 0, %s159
      %s163 = sphi 0, %s162
      %s179 = sphi 0, %s163
      %s185 = sphi 0, %s187
      %s188 = sphi 0, %s185
      %s189 = sphi 0, %s188
      %s205 = sphi 0, %s189
      %s211 = sphi 0, %s213
      %s214 = sphi 0, %s211
      %s215 = sphi 0, %s214
      %s231 = sphi 0, %s215
      %s237 = sphi 0, %s239
      %s240 = sphi 0, %s237
      %s241 = sphi 0, %s240
      %s257 = sphi 0, %s241
      %s263 = sphi 0, %s265
      %s266 = sphi 0, %s263
      %s267 = sphi 0, %s266
      %s283 = sphi 0, %s267
      %s289 = sphi 0, %s291
      %s292 = sphi 0, %s289
      %s293 = sphi 0, %s292
      %s309 = sphi 0, %s293
      %s315 = sphi 0, %s317
      %s318 = sphi 0, %s315
      %s319 = sphi 0, %s318
      %s335 = sphi 0, %s319
      %s341 = sphi 0, %s343
      %s344 = sphi 0, %s341
      %s345 = sphi 0, %s344
      %s361 = sphi 0, %s345
      %s367 = sphi 0, %s369
      %s370 = sphi 0, %s367
      %s371 = sphi 0, %s370
      %s387 = sphi 0, %s371
      %s393 = sphi 0, %s395
      %s396 = sphi 0, %s393
      %s397 = sphi 0, %s396
      %s413 = sphi 0, %s397
      %s417 = sphi 0, %s417
      %s419 = sphi 0, %s417
      %s420 = sphi 0, %s419
      %s434 = sphi 0, %s420
      %s438 = sphi 0, %s438
      %s440 = sphi 0, %s438
      %s441 = sphi 0, %s440
      %s455 = sphi 0, %s441
      %s459 = sphi 0, %s459
      %s461 = sphi 0, %s459
      %s462 = sphi 0, %s461
      %s476 = sphi 0, %s462
      %s480 = sphi 0, %s480
      %s482 = sphi 0, %s480
      %s483 = sphi 0, %s482
      %s497 = sphi 0, %s483
      %s501 = sphi 0, %s501
      %s503 = sphi 0, %s501
      %s504 = sphi 0, %s503
      %s518 = sphi 0, %s504
      %s522 = sphi 0, %s522
      %s524 = sphi 0, %s522
      %s525 = sphi 0, %s524
      %s539 = sphi 0, %s525
      %s543 = sphi 0, %s543
      %s545 = sphi 0, %s543
      %s546 = sphi 0, %s545
      %s560 = sphi 0, %s546
    $region4: #{gng_forward.1} parent=1 // loop_header_branch
      %48 = sbr.rel (%p46) target = $region8
    $region5: #{gng_forward.1} parent=1 // loop_body
      %s50 = ssub.s32 %s45, 1
      %s51 = ssub.s32 %s45, 2
      %s52 = sadd.s32 %s45, 1
      %s53 = ssub.s32 %s45, %s52
      %p54 = scmp.eq.s32.totalorder %s53, 0
      %s56 = sadd.s32 %s55, 1
      %s57 = scalar_select %p54, %s55, %s56
      %p60 = pneg %p54
      %p61 = scmp.eq.s32.totalorder %s45, 1
      %p62 = por %p60, %p61
      %p63 = scmp.ne.s32.totalorder %s55, %s58
      %p64 = scmp.eq.s32.totalorder %s45, 0
      %p65 = por %p63, %p64
      %p66 = scmp.ne.s32.totalorder %s55, %s58
      %p67 = scmp.eq.s32.totalorder %s50, 1
      %p68 = por %p66, %p67
      %p69 = scmp.ne.s32.totalorder %s58, %s59
      %p70 = scmp.eq.s32.totalorder %s50, 0
      %p71 = por %p69, %p70
      %p72 = scmp.ne.s32.totalorder %s58, %s59
      %p73 = scmp.eq.s32.totalorder %s51, 1
      %p74 = por %p72, %p73
      %p76 = scmp.ne.s32.totalorder %s59, %s75
      %p77 = scmp.eq.s32.totalorder %s51, 0
      %p78 = por %p76, %p77
      %s79 = ssub.s32 %s45, %s52
      %p80 = scmp.eq.s32.totalorder %s79, 0
      %s82 = sadd.s32 %s81, 1
      %s83 = scalar_select %p80, %s81, %s82
      %p86 = pneg %p80
      %p87 = scmp.eq.s32.totalorder %s45, 1
      %p88 = por %p86, %p87
      %p89 = scmp.ne.s32.totalorder %s81, %s84
      %p90 = scmp.eq.s32.totalorder %s45, 0
      %p91 = por %p89, %p90
      %p92 = scmp.ne.s32.totalorder %s81, %s84
      %p93 = scmp.eq.s32.totalorder %s50, 1
      %p94 = por %p92, %p93
      %p95 = scmp.ne.s32.totalorder %s84, %s85
      %p96 = scmp.eq.s32.totalorder %s50, 0
      %p97 = por %p95, %p96
      %p98 = scmp.ne.s32.totalorder %s84, %s85
      %p99 = scmp.eq.s32.totalorder %s51, 1
      %p100 = por %p98, %p99
      %p102 = scmp.ne.s32.totalorder %s85, %s101
      %p103 = scmp.eq.s32.totalorder %s51, 0
      %p104 = por %p102, %p103
      %s105 = ssub.s32 %s45, %s52
      %p106 = scmp.eq.s32.totalorder %s105, 0
      %s108 = sadd.s32 %s107, 1
      %s109 = scalar_select %p106, %s107, %s108
      %p112 = pneg %p106
      %p113 = scmp.eq.s32.totalorder %s45, 1
      %p114 = por %p112, %p113
      %p115 = scmp.ne.s32.totalorder %s107, %s110
      %p116 = scmp.eq.s32.totalorder %s45, 0
      %p117 = por %p115, %p116
      %p118 = scmp.ne.s32.totalorder %s107, %s110
      %p119 = scmp.eq.s32.totalorder %s50, 1
      %p120 = por %p118, %p119
      %p121 = scmp.ne.s32.totalorder %s110, %s111
      %p122 = scmp.eq.s32.totalorder %s50, 0
      %p123 = por %p121, %p122
      %p124 = scmp.ne.s32.totalorder %s110, %s111
      %p125 = scmp.eq.s32.totalorder %s51, 1
      %p126 = por %p124, %p125
      %p128 = scmp.ne.s32.totalorder %s111, %s127
      %p129 = scmp.eq.s32.totalorder %s51, 0
      %p130 = por %p128, %p129
      %s131 = ssub.s32 %s45, %s52
      %p132 = scmp.eq.s32.totalorder %s131, 0
      %s134 = sadd.s32 %s133, 1
      %s135 = scalar_select %p132, %s133, %s134
      %p138 = pneg %p132
      %p139 = scmp.eq.s32.totalorder %s45, 1
      %p140 = por %p138, %p139
      %p141 = scmp.ne.s32.totalorder %s133, %s136
      %p142 = scmp.eq.s32.totalorder %s45, 0
      %p143 = por %p141, %p142
      %p144 = scmp.ne.s32.totalorder %s133, %s136
      %p145 = scmp.eq.s32.totalorder %s50, 1
      %p146 = por %p144, %p145
      %p147 = scmp.ne.s32.totalorder %s136, %s137
      %p148 = scmp.eq.s32.totalorder %s50, 0
      %p149 = por %p147, %p148
      %p150 = scmp.ne.s32.totalorder %s136, %s137
      %p151 = scmp.eq.s32.totalorder %s51, 1
      %p152 = por %p150, %p151
      %p154 = scmp.ne.s32.totalorder %s137, %s153
      %p155 = scmp.eq.s32.totalorder %s51, 0
      %p156 = por %p154, %p155
      %s157 = ssub.s32 %s45, %s52
      %p158 = scmp.eq.s32.totalorder %s157, 0
      %s160 = sadd.s32 %s159, 1
      %s161 = scalar_select %p158, %s159, %s160
      %p164 = pneg %p158
      %p165 = scmp.eq.s32.totalorder %s45, 1
      %p166 = por %p164, %p165
      %p167 = scmp.ne.s32.totalorder %s159, %s162
      %p168 = scmp.eq.s32.totalorder %s45, 0
      %p169 = por %p167, %p168
      %p170 = scmp.ne.s32.totalorder %s159, %s162
      %p171 = scmp.eq.s32.totalorder %s50, 1
      %p172 = por %p170, %p171
      %p173 = scmp.ne.s32.totalorder %s162, %s163
      %p174 = scmp.eq.s32.totalorder %s50, 0
      %p175 = por %p173, %p174
      %p176 = scmp.ne.s32.totalorder %s162, %s163
      %p177 = scmp.eq.s32.totalorder %s51, 1
      %p178 = por %p176, %p177
      %p180 = scmp.ne.s32.totalorder %s163, %s179
      %p181 = scmp.eq.s32.totalorder %s51, 0
      %p182 = por %p180, %p181
      %s183 = ssub.s32 %s45, %s52
      %p184 = scmp.eq.s32.totalorder %s183, 0
      %s186 = sadd.s32 %s185, 1
      %s187 = scalar_select %p184, %s185, %s186
      %p190 = pneg %p184
      %p191 = scmp.eq.s32.totalorder %s45, 1
      %p192 = por %p190, %p191
      %p193 = scmp.ne.s32.totalorder %s185, %s188
      %p194 = scmp.eq.s32.totalorder %s45, 0
      %p195 = por %p193, %p194
      %p196 = scmp.ne.s32.totalorder %s185, %s188
      %p197 = scmp.eq.s32.totalorder %s50, 1
      %p198 = por %p196, %p197
      %p199 = scmp.ne.s32.totalorder %s188, %s189
      %p200 = scmp.eq.s32.totalorder %s50, 0
      %p201 = por %p199, %p200
      %p202 = scmp.ne.s32.totalorder %s188, %s189
      %p203 = scmp.eq.s32.totalorder %s51, 1
      %p204 = por %p202, %p203
      %p206 = scmp.ne.s32.totalorder %s189, %s205
      %p207 = scmp.eq.s32.totalorder %s51, 0
      %p208 = por %p206, %p207
      %s209 = ssub.s32 %s45, %s52
      %p210 = scmp.eq.s32.totalorder %s209, 0
      %s212 = sadd.s32 %s211, 1
      %s213 = scalar_select %p210, %s211, %s212
      %p216 = pneg %p210
      %p217 = scmp.eq.s32.totalorder %s45, 1
      %p218 = por %p216, %p217
      %p219 = scmp.ne.s32.totalorder %s211, %s214
      %p220 = scmp.eq.s32.totalorder %s45, 0
      %p221 = por %p219, %p220
      %p222 = scmp.ne.s32.totalorder %s211, %s214
      %p223 = scmp.eq.s32.totalorder %s50, 1
      %p224 = por %p222, %p223
      %p225 = scmp.ne.s32.totalorder %s214, %s215
      %p226 = scmp.eq.s32.totalorder %s50, 0
      %p227 = por %p225, %p226
      %p228 = scmp.ne.s32.totalorder %s214, %s215
      %p229 = scmp.eq.s32.totalorder %s51, 1
      %p230 = por %p228, %p229
      %p232 = scmp.ne.s32.totalorder %s215, %s231
      %p233 = scmp.eq.s32.totalorder %s51, 0
      %p234 = por %p232, %p233
      %s235 = ssub.s32 %s45, %s52
      %p236 = scmp.eq.s32.totalorder %s235, 0
      %s238 = sadd.s32 %s237, 1
      %s239 = scalar_select %p236, %s237, %s238
      %p242 = pneg %p236
      %p243 = scmp.eq.s32.totalorder %s45, 1
      %p244 = por %p242, %p243
      %p245 = scmp.ne.s32.totalorder %s237, %s240
      %p246 = scmp.eq.s32.totalorder %s45, 0
      %p247 = por %p245, %p246
      %p248 = scmp.ne.s32.totalorder %s237, %s240
      %p249 = scmp.eq.s32.totalorder %s50, 1
      %p250 = por %p248, %p249
      %p251 = scmp.ne.s32.totalorder %s240, %s241
      %p252 = scmp.eq.s32.totalorder %s50, 0
      %p253 = por %p251, %p252
      %p254 = scmp.ne.s32.totalorder %s240, %s241
      %p255 = scmp.eq.s32.totalorder %s51, 1
      %p256 = por %p254, %p255
      %p258 = scmp.ne.s32.totalorder %s241, %s257
      %p259 = scmp.eq.s32.totalorder %s51, 0
      %p260 = por %p258, %p259
      %s261 = ssub.s32 %s45, %s52
      %p262 = scmp.eq.s32.totalorder %s261, 0
      %s264 = sadd.s32 %s263, 1
      %s265 = scalar_select %p262, %s263, %s264
      %p268 = pneg %p262
      %p269 = scmp.eq.s32.totalorder %s45, 1
      %p270 = por %p268, %p269
      %p271 = scmp.ne.s32.totalorder %s263, %s266
      %p272 = scmp.eq.s32.totalorder %s45, 0
      %p273 = por %p271, %p272
      %p274 = scmp.ne.s32.totalorder %s263, %s266
      %p275 = scmp.eq.s32.totalorder %s50, 1
      %p276 = por %p274, %p275
      %p277 = scmp.ne.s32.totalorder %s266, %s267
      %p278 = scmp.eq.s32.totalorder %s50, 0
      %p279 = por %p277, %p278
      %p280 = scmp.ne.s32.totalorder %s266, %s267
      %p281 = scmp.eq.s32.totalorder %s51, 1
      %p282 = por %p280, %p281
      %p284 = scmp.ne.s32.totalorder %s267, %s283
      %p285 = scmp.eq.s32.totalorder %s51, 0
      %p286 = por %p284, %p285
      %s287 = ssub.s32 %s45, %s52
      %p288 = scmp.eq.s32.totalorder %s287, 0
      %s290 = sadd.s32 %s289, 1
      %s291 = scalar_select %p288, %s289, %s290
      %p294 = pneg %p288
      %p295 = scmp.eq.s32.totalorder %s45, 1
      %p296 = por %p294, %p295
      %p297 = scmp.ne.s32.totalorder %s289, %s292
      %p298 = scmp.eq.s32.totalorder %s45, 0
      %p299 = por %p297, %p298
      %p300 = scmp.ne.s32.totalorder %s289, %s292
      %p301 = scmp.eq.s32.totalorder %s50, 1
      %p302 = por %p300, %p301
      %p303 = scmp.ne.s32.totalorder %s292, %s293
      %p304 = scmp.eq.s32.totalorder %s50, 0
      %p305 = por %p303, %p304
      %p306 = scmp.ne.s32.totalorder %s292, %s293
      %p307 = scmp.eq.s32.totalorder %s51, 1
      %p308 = por %p306, %p307
      %p310 = scmp.ne.s32.totalorder %s293, %s309
      %p311 = scmp.eq.s32.totalorder %s51, 0
      %p312 = por %p310, %p311
      %s313 = ssub.s32 %s45, %s52
      %p314 = scmp.eq.s32.totalorder %s313, 0
      %s316 = sadd.s32 %s315, 1
      %s317 = scalar_select %p314, %s315, %s316
      %p320 = pneg %p314
      %p321 = scmp.eq.s32.totalorder %s45, 1
      %p322 = por %p320, %p321
      %p323 = scmp.ne.s32.totalorder %s315, %s318
      %p324 = scmp.eq.s32.totalorder %s45, 0
      %p325 = por %p323, %p324
      %p326 = scmp.ne.s32.totalorder %s315, %s318
      %p327 = scmp.eq.s32.totalorder %s50, 1
      %p328 = por %p326, %p327
      %p329 = scmp.ne.s32.totalorder %s318, %s319
      %p330 = scmp.eq.s32.totalorder %s50, 0
      %p331 = por %p329, %p330
      %p332 = scmp.ne.s32.totalorder %s318, %s319
      %p333 = scmp.eq.s32.totalorder %s51, 1
      %p334 = por %p332, %p333
      %p336 = scmp.ne.s32.totalorder %s319, %s335
      %p337 = scmp.eq.s32.totalorder %s51, 0
      %p338 = por %p336, %p337
      %s339 = ssub.s32 %s45, %s52
      %p340 = scmp.eq.s32.totalorder %s339, 0
      %s342 = sadd.s32 %s341, 1
      %s343 = scalar_select %p340, %s341, %s342
      %p346 = pneg %p340
      %p347 = scmp.eq.s32.totalorder %s45, 1
      %p348 = por %p346, %p347
      %p349 = scmp.ne.s32.totalorder %s341, %s344
      %p350 = scmp.eq.s32.totalorder %s45, 0
      %p351 = por %p349, %p350
      %p352 = scmp.ne.s32.totalorder %s341, %s344
      %p353 = scmp.eq.s32.totalorder %s50, 1
      %p354 = por %p352, %p353
      %p355 = scmp.ne.s32.totalorder %s344, %s345
      %p356 = scmp.eq.s32.totalorder %s50, 0
      %p357 = por %p355, %p356
      %p358 = scmp.ne.s32.totalorder %s344, %s345
      %p359 = scmp.eq.s32.totalorder %s51, 1
      %p360 = por %p358, %p359
      %p362 = scmp.ne.s32.totalorder %s345, %s361
      %p363 = scmp.eq.s32.totalorder %s51, 0
      %p364 = por %p362, %p363
      %s365 = ssub.s32 %s45, %s52
      %p366 = scmp.eq.s32.totalorder %s365, 0
      %s368 = sadd.s32 %s367, 1
      %s369 = scalar_select %p366, %s367, %s368
      %p372 = pneg %p366
      %p373 = scmp.eq.s32.totalorder %s45, 1
      %p374 = por %p372, %p373
      %p375 = scmp.ne.s32.totalorder %s367, %s370
      %p376 = scmp.eq.s32.totalorder %s45, 0
      %p377 = por %p375, %p376
      %p378 = scmp.ne.s32.totalorder %s367, %s370
      %p379 = scmp.eq.s32.totalorder %s50, 1
      %p380 = por %p378, %p379
      %p381 = scmp.ne.s32.totalorder %s370, %s371
      %p382 = scmp.eq.s32.totalorder %s50, 0
      %p383 = por %p381, %p382
      %p384 = scmp.ne.s32.totalorder %s370, %s371
      %p385 = scmp.eq.s32.totalorder %s51, 1
      %p386 = por %p384, %p385
      %p388 = scmp.ne.s32.totalorder %s371, %s387
      %p389 = scmp.eq.s32.totalorder %s51, 0
      %p390 = por %p388, %p389
      %s391 = ssub.s32 %s45, %s52
      %p392 = scmp.eq.s32.totalorder %s391, 0
      %s394 = sadd.s32 %s393, 1
      %s395 = scalar_select %p392, %s393, %s394
      %p398 = pneg %p392
      %p399 = scmp.eq.s32.totalorder %s45, 1
      %p400 = por %p398, %p399
      %p401 = scmp.ne.s32.totalorder %s393, %s396
      %p402 = scmp.eq.s32.totalorder %s45, 0
      %p403 = por %p401, %p402
      %p404 = scmp.ne.s32.totalorder %s393, %s396
      %p405 = scmp.eq.s32.totalorder %s50, 1
      %p406 = por %p404, %p405
      %p407 = scmp.ne.s32.totalorder %s396, %s397
      %p408 = scmp.eq.s32.totalorder %s50, 0
      %p409 = por %p407, %p408
      %p410 = scmp.ne.s32.totalorder %s396, %s397
      %p411 = scmp.eq.s32.totalorder %s51, 1
      %p412 = por %p410, %p411
      %p414 = scmp.ne.s32.totalorder %s397, %s413
      %p415 = scmp.eq.s32.totalorder %s51, 0
      %p416 = por %p414, %p415
      %s418 = sadd.s32 %s417, 1
      %p421 = scmp.eq.s32.totalorder %s45, 1
      %p422 = scmp.ne.s32.totalorder %s417, %s419
      %p423 = scmp.eq.s32.totalorder %s45, 0
      %p424 = por %p422, %p423
      %p425 = scmp.ne.s32.totalorder %s417, %s419
      %p426 = scmp.eq.s32.totalorder %s50, 1
      %p427 = por %p425, %p426
      %p428 = scmp.ne.s32.totalorder %s419, %s420
      %p429 = scmp.eq.s32.totalorder %s50, 0
      %p430 = por %p428, %p429
      %p431 = scmp.ne.s32.totalorder %s419, %s420
      %p432 = scmp.eq.s32.totalorder %s51, 1
      %p433 = por %p431, %p432
      %p435 = scmp.ne.s32.totalorder %s420, %s434
      %p436 = scmp.eq.s32.totalorder %s51, 0
      %p437 = por %p435, %p436
      %s439 = sadd.s32 %s438, 1
      %p442 = scmp.eq.s32.totalorder %s45, 1
      %p443 = scmp.ne.s32.totalorder %s438, %s440
      %p444 = scmp.eq.s32.totalorder %s45, 0
      %p445 = por %p443, %p444
      %p446 = scmp.ne.s32.totalorder %s438, %s440
      %p447 = scmp.eq.s32.totalorder %s50, 1
      %p448 = por %p446, %p447
      %p449 = scmp.ne.s32.totalorder %s440, %s441
      %p450 = scmp.eq.s32.totalorder %s50, 0
      %p451 = por %p449, %p450
      %p452 = scmp.ne.s32.totalorder %s440, %s441
      %p453 = scmp.eq.s32.totalorder %s51, 1
      %p454 = por %p452, %p453
      %p456 = scmp.ne.s32.totalorder %s441, %s455
      %p457 = scmp.eq.s32.totalorder %s51, 0
      %p458 = por %p456, %p457
      %s460 = sadd.s32 %s459, 1
      %p463 = scmp.eq.s32.totalorder %s45, 1
      %p464 = scmp.ne.s32.totalorder %s459, %s461
      %p465 = scmp.eq.s32.totalorder %s45, 0
      %p466 = por %p464, %p465
      %p467 = scmp.ne.s32.totalorder %s459, %s461
      %p468 = scmp.eq.s32.totalorder %s50, 1
      %p469 = por %p467, %p468
      %p470 = scmp.ne.s32.totalorder %s461, %s462
      %p471 = scmp.eq.s32.totalorder %s50, 0
      %p472 = por %p470, %p471
      %p473 = scmp.ne.s32.totalorder %s461, %s462
      %p474 = scmp.eq.s32.totalorder %s51, 1
      %p475 = por %p473, %p474
      %p477 = scmp.ne.s32.totalorder %s462, %s476
      %p478 = scmp.eq.s32.totalorder %s51, 0
      %p479 = por %p477, %p478
      %s481 = sadd.s32 %s480, 1
      %p484 = scmp.eq.s32.totalorder %s45, 1
      %p485 = scmp.ne.s32.totalorder %s480, %s482
      %p486 = scmp.eq.s32.totalorder %s45, 0
      %p487 = por %p485, %p486
      %p488 = scmp.ne.s32.totalorder %s480, %s482
      %p489 = scmp.eq.s32.totalorder %s50, 1
      %p490 = por %p488, %p489
      %p491 = scmp.ne.s32.totalorder %s482, %s483
      %p492 = scmp.eq.s32.totalorder %s50, 0
      %p493 = por %p491, %p492
      %p494 = scmp.ne.s32.totalorder %s482, %s483
      %p495 = scmp.eq.s32.totalorder %s51, 1
      %p496 = por %p494, %p495
      %p498 = scmp.ne.s32.totalorder %s483, %s497
      %p499 = scmp.eq.s32.totalorder %s51, 0
      %p500 = por %p498, %p499
      %s502 = sadd.s32 %s501, 1
      %p505 = scmp.eq.s32.totalorder %s45, 1
      %p506 = scmp.ne.s32.totalorder %s501, %s503
      %p507 = scmp.eq.s32.totalorder %s45, 0
      %p508 = por %p506, %p507
      %p509 = scmp.ne.s32.totalorder %s501, %s503
      %p510 = scmp.eq.s32.totalorder %s50, 1
      %p511 = por %p509, %p510
      %p512 = scmp.ne.s32.totalorder %s503, %s504
      %p513 = scmp.eq.s32.totalorder %s50, 0
      %p514 = por %p512, %p513
      %p515 = scmp.ne.s32.totalorder %s503, %s504
      %p516 = scmp.eq.s32.totalorder %s51, 1
      %p517 = por %p515, %p516
      %p519 = scmp.ne.s32.totalorder %s504, %s518
      %p520 = scmp.eq.s32.totalorder %s51, 0
      %p521 = por %p519, %p520
      %s523 = sadd.s32 %s522, 1
      %p526 = scmp.eq.s32.totalorder %s45, 1
      %p527 = scmp.ne.s32.totalorder %s522, %s524
      %p528 = scmp.eq.s32.totalorder %s45, 0
      %p529 = por %p527, %p528
      %p530 = scmp.ne.s32.totalorder %s522, %s524
      %p531 = scmp.eq.s32.totalorder %s50, 1
      %p532 = por %p530, %p531
      %p533 = scmp.ne.s32.totalorder %s524, %s525
      %p534 = scmp.eq.s32.totalorder %s50, 0
      %p535 = por %p533, %p534
      %p536 = scmp.ne.s32.totalorder %s524, %s525
      %p537 = scmp.eq.s32.totalorder %s51, 1
      %p538 = por %p536, %p537
      %p540 = scmp.ne.s32.totalorder %s525, %s539
      %p541 = scmp.eq.s32.totalorder %s51, 0
      %p542 = por %p540, %p541
      %s544 = sadd.s32 %s543, 1
      %p547 = scmp.eq.s32.totalorder %s45, 1
      %p548 = scmp.ne.s32.totalorder %s543, %s545
      %p549 = scmp.eq.s32.totalorder %s45, 0
      %p550 = por %p548, %p549
      %p551 = scmp.ne.s32.totalorder %s543, %s545
      %p552 = scmp.eq.s32.totalorder %s50, 1
      %p553 = por %p551, %p552
      %p554 = scmp.ne.s32.totalorder %s545, %s546
      %p555 = scmp.eq.s32.totalorder %s50, 0
      %p556 = por %p554, %p555
      %p557 = scmp.ne.s32.totalorder %s545, %s546
      %p558 = scmp.eq.s32.totalorder %s51, 1
      %p559 = por %p557, %p558
      %p561 = scmp.ne.s32.totalorder %s546, %s560
      %p562 = scmp.eq.s32.totalorder %s51, 0
      %p563 = por %p561, %p562
      %p564 = scmp.le.s32.totalorder 1, %s45
      %p565 = scmp.lt.s32.totalorder %s45, 3
      %p566 = pnand %p564, %p565
      %p567 = pneg %p566
      // Predicated region
      $region9: #{gng_forward.1} parent=5 // pred_check
        _
      $region10: #{gng_forward.1} parent=5 // pred_check_branch
        %569 = sbr.rel (%p566) target = $region12
      $region11: #{gng_forward.1} parent=5 // pred_region
        %s570 = ssub.s32 %s45, 1
        // Predicated region
        $region13: #{gng_forward.1} parent=11 // pred_check
          %p571 = pneg %p430
        $region14: #{gng_forward.1} parent=11 // pred_check_branch
          %573 = sbr.rel (%p571) target = $region16
        $region15: #{gng_forward.1} parent=11 // pred_region
          %s575 = ssub.s32 16384, 16384
          %576 = vsyncadd [#allocation18], %s575
          %s577 = sshll.u32 [#allocation19], 4
          %s578 = int_to_ptr.vmem [resolvable:$true] %s577
          %583 = dma.hbm_to_vmem [thread:$0]  %s14, 16384, %s578, [#allocation18], 512, 512, 32
        $region16: #{gng_forward.1} parent=11 // pred_fallthru
          _
        // Predicated region
        $region17: #{gng_forward.1} parent=11 // pred_check
          %p584 = pneg %p451
        $region18: #{gng_forward.1} parent=11 // pred_check_branch
          %586 = sbr.rel (%p584) target = $region20
        $region19: #{gng_forward.1} parent=11 // pred_region
          _
        $region20: #{gng_forward.1} parent=11 // pred_fallthru
          _
        // Predicated region
        $region21: #{gng_forward.1} parent=11 // pred_check
          %p587 = pneg %p472
        $region22: #{gng_forward.1} parent=11 // pred_check_branch
          %589 = sbr.rel (%p587) target = $region24
        $region23: #{gng_forward.1} parent=11 // pred_region
          %s591 = ssub.s32 32768, 32768
          %592 = vsyncadd [#allocation21], %s591
          %s593 = sshll.u32 [#allocation20], 4
          %s594 = int_to_ptr.vmem [resolvable:$true] %s593
          %599 = dma.hbm_to_vmem [thread:$0]  %s16, 32768, %s594, [#allocation21], 256, 256, 16
        $region24: #{gng_forward.1} parent=11 // pred_fallthru
          _
        // Predicated region
        $region25: #{gng_forward.1} parent=11 // pred_check
          %p600 = pneg %p493
        $region26: #{gng_forward.1} parent=11 // pred_check_branch
          %602 = sbr.rel (%p600) target = $region28
        $region27: #{gng_forward.1} parent=11 // pred_region
          _
        $region28: #{gng_forward.1} parent=11 // pred_fallthru
          _
        // Predicated region
        $region29: #{gng_forward.1} parent=11 // pred_check
          %p603 = pneg %p514
        $region30: #{gng_forward.1} parent=11 // pred_check_branch
          %605 = sbr.rel (%p603) target = $region32
        $region31: #{gng_forward.1} parent=11 // pred_region
          %s607 = ssub.s32 4096, 4096
          %608 = vsyncadd [#allocation21], %s607
          %s609 = sshll.u32 [#allocation22], 4
          %s610 = int_to_ptr.vmem [resolvable:$true] %s609
          %615 = dma.hbm_to_vmem [thread:$0]  %s18, 4096, %s610, [#allocation21], 64, 64, 4
        $region32: #{gng_forward.1} parent=11 // pred_fallthru
          _
        // Predicated region
        $region33: #{gng_forward.1} parent=11 // pred_check
          %p616 = pneg %p535
        $region34: #{gng_forward.1} parent=11 // pred_check_branch
          %618 = sbr.rel (%p616) target = $region36
        $region35: #{gng_forward.1} parent=11 // pred_region
          _
        $region36: #{gng_forward.1} parent=11 // pred_fallthru
          _
      $region12: #{gng_forward.1} parent=5 // pred_fallthru
        _
      %p619 = scmp.lt.s32.totalorder %s45, 2
      // Predicated region
      $region37: #{gng_forward.1} parent=5 // pred_check
        %p620 = pneg %p619
      $region38: #{gng_forward.1} parent=5 // pred_check_branch
        %622 = sbr.rel (%p620) target = $region40
      $region39: #{gng_forward.1} parent=5 // pred_region
        // Predicated region
        $region41: #{gng_forward.1} parent=39 // pred_check
          %p623 = pneg %p65
        $region42: #{gng_forward.1} parent=39 // pred_check_branch
          %625 = sbr.rel (%p623) target = $region44
        $region43: #{gng_forward.1} parent=39 // pred_region
          %s626 = sand.u32 %s55, 1
          %s627 = scalar_lea.sflag [#allocation4], %s626
          %s628 = sand.u32 %s55, 1
          %s629 = smul.addr %s628, 64
          %s630 = scalar_lea.vmem [#allocation3], %s629
          %s632 = ssub.s32 1024, 1024
          %633 = vsyncadd %s627, %s632
          %s634 = smul.addr %s45, 16
          %s635 = smul.addr %s634, 64
          %s636 = scalar_lea.hbm %s0, %s635
          %s637 = sshll.u32 %s630, 4
          %s638 = int_to_ptr.vmem [resolvable:$true] %s637
          %643 = dma.hbm_to_vmem [thread:$0]  %s636, 1024, %s638, %s627, 64, 64, 4
        $region44: #{gng_forward.1} parent=39 // pred_fallthru
          _
        // Predicated region
        $region45: #{gng_forward.1} parent=39 // pred_check
          %p644 = pneg %p91
        $region46: #{gng_forward.1} parent=39 // pred_check_branch
          %646 = sbr.rel (%p644) target = $region48
        $region47: #{gng_forward.1} parent=39 // pred_region
          %s647 = sand.u32 %s45, 1
          %s648 = scalar_lea.sflag [#allocation6], %s647
          %s649 = sand.u32 %s81, 1
          %s650 = smul.addr %s649, 64
          %s651 = scalar_lea.vmem [#allocation5], %s650
          %s653 = ssub.s32 1024, 1024
          %654 = vsyncadd %s648, %s653
          %s655 = smul.addr %s45, 16
          %s656 = smul.addr %s655, 64
          %s657 = scalar_lea.hbm %s1, %s656
          %s658 = sshll.u32 %s651, 4
          %s659 = int_to_ptr.vmem [resolvable:$true] %s658
          %664 = dma.hbm_to_vmem [thread:$0]  %s657, 1024, %s659, %s648, 64, 64, 4
        $region48: #{gng_forward.1} parent=39 // pred_fallthru
          _
        // Predicated region
        $region49: #{gng_forward.1} parent=39 // pred_check
          %p665 = pneg %p117
        $region50: #{gng_forward.1} parent=39 // pred_check_branch
          %667 = sbr.rel (%p665) target = $region52
        $region51: #{gng_forward.1} parent=39 // pred_region
          %p668 = scmp.lt.s32.totalorder %s45, 1
          %s669 = scalar_select %p668, %s45, 1
          %s670 = smul.addr %s669, 2
          %s671 = smul.addr %s670, 4
          %s672 = scalar_lea.vmem %s2, %s671
        $region52: #{gng_forward.1} parent=39 // pred_fallthru
          _
        // Predicated region
        $region53: #{gng_forward.1} parent=39 // pred_check
          %p673 = pneg %p143
        $region54: #{gng_forward.1} parent=39 // pred_check_branch
          %675 = sbr.rel (%p673) target = $region56
        $region55: #{gng_forward.1} parent=39 // pred_region
          %p676 = scmp.lt.s32.totalorder %s45, 1
          %s677 = scalar_select %p676, %s45, 1
          %s678 = smul.addr %s677, 2
          %s679 = smul.addr %s678, 8
          %s680 = scalar_lea.vmem %s3, %s679
        $region56: #{gng_forward.1} parent=39 // pred_fallthru
          _
        // Predicated region
        $region57: #{gng_forward.1} parent=39 // pred_check
          %p681 = pneg %p169
        $region58: #{gng_forward.1} parent=39 // pred_check_branch
          %683 = sbr.rel (%p681) target = $region60
        $region59: #{gng_forward.1} parent=39 // pred_region
          %s684 = sand.u32 %s45, 1
          %s685 = scalar_lea.sflag [#allocation6], %s684
          %s686 = sand.u32 %s159, 1
          %s687 = smul.addr %s686, 64
          %s688 = scalar_lea.vmem [#allocation7], %s687
          %s690 = ssub.s32 1024, 1024
          %691 = vsyncadd %s685, %s690
          %s692 = smul.addr %s45, 16
          %s693 = smul.addr %s692, 64
          %s694 = scalar_lea.hbm %s4, %s693
          %s695 = sshll.u32 %s688, 4
          %s696 = int_to_ptr.vmem [resolvable:$true] %s695
          %701 = dma.hbm_to_vmem [thread:$0]  %s694, 1024, %s696, %s685, 64, 64, 4
        $region60: #{gng_forward.1} parent=39 // pred_fallthru
          _
        // Predicated region
        $region61: #{gng_forward.1} parent=39 // pred_check
          %p702 = pneg %p195
        $region62: #{gng_forward.1} parent=39 // pred_check_branch
          %704 = sbr.rel (%p702) target = $region64
        $region63: #{gng_forward.1} parent=39 // pred_region
          %s705 = sand.u32 %s45, 1
          %s706 = scalar_lea.sflag [#allocation9], %s705
          %s707 = sand.u32 %s185, 1
          %s708 = scalar_lea.vmem [#allocation8], %s707
          %s710 = ssub.s32 16, 16
          %711 = vsyncadd %s706, %s710
          %s712 = smul.addr %s45, 16
          %s713 = scalar_lea.hbm %s5, %s712
          %s715 = sshll.u32 %s708, 4
          %s716 = int_to_ptr.vmem [resolvable:$true] %s715
          %718 = dma.hbm_to_vmem [thread:$0]  %s713, 16, %s716, %s706
        $region64: #{gng_forward.1} parent=39 // pred_fallthru
          _
        // Predicated region
        $region65: #{gng_forward.1} parent=39 // pred_check
          %p719 = pneg %p221
        $region66: #{gng_forward.1} parent=39 // pred_check_branch
          %721 = sbr.rel (%p719) target = $region68
        $region67: #{gng_forward.1} parent=39 // pred_region
          %s722 = sand.u32 %s45, 1
          %s723 = scalar_lea.sflag [#allocation9], %s722
          %s724 = sand.u32 %s211, 1
          %s725 = smul.addr %s724, 64
          %s726 = scalar_lea.vmem [#allocation10], %s725
          %s728 = ssub.s32 1024, 1024
          %729 = vsyncadd %s723, %s728
          %s730 = smul.addr %s45, 16
          %s731 = smul.addr %s730, 64
          %s732 = scalar_lea.hbm %s6, %s731
          %s733 = sshll.u32 %s726, 4
          %s734 = int_to_ptr.vmem [resolvable:$true] %s733
          %739 = dma.hbm_to_vmem [thread:$0]  %s732, 1024, %s734, %s723, 64, 64, 4
        $region68: #{gng_forward.1} parent=39 // pred_fallthru
          _
        // Predicated region
        $region69: #{gng_forward.1} parent=39 // pred_check
          %p740 = pneg %p247
        $region70: #{gng_forward.1} parent=39 // pred_check_branch
          %742 = sbr.rel (%p740) target = $region72
        $region71: #{gng_forward.1} parent=39 // pred_region
          %s743 = sand.u32 %s45, 1
          %s744 = scalar_lea.sflag [#allocation12], %s743
          %s745 = sand.u32 %s237, 1
          %s746 = scalar_lea.vmem [#allocation11], %s745
          %s748 = ssub.s32 16, 16
          %749 = vsyncadd %s744, %s748
          %s750 = smul.addr %s45, 16
          %s751 = scalar_lea.hbm %s7, %s750
          %s753 = sshll.u32 %s746, 4
          %s754 = int_to_ptr.vmem [resolvable:$true] %s753
          %756 = dma.hbm_to_vmem [thread:$0]  %s751, 16, %s754, %s744
        $region72: #{gng_forward.1} parent=39 // pred_fallthru
          _
        // Predicated region
        $region73: #{gng_forward.1} parent=39 // pred_check
          %p757 = pneg %p273
        $region74: #{gng_forward.1} parent=39 // pred_check_branch
          %759 = sbr.rel (%p757) target = $region76
        $region75: #{gng_forward.1} parent=39 // pred_region
          %s760 = sand.u32 %s45, 1
          %s761 = scalar_lea.sflag [#allocation12], %s760
          %s762 = sand.u32 %s263, 1
          %s763 = smul.addr %s762, 128
          %s764 = scalar_lea.vmem [#allocation13], %s763
          %s766 = ssub.s32 2048, 2048
          %767 = vsyncadd %s761, %s766
          %s768 = smul.addr %s45, 32
          %s769 = smul.addr %s768, 64
          %s770 = scalar_lea.hbm %s8, %s769
          %s771 = sshll.u32 %s764, 4
          %s772 = int_to_ptr.vmem [resolvable:$true] %s771
          %777 = dma.hbm_to_vmem [thread:$0]  %s770, 2048, %s772, %s761, 128, 128, 8
        $region76: #{gng_forward.1} parent=39 // pred_fallthru
          _
        // Predicated region
        $region77: #{gng_forward.1} parent=39 // pred_check
          %p778 = pneg %p299
        $region78: #{gng_forward.1} parent=39 // pred_check_branch
          %780 = sbr.rel (%p778) target = $region80
        $region79: #{gng_forward.1} parent=39 // pred_region
          %s781 = sand.u32 %s45, 1
          %s782 = scalar_lea.sflag [#allocation15], %s781
          %s783 = sand.u32 %s289, 1
          %s784 = smul.addr %s783, 2
          %s785 = scalar_lea.vmem [#allocation14], %s784
          %s787 = ssub.s32 32, 32
          %788 = vsyncadd %s782, %s787
          %s789 = smul.addr %s45, 2
          %s790 = smul.addr %s789, 16
          %s791 = scalar_lea.hbm %s9, %s790
          %s793 = sshll.u32 %s785, 4
          %s794 = int_to_ptr.vmem [resolvable:$true] %s793
          %796 = dma.hbm_to_vmem [thread:$0]  %s791, 32, %s794, %s782
        $region80: #{gng_forward.1} parent=39 // pred_fallthru
          _
        // Predicated region
        $region81: #{gng_forward.1} parent=39 // pred_check
          %p797 = pneg %p325
        $region82: #{gng_forward.1} parent=39 // pred_check_branch
          %799 = sbr.rel (%p797) target = $region84
        $region83: #{gng_forward.1} parent=39 // pred_region
          %s800 = sand.u32 %s45, 1
          %s801 = scalar_lea.sflag [#allocation15], %s800
          %s802 = sand.u32 %s315, 1
          %s803 = smul.addr %s802, 1024
          %s804 = scalar_lea.vmem [#allocation16], %s803
          %s806 = ssub.s32 16384, 16384
          %807 = vsyncadd %s801, %s806
          %s808 = smul.addr %s45, 256
          %s809 = smul.addr %s808, 64
          %s810 = scalar_lea.hbm %s10, %s809
          %s811 = sshll.u32 %s804, 4
          %s812 = int_to_ptr.vmem [resolvable:$true] %s811
          %817 = dma.hbm_to_vmem [thread:$0]  %s810, 16384, %s812, %s801, 512, 512, 32
        $region84: #{gng_forward.1} parent=39 // pred_fallthru
          _
        // Predicated region
        $region85: #{gng_forward.1} parent=39 // pred_check
          %p818 = pneg %p351
        $region86: #{gng_forward.1} parent=39 // pred_check_branch
          %820 = sbr.rel (%p818) target = $region88
        $region87: #{gng_forward.1} parent=39 // pred_region
          %p821 = scmp.lt.s32.totalorder %s45, 1
          %s822 = scalar_select %p821, %s45, 1
          %s823 = smul.addr %s822, 8
          %s824 = scalar_lea.vmem %s11, %s823
        $region88: #{gng_forward.1} parent=39 // pred_fallthru
          _
        // Predicated region
        $region89: #{gng_forward.1} parent=39 // pred_check
          %p825 = pneg %p377
        $region90: #{gng_forward.1} parent=39 // pred_check_branch
          %827 = sbr.rel (%p825) target = $region92
        $region91: #{gng_forward.1} parent=39 // pred_region
          %s828 = sand.u32 %s45, 1
          %s829 = scalar_lea.sflag [#allocation18], %s828
          %s830 = sand.u32 %s367, 1
          %s831 = smul.addr %s830, 512
          %s832 = scalar_lea.vmem [#allocation17], %s831
          %s834 = ssub.s32 8192, 8192
          %835 = vsyncadd %s829, %s834
          %s836 = smul.addr %s45, 128
          %s837 = smul.addr %s836, 64
          %s838 = scalar_lea.hbm %s12, %s837
          %s839 = sshll.u32 %s832, 4
          %s840 = int_to_ptr.vmem [resolvable:$true] %s839
          %845 = dma.hbm_to_vmem [thread:$0]  %s838, 8192, %s840, %s829, 64, 64, 4
        $region92: #{gng_forward.1} parent=39 // pred_fallthru
          _
        // Predicated region
        $region93: #{gng_forward.1} parent=39 // pred_check
          %p846 = pneg %p403
        $region94: #{gng_forward.1} parent=39 // pred_check_branch
          %848 = sbr.rel (%p846) target = $region96
        $region95: #{gng_forward.1} parent=39 // pred_region
          %p849 = scmp.lt.s32.totalorder %s45, 1
          %s850 = scalar_select %p849, %s45, 1
          %s851 = scalar_lea.vmem %s13, %s850
        $region96: #{gng_forward.1} parent=39 // pred_fallthru
          _
      $region40: #{gng_forward.1} parent=5 // pred_fallthru
        _
      %p852 = scmp.le.s32.totalorder 1, %s45
      %p853 = scmp.lt.s32.totalorder %s45, 3
      %p854 = pnand %p852, %p853
      %p855 = pneg %p854
      // Predicated region
      $region97: #{gng_forward.1} parent=5 // pred_check
        _
      $region98: #{gng_forward.1} parent=5 // pred_check_branch
        %857 = sbr.rel (%p854) target = $region100
      $region99: #{gng_forward.1} parent=5 // pred_region
        %s858 = ssub.s32 %s45, 1
        %s859 = sand.u32 %s58, 1
        %s860 = scalar_lea.sflag [#allocation4], %s859
        %s861 = sand.u32 %s58, 1
        %s862 = smul.addr %s861, 64
        %s863 = scalar_lea.vmem [#allocation3], %s862
        // Predicated region
        $region101: #{gng_forward.1} parent=99 // pred_check
          %p864 = pneg %p71
        $region102: #{gng_forward.1} parent=99 // pred_check_branch
          %866 = sbr.rel (%p864) target = $region104
        $region103: #{gng_forward.1} parent=99 // pred_region
          %867 = dma.done %s860, 1024
        $region104: #{gng_forward.1} parent=99 // pred_fallthru
          _
        %s868 = sand.u32 %s50, 1
        %s869 = scalar_lea.sflag [#allocation6], %s868
        %s870 = sand.u32 %s84, 1
        %s871 = smul.addr %s870, 64
        %s872 = scalar_lea.vmem [#allocation5], %s871
        // Predicated region
        $region105: #{gng_forward.1} parent=99 // pred_check
          %p873 = pneg %p97
        $region106: #{gng_forward.1} parent=99 // pred_check_branch
          %875 = sbr.rel (%p873) target = $region108
        $region107: #{gng_forward.1} parent=99 // pred_region
          %876 = dma.done %s869, 1024
        $region108: #{gng_forward.1} parent=99 // pred_fallthru
          _
        %s877 = sand.u32 %s50, 1
        %s878 = scalar_lea.sflag [#allocation6], %s877
        %s879 = sand.u32 %s162, 1
        %s880 = smul.addr %s879, 64
        %s881 = scalar_lea.vmem [#allocation7], %s880
        // Predicated region
        $region109: #{gng_forward.1} parent=99 // pred_check
          %p882 = pneg %p175
        $region110: #{gng_forward.1} parent=99 // pred_check_branch
          %884 = sbr.rel (%p882) target = $region112
        $region111: #{gng_forward.1} parent=99 // pred_region
          %885 = dma.done %s878, 1024
        $region112: #{gng_forward.1} parent=99 // pred_fallthru
          _
        %s886 = sand.u32 %s50, 1
        %s887 = scalar_lea.sflag [#allocation9], %s886
        %s888 = sand.u32 %s188, 1
        %s889 = scalar_lea.vmem [#allocation8], %s888
        // Predicated region
        $region113: #{gng_forward.1} parent=99 // pred_check
          %p890 = pneg %p201
        $region114: #{gng_forward.1} parent=99 // pred_check_branch
          %892 = sbr.rel (%p890) target = $region116
        $region115: #{gng_forward.1} parent=99 // pred_region
          %893 = dma.done %s887, 16
        $region116: #{gng_forward.1} parent=99 // pred_fallthru
          _
        %s894 = sand.u32 %s50, 1
        %s895 = scalar_lea.sflag [#allocation9], %s894
        %s896 = sand.u32 %s214, 1
        %s897 = smul.addr %s896, 64
        %s898 = scalar_lea.vmem [#allocation10], %s897
        // Predicated region
        $region117: #{gng_forward.1} parent=99 // pred_check
          %p899 = pneg %p227
        $region118: #{gng_forward.1} parent=99 // pred_check_branch
          %901 = sbr.rel (%p899) target = $region120
        $region119: #{gng_forward.1} parent=99 // pred_region
          %902 = dma.done %s895, 1024
        $region120: #{gng_forward.1} parent=99 // pred_fallthru
          _
        %s903 = sand.u32 %s50, 1
        %s904 = scalar_lea.sflag [#allocation12], %s903
        %s905 = sand.u32 %s240, 1
        %s906 = scalar_lea.vmem [#allocation11], %s905
        // Predicated region
        $region121: #{gng_forward.1} parent=99 // pred_check
          %p907 = pneg %p253
        $region122: #{gng_forward.1} parent=99 // pred_check_branch
          %909 = sbr.rel (%p907) target = $region124
        $region123: #{gng_forward.1} parent=99 // pred_region
          %910 = dma.done %s904, 16
        $region124: #{gng_forward.1} parent=99 // pred_fallthru
          _
        %s911 = sand.u32 %s50, 1
        %s912 = scalar_lea.sflag [#allocation12], %s911
        %s913 = sand.u32 %s266, 1
        %s914 = smul.addr %s913, 128
        %s915 = scalar_lea.vmem [#allocation13], %s914
        // Predicated region
        $region125: #{gng_forward.1} parent=99 // pred_check
          %p916 = pneg %p279
        $region126: #{gng_forward.1} parent=99 // pred_check_branch
          %918 = sbr.rel (%p916) target = $region128
        $region127: #{gng_forward.1} parent=99 // pred_region
          %919 = dma.done %s912, 2048
        $region128: #{gng_forward.1} parent=99 // pred_fallthru
          _
        %s920 = sand.u32 %s50, 1
        %s921 = scalar_lea.sflag [#allocation15], %s920
        %s922 = sand.u32 %s292, 1
        %s923 = smul.addr %s922, 2
        %s924 = scalar_lea.vmem [#allocation14], %s923
        // Predicated region
        $region129: #{gng_forward.1} parent=99 // pred_check
          %p925 = pneg %p305
        $region130: #{gng_forward.1} parent=99 // pred_check_branch
          %927 = sbr.rel (%p925) target = $region132
        $region131: #{gng_forward.1} parent=99 // pred_region
          %928 = dma.done %s921, 32
        $region132: #{gng_forward.1} parent=99 // pred_fallthru
          _
        %s929 = sand.u32 %s50, 1
        %s930 = scalar_lea.sflag [#allocation15], %s929
        %s931 = sand.u32 %s318, 1
        %s932 = smul.addr %s931, 1024
        %s933 = scalar_lea.vmem [#allocation16], %s932
        // Predicated region
        $region133: #{gng_forward.1} parent=99 // pred_check
          %p934 = pneg %p331
        $region134: #{gng_forward.1} parent=99 // pred_check_branch
          %936 = sbr.rel (%p934) target = $region136
        $region135: #{gng_forward.1} parent=99 // pred_region
          %937 = dma.done %s930, 16384
        $region136: #{gng_forward.1} parent=99 // pred_fallthru
          _
        %s938 = sand.u32 %s50, 1
        %s939 = scalar_lea.sflag [#allocation18], %s938
        %s940 = sand.u32 %s370, 1
        %s941 = smul.addr %s940, 512
        %s942 = scalar_lea.vmem [#allocation17], %s941
        // Predicated region
        $region137: #{gng_forward.1} parent=99 // pred_check
          %p943 = pneg %p383
        $region138: #{gng_forward.1} parent=99 // pred_check_branch
          %945 = sbr.rel (%p943) target = $region140
        $region139: #{gng_forward.1} parent=99 // pred_region
          %946 = dma.done %s939, 8192
        $region140: #{gng_forward.1} parent=99 // pred_fallthru
          _
        // Predicated region
        $region141: #{gng_forward.1} parent=99 // pred_check
          %p947 = pneg %p430
        $region142: #{gng_forward.1} parent=99 // pred_check_branch
          %949 = sbr.rel (%p947) target = $region144
        $region143: #{gng_forward.1} parent=99 // pred_region
          %950 = dma.done [#allocation18], 16384
        $region144: #{gng_forward.1} parent=99 // pred_fallthru
          _
        // Predicated region
        $region145: #{gng_forward.1} parent=99 // pred_check
          %p951 = pneg %p472
        $region146: #{gng_forward.1} parent=99 // pred_check_branch
          %953 = sbr.rel (%p951) target = $region148
        $region147: #{gng_forward.1} parent=99 // pred_region
          %954 = dma.done [#allocation21], 32768
        $region148: #{gng_forward.1} parent=99 // pred_fallthru
          _
        // Predicated region
        $region149: #{gng_forward.1} parent=99 // pred_check
          %p955 = pneg %p514
        $region150: #{gng_forward.1} parent=99 // pred_check_branch
          %957 = sbr.rel (%p955) target = $region152
        $region151: #{gng_forward.1} parent=99 // pred_region
          %958 = dma.done [#allocation21], 4096
        $region152: #{gng_forward.1} parent=99 // pred_fallthru
          _
        %s959 = sand.u32 %s58, 1
        %s960 = scalar_lea.sflag [#allocation4], %s959
        %s961 = sand.u32 %s58, 1
        %s962 = smul.addr %s961, 64
        %s963 = scalar_lea.vmem [#allocation3], %s962
        %p964 = pneg %p71
        %p965 = pneg %p68
        %s966 = sand.u32 %s50, 1
        %s967 = scalar_lea.sflag [#allocation6], %s966
        %s968 = sand.u32 %s84, 1
        %s969 = smul.addr %s968, 64
        %s970 = scalar_lea.vmem [#allocation5], %s969
        %p971 = pneg %p97
        %p972 = pneg %p94
        %p973 = scmp.lt.s32.totalorder %s50, 1
        %s974 = scalar_select %p973, %s50, 1
        %s975 = smul.addr %s974, 2
        %s976 = smul.addr %s975, 4
        %s977 = scalar_lea.vmem %s2, %s976
        %p978 = pneg %p123
        %p979 = pneg %p120
        %p980 = scmp.lt.s32.totalorder %s50, 1
        %s981 = scalar_select %p980, %s50, 1
        %s982 = smul.addr %s981, 2
        %s983 = smul.addr %s982, 8
        %s984 = scalar_lea.vmem %s3, %s983
        %p985 = pneg %p149
        %p986 = pneg %p146
        %s987 = sand.u32 %s50, 1
        %s988 = scalar_lea.sflag [#allocation6], %s987
        %s989 = sand.u32 %s162, 1
        %s990 = smul.addr %s989, 64
        %s991 = scalar_lea.vmem [#allocation7], %s990
        %p992 = pneg %p175
        %p993 = pneg %p172
        %s994 = sand.u32 %s50, 1
        %s995 = scalar_lea.sflag [#allocation9], %s994
        %s996 = sand.u32 %s188, 1
        %s997 = scalar_lea.vmem [#allocation8], %s996
        %p998 = pneg %p201
        %p999 = pneg %p198
        %s1000 = sand.u32 %s50, 1
        %s1001 = scalar_lea.sflag [#allocation9], %s1000
        %s1002 = sand.u32 %s214, 1
        %s1003 = smul.addr %s1002, 64
        %s1004 = scalar_lea.vmem [#allocation10], %s1003
        %p1005 = pneg %p227
        %p1006 = pneg %p224
        %s1007 = sand.u32 %s50, 1
        %s1008 = scalar_lea.sflag [#allocation12], %s1007
        %s1009 = sand.u32 %s240, 1
        %s1010 = scalar_lea.vmem [#allocation11], %s1009
        %p1011 = pneg %p253
        %p1012 = pneg %p250
        %s1013 = sand.u32 %s50, 1
        %s1014 = scalar_lea.sflag [#allocation12], %s1013
        %s1015 = sand.u32 %s266, 1
        %s1016 = smul.addr %s1015, 128
        %s1017 = scalar_lea.vmem [#allocation13], %s1016
        %p1018 = pneg %p279
        %p1019 = pneg %p276
        %s1020 = sand.u32 %s50, 1
        %s1021 = scalar_lea.sflag [#allocation15], %s1020
        %s1022 = sand.u32 %s292, 1
        %s1023 = smul.addr %s1022, 2
        %s1024 = scalar_lea.vmem [#allocation14], %s1023
        %p1025 = pneg %p305
        %p1026 = pneg %p302
        %s1027 = sand.u32 %s50, 1
        %s1028 = scalar_lea.sflag [#allocation15], %s1027
        %s1029 = sand.u32 %s318, 1
        %s1030 = smul.addr %s1029, 1024
        %s1031 = scalar_lea.vmem [#allocation16], %s1030
        %p1032 = pneg %p331
        %p1033 = pneg %p328
        %p1034 = scmp.lt.s32.totalorder %s50, 1
        %s1035 = scalar_select %p1034, %s50, 1
        %s1036 = smul.addr %s1035, 8
        %s1037 = scalar_lea.vmem %s11, %s1036
        %p1038 = pneg %p357
        %p1039 = pneg %p354
        %s1040 = sand.u32 %s50, 1
        %s1041 = scalar_lea.sflag [#allocation18], %s1040
        %s1042 = sand.u32 %s370, 1
        %s1043 = smul.addr %s1042, 512
        %s1044 = scalar_lea.vmem [#allocation17], %s1043
        %p1045 = pneg %p383
        %p1046 = pneg %p380
        %p1047 = scmp.lt.s32.totalorder %s50, 1
        %s1048 = scalar_select %p1047, %s50, 1
        %s1049 = scalar_lea.vmem %s13, %s1048
        %p1050 = pneg %p409
        %p1051 = pneg %p406
        %p1052 = pneg %p430
        %p1053 = pneg %p427
        %p1054 = pneg %p451
        %p1055 = pneg %p448
        %p1056 = pneg %p472
        %p1057 = pneg %p469
        %p1058 = pneg %p493
        %p1059 = pneg %p490
        %p1060 = pneg %p514
        %p1061 = pneg %p511
        %p1062 = pneg %p535
        %p1063 = pneg %p532
        %p1064 = pneg %p556
        %p1065 = pneg %p553
        %p1066 = scmp.lt.s32.totalorder %s50, 1
        %s1067 = scalar_select %p1066, %s50, 1
        %s1068 = smul.addr %s1067, 2
        %s1069 = smul.addr %s1068, 4
        %s1070 = scalar_lea.vmem %s2, %s1069
        %p1071 = scmp.lt.s32.totalorder %s50, 1
        %s1072 = scalar_select %p1071, %s50, 1
        %s1073 = smul.addr %s1072, 2
        %s1074 = smul.addr %s1073, 8
        %s1075 = scalar_lea.vmem %s3, %s1074
        %p1076 = scmp.lt.s32.totalorder %s50, 1
        %s1077 = scalar_select %p1076, %s50, 1
        %s1078 = smul.addr %s1077, 8
        %s1079 = scalar_lea.vmem %s11, %s1078
        %p1080 = scmp.lt.s32.totalorder %s50, 1
        %s1081 = scalar_select %p1080, %s50, 1
        %s1082 = scalar_lea.vmem %s13, %s1081
        %v1084 = vld [vmem:[%s863] sm:$0xf]
        %v1085 = vld [vmem:[%s863 + $0x4] sm:$0xf]
        %v1086 = vld [vmem:[%s863 + $0x8] sm:$0xf]
        %v1087 = vld [vmem:[%s863 + $0xc] sm:$0xf]
        %v1088 = vld [vmem:[%s863 + $0x10] sm:$0xf]
        %v1089 = vld [vmem:[%s863 + $0x14] sm:$0xf]
        %v1090 = vld [vmem:[%s863 + $0x18] sm:$0xf]
        %v1091 = vld [vmem:[%s863 + $0x1c] sm:$0xf]
        %v1092 = vld [vmem:[%s863 + $0x20] sm:$0xf]
        %v1093 = vld [vmem:[%s863 + $0x24] sm:$0xf]
        %v1094 = vld [vmem:[%s863 + $0x28] sm:$0xf]
        %v1095 = vld [vmem:[%s863 + $0x2c] sm:$0xf]
        %v1096 = vld [vmem:[%s863 + $0x30] sm:$0xf]
        %v1097 = vld [vmem:[%s863 + $0x34] sm:$0xf]
        %v1098 = vld [vmem:[%s863 + $0x38] sm:$0xf]
        %v1099 = vld [vmem:[%s863 + $0x3c] sm:$0xf]
        %v1100 = vld [vmem:[%s872] sm:$0xf]
        %v1101 = vld [vmem:[%s872 + $0x4] sm:$0xf]
        %v1102 = vld [vmem:[%s872 + $0x8] sm:$0xf]
        %v1103 = vld [vmem:[%s872 + $0xc] sm:$0xf]
        %v1104 = vld [vmem:[%s872 + $0x10] sm:$0xf]
        %v1105 = vld [vmem:[%s872 + $0x14] sm:$0xf]
        %v1106 = vld [vmem:[%s872 + $0x18] sm:$0xf]
        %v1107 = vld [vmem:[%s872 + $0x1c] sm:$0xf]
        %v1108 = vld [vmem:[%s872 + $0x20] sm:$0xf]
        %v1109 = vld [vmem:[%s872 + $0x24] sm:$0xf]
        %v1110 = vld [vmem:[%s872 + $0x28] sm:$0xf]
        %v1111 = vld [vmem:[%s872 + $0x2c] sm:$0xf]
        %v1112 = vld [vmem:[%s872 + $0x30] sm:$0xf]
        %v1113 = vld [vmem:[%s872 + $0x34] sm:$0xf]
        %v1114 = vld [vmem:[%s872 + $0x38] sm:$0xf]
        %v1115 = vld [vmem:[%s872 + $0x3c] sm:$0xf]
        %v1132 = vunpack.c.l.b16 %v1084
        %v1133 = vunpack.c.l.b16 %v1085
        %v1134 = vunpack.c.l.b16 %v1086
        %v1135 = vunpack.c.l.b16 %v1087
        %v1136 = vunpack.c.l.b16 %v1088
        %v1137 = vunpack.c.l.b16 %v1089
        %v1138 = vunpack.c.l.b16 %v1090
        %v1139 = vunpack.c.l.b16 %v1091
        %v1140 = vunpack.c.l.b16 %v1092
        %v1141 = vunpack.c.l.b16 %v1093
        %v1142 = vunpack.c.l.b16 %v1094
        %v1143 = vunpack.c.l.b16 %v1095
        %v1144 = vunpack.c.l.b16 %v1096
        %v1145 = vunpack.c.l.b16 %v1097
        %v1146 = vunpack.c.l.b16 %v1098
        %v1147 = vunpack.c.l.b16 %v1099
        %v1148 = vpack.c.b16 %v1133, %v1132
        %v1149 = vpack.c.b16 %v1135, %v1134
        %v1150 = vpack.c.b16 %v1137, %v1136
        %v1151 = vpack.c.b16 %v1139, %v1138
        %v1152 = vpack.c.b16 %v1141, %v1140
        %v1153 = vpack.c.b16 %v1143, %v1142
        %v1154 = vpack.c.b16 %v1145, %v1144
        %v1155 = vpack.c.b16 %v1147, %v1146
        %v1180 = vunpack.c.l.b16 %v1100
        %v1181 = vunpack.c.l.b16 %v1101
        %v1182 = vunpack.c.l.b16 %v1102
        %v1183 = vunpack.c.l.b16 %v1103
        %v1184 = vunpack.c.l.b16 %v1104
        %v1185 = vunpack.c.l.b16 %v1105
        %v1186 = vunpack.c.l.b16 %v1106
        %v1187 = vunpack.c.l.b16 %v1107
        %v1188 = vunpack.c.l.b16 %v1108
        %v1189 = vunpack.c.l.b16 %v1109
        %v1190 = vunpack.c.l.b16 %v1110
        %v1191 = vunpack.c.l.b16 %v1111
        %v1192 = vunpack.c.l.b16 %v1112
        %v1193 = vunpack.c.l.b16 %v1113
        %v1194 = vunpack.c.l.b16 %v1114
        %v1195 = vunpack.c.l.b16 %v1115
        %v1196 = vpack.c.b16 %v1181, %v1180
        %v1197 = vpack.c.b16 %v1183, %v1182
        %v1198 = vpack.c.b16 %v1185, %v1184
        %v1199 = vpack.c.b16 %v1187, %v1186
        %v1200 = vpack.c.b16 %v1189, %v1188
        %v1201 = vpack.c.b16 %v1191, %v1190
        %v1202 = vpack.c.b16 %v1193, %v1192
        %v1203 = vpack.c.b16 %v1195, %v1194
        %1212 = vmatprep.subr.bf16.mxu0 0
        %1213 = vmatpush1.bf16.msra.mxu0 %v1196
        %1214 = vmatprep.subr.bf16.mxu0 0
        %1215 = vmatpush1.bf16.msra.mxu0 %v1197
        %1216 = vmatprep.subr.bf16.mxu0 0
        %1217 = vmatpush1.bf16.msra.mxu0 %v1198
        %1218 = vmatprep.subr.bf16.mxu0 0
        %1219 = vmatpush1.bf16.msra.mxu0 %v1199
        %1220 = vmatprep.subr.bf16.mxu0 0
        %1221 = vmatpush1.bf16.msra.mxu0 %v1200
        %1222 = vmatprep.subr.bf16.mxu0 0
        %1223 = vmatpush1.bf16.msra.mxu0 %v1201
        %1224 = vmatprep.subr.bf16.mxu0 0
        %1225 = vmatpush1.bf16.msra.mxu0 %v1202
        %1226 = vmatprep.subr.bf16.mxu0 0
        %1227 = vmatpush1.bf16.msra.mxu0 %v1203
        %1228 = vmatprep.subr.bf16.mxu0 0
        %1229 = vmatpush1.bf16.msra.mxu0 0
        %1230 = vmatprep.subr.bf16.mxu0 0
        %1231 = vmatpush1.bf16.msra.mxu0 0
        %1232 = vmatprep.subr.bf16.mxu0 0
        %1233 = vmatpush1.bf16.msra.mxu0 0
        %1234 = vmatprep.subr.bf16.mxu0 0
        %1235 = vmatpush1.bf16.msra.mxu0 0
        %1236 = vmatprep.subr.bf16.mxu0 0
        %1237 = vmatpush1.bf16.msra.mxu0 0
        %1238 = vmatprep.subr.bf16.mxu0 0
        %1239 = vmatpush1.bf16.msra.mxu0 0
        %1240 = vmatprep.subr.bf16.mxu0 0
        %1241 = vmatpush1.bf16.msra.mxu0 0
        %1242 = vmatprep.subr.bf16.mxu0 0
        %1243 = vmatpush1.bf16.msra.mxu0 0
        %1244 = vmatprep.mubr.bf16.mxu0 0
        %1245 = vmatmul.mubr.bf16.gmra.mrb[0].mxu0 %v1148
        %v1246 = vpop.f32.mrb[0].mxu0
        %v1247 = vadd.f32 0.0, %v1246
        %v1248 = vpop.f32.mrb[0].mxu0
        %v1249 = vpop.f32.mrb[0].mxu0
        %v1250 = vadd.f32 0.0, %v1249
        %v1251 = vpop.f32.mrb[0].mxu0
        %1252 = vmatprep.mubr.bf16.mxu0 0
        %1253 = vmatmul.mubr.bf16.gmra.mrb[0].mxu0 %v1149
        %v1254 = vpop.f32.mrb[0].mxu0
        %v1255 = vadd.f32 0.0, %v1254
        %v1256 = vpop.f32.mrb[0].mxu0
        %v1257 = vpop.f32.mrb[0].mxu0
        %v1258 = vadd.f32 0.0, %v1257
        %v1259 = vpop.f32.mrb[0].mxu0
        %1260 = vmatprep.mubr.bf16.mxu0 0
        %1261 = vmatmul.mubr.bf16.gmra.mrb[0].mxu0 %v1150
        %v1262 = vpop.f32.mrb[0].mxu0
        %v1263 = vadd.f32 0.0, %v1262
        %v1264 = vpop.f32.mrb[0].mxu0
        %v1265 = vpop.f32.mrb[0].mxu0
        %v1266 = vadd.f32 0.0, %v1265
        %v1267 = vpop.f32.mrb[0].mxu0
        %1268 = vmatprep.mubr.bf16.mxu0 0
        %1269 = vmatmul.mubr.bf16.gmra.mrb[0].mxu0 %v1151
        %v1270 = vpop.f32.mrb[0].mxu0
        %v1271 = vadd.f32 0.0, %v1270
        %v1272 = vpop.f32.mrb[0].mxu0
        %v1273 = vpop.f32.mrb[0].mxu0
        %v1274 = vadd.f32 0.0, %v1273
        %v1275 = vpop.f32.mrb[0].mxu0
        %1276 = vmatprep.mubr.bf16.mxu0 0
        %1277 = vmatmul.mubr.bf16.gmra.mrb[0].mxu0 %v1152
        %v1278 = vpop.f32.mrb[0].mxu0
        %v1279 = vadd.f32 0.0, %v1278
        %v1280 = vpop.f32.mrb[0].mxu0
        %v1281 = vpop.f32.mrb[0].mxu0
        %v1282 = vadd.f32 0.0, %v1281
        %v1283 = vpop.f32.mrb[0].mxu0
        %1284 = vmatprep.mubr.bf16.mxu0 0
        %1285 = vmatmul.mubr.bf16.gmra.mrb[0].mxu0 %v1153
        %v1286 = vpop.f32.mrb[0].mxu0
        %v1287 = vadd.f32 0.0, %v1286
        %v1288 = vpop.f32.mrb[0].mxu0
        %v1289 = vpop.f32.mrb[0].mxu0
        %v1290 = vadd.f32 0.0, %v1289
        %v1291 = vpop.f32.mrb[0].mxu0
        %1292 = vmatprep.mubr.bf16.mxu0 0
        %1293 = vmatmul.mubr.bf16.gmra.mrb[0].mxu0 %v1154
        %v1294 = vpop.f32.mrb[0].mxu0
        %v1295 = vadd.f32 0.0, %v1294
        %v1296 = vpop.f32.mrb[0].mxu0
        %v1297 = vpop.f32.mrb[0].mxu0
        %v1298 = vadd.f32 0.0, %v1297
        %v1299 = vpop.f32.mrb[0].mxu0
        %1300 = vmatprep.mubr.bf16.mxu0 0
        %1301 = vmatmul.mubr.bf16.gmra.mrb[0].mxu0 %v1155
        %v1302 = vpop.f32.mrb[0].mxu0
        %v1303 = vadd.f32 0.0, %v1302
        %v1304 = vpop.f32.mrb[0].mxu0
        %v1305 = vpop.f32.mrb[0].mxu0
        %v1306 = vadd.f32 0.0, %v1305
        %v1307 = vpop.f32.mrb[0].mxu0
        %1308 = vdwg.mxu0
        %v1309 = vpack.c.bf16 %v1250, %v1247
        %v1310 = vpack.c.bf16 %v1258, %v1255
        %v1311 = vpack.c.bf16 %v1266, %v1263
        %v1312 = vpack.c.bf16 %v1274, %v1271
        %v1313 = vpack.c.bf16 %v1282, %v1279
        %v1314 = vpack.c.bf16 %v1290, %v1287
        %v1315 = vpack.c.bf16 %v1298, %v1295
        %v1316 = vpack.c.bf16 %v1306, %v1303
        %v1317 = vld [vmem:[%s881] sm:$0xf]
        %v1318 = vld [vmem:[%s881 + $0x4] sm:$0xf]
        %v1319 = vld [vmem:[%s881 + $0x8] sm:$0xf]
        %v1320 = vld [vmem:[%s881 + $0xc] sm:$0xf]
        %v1321 = vld [vmem:[%s881 + $0x10] sm:$0xf]
        %v1322 = vld [vmem:[%s881 + $0x14] sm:$0xf]
        %v1323 = vld [vmem:[%s881 + $0x18] sm:$0xf]
        %v1324 = vld [vmem:[%s881 + $0x1c] sm:$0xf]
        %v1325 = vld [vmem:[%s881 + $0x20] sm:$0xf]
        %v1326 = vld [vmem:[%s881 + $0x24] sm:$0xf]
        %v1327 = vld [vmem:[%s881 + $0x28] sm:$0xf]
        %v1328 = vld [vmem:[%s881 + $0x2c] sm:$0xf]
        %v1329 = vld [vmem:[%s881 + $0x30] sm:$0xf]
        %v1330 = vld [vmem:[%s881 + $0x34] sm:$0xf]
        %v1331 = vld [vmem:[%s881 + $0x38] sm:$0xf]
        %v1332 = vld [vmem:[%s881 + $0x3c] sm:$0xf]
        %v1333 = vld [vmem:[%s889] sm:$0x1]
        %v1335 = vlaneseq
        %v1336 = vshrl.u32 %v1335, 7
        %v1337 = vsub.s32 0, %v1336
        %v1338 = vrot.slane %v1333, %v1337
        %v1356 = vunpack.c.l.b16 %v1317
        %v1357 = vunpack.c.l.b16 %v1318
        %v1358 = vunpack.c.l.b16 %v1319
        %v1359 = vunpack.c.l.b16 %v1320
        %v1360 = vunpack.c.l.b16 %v1321
        %v1361 = vunpack.c.l.b16 %v1322
        %v1362 = vunpack.c.l.b16 %v1323
        %v1363 = vunpack.c.l.b16 %v1324
        %v1364 = vunpack.c.l.b16 %v1325
        %v1365 = vunpack.c.l.b16 %v1326
        %v1366 = vunpack.c.l.b16 %v1327
        %v1367 = vunpack.c.l.b16 %v1328
        %v1368 = vunpack.c.l.b16 %v1329
        %v1369 = vunpack.c.l.b16 %v1330
        %v1370 = vunpack.c.l.b16 %v1331
        %v1371 = vunpack.c.l.b16 %v1332
        %v1372 = vpack.c.b16 %v1357, %v1356
        %v1373 = vpack.c.b16 %v1359, %v1358
        %v1374 = vpack.c.b16 %v1361, %v1360
        %v1375 = vpack.c.b16 %v1363, %v1362
        %v1376 = vpack.c.b16 %v1365, %v1364
        %v1377 = vpack.c.b16 %v1367, %v1366
        %v1378 = vpack.c.b16 %v1369, %v1368
        %v1379 = vpack.c.b16 %v1371, %v1370
        %1388 = vmatprep.subr.bf16.mxu0 0
        %1389 = vmatpush1.bf16.msra.mxu0 %v1372
        %1390 = vmatprep.subr.bf16.mxu0 0
        %1391 = vmatpush1.bf16.msra.mxu0 %v1373
        %1392 = vmatprep.subr.bf16.mxu0 0
        %1393 = vmatpush1.bf16.msra.mxu0 %v1374
        %1394 = vmatprep.subr.bf16.mxu0 0
        %1395 = vmatpush1.bf16.msra.mxu0 %v1375
        %1396 = vmatprep.subr.bf16.mxu0 0
        %1397 = vmatpush1.bf16.msra.mxu0 %v1376
        %1398 = vmatprep.subr.bf16.mxu0 0
        %1399 = vmatpush1.bf16.msra.mxu0 %v1377
        %1400 = vmatprep.subr.bf16.mxu0 0
        %1401 = vmatpush1.bf16.msra.mxu0 %v1378
        %1402 = vmatprep.subr.bf16.mxu0 0
        %1403 = vmatpush1.bf16.msra.mxu0 %v1379
        %1404 = vmatprep.subr.bf16.mxu0 0
        %1405 = vmatpush1.bf16.msra.mxu0 0
        %1406 = vmatprep.subr.bf16.mxu0 0
        %1407 = vmatpush1.bf16.msra.mxu0 0
        %1408 = vmatprep.subr.bf16.mxu0 0
        %1409 = vmatpush1.bf16.msra.mxu0 0
        %1410 = vmatprep.subr.bf16.mxu0 0
        %1411 = vmatpush1.bf16.msra.mxu0 0
        %1412 = vmatprep.subr.bf16.mxu0 0
        %1413 = vmatpush1.bf16.msra.mxu0 0
        %1414 = vmatprep.subr.bf16.mxu0 0
        %1415 = vmatpush1.bf16.msra.mxu0 0
        %1416 = vmatprep.subr.bf16.mxu0 0
        %1417 = vmatpush1.bf16.msra.mxu0 0
        %1418 = vmatprep.subr.bf16.mxu0 0
        %1419 = vmatpush1.bf16.msra.mxu0 0
        %1420 = vmatprep.mubr.bf16.mxu0 0
        %1421 = vmatmul.mubr.bf16.gmra.mrb[0].mxu0 %v1309
        %v1422 = vpop.f32.mrb[0].mxu0
        %v1423 = vadd.f32 %v1338, %v1422
        %v1424 = vpop.f32.mrb[0].mxu0
        %v1425 = vpop.f32.mrb[0].mxu0
        %v1426 = vadd.f32 %v1338, %v1425
        %v1427 = vpop.f32.mrb[0].mxu0
        %1428 = vmatprep.mubr.bf16.mxu0 0
        %1429 = vmatmul.mubr.bf16.gmra.mrb[0].mxu0 %v1310
        %v1430 = vpop.f32.mrb[0].mxu0
        %v1431 = vadd.f32 %v1338, %v1430
        %v1432 = vpop.f32.mrb[0].mxu0
        %v1433 = vpop.f32.mrb[0].mxu0
        %v1434 = vadd.f32 %v1338, %v1433
        %v1435 = vpop.f32.mrb[0].mxu0
        %1436 = vmatprep.mubr.bf16.mxu0 0
        %1437 = vmatmul.mubr.bf16.gmra.mrb[0].mxu0 %v1311
        %v1438 = vpop.f32.mrb[0].mxu0
        %v1439 = vadd.f32 %v1338, %v1438
        %v1440 = vpop.f32.mrb[0].mxu0
        %v1441 = vpop.f32.mrb[0].mxu0
        %v1442 = vadd.f32 %v1338, %v1441
        %v1443 = vpop.f32.mrb[0].mxu0
        %1444 = vmatprep.mubr.bf16.mxu0 0
        %1445 = vmatmul.mubr.bf16.gmra.mrb[0].mxu0 %v1312
        %v1446 = vpop.f32.mrb[0].mxu0
        %v1447 = vadd.f32 %v1338, %v1446
        %v1448 = vpop.f32.mrb[0].mxu0
        %v1449 = vpop.f32.mrb[0].mxu0
        %v1450 = vadd.f32 %v1338, %v1449
        %v1451 = vpop.f32.mrb[0].mxu0
        %1452 = vmatprep.mubr.bf16.mxu0 0
        %1453 = vmatmul.mubr.bf16.gmra.mrb[0].mxu0 %v1313
        %v1454 = vpop.f32.mrb[0].mxu0
        %v1455 = vadd.f32 %v1338, %v1454
        %v1456 = vpop.f32.mrb[0].mxu0
        %v1457 = vpop.f32.mrb[0].mxu0
        %v1458 = vadd.f32 %v1338, %v1457
        %v1459 = vpop.f32.mrb[0].mxu0
        %1460 = vmatprep.mubr.bf16.mxu0 0
        %1461 = vmatmul.mubr.bf16.gmra.mrb[0].mxu0 %v1314
        %v1462 = vpop.f32.mrb[0].mxu0
        %v1463 = vadd.f32 %v1338, %v1462
        %v1464 = vpop.f32.mrb[0].mxu0
        %v1465 = vpop.f32.mrb[0].mxu0
        %v1466 = vadd.f32 %v1338, %v1465
        %v1467 = vpop.f32.mrb[0].mxu0
        %1468 = vmatprep.mubr.bf16.mxu0 0
        %1469 = vmatmul.mubr.bf16.gmra.mrb[0].mxu0 %v1315
        %v1470 = vpop.f32.mrb[0].mxu0
        %v1471 = vadd.f32 %v1338, %v1470
        %v1472 = vpop.f32.mrb[0].mxu0
        %v1473 = vpop.f32.mrb[0].mxu0
        %v1474 = vadd.f32 %v1338, %v1473
        %v1475 = vpop.f32.mrb[0].mxu0
        %1476 = vmatprep.mubr.bf16.mxu0 0
        %1477 = vmatmul.mubr.bf16.gmra.mrb[0].mxu0 %v1316
        %v1478 = vpop.f32.mrb[0].mxu0
        %v1479 = vadd.f32 %v1338, %v1478
        %v1480 = vpop.f32.mrb[0].mxu0
        %v1481 = vpop.f32.mrb[0].mxu0
        %v1482 = vadd.f32 %v1338, %v1481
        %v1483 = vpop.f32.mrb[0].mxu0
        %1484 = vdwg.mxu0
        %v1485 = vmax.f32 %v1423, 0.0
        %v1486 = vmax.f32 %v1426, 0.0
        %v1487 = vmax.f32 %v1431, 0.0
        %v1488 = vmax.f32 %v1434, 0.0
        %v1489 = vmax.f32 %v1439, 0.0
        %v1490 = vmax.f32 %v1442, 0.0
        %v1491 = vmax.f32 %v1447, 0.0
        %v1492 = vmax.f32 %v1450, 0.0
        %v1493 = vmax.f32 %v1455, 0.0
        %v1494 = vmax.f32 %v1458, 0.0
        %v1495 = vmax.f32 %v1463, 0.0
        %v1496 = vmax.f32 %v1466, 0.0
        %v1497 = vmax.f32 %v1471, 0.0
        %v1498 = vmax.f32 %v1474, 0.0
        %v1499 = vmax.f32 %v1479, 0.0
        %v1500 = vmax.f32 %v1482, 0.0
        %v1501 = vpack.c.bf16 %v1486, %v1485
        %v1502 = vpack.c.bf16 %v1488, %v1487
        %v1503 = vpack.c.bf16 %v1490, %v1489
        %v1504 = vpack.c.bf16 %v1492, %v1491
        %v1505 = vpack.c.bf16 %v1494, %v1493
        %v1506 = vpack.c.bf16 %v1496, %v1495
        %v1507 = vpack.c.bf16 %v1498, %v1497
        %v1508 = vpack.c.bf16 %v1500, %v1499
        %1509 = vmatprep.subr.bf16.mxu0 0
        %1510 = vmatpush1.bf16.msra.mxu0 %v1501
        %1511 = vmatprep.subr.bf16.mxu0 0
        %1512 = vmatpush1.bf16.msra.mxu0 %v1502
        %1513 = vmatprep.subr.bf16.mxu0 0
        %1514 = vmatpush1.bf16.msra.mxu0 %v1503
        %1515 = vmatprep.subr.bf16.mxu0 0
        %1516 = vmatpush1.bf16.msra.mxu0 %v1504
        %1517 = vmatprep.subr.bf16.mxu0 0
        %1518 = vmatpush1.bf16.msra.mxu0 %v1505
        %1519 = vmatprep.subr.bf16.mxu0 0
        %1520 = vmatpush1.bf16.msra.mxu0 %v1506
        %1521 = vmatprep.subr.bf16.mxu0 0
        %1522 = vmatpush1.bf16.msra.mxu0 %v1507
        %1523 = vmatprep.subr.bf16.mxu0 0
        %1524 = vmatpush1.bf16.msra.mxu0 %v1508
        %1525 = vmatprep.subr.bf16.mxu0 0
        %1526 = vmatpush1.bf16.msra.mxu0 0
        %1527 = vmatprep.subr.bf16.mxu0 0
        %1528 = vmatpush1.bf16.msra.mxu0 0
        %1529 = vmatprep.subr.bf16.mxu0 0
        %1530 = vmatpush1.bf16.msra.mxu0 0
        %1531 = vmatprep.subr.bf16.mxu0 0
        %1532 = vmatpush1.bf16.msra.mxu0 0
        %1533 = vmatprep.subr.bf16.mxu0 0
        %1534 = vmatpush1.bf16.msra.mxu0 0
        %1535 = vmatprep.subr.bf16.mxu0 0
        %1536 = vmatpush1.bf16.msra.mxu0 0
        %1537 = vmatprep.subr.bf16.mxu0 0
        %1538 = vmatpush1.bf16.msra.mxu0 0
        %1539 = vmatprep.subr.bf16.mxu0 0
        %1540 = vmatpush1.bf16.msra.mxu0 0
        %1541 = vmatprep.mubr.bf16.mxu0 0
        %1542 = vmatmul.mubr.bf16.gmra.mrb[0].mxu0 %v1148
        %v1543 = vpop.f32.mrb[0].mxu0
        %v1544 = vadd.f32 0.0, %v1543
        %v1545 = vpop.f32.mrb[0].mxu0
        %v1546 = vpop.f32.mrb[0].mxu0
        %v1547 = vadd.f32 0.0, %v1546
        %v1548 = vpop.f32.mrb[0].mxu0
        %1549 = vmatprep.mubr.bf16.mxu0 0
        %1550 = vmatmul.mubr.bf16.gmra.mrb[0].mxu0 %v1149
        %v1551 = vpop.f32.mrb[0].mxu0
        %v1552 = vadd.f32 0.0, %v1551
        %v1553 = vpop.f32.mrb[0].mxu0
        %v1554 = vpop.f32.mrb[0].mxu0
        %v1555 = vadd.f32 0.0, %v1554
        %v1556 = vpop.f32.mrb[0].mxu0
        %1557 = vmatprep.mubr.bf16.mxu0 0
        %1558 = vmatmul.mubr.bf16.gmra.mrb[0].mxu0 %v1150
        %v1559 = vpop.f32.mrb[0].mxu0
        %v1560 = vadd.f32 0.0, %v1559
        %v1561 = vpop.f32.mrb[0].mxu0
        %v1562 = vpop.f32.mrb[0].mxu0
        %v1563 = vadd.f32 0.0, %v1562
        %v1564 = vpop.f32.mrb[0].mxu0
        %1565 = vmatprep.mubr.bf16.mxu0 0
        %1566 = vmatmul.mubr.bf16.gmra.mrb[0].mxu0 %v1151
        %v1567 = vpop.f32.mrb[0].mxu0
        %v1568 = vadd.f32 0.0, %v1567
        %v1569 = vpop.f32.mrb[0].mxu0
        %v1570 = vpop.f32.mrb[0].mxu0
        %v1571 = vadd.f32 0.0, %v1570
        %v1572 = vpop.f32.mrb[0].mxu0
        %1573 = vmatprep.mubr.bf16.mxu0 0
        %1574 = vmatmul.mubr.bf16.gmra.mrb[0].mxu0 %v1152
        %v1575 = vpop.f32.mrb[0].mxu0
        %v1576 = vadd.f32 0.0, %v1575
        %v1577 = vpop.f32.mrb[0].mxu0
        %v1578 = vpop.f32.mrb[0].mxu0
        %v1579 = vadd.f32 0.0, %v1578
        %v1580 = vpop.f32.mrb[0].mxu0
        %1581 = vmatprep.mubr.bf16.mxu0 0
        %1582 = vmatmul.mubr.bf16.gmra.mrb[0].mxu0 %v1153
        %v1583 = vpop.f32.mrb[0].mxu0
        %v1584 = vadd.f32 0.0, %v1583
        %v1585 = vpop.f32.mrb[0].mxu0
        %v1586 = vpop.f32.mrb[0].mxu0
        %v1587 = vadd.f32 0.0, %v1586
        %v1588 = vpop.f32.mrb[0].mxu0
        %1589 = vmatprep.mubr.bf16.mxu0 0
        %1590 = vmatmul.mubr.bf16.gmra.mrb[0].mxu0 %v1154
        %v1591 = vpop.f32.mrb[0].mxu0
        %v1592 = vadd.f32 0.0, %v1591
        %v1593 = vpop.f32.mrb[0].mxu0
        %v1594 = vpop.f32.mrb[0].mxu0
        %v1595 = vadd.f32 0.0, %v1594
        %v1596 = vpop.f32.mrb[0].mxu0
        %1597 = vmatprep.mubr.bf16.mxu0 0
        %1598 = vmatmul.mubr.bf16.gmra.mrb[0].mxu0 %v1155
        %v1599 = vpop.f32.mrb[0].mxu0
        %v1600 = vadd.f32 0.0, %v1599
        %v1601 = vpop.f32.mrb[0].mxu0
        %v1602 = vpop.f32.mrb[0].mxu0
        %v1603 = vadd.f32 0.0, %v1602
        %v1604 = vpop.f32.mrb[0].mxu0
        %1605 = vdwg.mxu0
        %v1606 = vpack.c.bf16 %v1547, %v1544
        %v1607 = vpack.c.bf16 %v1555, %v1552
        %v1608 = vpack.c.bf16 %v1563, %v1560
        %v1609 = vpack.c.bf16 %v1571, %v1568
        %v1610 = vpack.c.bf16 %v1579, %v1576
        %v1611 = vpack.c.bf16 %v1587, %v1584
        %v1612 = vpack.c.bf16 %v1595, %v1592
        %v1613 = vpack.c.bf16 %v1603, %v1600
        %v1614 = vld [vmem:[%s898] sm:$0xf]
        %v1615 = vld [vmem:[%s898 + $0x4] sm:$0xf]
        %v1616 = vld [vmem:[%s898 + $0x8] sm:$0xf]
        %v1617 = vld [vmem:[%s898 + $0xc] sm:$0xf]
        %v1618 = vld [vmem:[%s898 + $0x10] sm:$0xf]
        %v1619 = vld [vmem:[%s898 + $0x14] sm:$0xf]
        %v1620 = vld [vmem:[%s898 + $0x18] sm:$0xf]
        %v1621 = vld [vmem:[%s898 + $0x1c] sm:$0xf]
        %v1622 = vld [vmem:[%s898 + $0x20] sm:$0xf]
        %v1623 = vld [vmem:[%s898 + $0x24] sm:$0xf]
        %v1624 = vld [vmem:[%s898 + $0x28] sm:$0xf]
        %v1625 = vld [vmem:[%s898 + $0x2c] sm:$0xf]
        %v1626 = vld [vmem:[%s898 + $0x30] sm:$0xf]
        %v1627 = vld [vmem:[%s898 + $0x34] sm:$0xf]
        %v1628 = vld [vmem:[%s898 + $0x38] sm:$0xf]
        %v1629 = vld [vmem:[%s898 + $0x3c] sm:$0xf]
        %v1630 = vld [vmem:[%s906] sm:$0x1]
        %v1632 = vlaneseq
        %v1633 = vshrl.u32 %v1632, 7
        %v1634 = vsub.s32 0, %v1633
        %v1635 = vrot.slane %v1630, %v1634
        %v1653 = vunpack.c.l.b16 %v1614
        %v1654 = vunpack.c.l.b16 %v1615
        %v1655 = vunpack.c.l.b16 %v1616
        %v1656 = vunpack.c.l.b16 %v1617
        %v1657 = vunpack.c.l.b16 %v1618
        %v1658 = vunpack.c.l.b16 %v1619
        %v1659 = vunpack.c.l.b16 %v1620
        %v1660 = vunpack.c.l.b16 %v1621
        %v1661 = vunpack.c.l.b16 %v1622
        %v1662 = vunpack.c.l.b16 %v1623
        %v1663 = vunpack.c.l.b16 %v1624
        %v1664 = vunpack.c.l.b16 %v1625
        %v1665 = vunpack.c.l.b16 %v1626
        %v1666 = vunpack.c.l.b16 %v1627
        %v1667 = vunpack.c.l.b16 %v1628
        %v1668 = vunpack.c.l.b16 %v1629
        %v1669 = vpack.c.b16 %v1654, %v1653
        %v1670 = vpack.c.b16 %v1656, %v1655
        %v1671 = vpack.c.b16 %v1658, %v1657
        %v1672 = vpack.c.b16 %v1660, %v1659
        %v1673 = vpack.c.b16 %v1662, %v1661
        %v1674 = vpack.c.b16 %v1664, %v1663
        %v1675 = vpack.c.b16 %v1666, %v1665
        %v1676 = vpack.c.b16 %v1668, %v1667
        %1685 = vmatprep.subr.bf16.mxu0 0
        %1686 = vmatpush1.bf16.msra.mxu0 %v1669
        %1687 = vmatprep.subr.bf16.mxu0 0
        %1688 = vmatpush1.bf16.msra.mxu0 %v1670
        %1689 = vmatprep.subr.bf16.mxu0 0
        %1690 = vmatpush1.bf16.msra.mxu0 %v1671
        %1691 = vmatprep.subr.bf16.mxu0 0
        %1692 = vmatpush1.bf16.msra.mxu0 %v1672
        %1693 = vmatprep.subr.bf16.mxu0 0
        %1694 = vmatpush1.bf16.msra.mxu0 %v1673
        %1695 = vmatprep.subr.bf16.mxu0 0
        %1696 = vmatpush1.bf16.msra.mxu0 %v1674
        %1697 = vmatprep.subr.bf16.mxu0 0
        %1698 = vmatpush1.bf16.msra.mxu0 %v1675
        %1699 = vmatprep.subr.bf16.mxu0 0
        %1700 = vmatpush1.bf16.msra.mxu0 %v1676
        %1701 = vmatprep.subr.bf16.mxu0 0
        %1702 = vmatpush1.bf16.msra.mxu0 0
        %1703 = vmatprep.subr.bf16.mxu0 0
        %1704 = vmatpush1.bf16.msra.mxu0 0
        %1705 = vmatprep.subr.bf16.mxu0 0
        %1706 = vmatpush1.bf16.msra.mxu0 0
        %1707 = vmatprep.subr.bf16.mxu0 0
        %1708 = vmatpush1.bf16.msra.mxu0 0
        %1709 = vmatprep.subr.bf16.mxu0 0
        %1710 = vmatpush1.bf16.msra.mxu0 0
        %1711 = vmatprep.subr.bf16.mxu0 0
        %1712 = vmatpush1.bf16.msra.mxu0 0
        %1713 = vmatprep.subr.bf16.mxu0 0
        %1714 = vmatpush1.bf16.msra.mxu0 0
        %1715 = vmatprep.subr.bf16.mxu0 0
        %1716 = vmatpush1.bf16.msra.mxu0 0
        %1717 = vmatprep.mubr.bf16.mxu0 0
        %1718 = vmatmul.mubr.bf16.gmra.mrb[0].mxu0 %v1606
        %v1719 = vpop.f32.mrb[0].mxu0
        %v1720 = vadd.f32 %v1635, %v1719
        %v1721 = vpop.f32.mrb[0].mxu0
        %v1722 = vpop.f32.mrb[0].mxu0
        %v1723 = vadd.f32 %v1635, %v1722
        %v1724 = vpop.f32.mrb[0].mxu0
        %1725 = vmatprep.mubr.bf16.mxu0 0
        %1726 = vmatmul.mubr.bf16.gmra.mrb[0].mxu0 %v1607
        %v1727 = vpop.f32.mrb[0].mxu0
        %v1728 = vadd.f32 %v1635, %v1727
        %v1729 = vpop.f32.mrb[0].mxu0
        %v1730 = vpop.f32.mrb[0].mxu0
        %v1731 = vadd.f32 %v1635, %v1730
        %v1732 = vpop.f32.mrb[0].mxu0
        %1733 = vmatprep.mubr.bf16.mxu0 0
        %1734 = vmatmul.mubr.bf16.gmra.mrb[0].mxu0 %v1608
        %v1735 = vpop.f32.mrb[0].mxu0
        %v1736 = vadd.f32 %v1635, %v1735
        %v1737 = vpop.f32.mrb[0].mxu0
        %v1738 = vpop.f32.mrb[0].mxu0
        %v1739 = vadd.f32 %v1635, %v1738
        %v1740 = vpop.f32.mrb[0].mxu0
        %1741 = vmatprep.mubr.bf16.mxu0 0
        %1742 = vmatmul.mubr.bf16.gmra.mrb[0].mxu0 %v1609
        %v1743 = vpop.f32.mrb[0].mxu0
        %v1744 = vadd.f32 %v1635, %v1743
        %v1745 = vpop.f32.mrb[0].mxu0
        %v1746 = vpop.f32.mrb[0].mxu0
        %v1747 = vadd.f32 %v1635, %v1746
        %v1748 = vpop.f32.mrb[0].mxu0
        %1749 = vmatprep.mubr.bf16.mxu0 0
        %1750 = vmatmul.mubr.bf16.gmra.mrb[0].mxu0 %v1610
        %v1751 = vpop.f32.mrb[0].mxu0
        %v1752 = vadd.f32 %v1635, %v1751
        %v1753 = vpop.f32.mrb[0].mxu0
        %v1754 = vpop.f32.mrb[0].mxu0
        %v1755 = vadd.f32 %v1635, %v1754
        %v1756 = vpop.f32.mrb[0].mxu0
        %1757 = vmatprep.mubr.bf16.mxu0 0
        %1758 = vmatmul.mubr.bf16.gmra.mrb[0].mxu0 %v1611
        %v1759 = vpop.f32.mrb[0].mxu0
        %v1760 = vadd.f32 %v1635, %v1759
        %v1761 = vpop.f32.mrb[0].mxu0
        %v1762 = vpop.f32.mrb[0].mxu0
        %v1763 = vadd.f32 %v1635, %v1762
        %v1764 = vpop.f32.mrb[0].mxu0
        %1765 = vmatprep.mubr.bf16.mxu0 0
        %1766 = vmatmul.mubr.bf16.gmra.mrb[0].mxu0 %v1612
        %v1767 = vpop.f32.mrb[0].mxu0
        %v1768 = vadd.f32 %v1635, %v1767
        %v1769 = vpop.f32.mrb[0].mxu0
        %v1770 = vpop.f32.mrb[0].mxu0
        %v1771 = vadd.f32 %v1635, %v1770
        %v1772 = vpop.f32.mrb[0].mxu0
        %1773 = vmatprep.mubr.bf16.mxu0 0
        %1774 = vmatmul.mubr.bf16.gmra.mrb[0].mxu0 %v1613
        %v1775 = vpop.f32.mrb[0].mxu0
        %v1776 = vadd.f32 %v1635, %v1775
        %v1777 = vpop.f32.mrb[0].mxu0
        %v1778 = vpop.f32.mrb[0].mxu0
        %v1779 = vadd.f32 %v1635, %v1778
        %v1780 = vpop.f32.mrb[0].mxu0
        %1781 = vdwg.mxu0
        %v1782 = vmax.f32 %v1720, 0.0
        %v1783 = vmax.f32 %v1723, 0.0
        %v1784 = vmax.f32 %v1728, 0.0
        %v1785 = vmax.f32 %v1731, 0.0
        %v1786 = vmax.f32 %v1736, 0.0
        %v1787 = vmax.f32 %v1739, 0.0
        %v1788 = vmax.f32 %v1744, 0.0
        %v1789 = vmax.f32 %v1747, 0.0
        %v1790 = vmax.f32 %v1752, 0.0
        %v1791 = vmax.f32 %v1755, 0.0
        %v1792 = vmax.f32 %v1760, 0.0
        %v1793 = vmax.f32 %v1763, 0.0
        %v1794 = vmax.f32 %v1768, 0.0
        %v1795 = vmax.f32 %v1771, 0.0
        %v1796 = vmax.f32 %v1776, 0.0
        %v1797 = vmax.f32 %v1779, 0.0
        %v1798 = vpack.c.bf16 %v1783, %v1782
        %v1799 = vpack.c.bf16 %v1785, %v1784
        %v1800 = vpack.c.bf16 %v1787, %v1786
        %v1801 = vpack.c.bf16 %v1789, %v1788
        %v1802 = vpack.c.bf16 %v1791, %v1790
        %v1803 = vpack.c.bf16 %v1793, %v1792
        %v1804 = vpack.c.bf16 %v1795, %v1794
        %v1805 = vpack.c.bf16 %v1797, %v1796
        %1806 = vmatprep.subr.bf16.mxu0 0
        %1807 = vmatpush1.bf16.msra.mxu0 %v1798
        %1808 = vmatprep.subr.bf16.mxu0 0
        %1809 = vmatpush1.bf16.msra.mxu0 %v1799
        %1810 = vmatprep.subr.bf16.mxu0 0
        %1811 = vmatpush1.bf16.msra.mxu0 %v1800
        %1812 = vmatprep.subr.bf16.mxu0 0
        %1813 = vmatpush1.bf16.msra.mxu0 %v1801
        %1814 = vmatprep.subr.bf16.mxu0 0
        %1815 = vmatpush1.bf16.msra.mxu0 %v1802
        %1816 = vmatprep.subr.bf16.mxu0 0
        %1817 = vmatpush1.bf16.msra.mxu0 %v1803
        %1818 = vmatprep.subr.bf16.mxu0 0
        %1819 = vmatpush1.bf16.msra.mxu0 %v1804
        %1820 = vmatprep.subr.bf16.mxu0 0
        %1821 = vmatpush1.bf16.msra.mxu0 %v1805
        %1822 = vmatprep.subr.bf16.mxu0 0
        %1823 = vmatpush1.bf16.msra.mxu0 0
        %1824 = vmatprep.subr.bf16.mxu0 0
        %1825 = vmatpush1.bf16.msra.mxu0 0
        %1826 = vmatprep.subr.bf16.mxu0 0
        %1827 = vmatpush1.bf16.msra.mxu0 0
        %1828 = vmatprep.subr.bf16.mxu0 0
        %1829 = vmatpush1.bf16.msra.mxu0 0
        %1830 = vmatprep.subr.bf16.mxu0 0
        %1831 = vmatpush1.bf16.msra.mxu0 0
        %1832 = vmatprep.subr.bf16.mxu0 0
        %1833 = vmatpush1.bf16.msra.mxu0 0
        %1834 = vmatprep.subr.bf16.mxu0 0
        %1835 = vmatpush1.bf16.msra.mxu0 0
        %1836 = vmatprep.subr.bf16.mxu0 0
        %1837 = vmatpush1.bf16.msra.mxu0 0
        %1838 = vmatprep.mubr.bf16.mxu0 0
        %1839 = vmatmul.mubr.bf16.gmra.mrb[0].mxu0 %v1148
        %v1840 = vpop.f32.mrb[0].mxu0
        %v1841 = vadd.f32 0.0, %v1840
        %v1842 = vpop.f32.mrb[0].mxu0
        %v1843 = vpop.f32.mrb[0].mxu0
        %v1844 = vadd.f32 0.0, %v1843
        %v1845 = vpop.f32.mrb[0].mxu0
        %1846 = vmatprep.mubr.bf16.mxu0 0
        %1847 = vmatmul.mubr.bf16.gmra.mrb[0].mxu0 %v1149
        %v1848 = vpop.f32.mrb[0].mxu0
        %v1849 = vadd.f32 0.0, %v1848
        %v1850 = vpop.f32.mrb[0].mxu0
        %v1851 = vpop.f32.mrb[0].mxu0
        %v1852 = vadd.f32 0.0, %v1851
        %v1853 = vpop.f32.mrb[0].mxu0
        %1854 = vmatprep.mubr.bf16.mxu0 0
        %1855 = vmatmul.mubr.bf16.gmra.mrb[0].mxu0 %v1150
        %v1856 = vpop.f32.mrb[0].mxu0
        %v1857 = vadd.f32 0.0, %v1856
        %v1858 = vpop.f32.mrb[0].mxu0
        %v1859 = vpop.f32.mrb[0].mxu0
        %v1860 = vadd.f32 0.0, %v1859
        %v1861 = vpop.f32.mrb[0].mxu0
        %1862 = vmatprep.mubr.bf16.mxu0 0
        %1863 = vmatmul.mubr.bf16.gmra.mrb[0].mxu0 %v1151
        %v1864 = vpop.f32.mrb[0].mxu0
        %v1865 = vadd.f32 0.0, %v1864
        %v1866 = vpop.f32.mrb[0].mxu0
        %v1867 = vpop.f32.mrb[0].mxu0
        %v1868 = vadd.f32 0.0, %v1867
        %v1869 = vpop.f32.mrb[0].mxu0
        %1870 = vmatprep.mubr.bf16.mxu0 0
        %1871 = vmatmul.mubr.bf16.gmra.mrb[0].mxu0 %v1152
        %v1872 = vpop.f32.mrb[0].mxu0
        %v1873 = vadd.f32 0.0, %v1872
        %v1874 = vpop.f32.mrb[0].mxu0
        %v1875 = vpop.f32.mrb[0].mxu0
        %v1876 = vadd.f32 0.0, %v1875
        %v1877 = vpop.f32.mrb[0].mxu0
        %1878 = vmatprep.mubr.bf16.mxu0 0
        %1879 = vmatmul.mubr.bf16.gmra.mrb[0].mxu0 %v1153
        %v1880 = vpop.f32.mrb[0].mxu0
        %v1881 = vadd.f32 0.0, %v1880
        %v1882 = vpop.f32.mrb[0].mxu0
        %v1883 = vpop.f32.mrb[0].mxu0
        %v1884 = vadd.f32 0.0, %v1883
        %v1885 = vpop.f32.mrb[0].mxu0
        %1886 = vmatprep.mubr.bf16.mxu0 0
        %1887 = vmatmul.mubr.bf16.gmra.mrb[0].mxu0 %v1154
        %v1888 = vpop.f32.mrb[0].mxu0
        %v1889 = vadd.f32 0.0, %v1888
        %v1890 = vpop.f32.mrb[0].mxu0
        %v1891 = vpop.f32.mrb[0].mxu0
        %v1892 = vadd.f32 0.0, %v1891
        %v1893 = vpop.f32.mrb[0].mxu0
        %1894 = vmatprep.mubr.bf16.mxu0 0
        %1895 = vmatmul.mubr.bf16.gmra.mrb[0].mxu0 %v1155
        %v1896 = vpop.f32.mrb[0].mxu0
        %v1897 = vadd.f32 0.0, %v1896
        %v1898 = vpop.f32.mrb[0].mxu0
        %v1899 = vpop.f32.mrb[0].mxu0
        %v1900 = vadd.f32 0.0, %v1899
        %v1901 = vpop.f32.mrb[0].mxu0
        %1902 = vdwg.mxu0
        %v1903 = vpack.c.bf16 %v1844, %v1841
        %v1904 = vpack.c.bf16 %v1852, %v1849
        %v1905 = vpack.c.bf16 %v1860, %v1857
        %v1906 = vpack.c.bf16 %v1868, %v1865
        %v1907 = vpack.c.bf16 %v1876, %v1873
        %v1908 = vpack.c.bf16 %v1884, %v1881
        %v1909 = vpack.c.bf16 %v1892, %v1889
        %v1910 = vpack.c.bf16 %v1900, %v1897
        %v1911 = vld [vmem:[%s915] sm:$0xff]
        %v1912 = vld [vmem:[%s915 + $0x8] sm:$0xff]
        %v1913 = vld [vmem:[%s915 + $0x10] sm:$0xff]
        %v1914 = vld [vmem:[%s915 + $0x18] sm:$0xff]
        %v1915 = vld [vmem:[%s915 + $0x20] sm:$0xff]
        %v1916 = vld [vmem:[%s915 + $0x28] sm:$0xff]
        %v1917 = vld [vmem:[%s915 + $0x30] sm:$0xff]
        %v1918 = vld [vmem:[%s915 + $0x38] sm:$0xff]
        %v1919 = vld [vmem:[%s915 + $0x40] sm:$0xff]
        %v1920 = vld [vmem:[%s915 + $0x48] sm:$0xff]
        %v1921 = vld [vmem:[%s915 + $0x50] sm:$0xff]
        %v1922 = vld [vmem:[%s915 + $0x58] sm:$0xff]
        %v1923 = vld [vmem:[%s915 + $0x60] sm:$0xff]
        %v1924 = vld [vmem:[%s915 + $0x68] sm:$0xff]
        %v1925 = vld [vmem:[%s915 + $0x70] sm:$0xff]
        %v1926 = vld [vmem:[%s915 + $0x78] sm:$0xff]
        %v1927 = vld [vmem:[%s924] sm:$0x3]
        %v1929 = vlaneseq
        %v1930 = vshrl.u32 %v1929, 7
        %v1931 = vsub.s32 0, %v1930
        %v1932 = vrot.slane %v1927, %v1931
        %v1933 = vlaneseq
        %v1934 = vshrl.u32 %v1933, 7
        %v1935 = vsub.s32 1, %v1934
        %v1936 = vrot.slane %v1927, %v1935
        %v1955 = vunpack.c.l.b16 %v1911
        %v1956 = vunpack.c.h.b16 %v1911
        %v1957 = vunpack.c.l.b16 %v1912
        %v1958 = vunpack.c.h.b16 %v1912
        %v1959 = vunpack.c.l.b16 %v1913
        %v1960 = vunpack.c.h.b16 %v1913
        %v1961 = vunpack.c.l.b16 %v1914
        %v1962 = vunpack.c.h.b16 %v1914
        %v1963 = vunpack.c.l.b16 %v1915
        %v1964 = vunpack.c.h.b16 %v1915
        %v1965 = vunpack.c.l.b16 %v1916
        %v1966 = vunpack.c.h.b16 %v1916
        %v1967 = vunpack.c.l.b16 %v1917
        %v1968 = vunpack.c.h.b16 %v1917
        %v1969 = vunpack.c.l.b16 %v1918
        %v1970 = vunpack.c.h.b16 %v1918
        %v1971 = vunpack.c.l.b16 %v1919
        %v1972 = vunpack.c.h.b16 %v1919
        %v1973 = vunpack.c.l.b16 %v1920
        %v1974 = vunpack.c.h.b16 %v1920
        %v1975 = vunpack.c.l.b16 %v1921
        %v1976 = vunpack.c.h.b16 %v1921
        %v1977 = vunpack.c.l.b16 %v1922
        %v1978 = vunpack.c.h.b16 %v1922
        %v1979 = vunpack.c.l.b16 %v1923
        %v1980 = vunpack.c.h.b16 %v1923
        %v1981 = vunpack.c.l.b16 %v1924
        %v1982 = vunpack.c.h.b16 %v1924
        %v1983 = vunpack.c.l.b16 %v1925
        %v1984 = vunpack.c.h.b16 %v1925
        %v1985 = vunpack.c.l.b16 %v1926
        %v1986 = vunpack.c.h.b16 %v1926
        %v1987 = vpack.c.b16 %v1957, %v1955
        %v1988 = vpack.c.b16 %v1958, %v1956
        %v1989 = vpack.c.b16 %v1961, %v1959
        %v1990 = vpack.c.b16 %v1962, %v1960
        %v1991 = vpack.c.b16 %v1965, %v1963
        %v1992 = vpack.c.b16 %v1966, %v1964
        %v1993 = vpack.c.b16 %v1969, %v1967
        %v1994 = vpack.c.b16 %v1970, %v1968
        %v1995 = vpack.c.b16 %v1973, %v1971
        %v1996 = vpack.c.b16 %v1974, %v1972
        %v1997 = vpack.c.b16 %v1977, %v1975
        %v1998 = vpack.c.b16 %v1978, %v1976
        %v1999 = vpack.c.b16 %v1981, %v1979
        %v2000 = vpack.c.b16 %v1982, %v1980
        %v2001 = vpack.c.b16 %v1985, %v1983
        %v2002 = vpack.c.b16 %v1986, %v1984
        %2019 = vmatprep.subr.bf16.mxu0 %v1988
        %2020 = vmatpush1.bf16.msra.mxu0 %v1987
        %2021 = vmatprep.subr.bf16.mxu0 %v1990
        %2022 = vmatpush1.bf16.msra.mxu0 %v1989
        %2023 = vmatprep.subr.bf16.mxu0 %v1992
        %2024 = vmatpush1.bf16.msra.mxu0 %v1991
        %2025 = vmatprep.subr.bf16.mxu0 %v1994
        %2026 = vmatpush1.bf16.msra.mxu0 %v1993
        %2027 = vmatprep.subr.bf16.mxu0 %v1996
        %2028 = vmatpush1.bf16.msra.mxu0 %v1995
        %2029 = vmatprep.subr.bf16.mxu0 %v1998
        %2030 = vmatpush1.bf16.msra.mxu0 %v1997
        %2031 = vmatprep.subr.bf16.mxu0 %v2000
        %2032 = vmatpush1.bf16.msra.mxu0 %v1999
        %2033 = vmatprep.subr.bf16.mxu0 %v2002
        %2034 = vmatpush1.bf16.msra.mxu0 %v2001
        %2035 = vmatprep.subr.bf16.mxu0 0
        %2036 = vmatpush1.bf16.msra.mxu0 0
        %2037 = vmatprep.subr.bf16.mxu0 0
        %2038 = vmatpush1.bf16.msra.mxu0 0
        %2039 = vmatprep.subr.bf16.mxu0 0
        %2040 = vmatpush1.bf16.msra.mxu0 0
        %2041 = vmatprep.subr.bf16.mxu0 0
        %2042 = vmatpush1.bf16.msra.mxu0 0
        %2043 = vmatprep.subr.bf16.mxu0 0
        %2044 = vmatpush1.bf16.msra.mxu0 0
        %2045 = vmatprep.subr.bf16.mxu0 0
        %2046 = vmatpush1.bf16.msra.mxu0 0
        %2047 = vmatprep.subr.bf16.mxu0 0
        %2048 = vmatpush1.bf16.msra.mxu0 0
        %2049 = vmatprep.subr.bf16.mxu0 0
        %2050 = vmatpush1.bf16.msra.mxu0 0
        %2051 = vmatprep.mubr.bf16.mxu0 0
        %2052 = vmatmul.mubr.bf16.gmra.mrb[0].mxu0 %v1903
        %v2053 = vpop.f32.mrb[0].mxu0
        %v2054 = vadd.f32 %v1932, %v2053
        %v2055 = vpop.f32.mrb[0].mxu0
        %v2056 = vadd.f32 %v1936, %v2055
        %v2057 = vpop.f32.mrb[0].mxu0
        %v2058 = vadd.f32 %v1932, %v2057
        %v2059 = vpop.f32.mrb[0].mxu0
        %v2060 = vadd.f32 %v1936, %v2059
        %2061 = vmatprep.mubr.bf16.mxu0 0
        %2062 = vmatmul.mubr.bf16.gmra.mrb[0].mxu0 %v1904
        %v2063 = vpop.f32.mrb[0].mxu0
        %v2064 = vadd.f32 %v1932, %v2063
        %v2065 = vpop.f32.mrb[0].mxu0
        %v2066 = vadd.f32 %v1936, %v2065
        %v2067 = vpop.f32.mrb[0].mxu0
        %v2068 = vadd.f32 %v1932, %v2067
        %v2069 = vpop.f32.mrb[0].mxu0
        %v2070 = vadd.f32 %v1936, %v2069
        %2071 = vmatprep.mubr.bf16.mxu0 0
        %2072 = vmatmul.mubr.bf16.gmra.mrb[0].mxu0 %v1905
        %v2073 = vpop.f32.mrb[0].mxu0
        %v2074 = vadd.f32 %v1932, %v2073
        %v2075 = vpop.f32.mrb[0].mxu0
        %v2076 = vadd.f32 %v1936, %v2075
        %v2077 = vpop.f32.mrb[0].mxu0
        %v2078 = vadd.f32 %v1932, %v2077
        %v2079 = vpop.f32.mrb[0].mxu0
        %v2080 = vadd.f32 %v1936, %v2079
        %2081 = vmatprep.mubr.bf16.mxu0 0
        %2082 = vmatmul.mubr.bf16.gmra.mrb[0].mxu0 %v1906
        %v2083 = vpop.f32.mrb[0].mxu0
        %v2084 = vadd.f32 %v1932, %v2083
        %v2085 = vpop.f32.mrb[0].mxu0
        %v2086 = vadd.f32 %v1936, %v2085
        %v2087 = vpop.f32.mrb[0].mxu0
        %v2088 = vadd.f32 %v1932, %v2087
        %v2089 = vpop.f32.mrb[0].mxu0
        %v2090 = vadd.f32 %v1936, %v2089
        %2091 = vmatprep.mubr.bf16.mxu0 0
        %2092 = vmatmul.mubr.bf16.gmra.mrb[0].mxu0 %v1907
        %v2093 = vpop.f32.mrb[0].mxu0
        %v2094 = vadd.f32 %v1932, %v2093
        %v2095 = vpop.f32.mrb[0].mxu0
        %v2096 = vadd.f32 %v1936, %v2095
        %v2097 = vpop.f32.mrb[0].mxu0
        %v2098 = vadd.f32 %v1932, %v2097
        %v2099 = vpop.f32.mrb[0].mxu0
        %v2100 = vadd.f32 %v1936, %v2099
        %2101 = vmatprep.mubr.bf16.mxu0 0
        %2102 = vmatmul.mubr.bf16.gmra.mrb[0].mxu0 %v1908
        %v2103 = vpop.f32.mrb[0].mxu0
        %v2104 = vadd.f32 %v1932, %v2103
        %v2105 = vpop.f32.mrb[0].mxu0
        %v2106 = vadd.f32 %v1936, %v2105
        %v2107 = vpop.f32.mrb[0].mxu0
        %v2108 = vadd.f32 %v1932, %v2107
        %v2109 = vpop.f32.mrb[0].mxu0
        %v2110 = vadd.f32 %v1936, %v2109
        %2111 = vmatprep.mubr.bf16.mxu0 0
        %2112 = vmatmul.mubr.bf16.gmra.mrb[0].mxu0 %v1909
        %v2113 = vpop.f32.mrb[0].mxu0
        %v2114 = vadd.f32 %v1932, %v2113
        %v2115 = vpop.f32.mrb[0].mxu0
        %v2116 = vadd.f32 %v1936, %v2115
        %v2117 = vpop.f32.mrb[0].mxu0
        %v2118 = vadd.f32 %v1932, %v2117
        %v2119 = vpop.f32.mrb[0].mxu0
        %v2120 = vadd.f32 %v1936, %v2119
        %2121 = vmatprep.mubr.bf16.mxu0 0
        %2122 = vmatmul.mubr.bf16.gmra.mrb[0].mxu0 %v1910
        %v2123 = vpop.f32.mrb[0].mxu0
        %v2124 = vadd.f32 %v1932, %v2123
        %v2125 = vpop.f32.mrb[0].mxu0
        %v2126 = vadd.f32 %v1936, %v2125
        %v2127 = vpop.f32.mrb[0].mxu0
        %v2128 = vadd.f32 %v1932, %v2127
        %v2129 = vpop.f32.mrb[0].mxu0
        %v2130 = vadd.f32 %v1936, %v2129
        %2131 = vdwg.mxu0
        %v2132 = vmax.f32 %v2054, 0.0
        %v2133 = vmax.f32 %v2056, 0.0
        %v2134 = vmax.f32 %v2058, 0.0
        %v2135 = vmax.f32 %v2060, 0.0
        %v2136 = vmax.f32 %v2064, 0.0
        %v2137 = vmax.f32 %v2066, 0.0
        %v2138 = vmax.f32 %v2068, 0.0
        %v2139 = vmax.f32 %v2070, 0.0
        %v2140 = vmax.f32 %v2074, 0.0
        %v2141 = vmax.f32 %v2076, 0.0
        %v2142 = vmax.f32 %v2078, 0.0
        %v2143 = vmax.f32 %v2080, 0.0
        %v2144 = vmax.f32 %v2084, 0.0
        %v2145 = vmax.f32 %v2086, 0.0
        %v2146 = vmax.f32 %v2088, 0.0
        %v2147 = vmax.f32 %v2090, 0.0
        %v2148 = vmax.f32 %v2094, 0.0
        %v2149 = vmax.f32 %v2096, 0.0
        %v2150 = vmax.f32 %v2098, 0.0
        %v2151 = vmax.f32 %v2100, 0.0
        %v2152 = vmax.f32 %v2104, 0.0
        %v2153 = vmax.f32 %v2106, 0.0
        %v2154 = vmax.f32 %v2108, 0.0
        %v2155 = vmax.f32 %v2110, 0.0
        %v2156 = vmax.f32 %v2114, 0.0
        %v2157 = vmax.f32 %v2116, 0.0
        %v2158 = vmax.f32 %v2118, 0.0
        %v2159 = vmax.f32 %v2120, 0.0
        %v2160 = vmax.f32 %v2124, 0.0
        %v2161 = vmax.f32 %v2126, 0.0
        %v2162 = vmax.f32 %v2128, 0.0
        %v2163 = vmax.f32 %v2130, 0.0
        %v2164 = vpack.c.bf16 %v2134, %v2132
        %v2165 = vpack.c.bf16 %v2135, %v2133
        %v2166 = vpack.c.bf16 %v2138, %v2136
        %v2167 = vpack.c.bf16 %v2139, %v2137
        %v2168 = vpack.c.bf16 %v2142, %v2140
        %v2169 = vpack.c.bf16 %v2143, %v2141
        %v2170 = vpack.c.bf16 %v2146, %v2144
        %v2171 = vpack.c.bf16 %v2147, %v2145
        %v2172 = vpack.c.bf16 %v2150, %v2148
        %v2173 = vpack.c.bf16 %v2151, %v2149
        %v2174 = vpack.c.bf16 %v2154, %v2152
        %v2175 = vpack.c.bf16 %v2155, %v2153
        %v2176 = vpack.c.bf16 %v2158, %v2156
        %v2177 = vpack.c.bf16 %v2159, %v2157
        %v2178 = vpack.c.bf16 %v2162, %v2160
        %v2179 = vpack.c.bf16 %v2163, %v2161
        %v2180 = vld [vmem:[%s1070] sm:$0xf]
        %v2181 = vld [vmem:[%s1070 + $0x4] sm:$0xf]
        %v2184 = vunpack.c.l.b16 %v2180
        %v2185 = vunpack.c.l.b16 %v2181
        %v2186 = vpack.c.b16 %v2185, %v2184
        %2188 = vmatprep.subr.bf16.mxu0 %v2165
        %2189 = vmatpush1.bf16.msra.mxu0 %v2164
        %2190 = vmatprep.subr.bf16.mxu0 %v2167
        %2191 = vmatpush1.bf16.msra.mxu0 %v2166
        %2192 = vmatprep.subr.bf16.mxu0 %v2169
        %2193 = vmatpush1.bf16.msra.mxu0 %v2168
        %2194 = vmatprep.subr.bf16.mxu0 %v2171
        %2195 = vmatpush1.bf16.msra.mxu0 %v2170
        %2196 = vmatprep.subr.bf16.mxu0 %v2173
        %2197 = vmatpush1.bf16.msra.mxu0 %v2172
        %2198 = vmatprep.subr.bf16.mxu0 %v2175
        %2199 = vmatpush1.bf16.msra.mxu0 %v2174
        %2200 = vmatprep.subr.bf16.mxu0 %v2177
        %2201 = vmatpush1.bf16.msra.mxu0 %v2176
        %2202 = vmatprep.subr.bf16.mxu0 %v2179
        %2203 = vmatpush1.bf16.msra.mxu0 %v2178
        %2204 = vmatprep.subr.bf16.mxu0 0
        %2205 = vmatpush1.bf16.msra.mxu0 0
        %2206 = vmatprep.subr.bf16.mxu0 0
        %2207 = vmatpush1.bf16.msra.mxu0 0
        %2208 = vmatprep.subr.bf16.mxu0 0
        %2209 = vmatpush1.bf16.msra.mxu0 0
        %2210 = vmatprep.subr.bf16.mxu0 0
        %2211 = vmatpush1.bf16.msra.mxu0 0
        %2212 = vmatprep.subr.bf16.mxu0 0
        %2213 = vmatpush1.bf16.msra.mxu0 0
        %2214 = vmatprep.subr.bf16.mxu0 0
        %2215 = vmatpush1.bf16.msra.mxu0 0
        %2216 = vmatprep.subr.bf16.mxu0 0
        %2217 = vmatpush1.bf16.msra.mxu0 0
        %2218 = vmatprep.subr.bf16.mxu0 0
        %2219 = vmatpush1.bf16.msra.mxu0 0
        %2220 = vmatprep.mubr.bf16.mxu0 0
        %2221 = vmatmul.mubr.bf16.gmra.mrb[0].mxu0 %v2186
        %v2222 = vpop.f32.mrb[0].mxu0
        %v2223 = vadd.f32 0.0, %v2222
        %v2224 = vpop.f32.mrb[0].mxu0
        %v2225 = vadd.f32 0.0, %v2224
        %v2226 = vpop.f32.mrb[0].mxu0
        %v2227 = vadd.f32 0.0, %v2226
        %v2228 = vpop.f32.mrb[0].mxu0
        %v2229 = vadd.f32 0.0, %v2228
        %2230 = vdwg.mxu0
        %v2231 = vld [vmem:[%s1075] sm:$0xff]
        %v2232 = vld [vmem:[%s1075 + $0x8] sm:$0xff]
        %2234 = vset.pattern.permute.xlu0 0
        %2235 = vperm.xlu0 %2234, %v2231
        %v2236 = vpop.permute.xlu0 %2235
        %2239 = vset.pattern.permute.xlu0 0
        %2240 = vperm.xlu0 %2239, %v2232
        %v2241 = vpop.permute.xlu0 %2240
        %v2243 = vmul.f32 %v2223, %v2236
        %v2244 = vmul.f32 %v2225, %v2236
        %v2245 = vmul.f32 %v2227, %v2241
        %v2246 = vmul.f32 %v2229, %v2241
        %v2247 = vpack.c.bf16 %v2245, %v2243
        %v2248 = vpack.c.bf16 %v2246, %v2244
        %v2249 = vld [vmem:[%s933] sm:$0xff]
        %v2250 = vld [vmem:[%s933 + $0x8] sm:$0xff]
        %v2251 = vld [vmem:[%s933 + $0x10] sm:$0xff]
        %v2252 = vld [vmem:[%s933 + $0x18] sm:$0xff]
        %v2253 = vld [vmem:[%s933 + $0x20] sm:$0xff]
        %v2254 = vld [vmem:[%s933 + $0x28] sm:$0xff]
        %v2255 = vld [vmem:[%s933 + $0x30] sm:$0xff]
        %v2256 = vld [vmem:[%s933 + $0x38] sm:$0xff]
        %v2257 = vld [vmem:[%s933 + $0x40] sm:$0xff]
        %v2258 = vld [vmem:[%s933 + $0x48] sm:$0xff]
        %v2259 = vld [vmem:[%s933 + $0x50] sm:$0xff]
        %v2260 = vld [vmem:[%s933 + $0x58] sm:$0xff]
        %v2261 = vld [vmem:[%s933 + $0x60] sm:$0xff]
        %v2262 = vld [vmem:[%s933 + $0x68] sm:$0xff]
        %v2263 = vld [vmem:[%s933 + $0x70] sm:$0xff]
        %v2264 = vld [vmem:[%s933 + $0x78] sm:$0xff]
        %v2265 = vld [vmem:[%s933 + $0x80] sm:$0xff]
        %v2266 = vld [vmem:[%s933 + $0x88] sm:$0xff]
        %v2267 = vld [vmem:[%s933 + $0x90] sm:$0xff]
        %v2268 = vld [vmem:[%s933 + $0x98] sm:$0xff]
        %v2269 = vld [vmem:[%s933 + $0xa0] sm:$0xff]
        %v2270 = vld [vmem:[%s933 + $0xa8] sm:$0xff]
        %v2271 = vld [vmem:[%s933 + $0xb0] sm:$0xff]
        %v2272 = vld [vmem:[%s933 + $0xb8] sm:$0xff]
        %v2273 = vld [vmem:[%s933 + $0xc0] sm:$0xff]
        %v2274 = vld [vmem:[%s933 + $0xc8] sm:$0xff]
        %v2275 = vld [vmem:[%s933 + $0xd0] sm:$0xff]
        %v2276 = vld [vmem:[%s933 + $0xd8] sm:$0xff]
        %v2277 = vld [vmem:[%s933 + $0xe0] sm:$0xff]
        %v2278 = vld [vmem:[%s933 + $0xe8] sm:$0xff]
        %v2279 = vld [vmem:[%s933 + $0xf0] sm:$0xff]
        %v2280 = vld [vmem:[%s933 + $0xf8] sm:$0xff]
        %v2281 = vld [vmem:[%s933 + $0x100] sm:$0xff]
        %v2282 = vld [vmem:[%s933 + $0x108] sm:$0xff]
        %v2283 = vld [vmem:[%s933 + $0x110] sm:$0xff]
        %v2284 = vld [vmem:[%s933 + $0x118] sm:$0xff]
        %v2285 = vld [vmem:[%s933 + $0x120] sm:$0xff]
        %v2286 = vld [vmem:[%s933 + $0x128] sm:$0xff]
        %v2287 = vld [vmem:[%s933 + $0x130] sm:$0xff]
        %v2288 = vld [vmem:[%s933 + $0x138] sm:$0xff]
        %v2289 = vld [vmem:[%s933 + $0x140] sm:$0xff]
        %v2290 = vld [vmem:[%s933 + $0x148] sm:$0xff]
        %v2291 = vld [vmem:[%s933 + $0x150] sm:$0xff]
        %v2292 = vld [vmem:[%s933 + $0x158] sm:$0xff]
        %v2293 = vld [vmem:[%s933 + $0x160] sm:$0xff]
        %v2294 = vld [vmem:[%s933 + $0x168] sm:$0xff]
        %v2295 = vld [vmem:[%s933 + $0x170] sm:$0xff]
        %v2296 = vld [vmem:[%s933 + $0x178] sm:$0xff]
        %v2297 = vld [vmem:[%s933 + $0x180] sm:$0xff]
        %v2298 = vld [vmem:[%s933 + $0x188] sm:$0xff]
        %v2299 = vld [vmem:[%s933 + $0x190] sm:$0xff]
        %v2300 = vld [vmem:[%s933 + $0x198] sm:$0xff]
        %v2301 = vld [vmem:[%s933 + $0x1a0] sm:$0xff]
        %v2302 = vld [vmem:[%s933 + $0x1a8] sm:$0xff]
        %v2303 = vld [vmem:[%s933 + $0x1b0] sm:$0xff]
        %v2304 = vld [vmem:[%s933 + $0x1b8] sm:$0xff]
        %v2305 = vld [vmem:[%s933 + $0x1c0] sm:$0xff]
        %v2306 = vld [vmem:[%s933 + $0x1c8] sm:$0xff]
        %v2307 = vld [vmem:[%s933 + $0x1d0] sm:$0xff]
        %v2308 = vld [vmem:[%s933 + $0x1d8] sm:$0xff]
        %v2309 = vld [vmem:[%s933 + $0x1e0] sm:$0xff]
        %v2310 = vld [vmem:[%s933 + $0x1e8] sm:$0xff]
        %v2311 = vld [vmem:[%s933 + $0x1f0] sm:$0xff]
        %v2312 = vld [vmem:[%s933 + $0x1f8] sm:$0xff]
        %v2313 = vld [vmem:[%s933 + $0x200] sm:$0xff]
        %v2314 = vld [vmem:[%s933 + $0x208] sm:$0xff]
        %v2315 = vld [vmem:[%s933 + $0x210] sm:$0xff]
        %v2316 = vld [vmem:[%s933 + $0x218] sm:$0xff]
        %v2317 = vld [vmem:[%s933 + $0x220] sm:$0xff]
        %v2318 = vld [vmem:[%s933 + $0x228] sm:$0xff]
        %v2319 = vld [vmem:[%s933 + $0x230] sm:$0xff]
        %v2320 = vld [vmem:[%s933 + $0x238] sm:$0xff]
        %v2321 = vld [vmem:[%s933 + $0x240] sm:$0xff]
        %v2322 = vld [vmem:[%s933 + $0x248] sm:$0xff]
        %v2323 = vld [vmem:[%s933 + $0x250] sm:$0xff]
        %v2324 = vld [vmem:[%s933 + $0x258] sm:$0xff]
        %v2325 = vld [vmem:[%s933 + $0x260] sm:$0xff]
        %v2326 = vld [vmem:[%s933 + $0x268] sm:$0xff]
        %v2327 = vld [vmem:[%s933 + $0x270] sm:$0xff]
        %v2328 = vld [vmem:[%s933 + $0x278] sm:$0xff]
        %v2329 = vld [vmem:[%s933 + $0x280] sm:$0xff]
        %v2330 = vld [vmem:[%s933 + $0x288] sm:$0xff]
        %v2331 = vld [vmem:[%s933 + $0x290] sm:$0xff]
        %v2332 = vld [vmem:[%s933 + $0x298] sm:$0xff]
        %v2333 = vld [vmem:[%s933 + $0x2a0] sm:$0xff]
        %v2334 = vld [vmem:[%s933 + $0x2a8] sm:$0xff]
        %v2335 = vld [vmem:[%s933 + $0x2b0] sm:$0xff]
        %v2336 = vld [vmem:[%s933 + $0x2b8] sm:$0xff]
        %v2337 = vld [vmem:[%s933 + $0x2c0] sm:$0xff]
        %v2338 = vld [vmem:[%s933 + $0x2c8] sm:$0xff]
        %v2339 = vld [vmem:[%s933 + $0x2d0] sm:$0xff]
        %v2340 = vld [vmem:[%s933 + $0x2d8] sm:$0xff]
        %v2341 = vld [vmem:[%s933 + $0x2e0] sm:$0xff]
        %v2342 = vld [vmem:[%s933 + $0x2e8] sm:$0xff]
        %v2343 = vld [vmem:[%s933 + $0x2f0] sm:$0xff]
        %v2344 = vld [vmem:[%s933 + $0x2f8] sm:$0xff]
        %v2345 = vld [vmem:[%s933 + $0x300] sm:$0xff]
        %v2346 = vld [vmem:[%s933 + $0x308] sm:$0xff]
        %v2347 = vld [vmem:[%s933 + $0x310] sm:$0xff]
        %v2348 = vld [vmem:[%s933 + $0x318] sm:$0xff]
        %v2349 = vld [vmem:[%s933 + $0x320] sm:$0xff]
        %v2350 = vld [vmem:[%s933 + $0x328] sm:$0xff]
        %v2351 = vld [vmem:[%s933 + $0x330] sm:$0xff]
        %v2352 = vld [vmem:[%s933 + $0x338] sm:$0xff]
        %v2353 = vld [vmem:[%s933 + $0x340] sm:$0xff]
        %v2354 = vld [vmem:[%s933 + $0x348] sm:$0xff]
        %v2355 = vld [vmem:[%s933 + $0x350] sm:$0xff]
        %v2356 = vld [vmem:[%s933 + $0x358] sm:$0xff]
        %v2357 = vld [vmem:[%s933 + $0x360] sm:$0xff]
        %v2358 = vld [vmem:[%s933 + $0x368] sm:$0xff]
        %v2359 = vld [vmem:[%s933 + $0x370] sm:$0xff]
        %v2360 = vld [vmem:[%s933 + $0x378] sm:$0xff]
        %v2361 = vld [vmem:[%s933 + $0x380] sm:$0xff]
        %v2362 = vld [vmem:[%s933 + $0x388] sm:$0xff]
        %v2363 = vld [vmem:[%s933 + $0x390] sm:$0xff]
        %v2364 = vld [vmem:[%s933 + $0x398] sm:$0xff]
        %v2365 = vld [vmem:[%s933 + $0x3a0] sm:$0xff]
        %v2366 = vld [vmem:[%s933 + $0x3a8] sm:$0xff]
        %v2367 = vld [vmem:[%s933 + $0x3b0] sm:$0xff]
        %v2368 = vld [vmem:[%s933 + $0x3b8] sm:$0xff]
        %v2369 = vld [vmem:[%s933 + $0x3c0] sm:$0xff]
        %v2370 = vld [vmem:[%s933 + $0x3c8] sm:$0xff]
        %v2371 = vld [vmem:[%s933 + $0x3d0] sm:$0xff]
        %v2372 = vld [vmem:[%s933 + $0x3d8] sm:$0xff]
        %v2373 = vld [vmem:[%s933 + $0x3e0] sm:$0xff]
        %v2374 = vld [vmem:[%s933 + $0x3e8] sm:$0xff]
        %v2375 = vld [vmem:[%s933 + $0x3f0] sm:$0xff]
        %v2376 = vld [vmem:[%s933 + $0x3f8] sm:$0xff]
        %v2377 = vld [vmem:[%s1079] sm:$0xff]
        %v2379 = vlaneseq
        %v2380 = vshrl.u32 %v2379, 7
        %v2381 = vsub.s32 0, %v2380
        %v2382 = vrot.slane %v2377, %v2381
        %v2383 = vlaneseq
        %v2384 = vshrl.u32 %v2383, 7
        %v2385 = vsub.s32 1, %v2384
        %v2386 = vrot.slane %v2377, %v2385
        %v2387 = vlaneseq
        %v2388 = vshrl.u32 %v2387, 7
        %v2389 = vsub.s32 2, %v2388
        %v2390 = vrot.slane %v2377, %v2389
        %v2391 = vlaneseq
        %v2392 = vshrl.u32 %v2391, 7
        %v2393 = vsub.s32 3, %v2392
        %v2394 = vrot.slane %v2377, %v2393
        %v2395 = vlaneseq
        %v2396 = vshrl.u32 %v2395, 7
        %v2397 = vsub.s32 4, %v2396
        %v2398 = vrot.slane %v2377, %v2397
        %v2399 = vlaneseq
        %v2400 = vshrl.u32 %v2399, 7
        %v2401 = vsub.s32 5, %v2400
        %v2402 = vrot.slane %v2377, %v2401
        %v2403 = vlaneseq
        %v2404 = vshrl.u32 %v2403, 7
        %v2405 = vsub.s32 6, %v2404
        %v2406 = vrot.slane %v2377, %v2405
        %v2407 = vlaneseq
        %v2408 = vshrl.u32 %v2407, 7
        %v2409 = vsub.s32 7, %v2408
        %v2410 = vrot.slane %v2377, %v2409
        %v2547 = vunpack.c.l.b16 %v2249
        %v2548 = vunpack.c.h.b16 %v2249
        %v2549 = vunpack.c.l.b16 %v2250
        %v2550 = vunpack.c.h.b16 %v2250
        %v2551 = vunpack.c.l.b16 %v2251
        %v2552 = vunpack.c.h.b16 %v2251
        %v2553 = vunpack.c.l.b16 %v2252
        %v2554 = vunpack.c.h.b16 %v2252
        %v2555 = vunpack.c.l.b16 %v2253
        %v2556 = vunpack.c.h.b16 %v2253
        %v2557 = vunpack.c.l.b16 %v2254
        %v2558 = vunpack.c.h.b16 %v2254
        %v2559 = vunpack.c.l.b16 %v2255
        %v2560 = vunpack.c.h.b16 %v2255
        %v2561 = vunpack.c.l.b16 %v2256
        %v2562 = vunpack.c.h.b16 %v2256
        %v2563 = vunpack.c.l.b16 %v2257
        %v2564 = vunpack.c.h.b16 %v2257
        %v2565 = vunpack.c.l.b16 %v2258
        %v2566 = vunpack.c.h.b16 %v2258
        %v2567 = vunpack.c.l.b16 %v2259
        %v2568 = vunpack.c.h.b16 %v2259
        %v2569 = vunpack.c.l.b16 %v2260
        %v2570 = vunpack.c.h.b16 %v2260
        %v2571 = vunpack.c.l.b16 %v2261
        %v2572 = vunpack.c.h.b16 %v2261
        %v2573 = vunpack.c.l.b16 %v2262
        %v2574 = vunpack.c.h.b16 %v2262
        %v2575 = vunpack.c.l.b16 %v2263
        %v2576 = vunpack.c.h.b16 %v2263
        %v2577 = vunpack.c.l.b16 %v2264
        %v2578 = vunpack.c.h.b16 %v2264
        %v2579 = vunpack.c.l.b16 %v2265
        %v2580 = vunpack.c.h.b16 %v2265
        %v2581 = vunpack.c.l.b16 %v2266
        %v2582 = vunpack.c.h.b16 %v2266
        %v2583 = vunpack.c.l.b16 %v2267
        %v2584 = vunpack.c.h.b16 %v2267
        %v2585 = vunpack.c.l.b16 %v2268
        %v2586 = vunpack.c.h.b16 %v2268
        %v2587 = vunpack.c.l.b16 %v2269
        %v2588 = vunpack.c.h.b16 %v2269
        %v2589 = vunpack.c.l.b16 %v2270
        %v2590 = vunpack.c.h.b16 %v2270
        %v2591 = vunpack.c.l.b16 %v2271
        %v2592 = vunpack.c.h.b16 %v2271
        %v2593 = vunpack.c.l.b16 %v2272
        %v2594 = vunpack.c.h.b16 %v2272
        %v2595 = vunpack.c.l.b16 %v2273
        %v2596 = vunpack.c.h.b16 %v2273
        %v2597 = vunpack.c.l.b16 %v2274
        %v2598 = vunpack.c.h.b16 %v2274
        %v2599 = vunpack.c.l.b16 %v2275
        %v2600 = vunpack.c.h.b16 %v2275
        %v2601 = vunpack.c.l.b16 %v2276
        %v2602 = vunpack.c.h.b16 %v2276
        %v2603 = vunpack.c.l.b16 %v2277
        %v2604 = vunpack.c.h.b16 %v2277
        %v2605 = vunpack.c.l.b16 %v2278
        %v2606 = vunpack.c.h.b16 %v2278
        %v2607 = vunpack.c.l.b16 %v2279
        %v2608 = vunpack.c.h.b16 %v2279
        %v2609 = vunpack.c.l.b16 %v2280
        %v2610 = vunpack.c.h.b16 %v2280
        %v2611 = vunpack.c.l.b16 %v2281
        %v2612 = vunpack.c.h.b16 %v2281
        %v2613 = vunpack.c.l.b16 %v2282
        %v2614 = vunpack.c.h.b16 %v2282
        %v2615 = vunpack.c.l.b16 %v2283
        %v2616 = vunpack.c.h.b16 %v2283
        %v2617 = vunpack.c.l.b16 %v2284
        %v2618 = vunpack.c.h.b16 %v2284
        %v2619 = vunpack.c.l.b16 %v2285
        %v2620 = vunpack.c.h.b16 %v2285
        %v2621 = vunpack.c.l.b16 %v2286
        %v2622 = vunpack.c.h.b16 %v2286
        %v2623 = vunpack.c.l.b16 %v2287
        %v2624 = vunpack.c.h.b16 %v2287
        %v2625 = vunpack.c.l.b16 %v2288
        %v2626 = vunpack.c.h.b16 %v2288
        %v2627 = vunpack.c.l.b16 %v2289
        %v2628 = vunpack.c.h.b16 %v2289
        %v2629 = vunpack.c.l.b16 %v2290
        %v2630 = vunpack.c.h.b16 %v2290
        %v2631 = vunpack.c.l.b16 %v2291
        %v2632 = vunpack.c.h.b16 %v2291
        %v2633 = vunpack.c.l.b16 %v2292
        %v2634 = vunpack.c.h.b16 %v2292
        %v2635 = vunpack.c.l.b16 %v2293
        %v2636 = vunpack.c.h.b16 %v2293
        %v2637 = vunpack.c.l.b16 %v2294
        %v2638 = vunpack.c.h.b16 %v2294
        %v2639 = vunpack.c.l.b16 %v2295
        %v2640 = vunpack.c.h.b16 %v2295
        %v2641 = vunpack.c.l.b16 %v2296
        %v2642 = vunpack.c.h.b16 %v2296
        %v2643 = vunpack.c.l.b16 %v2297
        %v2644 = vunpack.c.h.b16 %v2297
        %v2645 = vunpack.c.l.b16 %v2298
        %v2646 = vunpack.c.h.b16 %v2298
        %v2647 = vunpack.c.l.b16 %v2299
        %v2648 = vunpack.c.h.b16 %v2299
        %v2649 = vunpack.c.l.b16 %v2300
        %v2650 = vunpack.c.h.b16 %v2300
        %v2651 = vunpack.c.l.b16 %v2301
        %v2652 = vunpack.c.h.b16 %v2301
        %v2653 = vunpack.c.l.b16 %v2302
        %v2654 = vunpack.c.h.b16 %v2302
        %v2655 = vunpack.c.l.b16 %v2303
        %v2656 = vunpack.c.h.b16 %v2303
        %v2657 = vunpack.c.l.b16 %v2304
        %v2658 = vunpack.c.h.b16 %v2304
        %v2659 = vunpack.c.l.b16 %v2305
        %v2660 = vunpack.c.h.b16 %v2305
        %v2661 = vunpack.c.l.b16 %v2306
        %v2662 = vunpack.c.h.b16 %v2306
        %v2663 = vunpack.c.l.b16 %v2307
        %v2664 = vunpack.c.h.b16 %v2307
        %v2665 = vunpack.c.l.b16 %v2308
        %v2666 = vunpack.c.h.b16 %v2308
        %v2667 = vunpack.c.l.b16 %v2309
        %v2668 = vunpack.c.h.b16 %v2309
        %v2669 = vunpack.c.l.b16 %v2310
        %v2670 = vunpack.c.h.b16 %v2310
        %v2671 = vunpack.c.l.b16 %v2311
        %v2672 = vunpack.c.h.b16 %v2311
        %v2673 = vunpack.c.l.b16 %v2312
        %v2674 = vunpack.c.h.b16 %v2312
        %v2675 = vunpack.c.l.b16 %v2313
        %v2676 = vunpack.c.h.b16 %v2313
        %v2677 = vunpack.c.l.b16 %v2314
        %v2678 = vunpack.c.h.b16 %v2314
        %v2679 = vunpack.c.l.b16 %v2315
        %v2680 = vunpack.c.h.b16 %v2315
        %v2681 = vunpack.c.l.b16 %v2316
        %v2682 = vunpack.c.h.b16 %v2316
        %v2683 = vunpack.c.l.b16 %v2317
        %v2684 = vunpack.c.h.b16 %v2317
        %v2685 = vunpack.c.l.b16 %v2318
        %v2686 = vunpack.c.h.b16 %v2318
        %v2687 = vunpack.c.l.b16 %v2319
        %v2688 = vunpack.c.h.b16 %v2319
        %v2689 = vunpack.c.l.b16 %v2320
        %v2690 = vunpack.c.h.b16 %v2320
        %v2691 = vunpack.c.l.b16 %v2321
        %v2692 = vunpack.c.h.b16 %v2321
        %v2693 = vunpack.c.l.b16 %v2322
        %v2694 = vunpack.c.h.b16 %v2322
        %v2695 = vunpack.c.l.b16 %v2323
        %v2696 = vunpack.c.h.b16 %v2323
        %v2697 = vunpack.c.l.b16 %v2324
        %v2698 = vunpack.c.h.b16 %v2324
        %v2699 = vunpack.c.l.b16 %v2325
        %v2700 = vunpack.c.h.b16 %v2325
        %v2701 = vunpack.c.l.b16 %v2326
        %v2702 = vunpack.c.h.b16 %v2326
        %v2703 = vunpack.c.l.b16 %v2327
        %v2704 = vunpack.c.h.b16 %v2327
        %v2705 = vunpack.c.l.b16 %v2328
        %v2706 = vunpack.c.h.b16 %v2328
        %v2707 = vunpack.c.l.b16 %v2329
        %v2708 = vunpack.c.h.b16 %v2329
        %v2709 = vunpack.c.l.b16 %v2330
        %v2710 = vunpack.c.h.b16 %v2330
        %v2711 = vunpack.c.l.b16 %v2331
        %v2712 = vunpack.c.h.b16 %v2331
        %v2713 = vunpack.c.l.b16 %v2332
        %v2714 = vunpack.c.h.b16 %v2332
        %v2715 = vunpack.c.l.b16 %v2333
        %v2716 = vunpack.c.h.b16 %v2333
        %v2717 = vunpack.c.l.b16 %v2334
        %v2718 = vunpack.c.h.b16 %v2334
        %v2719 = vunpack.c.l.b16 %v2335
        %v2720 = vunpack.c.h.b16 %v2335
        %v2721 = vunpack.c.l.b16 %v2336
        %v2722 = vunpack.c.h.b16 %v2336
        %v2723 = vunpack.c.l.b16 %v2337
        %v2724 = vunpack.c.h.b16 %v2337
        %v2725 = vunpack.c.l.b16 %v2338
        %v2726 = vunpack.c.h.b16 %v2338
        %v2727 = vunpack.c.l.b16 %v2339
        %v2728 = vunpack.c.h.b16 %v2339
        %v2729 = vunpack.c.l.b16 %v2340
        %v2730 = vunpack.c.h.b16 %v2340
        %v2731 = vunpack.c.l.b16 %v2341
        %v2732 = vunpack.c.h.b16 %v2341
        %v2733 = vunpack.c.l.b16 %v2342
        %v2734 = vunpack.c.h.b16 %v2342
        %v2735 = vunpack.c.l.b16 %v2343
        %v2736 = vunpack.c.h.b16 %v2343
        %v2737 = vunpack.c.l.b16 %v2344
        %v2738 = vunpack.c.h.b16 %v2344
        %v2739 = vunpack.c.l.b16 %v2345
        %v2740 = vunpack.c.h.b16 %v2345
        %v2741 = vunpack.c.l.b16 %v2346
        %v2742 = vunpack.c.h.b16 %v2346
        %v2743 = vunpack.c.l.b16 %v2347
        %v2744 = vunpack.c.h.b16 %v2347
        %v2745 = vunpack.c.l.b16 %v2348
        %v2746 = vunpack.c.h.b16 %v2348
        %v2747 = vunpack.c.l.b16 %v2349
        %v2748 = vunpack.c.h.b16 %v2349
        %v2749 = vunpack.c.l.b16 %v2350
        %v2750 = vunpack.c.h.b16 %v2350
        %v2751 = vunpack.c.l.b16 %v2351
        %v2752 = vunpack.c.h.b16 %v2351
        %v2753 = vunpack.c.l.b16 %v2352
        %v2754 = vunpack.c.h.b16 %v2352
        %v2755 = vunpack.c.l.b16 %v2353
        %v2756 = vunpack.c.h.b16 %v2353
        %v2757 = vunpack.c.l.b16 %v2354
        %v2758 = vunpack.c.h.b16 %v2354
        %v2759 = vunpack.c.l.b16 %v2355
        %v2760 = vunpack.c.h.b16 %v2355
        %v2761 = vunpack.c.l.b16 %v2356
        %v2762 = vunpack.c.h.b16 %v2356
        %v2763 = vunpack.c.l.b16 %v2357
        %v2764 = vunpack.c.h.b16 %v2357
        %v2765 = vunpack.c.l.b16 %v2358
        %v2766 = vunpack.c.h.b16 %v2358
        %v2767 = vunpack.c.l.b16 %v2359
        %v2768 = vunpack.c.h.b16 %v2359
        %v2769 = vunpack.c.l.b16 %v2360
        %v2770 = vunpack.c.h.b16 %v2360
        %v2771 = vunpack.c.l.b16 %v2361
        %v2772 = vunpack.c.h.b16 %v2361
        %v2773 = vunpack.c.l.b16 %v2362
        %v2774 = vunpack.c.h.b16 %v2362
        %v2775 = vunpack.c.l.b16 %v2363
        %v2776 = vunpack.c.h.b16 %v2363
        %v2777 = vunpack.c.l.b16 %v2364
        %v2778 = vunpack.c.h.b16 %v2364
        %v2779 = vunpack.c.l.b16 %v2365
        %v2780 = vunpack.c.h.b16 %v2365
        %v2781 = vunpack.c.l.b16 %v2366
        %v2782 = vunpack.c.h.b16 %v2366
        %v2783 = vunpack.c.l.b16 %v2367
        %v2784 = vunpack.c.h.b16 %v2367
        %v2785 = vunpack.c.l.b16 %v2368
        %v2786 = vunpack.c.h.b16 %v2368
        %v2787 = vunpack.c.l.b16 %v2369
        %v2788 = vunpack.c.h.b16 %v2369
        %v2789 = vunpack.c.l.b16 %v2370
        %v2790 = vunpack.c.h.b16 %v2370
        %v2791 = vunpack.c.l.b16 %v2371
        %v2792 = vunpack.c.h.b16 %v2371
        %v2793 = vunpack.c.l.b16 %v2372
        %v2794 = vunpack.c.h.b16 %v2372
        %v2795 = vunpack.c.l.b16 %v2373
        %v2796 = vunpack.c.h.b16 %v2373
        %v2797 = vunpack.c.l.b16 %v2374
        %v2798 = vunpack.c.h.b16 %v2374
        %v2799 = vunpack.c.l.b16 %v2375
        %v2800 = vunpack.c.h.b16 %v2375
        %v2801 = vunpack.c.l.b16 %v2376
        %v2802 = vunpack.c.h.b16 %v2376
        %v2803 = vpack.c.b16 %v2555, %v2547
        %v2804 = vpack.c.b16 %v2556, %v2548
        %v2805 = vpack.c.b16 %v2557, %v2549
        %v2806 = vpack.c.b16 %v2558, %v2550
        %v2807 = vpack.c.b16 %v2559, %v2551
        %v2808 = vpack.c.b16 %v2560, %v2552
        %v2809 = vpack.c.b16 %v2561, %v2553
        %v2810 = vpack.c.b16 %v2562, %v2554
        %v2811 = vpack.c.b16 %v2571, %v2563
        %v2812 = vpack.c.b16 %v2572, %v2564
        %v2813 = vpack.c.b16 %v2573, %v2565
        %v2814 = vpack.c.b16 %v2574, %v2566
        %v2815 = vpack.c.b16 %v2575, %v2567
        %v2816 = vpack.c.b16 %v2576, %v2568
        %v2817 = vpack.c.b16 %v2577, %v2569
        %v2818 = vpack.c.b16 %v2578, %v2570
        %v2819 = vpack.c.b16 %v2587, %v2579
        %v2820 = vpack.c.b16 %v2588, %v2580
        %v2821 = vpack.c.b16 %v2589, %v2581
        %v2822 = vpack.c.b16 %v2590, %v2582
        %v2823 = vpack.c.b16 %v2591, %v2583
        %v2824 = vpack.c.b16 %v2592, %v2584
        %v2825 = vpack.c.b16 %v2593, %v2585
        %v2826 = vpack.c.b16 %v2594, %v2586
        %v2827 = vpack.c.b16 %v2603, %v2595
        %v2828 = vpack.c.b16 %v2604, %v2596
        %v2829 = vpack.c.b16 %v2605, %v2597
        %v2830 = vpack.c.b16 %v2606, %v2598
        %v2831 = vpack.c.b16 %v2607, %v2599
        %v2832 = vpack.c.b16 %v2608, %v2600
        %v2833 = vpack.c.b16 %v2609, %v2601
        %v2834 = vpack.c.b16 %v2610, %v2602
        %v2835 = vpack.c.b16 %v2619, %v2611
        %v2836 = vpack.c.b16 %v2620, %v2612
        %v2837 = vpack.c.b16 %v2621, %v2613
        %v2838 = vpack.c.b16 %v2622, %v2614
        %v2839 = vpack.c.b16 %v2623, %v2615
        %v2840 = vpack.c.b16 %v2624, %v2616
        %v2841 = vpack.c.b16 %v2625, %v2617
        %v2842 = vpack.c.b16 %v2626, %v2618
        %v2843 = vpack.c.b16 %v2635, %v2627
        %v2844 = vpack.c.b16 %v2636, %v2628
        %v2845 = vpack.c.b16 %v2637, %v2629
        %v2846 = vpack.c.b16 %v2638, %v2630
        %v2847 = vpack.c.b16 %v2639, %v2631
        %v2848 = vpack.c.b16 %v2640, %v2632
        %v2849 = vpack.c.b16 %v2641, %v2633
        %v2850 = vpack.c.b16 %v2642, %v2634
        %v2851 = vpack.c.b16 %v2651, %v2643
        %v2852 = vpack.c.b16 %v2652, %v2644
        %v2853 = vpack.c.b16 %v2653, %v2645
        %v2854 = vpack.c.b16 %v2654, %v2646
        %v2855 = vpack.c.b16 %v2655, %v2647
        %v2856 = vpack.c.b16 %v2656, %v2648
        %v2857 = vpack.c.b16 %v2657, %v2649
        %v2858 = vpack.c.b16 %v2658, %v2650
        %v2859 = vpack.c.b16 %v2667, %v2659
        %v2860 = vpack.c.b16 %v2668, %v2660
        %v2861 = vpack.c.b16 %v2669, %v2661
        %v2862 = vpack.c.b16 %v2670, %v2662
        %v2863 = vpack.c.b16 %v2671, %v2663
        %v2864 = vpack.c.b16 %v2672, %v2664
        %v2865 = vpack.c.b16 %v2673, %v2665
        %v2866 = vpack.c.b16 %v2674, %v2666
        %v2867 = vpack.c.b16 %v2683, %v2675
        %v2868 = vpack.c.b16 %v2684, %v2676
        %v2869 = vpack.c.b16 %v2685, %v2677
        %v2870 = vpack.c.b16 %v2686, %v2678
        %v2871 = vpack.c.b16 %v2687, %v2679
        %v2872 = vpack.c.b16 %v2688, %v2680
        %v2873 = vpack.c.b16 %v2689, %v2681
        %v2874 = vpack.c.b16 %v2690, %v2682
        %v2875 = vpack.c.b16 %v2699, %v2691
        %v2876 = vpack.c.b16 %v2700, %v2692
        %v2877 = vpack.c.b16 %v2701, %v2693
        %v2878 = vpack.c.b16 %v2702, %v2694
        %v2879 = vpack.c.b16 %v2703, %v2695
        %v2880 = vpack.c.b16 %v2704, %v2696
        %v2881 = vpack.c.b16 %v2705, %v2697
        %v2882 = vpack.c.b16 %v2706, %v2698
        %v2883 = vpack.c.b16 %v2715, %v2707
        %v2884 = vpack.c.b16 %v2716, %v2708
        %v2885 = vpack.c.b16 %v2717, %v2709
        %v2886 = vpack.c.b16 %v2718, %v2710
        %v2887 = vpack.c.b16 %v2719, %v2711
        %v2888 = vpack.c.b16 %v2720, %v2712
        %v2889 = vpack.c.b16 %v2721, %v2713
        %v2890 = vpack.c.b16 %v2722, %v2714
        %v2891 = vpack.c.b16 %v2731, %v2723
        %v2892 = vpack.c.b16 %v2732, %v2724
        %v2893 = vpack.c.b16 %v2733, %v2725
        %v2894 = vpack.c.b16 %v2734, %v2726
        %v2895 = vpack.c.b16 %v2735, %v2727
        %v2896 = vpack.c.b16 %v2736, %v2728
        %v2897 = vpack.c.b16 %v2737, %v2729
        %v2898 = vpack.c.b16 %v2738, %v2730
        %v2899 = vpack.c.b16 %v2747, %v2739
        %v2900 = vpack.c.b16 %v2748, %v2740
        %v2901 = vpack.c.b16 %v2749, %v2741
        %v2902 = vpack.c.b16 %v2750, %v2742
        %v2903 = vpack.c.b16 %v2751, %v2743
        %v2904 = vpack.c.b16 %v2752, %v2744
        %v2905 = vpack.c.b16 %v2753, %v2745
        %v2906 = vpack.c.b16 %v2754, %v2746
        %v2907 = vpack.c.b16 %v2763, %v2755
        %v2908 = vpack.c.b16 %v2764, %v2756
        %v2909 = vpack.c.b16 %v2765, %v2757
        %v2910 = vpack.c.b16 %v2766, %v2758
        %v2911 = vpack.c.b16 %v2767, %v2759
        %v2912 = vpack.c.b16 %v2768, %v2760
        %v2913 = vpack.c.b16 %v2769, %v2761
        %v2914 = vpack.c.b16 %v2770, %v2762
        %v2915 = vpack.c.b16 %v2779, %v2771
        %v2916 = vpack.c.b16 %v2780, %v2772
        %v2917 = vpack.c.b16 %v2781, %v2773
        %v2918 = vpack.c.b16 %v2782, %v2774
        %v2919 = vpack.c.b16 %v2783, %v2775
        %v2920 = vpack.c.b16 %v2784, %v2776
        %v2921 = vpack.c.b16 %v2785, %v2777
        %v2922 = vpack.c.b16 %v2786, %v2778
        %v2923 = vpack.c.b16 %v2795, %v2787
        %v2924 = vpack.c.b16 %v2796, %v2788
        %v2925 = vpack.c.b16 %v2797, %v2789
        %v2926 = vpack.c.b16 %v2798, %v2790
        %v2927 = vpack.c.b16 %v2799, %v2791
        %v2928 = vpack.c.b16 %v2800, %v2792
        %v2929 = vpack.c.b16 %v2801, %v2793
        %v2930 = vpack.c.b16 %v2802, %v2794
        %3059 = vmatprep.subr.bf16.mxu0 %v2804
        %3060 = vmatpush1.bf16.msra.mxu0 %v2803
        %3061 = vmatprep.subr.bf16.mxu0 %v2812
        %3062 = vmatpush1.bf16.msra.mxu0 %v2811
        %3063 = vmatprep.subr.bf16.mxu0 %v2820
        %3064 = vmatpush1.bf16.msra.mxu0 %v2819
        %3065 = vmatprep.subr.bf16.mxu0 %v2828
        %3066 = vmatpush1.bf16.msra.mxu0 %v2827
        %3067 = vmatprep.subr.bf16.mxu0 %v2836
        %3068 = vmatpush1.bf16.msra.mxu0 %v2835
        %3069 = vmatprep.subr.bf16.mxu0 %v2844
        %3070 = vmatpush1.bf16.msra.mxu0 %v2843
        %3071 = vmatprep.subr.bf16.mxu0 %v2852
        %3072 = vmatpush1.bf16.msra.mxu0 %v2851
        %3073 = vmatprep.subr.bf16.mxu0 %v2860
        %3074 = vmatpush1.bf16.msra.mxu0 %v2859
        %3075 = vmatprep.subr.bf16.mxu0 %v2868
        %3076 = vmatpush1.bf16.msra.mxu0 %v2867
        %3077 = vmatprep.subr.bf16.mxu0 %v2876
        %3078 = vmatpush1.bf16.msra.mxu0 %v2875
        %3079 = vmatprep.subr.bf16.mxu0 %v2884
        %3080 = vmatpush1.bf16.msra.mxu0 %v2883
        %3081 = vmatprep.subr.bf16.mxu0 %v2892
        %3082 = vmatpush1.bf16.msra.mxu0 %v2891
        %3083 = vmatprep.subr.bf16.mxu0 %v2900
        %3084 = vmatpush1.bf16.msra.mxu0 %v2899
        %3085 = vmatprep.subr.bf16.mxu0 %v2908
        %3086 = vmatpush1.bf16.msra.mxu0 %v2907
        %3087 = vmatprep.subr.bf16.mxu0 %v2916
        %3088 = vmatpush1.bf16.msra.mxu0 %v2915
        %3089 = vmatprep.subr.bf16.mxu0 %v2924
        %3090 = vmatpush1.bf16.msra.mxu0 %v2923
        %3091 = vmatprep.mubr.bf16.mxu0 %v2248
        %3092 = vmatmul.mubr.bf16.gmra.mrb[0].mxu0 %v2247
        %v3093 = vpop.f32.mrb[0].mxu0
        %v3094 = vadd.f32 %v2382, %v3093
        %v3095 = vpop.f32.mrb[0].mxu0
        %v3096 = vadd.f32 %v2386, %v3095
        %v3097 = vpop.f32.mrb[0].mxu0
        %v3098 = vadd.f32 %v2382, %v3097
        %v3099 = vpop.f32.mrb[0].mxu0
        %v3100 = vadd.f32 %v2386, %v3099
        %3101 = vdwg.mxu0
        %3102 = vmatprep.subr.bf16.mxu0 %v2806
        %3103 = vmatpush1.bf16.msra.mxu0 %v2805
        %3104 = vmatprep.subr.bf16.mxu0 %v2814
        %3105 = vmatpush1.bf16.msra.mxu0 %v2813
        %3106 = vmatprep.subr.bf16.mxu0 %v2822
        %3107 = vmatpush1.bf16.msra.mxu0 %v2821
        %3108 = vmatprep.subr.bf16.mxu0 %v2830
        %3109 = vmatpush1.bf16.msra.mxu0 %v2829
        %3110 = vmatprep.subr.bf16.mxu0 %v2838
        %3111 = vmatpush1.bf16.msra.mxu0 %v2837
        %3112 = vmatprep.subr.bf16.mxu0 %v2846
        %3113 = vmatpush1.bf16.msra.mxu0 %v2845
        %3114 = vmatprep.subr.bf16.mxu0 %v2854
        %3115 = vmatpush1.bf16.msra.mxu0 %v2853
        %3116 = vmatprep.subr.bf16.mxu0 %v2862
        %3117 = vmatpush1.bf16.msra.mxu0 %v2861
        %3118 = vmatprep.subr.bf16.mxu0 %v2870
        %3119 = vmatpush1.bf16.msra.mxu0 %v2869
        %3120 = vmatprep.subr.bf16.mxu0 %v2878
        %3121 = vmatpush1.bf16.msra.mxu0 %v2877
        %3122 = vmatprep.subr.bf16.mxu0 %v2886
        %3123 = vmatpush1.bf16.msra.mxu0 %v2885
        %3124 = vmatprep.subr.bf16.mxu0 %v2894
        %3125 = vmatpush1.bf16.msra.mxu0 %v2893
        %3126 = vmatprep.subr.bf16.mxu0 %v2902
        %3127 = vmatpush1.bf16.msra.mxu0 %v2901
        %3128 = vmatprep.subr.bf16.mxu0 %v2910
        %3129 = vmatpush1.bf16.msra.mxu0 %v2909
        %3130 = vmatprep.subr.bf16.mxu0 %v2918
        %3131 = vmatpush1.bf16.msra.mxu0 %v2917
        %3132 = vmatprep.subr.bf16.mxu0 %v2926
        %3133 = vmatpush1.bf16.msra.mxu0 %v2925
        %3134 = vmatprep.mubr.bf16.mxu0 %v2248
        %3135 = vmatmul.mubr.bf16.gmra.mrb[0].mxu0 %v2247
        %v3136 = vpop.f32.mrb[0].mxu0
        %v3137 = vadd.f32 %v2390, %v3136
        %v3138 = vpop.f32.mrb[0].mxu0
        %v3139 = vadd.f32 %v2394, %v3138
        %v3140 = vpop.f32.mrb[0].mxu0
        %v3141 = vadd.f32 %v2390, %v3140
        %v3142 = vpop.f32.mrb[0].mxu0
        %v3143 = vadd.f32 %v2394, %v3142
        %3144 = vdwg.mxu0
        %3145 = vmatprep.subr.bf16.mxu0 %v2808
        %3146 = vmatpush1.bf16.msra.mxu0 %v2807
        %3147 = vmatprep.subr.bf16.mxu0 %v2816
        %3148 = vmatpush1.bf16.msra.mxu0 %v2815
        %3149 = vmatprep.subr.bf16.mxu0 %v2824
        %3150 = vmatpush1.bf16.msra.mxu0 %v2823
        %3151 = vmatprep.subr.bf16.mxu0 %v2832
        %3152 = vmatpush1.bf16.msra.mxu0 %v2831
        %3153 = vmatprep.subr.bf16.mxu0 %v2840
        %3154 = vmatpush1.bf16.msra.mxu0 %v2839
        %3155 = vmatprep.subr.bf16.mxu0 %v2848
        %3156 = vmatpush1.bf16.msra.mxu0 %v2847
        %3157 = vmatprep.subr.bf16.mxu0 %v2856
        %3158 = vmatpush1.bf16.msra.mxu0 %v2855
        %3159 = vmatprep.subr.bf16.mxu0 %v2864
        %3160 = vmatpush1.bf16.msra.mxu0 %v2863
        %3161 = vmatprep.subr.bf16.mxu0 %v2872
        %3162 = vmatpush1.bf16.msra.mxu0 %v2871
        %3163 = vmatprep.subr.bf16.mxu0 %v2880
        %3164 = vmatpush1.bf16.msra.mxu0 %v2879
        %3165 = vmatprep.subr.bf16.mxu0 %v2888
        %3166 = vmatpush1.bf16.msra.mxu0 %v2887
        %3167 = vmatprep.subr.bf16.mxu0 %v2896
        %3168 = vmatpush1.bf16.msra.mxu0 %v2895
        %3169 = vmatprep.subr.bf16.mxu0 %v2904
        %3170 = vmatpush1.bf16.msra.mxu0 %v2903
        %3171 = vmatprep.subr.bf16.mxu0 %v2912
        %3172 = vmatpush1.bf16.msra.mxu0 %v2911
        %3173 = vmatprep.subr.bf16.mxu0 %v2920
        %3174 = vmatpush1.bf16.msra.mxu0 %v2919
        %3175 = vmatprep.subr.bf16.mxu0 %v2928
        %3176 = vmatpush1.bf16.msra.mxu0 %v2927
        %3177 = vmatprep.mubr.bf16.mxu0 %v2248
        %3178 = vmatmul.mubr.bf16.gmra.mrb[0].mxu0 %v2247
        %v3179 = vpop.f32.mrb[0].mxu0
        %v3180 = vadd.f32 %v2398, %v3179
        %v3181 = vpop.f32.mrb[0].mxu0
        %v3182 = vadd.f32 %v2402, %v3181
        %v3183 = vpop.f32.mrb[0].mxu0
        %v3184 = vadd.f32 %v2398, %v3183
        %v3185 = vpop.f32.mrb[0].mxu0
        %v3186 = vadd.f32 %v2402, %v3185
        %3187 = vdwg.mxu0
        %3188 = vmatprep.subr.bf16.mxu0 %v2810
        %3189 = vmatpush1.bf16.msra.mxu0 %v2809
        %3190 = vmatprep.subr.bf16.mxu0 %v2818
        %3191 = vmatpush1.bf16.msra.mxu0 %v2817
        %3192 = vmatprep.subr.bf16.mxu0 %v2826
        %3193 = vmatpush1.bf16.msra.mxu0 %v2825
        %3194 = vmatprep.subr.bf16.mxu0 %v2834
        %3195 = vmatpush1.bf16.msra.mxu0 %v2833
        %3196 = vmatprep.subr.bf16.mxu0 %v2842
        %3197 = vmatpush1.bf16.msra.mxu0 %v2841
        %3198 = vmatprep.subr.bf16.mxu0 %v2850
        %3199 = vmatpush1.bf16.msra.mxu0 %v2849
        %3200 = vmatprep.subr.bf16.mxu0 %v2858
        %3201 = vmatpush1.bf16.msra.mxu0 %v2857
        %3202 = vmatprep.subr.bf16.mxu0 %v2866
        %3203 = vmatpush1.bf16.msra.mxu0 %v2865
        %3204 = vmatprep.subr.bf16.mxu0 %v2874
        %3205 = vmatpush1.bf16.msra.mxu0 %v2873
        %3206 = vmatprep.subr.bf16.mxu0 %v2882
        %3207 = vmatpush1.bf16.msra.mxu0 %v2881
        %3208 = vmatprep.subr.bf16.mxu0 %v2890
        %3209 = vmatpush1.bf16.msra.mxu0 %v2889
        %3210 = vmatprep.subr.bf16.mxu0 %v2898
        %3211 = vmatpush1.bf16.msra.mxu0 %v2897
        %3212 = vmatprep.subr.bf16.mxu0 %v2906
        %3213 = vmatpush1.bf16.msra.mxu0 %v2905
        %3214 = vmatprep.subr.bf16.mxu0 %v2914
        %3215 = vmatpush1.bf16.msra.mxu0 %v2913
        %3216 = vmatprep.subr.bf16.mxu0 %v2922
        %3217 = vmatpush1.bf16.msra.mxu0 %v2921
        %3218 = vmatprep.subr.bf16.mxu0 %v2930
        %3219 = vmatpush1.bf16.msra.mxu0 %v2929
        %3220 = vmatprep.mubr.bf16.mxu0 %v2248
        %3221 = vmatmul.mubr.bf16.gmra.mrb[0].mxu0 %v2247
        %v3222 = vpop.f32.mrb[0].mxu0
        %v3223 = vadd.f32 %v2406, %v3222
        %v3224 = vpop.f32.mrb[0].mxu0
        %v3225 = vadd.f32 %v2410, %v3224
        %v3226 = vpop.f32.mrb[0].mxu0
        %v3227 = vadd.f32 %v2406, %v3226
        %v3228 = vpop.f32.mrb[0].mxu0
        %v3229 = vadd.f32 %v2410, %v3228
        %3230 = vdwg.mxu0
        %v3231 = vmax.f32 %v3094, 0.0
        %v3232 = vmax.f32 %v3096, 0.0
        %v3233 = vmax.f32 %v3137, 0.0
        %v3234 = vmax.f32 %v3139, 0.0
        %v3235 = vmax.f32 %v3180, 0.0
        %v3236 = vmax.f32 %v3182, 0.0
        %v3237 = vmax.f32 %v3223, 0.0
        %v3238 = vmax.f32 %v3225, 0.0
        %v3239 = vmax.f32 %v3098, 0.0
        %v3240 = vmax.f32 %v3100, 0.0
        %v3241 = vmax.f32 %v3141, 0.0
        %v3242 = vmax.f32 %v3143, 0.0
        %v3243 = vmax.f32 %v3184, 0.0
        %v3244 = vmax.f32 %v3186, 0.0
        %v3245 = vmax.f32 %v3227, 0.0
        %v3246 = vmax.f32 %v3229, 0.0
        %v3247 = vpack.c.bf16 %v3239, %v3231
        %v3248 = vpack.c.bf16 %v3240, %v3232
        %v3249 = vpack.c.bf16 %v3241, %v3233
        %v3250 = vpack.c.bf16 %v3242, %v3234
        %v3251 = vpack.c.bf16 %v3243, %v3235
        %v3252 = vpack.c.bf16 %v3244, %v3236
        %v3253 = vpack.c.bf16 %v3245, %v3237
        %v3254 = vpack.c.bf16 %v3246, %v3238
        %v3255 = vld [vmem:[%s942] sm:$0xf]
        %v3256 = vld [vmem:[%s942 + $0x4] sm:$0xf]
        %v3257 = vld [vmem:[%s942 + $0x8] sm:$0xf]
        %v3258 = vld [vmem:[%s942 + $0xc] sm:$0xf]
        %v3259 = vld [vmem:[%s942 + $0x10] sm:$0xf]
        %v3260 = vld [vmem:[%s942 + $0x14] sm:$0xf]
        %v3261 = vld [vmem:[%s942 + $0x18] sm:$0xf]
        %v3262 = vld [vmem:[%s942 + $0x1c] sm:$0xf]
        %v3263 = vld [vmem:[%s942 + $0x20] sm:$0xf]
        %v3264 = vld [vmem:[%s942 + $0x24] sm:$0xf]
        %v3265 = vld [vmem:[%s942 + $0x28] sm:$0xf]
        %v3266 = vld [vmem:[%s942 + $0x2c] sm:$0xf]
        %v3267 = vld [vmem:[%s942 + $0x30] sm:$0xf]
        %v3268 = vld [vmem:[%s942 + $0x34] sm:$0xf]
        %v3269 = vld [vmem:[%s942 + $0x38] sm:$0xf]
        %v3270 = vld [vmem:[%s942 + $0x3c] sm:$0xf]
        %v3271 = vld [vmem:[%s942 + $0x40] sm:$0xf]
        %v3272 = vld [vmem:[%s942 + $0x44] sm:$0xf]
        %v3273 = vld [vmem:[%s942 + $0x48] sm:$0xf]
        %v3274 = vld [vmem:[%s942 + $0x4c] sm:$0xf]
        %v3275 = vld [vmem:[%s942 + $0x50] sm:$0xf]
        %v3276 = vld [vmem:[%s942 + $0x54] sm:$0xf]
        %v3277 = vld [vmem:[%s942 + $0x58] sm:$0xf]
        %v3278 = vld [vmem:[%s942 + $0x5c] sm:$0xf]
        %v3279 = vld [vmem:[%s942 + $0x60] sm:$0xf]
        %v3280 = vld [vmem:[%s942 + $0x64] sm:$0xf]
        %v3281 = vld [vmem:[%s942 + $0x68] sm:$0xf]
        %v3282 = vld [vmem:[%s942 + $0x6c] sm:$0xf]
        %v3283 = vld [vmem:[%s942 + $0x70] sm:$0xf]
        %v3284 = vld [vmem:[%s942 + $0x74] sm:$0xf]
        %v3285 = vld [vmem:[%s942 + $0x78] sm:$0xf]
        %v3286 = vld [vmem:[%s942 + $0x7c] sm:$0xf]
        %v3287 = vld [vmem:[%s942 + $0x80] sm:$0xf]
        %v3288 = vld [vmem:[%s942 + $0x84] sm:$0xf]
        %v3289 = vld [vmem:[%s942 + $0x88] sm:$0xf]
        %v3290 = vld [vmem:[%s942 + $0x8c] sm:$0xf]
        %v3291 = vld [vmem:[%s942 + $0x90] sm:$0xf]
        %v3292 = vld [vmem:[%s942 + $0x94] sm:$0xf]
        %v3293 = vld [vmem:[%s942 + $0x98] sm:$0xf]
        %v3294 = vld [vmem:[%s942 + $0x9c] sm:$0xf]
        %v3295 = vld [vmem:[%s942 + $0xa0] sm:$0xf]
        %v3296 = vld [vmem:[%s942 + $0xa4] sm:$0xf]
        %v3297 = vld [vmem:[%s942 + $0xa8] sm:$0xf]
        %v3298 = vld [vmem:[%s942 + $0xac] sm:$0xf]
        %v3299 = vld [vmem:[%s942 + $0xb0] sm:$0xf]
        %v3300 = vld [vmem:[%s942 + $0xb4] sm:$0xf]
        %v3301 = vld [vmem:[%s942 + $0xb8] sm:$0xf]
        %v3302 = vld [vmem:[%s942 + $0xbc] sm:$0xf]
        %v3303 = vld [vmem:[%s942 + $0xc0] sm:$0xf]
        %v3304 = vld [vmem:[%s942 + $0xc4] sm:$0xf]
        %v3305 = vld [vmem:[%s942 + $0xc8] sm:$0xf]
        %v3306 = vld [vmem:[%s942 + $0xcc] sm:$0xf]
        %v3307 = vld [vmem:[%s942 + $0xd0] sm:$0xf]
        %v3308 = vld [vmem:[%s942 + $0xd4] sm:$0xf]
        %v3309 = vld [vmem:[%s942 + $0xd8] sm:$0xf]
        %v3310 = vld [vmem:[%s942 + $0xdc] sm:$0xf]
        %v3311 = vld [vmem:[%s942 + $0xe0] sm:$0xf]
        %v3312 = vld [vmem:[%s942 + $0xe4] sm:$0xf]
        %v3313 = vld [vmem:[%s942 + $0xe8] sm:$0xf]
        %v3314 = vld [vmem:[%s942 + $0xec] sm:$0xf]
        %v3315 = vld [vmem:[%s942 + $0xf0] sm:$0xf]
        %v3316 = vld [vmem:[%s942 + $0xf4] sm:$0xf]
        %v3317 = vld [vmem:[%s942 + $0xf8] sm:$0xf]
        %v3318 = vld [vmem:[%s942 + $0xfc] sm:$0xf]
        %v3319 = vld [vmem:[%s942 + $0x100] sm:$0xf]
        %v3320 = vld [vmem:[%s942 + $0x104] sm:$0xf]
        %v3321 = vld [vmem:[%s942 + $0x108] sm:$0xf]
        %v3322 = vld [vmem:[%s942 + $0x10c] sm:$0xf]
        %v3323 = vld [vmem:[%s942 + $0x110] sm:$0xf]
        %v3324 = vld [vmem:[%s942 + $0x114] sm:$0xf]
        %v3325 = vld [vmem:[%s942 + $0x118] sm:$0xf]
        %v3326 = vld [vmem:[%s942 + $0x11c] sm:$0xf]
        %v3327 = vld [vmem:[%s942 + $0x120] sm:$0xf]
        %v3328 = vld [vmem:[%s942 + $0x124] sm:$0xf]
        %v3329 = vld [vmem:[%s942 + $0x128] sm:$0xf]
        %v3330 = vld [vmem:[%s942 + $0x12c] sm:$0xf]
        %v3331 = vld [vmem:[%s942 + $0x130] sm:$0xf]
        %v3332 = vld [vmem:[%s942 + $0x134] sm:$0xf]
        %v3333 = vld [vmem:[%s942 + $0x138] sm:$0xf]
        %v3334 = vld [vmem:[%s942 + $0x13c] sm:$0xf]
        %v3335 = vld [vmem:[%s942 + $0x140] sm:$0xf]
        %v3336 = vld [vmem:[%s942 + $0x144] sm:$0xf]
        %v3337 = vld [vmem:[%s942 + $0x148] sm:$0xf]
        %v3338 = vld [vmem:[%s942 + $0x14c] sm:$0xf]
        %v3339 = vld [vmem:[%s942 + $0x150] sm:$0xf]
        %v3340 = vld [vmem:[%s942 + $0x154] sm:$0xf]
        %v3341 = vld [vmem:[%s942 + $0x158] sm:$0xf]
        %v3342 = vld [vmem:[%s942 + $0x15c] sm:$0xf]
        %v3343 = vld [vmem:[%s942 + $0x160] sm:$0xf]
        %v3344 = vld [vmem:[%s942 + $0x164] sm:$0xf]
        %v3345 = vld [vmem:[%s942 + $0x168] sm:$0xf]
        %v3346 = vld [vmem:[%s942 + $0x16c] sm:$0xf]
        %v3347 = vld [vmem:[%s942 + $0x170] sm:$0xf]
        %v3348 = vld [vmem:[%s942 + $0x174] sm:$0xf]
        %v3349 = vld [vmem:[%s942 + $0x178] sm:$0xf]
        %v3350 = vld [vmem:[%s942 + $0x17c] sm:$0xf]
        %v3351 = vld [vmem:[%s942 + $0x180] sm:$0xf]
        %v3352 = vld [vmem:[%s942 + $0x184] sm:$0xf]
        %v3353 = vld [vmem:[%s942 + $0x188] sm:$0xf]
        %v3354 = vld [vmem:[%s942 + $0x18c] sm:$0xf]
        %v3355 = vld [vmem:[%s942 + $0x190] sm:$0xf]
        %v3356 = vld [vmem:[%s942 + $0x194] sm:$0xf]
        %v3357 = vld [vmem:[%s942 + $0x198] sm:$0xf]
        %v3358 = vld [vmem:[%s942 + $0x19c] sm:$0xf]
        %v3359 = vld [vmem:[%s942 + $0x1a0] sm:$0xf]
        %v3360 = vld [vmem:[%s942 + $0x1a4] sm:$0xf]
        %v3361 = vld [vmem:[%s942 + $0x1a8] sm:$0xf]
        %v3362 = vld [vmem:[%s942 + $0x1ac] sm:$0xf]
        %v3363 = vld [vmem:[%s942 + $0x1b0] sm:$0xf]
        %v3364 = vld [vmem:[%s942 + $0x1b4] sm:$0xf]
        %v3365 = vld [vmem:[%s942 + $0x1b8] sm:$0xf]
        %v3366 = vld [vmem:[%s942 + $0x1bc] sm:$0xf]
        %v3367 = vld [vmem:[%s942 + $0x1c0] sm:$0xf]
        %v3368 = vld [vmem:[%s942 + $0x1c4] sm:$0xf]
        %v3369 = vld [vmem:[%s942 + $0x1c8] sm:$0xf]
        %v3370 = vld [vmem:[%s942 + $0x1cc] sm:$0xf]
        %v3371 = vld [vmem:[%s942 + $0x1d0] sm:$0xf]
        %v3372 = vld [vmem:[%s942 + $0x1d4] sm:$0xf]
        %v3373 = vld [vmem:[%s942 + $0x1d8] sm:$0xf]
        %v3374 = vld [vmem:[%s942 + $0x1dc] sm:$0xf]
        %v3375 = vld [vmem:[%s942 + $0x1e0] sm:$0xf]
        %v3376 = vld [vmem:[%s942 + $0x1e4] sm:$0xf]
        %v3377 = vld [vmem:[%s942 + $0x1e8] sm:$0xf]
        %v3378 = vld [vmem:[%s942 + $0x1ec] sm:$0xf]
        %v3379 = vld [vmem:[%s942 + $0x1f0] sm:$0xf]
        %v3380 = vld [vmem:[%s942 + $0x1f4] sm:$0xf]
        %v3381 = vld [vmem:[%s942 + $0x1f8] sm:$0xf]
        %v3382 = vld [vmem:[%s942 + $0x1fc] sm:$0xf]
        %v3383 = vld [vmem:[%s1082] sm:$0x1]
        %v3385 = vlaneseq
        %v3386 = vshrl.u32 %v3385, 7
        %v3387 = vsub.s32 0, %v3386
        %v3388 = vrot.slane %v3383, %v3387
        %v3518 = vunpack.c.l.b16 %v3255
        %v3519 = vunpack.c.l.b16 %v3256
        %v3520 = vunpack.c.l.b16 %v3257
        %v3521 = vunpack.c.l.b16 %v3258
        %v3522 = vunpack.c.l.b16 %v3259
        %v3523 = vunpack.c.l.b16 %v3260
        %v3524 = vunpack.c.l.b16 %v3261
        %v3525 = vunpack.c.l.b16 %v3262
        %v3526 = vunpack.c.l.b16 %v3263
        %v3527 = vunpack.c.l.b16 %v3264
        %v3528 = vunpack.c.l.b16 %v3265
        %v3529 = vunpack.c.l.b16 %v3266
        %v3530 = vunpack.c.l.b16 %v3267
        %v3531 = vunpack.c.l.b16 %v3268
        %v3532 = vunpack.c.l.b16 %v3269
        %v3533 = vunpack.c.l.b16 %v3270
        %v3534 = vunpack.c.l.b16 %v3271
        %v3535 = vunpack.c.l.b16 %v3272
        %v3536 = vunpack.c.l.b16 %v3273
        %v3537 = vunpack.c.l.b16 %v3274
        %v3538 = vunpack.c.l.b16 %v3275
        %v3539 = vunpack.c.l.b16 %v3276
        %v3540 = vunpack.c.l.b16 %v3277
        %v3541 = vunpack.c.l.b16 %v3278
        %v3542 = vunpack.c.l.b16 %v3279
        %v3543 = vunpack.c.l.b16 %v3280
        %v3544 = vunpack.c.l.b16 %v3281
        %v3545 = vunpack.c.l.b16 %v3282
        %v3546 = vunpack.c.l.b16 %v3283
        %v3547 = vunpack.c.l.b16 %v3284
        %v3548 = vunpack.c.l.b16 %v3285
        %v3549 = vunpack.c.l.b16 %v3286
        %v3550 = vunpack.c.l.b16 %v3287
        %v3551 = vunpack.c.l.b16 %v3288
        %v3552 = vunpack.c.l.b16 %v3289
        %v3553 = vunpack.c.l.b16 %v3290
        %v3554 = vunpack.c.l.b16 %v3291
        %v3555 = vunpack.c.l.b16 %v3292
        %v3556 = vunpack.c.l.b16 %v3293
        %v3557 = vunpack.c.l.b16 %v3294
        %v3558 = vunpack.c.l.b16 %v3295
        %v3559 = vunpack.c.l.b16 %v3296
        %v3560 = vunpack.c.l.b16 %v3297
        %v3561 = vunpack.c.l.b16 %v3298
        %v3562 = vunpack.c.l.b16 %v3299
        %v3563 = vunpack.c.l.b16 %v3300
        %v3564 = vunpack.c.l.b16 %v3301
        %v3565 = vunpack.c.l.b16 %v3302
        %v3566 = vunpack.c.l.b16 %v3303
        %v3567 = vunpack.c.l.b16 %v3304
        %v3568 = vunpack.c.l.b16 %v3305
        %v3569 = vunpack.c.l.b16 %v3306
        %v3570 = vunpack.c.l.b16 %v3307
        %v3571 = vunpack.c.l.b16 %v3308
        %v3572 = vunpack.c.l.b16 %v3309
        %v3573 = vunpack.c.l.b16 %v3310
        %v3574 = vunpack.c.l.b16 %v3311
        %v3575 = vunpack.c.l.b16 %v3312
        %v3576 = vunpack.c.l.b16 %v3313
        %v3577 = vunpack.c.l.b16 %v3314
        %v3578 = vunpack.c.l.b16 %v3315
        %v3579 = vunpack.c.l.b16 %v3316
        %v3580 = vunpack.c.l.b16 %v3317
        %v3581 = vunpack.c.l.b16 %v3318
        %v3582 = vunpack.c.l.b16 %v3319
        %v3583 = vunpack.c.l.b16 %v3320
        %v3584 = vunpack.c.l.b16 %v3321
        %v3585 = vunpack.c.l.b16 %v3322
        %v3586 = vunpack.c.l.b16 %v3323
        %v3587 = vunpack.c.l.b16 %v3324
        %v3588 = vunpack.c.l.b16 %v3325
        %v3589 = vunpack.c.l.b16 %v3326
        %v3590 = vunpack.c.l.b16 %v3327
        %v3591 = vunpack.c.l.b16 %v3328
        %v3592 = vunpack.c.l.b16 %v3329
        %v3593 = vunpack.c.l.b16 %v3330
        %v3594 = vunpack.c.l.b16 %v3331
        %v3595 = vunpack.c.l.b16 %v3332
        %v3596 = vunpack.c.l.b16 %v3333
        %v3597 = vunpack.c.l.b16 %v3334
        %v3598 = vunpack.c.l.b16 %v3335
        %v3599 = vunpack.c.l.b16 %v3336
        %v3600 = vunpack.c.l.b16 %v3337
        %v3601 = vunpack.c.l.b16 %v3338
        %v3602 = vunpack.c.l.b16 %v3339
        %v3603 = vunpack.c.l.b16 %v3340
        %v3604 = vunpack.c.l.b16 %v3341
        %v3605 = vunpack.c.l.b16 %v3342
        %v3606 = vunpack.c.l.b16 %v3343
        %v3607 = vunpack.c.l.b16 %v3344
        %v3608 = vunpack.c.l.b16 %v3345
        %v3609 = vunpack.c.l.b16 %v3346
        %v3610 = vunpack.c.l.b16 %v3347
        %v3611 = vunpack.c.l.b16 %v3348
        %v3612 = vunpack.c.l.b16 %v3349
        %v3613 = vunpack.c.l.b16 %v3350
        %v3614 = vunpack.c.l.b16 %v3351
        %v3615 = vunpack.c.l.b16 %v3352
        %v3616 = vunpack.c.l.b16 %v3353
        %v3617 = vunpack.c.l.b16 %v3354
        %v3618 = vunpack.c.l.b16 %v3355
        %v3619 = vunpack.c.l.b16 %v3356
        %v3620 = vunpack.c.l.b16 %v3357
        %v3621 = vunpack.c.l.b16 %v3358
        %v3622 = vunpack.c.l.b16 %v3359
        %v3623 = vunpack.c.l.b16 %v3360
        %v3624 = vunpack.c.l.b16 %v3361
        %v3625 = vunpack.c.l.b16 %v3362
        %v3626 = vunpack.c.l.b16 %v3363
        %v3627 = vunpack.c.l.b16 %v3364
        %v3628 = vunpack.c.l.b16 %v3365
        %v3629 = vunpack.c.l.b16 %v3366
        %v3630 = vunpack.c.l.b16 %v3367
        %v3631 = vunpack.c.l.b16 %v3368
        %v3632 = vunpack.c.l.b16 %v3369
        %v3633 = vunpack.c.l.b16 %v3370
        %v3634 = vunpack.c.l.b16 %v3371
        %v3635 = vunpack.c.l.b16 %v3372
        %v3636 = vunpack.c.l.b16 %v3373
        %v3637 = vunpack.c.l.b16 %v3374
        %v3638 = vunpack.c.l.b16 %v3375
        %v3639 = vunpack.c.l.b16 %v3376
        %v3640 = vunpack.c.l.b16 %v3377
        %v3641 = vunpack.c.l.b16 %v3378
        %v3642 = vunpack.c.l.b16 %v3379
        %v3643 = vunpack.c.l.b16 %v3380
        %v3644 = vunpack.c.l.b16 %v3381
        %v3645 = vunpack.c.l.b16 %v3382
        %v3646 = vpack.c.b16 %v3519, %v3518
        %v3647 = vpack.c.b16 %v3521, %v3520
        %v3648 = vpack.c.b16 %v3523, %v3522
        %v3649 = vpack.c.b16 %v3525, %v3524
        %v3650 = vpack.c.b16 %v3527, %v3526
        %v3651 = vpack.c.b16 %v3529, %v3528
        %v3652 = vpack.c.b16 %v3531, %v3530
        %v3653 = vpack.c.b16 %v3533, %v3532
        %v3654 = vpack.c.b16 %v3535, %v3534
        %v3655 = vpack.c.b16 %v3537, %v3536
        %v3656 = vpack.c.b16 %v3539, %v3538
        %v3657 = vpack.c.b16 %v3541, %v3540
        %v3658 = vpack.c.b16 %v3543, %v3542
        %v3659 = vpack.c.b16 %v3545, %v3544
        %v3660 = vpack.c.b16 %v3547, %v3546
        %v3661 = vpack.c.b16 %v3549, %v3548
        %v3662 = vpack.c.b16 %v3551, %v3550
        %v3663 = vpack.c.b16 %v3553, %v3552
        %v3664 = vpack.c.b16 %v3555, %v3554
        %v3665 = vpack.c.b16 %v3557, %v3556
        %v3666 = vpack.c.b16 %v3559, %v3558
        %v3667 = vpack.c.b16 %v3561, %v3560
        %v3668 = vpack.c.b16 %v3563, %v3562
        %v3669 = vpack.c.b16 %v3565, %v3564
        %v3670 = vpack.c.b16 %v3567, %v3566
        %v3671 = vpack.c.b16 %v3569, %v3568
        %v3672 = vpack.c.b16 %v3571, %v3570
        %v3673 = vpack.c.b16 %v3573, %v3572
        %v3674 = vpack.c.b16 %v3575, %v3574
        %v3675 = vpack.c.b16 %v3577, %v3576
        %v3676 = vpack.c.b16 %v3579, %v3578
        %v3677 = vpack.c.b16 %v3581, %v3580
        %v3678 = vpack.c.b16 %v3583, %v3582
        %v3679 = vpack.c.b16 %v3585, %v3584
        %v3680 = vpack.c.b16 %v3587, %v3586
        %v3681 = vpack.c.b16 %v3589, %v3588
        %v3682 = vpack.c.b16 %v3591, %v3590
        %v3683 = vpack.c.b16 %v3593, %v3592
        %v3684 = vpack.c.b16 %v3595, %v3594
        %v3685 = vpack.c.b16 %v3597, %v3596
        %v3686 = vpack.c.b16 %v3599, %v3598
        %v3687 = vpack.c.b16 %v3601, %v3600
        %v3688 = vpack.c.b16 %v3603, %v3602
        %v3689 = vpack.c.b16 %v3605, %v3604
        %v3690 = vpack.c.b16 %v3607, %v3606
        %v3691 = vpack.c.b16 %v3609, %v3608
        %v3692 = vpack.c.b16 %v3611, %v3610
        %v3693 = vpack.c.b16 %v3613, %v3612
        %v3694 = vpack.c.b16 %v3615, %v3614
        %v3695 = vpack.c.b16 %v3617, %v3616
        %v3696 = vpack.c.b16 %v3619, %v3618
        %v3697 = vpack.c.b16 %v3621, %v3620
        %v3698 = vpack.c.b16 %v3623, %v3622
        %v3699 = vpack.c.b16 %v3625, %v3624
        %v3700 = vpack.c.b16 %v3627, %v3626
        %v3701 = vpack.c.b16 %v3629, %v3628
        %v3702 = vpack.c.b16 %v3631, %v3630
        %v3703 = vpack.c.b16 %v3633, %v3632
        %v3704 = vpack.c.b16 %v3635, %v3634
        %v3705 = vpack.c.b16 %v3637, %v3636
        %v3706 = vpack.c.b16 %v3639, %v3638
        %v3707 = vpack.c.b16 %v3641, %v3640
        %v3708 = vpack.c.b16 %v3643, %v3642
        %v3709 = vpack.c.b16 %v3645, %v3644
        %3774 = vmatprep.subr.bf16.mxu0 0
        %3775 = vmatpush1.bf16.msra.mxu0 %v3646
        %3776 = vmatprep.subr.bf16.mxu0 0
        %3777 = vmatpush1.bf16.msra.mxu0 %v3647
        %3778 = vmatprep.subr.bf16.mxu0 0
        %3779 = vmatpush1.bf16.msra.mxu0 %v3648
        %3780 = vmatprep.subr.bf16.mxu0 0
        %3781 = vmatpush1.bf16.msra.mxu0 %v3649
        %3782 = vmatprep.subr.bf16.mxu0 0
        %3783 = vmatpush1.bf16.msra.mxu0 %v3650
        %3784 = vmatprep.subr.bf16.mxu0 0
        %3785 = vmatpush1.bf16.msra.mxu0 %v3651
        %3786 = vmatprep.subr.bf16.mxu0 0
        %3787 = vmatpush1.bf16.msra.mxu0 %v3652
        %3788 = vmatprep.subr.bf16.mxu0 0
        %3789 = vmatpush1.bf16.msra.mxu0 %v3653
        %3790 = vmatprep.subr.bf16.mxu0 0
        %3791 = vmatpush1.bf16.msra.mxu0 %v3654
        %3792 = vmatprep.subr.bf16.mxu0 0
        %3793 = vmatpush1.bf16.msra.mxu0 %v3655
        %3794 = vmatprep.subr.bf16.mxu0 0
        %3795 = vmatpush1.bf16.msra.mxu0 %v3656
        %3796 = vmatprep.subr.bf16.mxu0 0
        %3797 = vmatpush1.bf16.msra.mxu0 %v3657
        %3798 = vmatprep.subr.bf16.mxu0 0
        %3799 = vmatpush1.bf16.msra.mxu0 %v3658
        %3800 = vmatprep.subr.bf16.mxu0 0
        %3801 = vmatpush1.bf16.msra.mxu0 %v3659
        %3802 = vmatprep.subr.bf16.mxu0 0
        %3803 = vmatpush1.bf16.msra.mxu0 %v3660
        %3804 = vmatprep.subr.bf16.mxu0 0
        %3805 = vmatpush1.bf16.msra.mxu0 %v3661
        %3806 = vmatprep.mubr.bf16.mxu0 %v3248
        %3807 = vmatmul.mubr.bf16.gmra.mrb[0].mxu0 %v3247
        %v3808 = vpop.f32.mrb[0].mxu0
        %v3809 = vadd.f32 %v3388, %v3808
        %v3810 = vpop.f32.mrb[0].mxu0
        %v3811 = vpop.f32.mrb[0].mxu0
        %v3812 = vadd.f32 %v3388, %v3811
        %v3813 = vpop.f32.mrb[0].mxu0
        %3814 = vdwg.mxu0
        %3815 = vmatprep.subr.bf16.mxu0 0
        %3816 = vmatpush1.bf16.msra.mxu0 %v3662
        %3817 = vmatprep.subr.bf16.mxu0 0
        %3818 = vmatpush1.bf16.msra.mxu0 %v3663
        %3819 = vmatprep.subr.bf16.mxu0 0
        %3820 = vmatpush1.bf16.msra.mxu0 %v3664
        %3821 = vmatprep.subr.bf16.mxu0 0
        %3822 = vmatpush1.bf16.msra.mxu0 %v3665
        %3823 = vmatprep.subr.bf16.mxu0 0
        %3824 = vmatpush1.bf16.msra.mxu0 %v3666
        %3825 = vmatprep.subr.bf16.mxu0 0
        %3826 = vmatpush1.bf16.msra.mxu0 %v3667
        %3827 = vmatprep.subr.bf16.mxu0 0
        %3828 = vmatpush1.bf16.msra.mxu0 %v3668
        %3829 = vmatprep.subr.bf16.mxu0 0
        %3830 = vmatpush1.bf16.msra.mxu0 %v3669
        %3831 = vmatprep.subr.bf16.mxu0 0
        %3832 = vmatpush1.bf16.msra.mxu0 %v3670
        %3833 = vmatprep.subr.bf16.mxu0 0
        %3834 = vmatpush1.bf16.msra.mxu0 %v3671
        %3835 = vmatprep.subr.bf16.mxu0 0
        %3836 = vmatpush1.bf16.msra.mxu0 %v3672
        %3837 = vmatprep.subr.bf16.mxu0 0
        %3838 = vmatpush1.bf16.msra.mxu0 %v3673
        %3839 = vmatprep.subr.bf16.mxu0 0
        %3840 = vmatpush1.bf16.msra.mxu0 %v3674
        %3841 = vmatprep.subr.bf16.mxu0 0
        %3842 = vmatpush1.bf16.msra.mxu0 %v3675
        %3843 = vmatprep.subr.bf16.mxu0 0
        %3844 = vmatpush1.bf16.msra.mxu0 %v3676
        %3845 = vmatprep.subr.bf16.mxu0 0
        %3846 = vmatpush1.bf16.msra.mxu0 %v3677
        %3847 = vmatprep.mubr.bf16.mxu0 %v3250
        %3848 = vmatmul.mubr.bf16.gmra.mrb[0].mxu0 %v3249
        %v3849 = vpop.f32.mrb[0].mxu0
        %v3850 = vadd.f32 %v3809, %v3849
        %v3851 = vpop.f32.mrb[0].mxu0
        %v3852 = vpop.f32.mrb[0].mxu0
        %v3853 = vadd.f32 %v3812, %v3852
        %v3854 = vpop.f32.mrb[0].mxu0
        %3855 = vdwg.mxu0
        %3856 = vmatprep.subr.bf16.mxu0 0
        %3857 = vmatpush1.bf16.msra.mxu0 %v3678
        %3858 = vmatprep.subr.bf16.mxu0 0
        %3859 = vmatpush1.bf16.msra.mxu0 %v3679
        %3860 = vmatprep.subr.bf16.mxu0 0
        %3861 = vmatpush1.bf16.msra.mxu0 %v3680
        %3862 = vmatprep.subr.bf16.mxu0 0
        %3863 = vmatpush1.bf16.msra.mxu0 %v3681
        %3864 = vmatprep.subr.bf16.mxu0 0
        %3865 = vmatpush1.bf16.msra.mxu0 %v3682
        %3866 = vmatprep.subr.bf16.mxu0 0
        %3867 = vmatpush1.bf16.msra.mxu0 %v3683
        %3868 = vmatprep.subr.bf16.mxu0 0
        %3869 = vmatpush1.bf16.msra.mxu0 %v3684
        %3870 = vmatprep.subr.bf16.mxu0 0
        %3871 = vmatpush1.bf16.msra.mxu0 %v3685
        %3872 = vmatprep.subr.bf16.mxu0 0
        %3873 = vmatpush1.bf16.msra.mxu0 %v3686
        %3874 = vmatprep.subr.bf16.mxu0 0
        %3875 = vmatpush1.bf16.msra.mxu0 %v3687
        %3876 = vmatprep.subr.bf16.mxu0 0
        %3877 = vmatpush1.bf16.msra.mxu0 %v3688
        %3878 = vmatprep.subr.bf16.mxu0 0
        %3879 = vmatpush1.bf16.msra.mxu0 %v3689
        %3880 = vmatprep.subr.bf16.mxu0 0
        %3881 = vmatpush1.bf16.msra.mxu0 %v3690
        %3882 = vmatprep.subr.bf16.mxu0 0
        %3883 = vmatpush1.bf16.msra.mxu0 %v3691
        %3884 = vmatprep.subr.bf16.mxu0 0
        %3885 = vmatpush1.bf16.msra.mxu0 %v3692
        %3886 = vmatprep.subr.bf16.mxu0 0
        %3887 = vmatpush1.bf16.msra.mxu0 %v3693
        %3888 = vmatprep.mubr.bf16.mxu0 %v3252
        %3889 = vmatmul.mubr.bf16.gmra.mrb[0].mxu0 %v3251
        %v3890 = vpop.f32.mrb[0].mxu0
        %v3891 = vadd.f32 %v3850, %v3890
        %v3892 = vpop.f32.mrb[0].mxu0
        %v3893 = vpop.f32.mrb[0].mxu0
        %v3894 = vadd.f32 %v3853, %v3893
        %v3895 = vpop.f32.mrb[0].mxu0
        %3896 = vdwg.mxu0
        %3897 = vmatprep.subr.bf16.mxu0 0
        %3898 = vmatpush1.bf16.msra.mxu0 %v3694
        %3899 = vmatprep.subr.bf16.mxu0 0
        %3900 = vmatpush1.bf16.msra.mxu0 %v3695
        %3901 = vmatprep.subr.bf16.mxu0 0
        %3902 = vmatpush1.bf16.msra.mxu0 %v3696
        %3903 = vmatprep.subr.bf16.mxu0 0
        %3904 = vmatpush1.bf16.msra.mxu0 %v3697
        %3905 = vmatprep.subr.bf16.mxu0 0
        %3906 = vmatpush1.bf16.msra.mxu0 %v3698
        %3907 = vmatprep.subr.bf16.mxu0 0
        %3908 = vmatpush1.bf16.msra.mxu0 %v3699
        %3909 = vmatprep.subr.bf16.mxu0 0
        %3910 = vmatpush1.bf16.msra.mxu0 %v3700
        %3911 = vmatprep.subr.bf16.mxu0 0
        %3912 = vmatpush1.bf16.msra.mxu0 %v3701
        %3913 = vmatprep.subr.bf16.mxu0 0
        %3914 = vmatpush1.bf16.msra.mxu0 %v3702
        %3915 = vmatprep.subr.bf16.mxu0 0
        %3916 = vmatpush1.bf16.msra.mxu0 %v3703
        %3917 = vmatprep.subr.bf16.mxu0 0
        %3918 = vmatpush1.bf16.msra.mxu0 %v3704
        %3919 = vmatprep.subr.bf16.mxu0 0
        %3920 = vmatpush1.bf16.msra.mxu0 %v3705
        %3921 = vmatprep.subr.bf16.mxu0 0
        %3922 = vmatpush1.bf16.msra.mxu0 %v3706
        %3923 = vmatprep.subr.bf16.mxu0 0
        %3924 = vmatpush1.bf16.msra.mxu0 %v3707
        %3925 = vmatprep.subr.bf16.mxu0 0
        %3926 = vmatpush1.bf16.msra.mxu0 %v3708
        %3927 = vmatprep.subr.bf16.mxu0 0
        %3928 = vmatpush1.bf16.msra.mxu0 %v3709
        %3929 = vmatprep.mubr.bf16.mxu0 %v3254
        %3930 = vmatmul.mubr.bf16.gmra.mrb[0].mxu0 %v3253
        %v3931 = vpop.f32.mrb[0].mxu0
        %v3932 = vadd.f32 %v3891, %v3931
        %v3933 = vpop.f32.mrb[0].mxu0
        %v3934 = vpop.f32.mrb[0].mxu0
        %v3935 = vadd.f32 %v3894, %v3934
        %v3936 = vpop.f32.mrb[0].mxu0
        %3937 = vdwg.mxu0
        %p3938 = scmp.eq.s32.totalorder %s50, 0
        // Predicated region
        $region153: #{gng_forward.1} parent=99 // pred_check
          %p3939 = pneg %p3938
        $region154: #{gng_forward.1} parent=99 // pred_check_branch
          %3941 = sbr.rel (%p3939) target = $region156
        $region155: #{gng_forward.1} parent=99 // pred_region
          %3942 = vst [vmem:[#allocation2] sm:$0xff] %v3932
          %3943 = vst [vmem:[#allocation2 + $0x10] sm:$0xff] %v3935
        $region156: #{gng_forward.1} parent=99 // pred_fallthru
          _
        %p3944 = scmp.gt.s32.totalorder %s50, 0
        // Predicated region
        $region157: #{gng_forward.1} parent=99 // pred_check
          %p3945 = pneg %p3944
        $region158: #{gng_forward.1} parent=99 // pred_check_branch
          %3947 = sbr.rel (%p3945) target = $region160
        $region159: #{gng_forward.1} parent=99 // pred_region
          %3948 = vst [vmem:[#allocation2 + $0x8] sm:$0xff] %v3932
          %3949 = vst [vmem:[#allocation2 + $0x18] sm:$0xff] %v3935
        $region160: #{gng_forward.1} parent=99 // pred_fallthru
          _
        %p3950 = scmp.eq.s32.totalorder %s50, 1
        // Predicated region
        $region161: #{gng_forward.1} parent=99 // pred_check
          %p3951 = pneg %p3950
        $region162: #{gng_forward.1} parent=99 // pred_check_branch
          %3953 = sbr.rel (%p3951) target = $region164
        $region163: #{gng_forward.1} parent=99 // pred_region
          %v3954 = vld [vmem:[#allocation2] sm:$0xff]
          %v3955 = vld [vmem:[#allocation2 + $0x8] sm:$0xff]
          %v3956 = vld [vmem:[#allocation2 + $0x10] sm:$0xff]
          %v3957 = vld [vmem:[#allocation2 + $0x18] sm:$0xff]
          %v3958 = vpack.c.bf16 %v3956, %v3954
          %v3959 = vpack.c.bf16 %v3957, %v3955
          %v3960 = vld [vmem:[#allocation19] sm:$0xff]
          %v3961 = vld [vmem:[#allocation19 + $0x8] sm:$0xff]
          %v3962 = vld [vmem:[#allocation19 + $0x10] sm:$0xff]
          %v3963 = vld [vmem:[#allocation19 + $0x18] sm:$0xff]
          %v3964 = vld [vmem:[#allocation19 + $0x20] sm:$0xff]
          %v3965 = vld [vmem:[#allocation19 + $0x28] sm:$0xff]
          %v3966 = vld [vmem:[#allocation19 + $0x30] sm:$0xff]
          %v3967 = vld [vmem:[#allocation19 + $0x38] sm:$0xff]
          %v3968 = vld [vmem:[#allocation19 + $0x40] sm:$0xff]
          %v3969 = vld [vmem:[#allocation19 + $0x48] sm:$0xff]
          %v3970 = vld [vmem:[#allocation19 + $0x50] sm:$0xff]
          %v3971 = vld [vmem:[#allocation19 + $0x58] sm:$0xff]
          %v3972 = vld [vmem:[#allocation19 + $0x60] sm:$0xff]
          %v3973 = vld [vmem:[#allocation19 + $0x68] sm:$0xff]
          %v3974 = vld [vmem:[#allocation19 + $0x70] sm:$0xff]
          %v3975 = vld [vmem:[#allocation19 + $0x78] sm:$0xff]
          %v3976 = vld [vmem:[#allocation19 + $0x80] sm:$0xff]
          %v3977 = vld [vmem:[#allocation19 + $0x88] sm:$0xff]
          %v3978 = vld [vmem:[#allocation19 + $0x90] sm:$0xff]
          %v3979 = vld [vmem:[#allocation19 + $0x98] sm:$0xff]
          %v3980 = vld [vmem:[#allocation19 + $0xa0] sm:$0xff]
          %v3981 = vld [vmem:[#allocation19 + $0xa8] sm:$0xff]
          %v3982 = vld [vmem:[#allocation19 + $0xb0] sm:$0xff]
          %v3983 = vld [vmem:[#allocation19 + $0xb8] sm:$0xff]
          %v3984 = vld [vmem:[#allocation19 + $0xc0] sm:$0xff]
          %v3985 = vld [vmem:[#allocation19 + $0xc8] sm:$0xff]
          %v3986 = vld [vmem:[#allocation19 + $0xd0] sm:$0xff]
          %v3987 = vld [vmem:[#allocation19 + $0xd8] sm:$0xff]
          %v3988 = vld [vmem:[#allocation19 + $0xe0] sm:$0xff]
          %v3989 = vld [vmem:[#allocation19 + $0xe8] sm:$0xff]
          %v3990 = vld [vmem:[#allocation19 + $0xf0] sm:$0xff]
          %v3991 = vld [vmem:[#allocation19 + $0xf8] sm:$0xff]
          %v3992 = vld [vmem:[#allocation19 + $0x100] sm:$0xff]
          %v3993 = vld [vmem:[#allocation19 + $0x108] sm:$0xff]
          %v3994 = vld [vmem:[#allocation19 + $0x110] sm:$0xff]
          %v3995 = vld [vmem:[#allocation19 + $0x118] sm:$0xff]
          %v3996 = vld [vmem:[#allocation19 + $0x120] sm:$0xff]
          %v3997 = vld [vmem:[#allocation19 + $0x128] sm:$0xff]
          %v3998 = vld [vmem:[#allocation19 + $0x130] sm:$0xff]
          %v3999 = vld [vmem:[#allocation19 + $0x138] sm:$0xff]
          %v4000 = vld [vmem:[#allocation19 + $0x140] sm:$0xff]
          %v4001 = vld [vmem:[#allocation19 + $0x148] sm:$0xff]
          %v4002 = vld [vmem:[#allocation19 + $0x150] sm:$0xff]
          %v4003 = vld [vmem:[#allocation19 + $0x158] sm:$0xff]
          %v4004 = vld [vmem:[#allocation19 + $0x160] sm:$0xff]
          %v4005 = vld [vmem:[#allocation19 + $0x168] sm:$0xff]
          %v4006 = vld [vmem:[#allocation19 + $0x170] sm:$0xff]
          %v4007 = vld [vmem:[#allocation19 + $0x178] sm:$0xff]
          %v4008 = vld [vmem:[#allocation19 + $0x180] sm:$0xff]
          %v4009 = vld [vmem:[#allocation19 + $0x188] sm:$0xff]
          %v4010 = vld [vmem:[#allocation19 + $0x190] sm:$0xff]
          %v4011 = vld [vmem:[#allocation19 + $0x198] sm:$0xff]
          %v4012 = vld [vmem:[#allocation19 + $0x1a0] sm:$0xff]
          %v4013 = vld [vmem:[#allocation19 + $0x1a8] sm:$0xff]
          %v4014 = vld [vmem:[#allocation19 + $0x1b0] sm:$0xff]
          %v4015 = vld [vmem:[#allocation19 + $0x1b8] sm:$0xff]
          %v4016 = vld [vmem:[#allocation19 + $0x1c0] sm:$0xff]
          %v4017 = vld [vmem:[#allocation19 + $0x1c8] sm:$0xff]
          %v4018 = vld [vmem:[#allocation19 + $0x1d0] sm:$0xff]
          %v4019 = vld [vmem:[#allocation19 + $0x1d8] sm:$0xff]
          %v4020 = vld [vmem:[#allocation19 + $0x1e0] sm:$0xff]
          %v4021 = vld [vmem:[#allocation19 + $0x1e8] sm:$0xff]
          %v4022 = vld [vmem:[#allocation19 + $0x1f0] sm:$0xff]
          %v4023 = vld [vmem:[#allocation19 + $0x1f8] sm:$0xff]
          %v4024 = vld [vmem:[#allocation19 + $0x200] sm:$0xff]
          %v4025 = vld [vmem:[#allocation19 + $0x208] sm:$0xff]
          %v4026 = vld [vmem:[#allocation19 + $0x210] sm:$0xff]
          %v4027 = vld [vmem:[#allocation19 + $0x218] sm:$0xff]
          %v4028 = vld [vmem:[#allocation19 + $0x220] sm:$0xff]
          %v4029 = vld [vmem:[#allocation19 + $0x228] sm:$0xff]
          %v4030 = vld [vmem:[#allocation19 + $0x230] sm:$0xff]
          %v4031 = vld [vmem:[#allocation19 + $0x238] sm:$0xff]
          %v4032 = vld [vmem:[#allocation19 + $0x240] sm:$0xff]
          %v4033 = vld [vmem:[#allocation19 + $0x248] sm:$0xff]
          %v4034 = vld [vmem:[#allocation19 + $0x250] sm:$0xff]
          %v4035 = vld [vmem:[#allocation19 + $0x258] sm:$0xff]
          %v4036 = vld [vmem:[#allocation19 + $0x260] sm:$0xff]
          %v4037 = vld [vmem:[#allocation19 + $0x268] sm:$0xff]
          %v4038 = vld [vmem:[#allocation19 + $0x270] sm:$0xff]
          %v4039 = vld [vmem:[#allocation19 + $0x278] sm:$0xff]
          %v4040 = vld [vmem:[#allocation19 + $0x280] sm:$0xff]
          %v4041 = vld [vmem:[#allocation19 + $0x288] sm:$0xff]
          %v4042 = vld [vmem:[#allocation19 + $0x290] sm:$0xff]
          %v4043 = vld [vmem:[#allocation19 + $0x298] sm:$0xff]
          %v4044 = vld [vmem:[#allocation19 + $0x2a0] sm:$0xff]
          %v4045 = vld [vmem:[#allocation19 + $0x2a8] sm:$0xff]
          %v4046 = vld [vmem:[#allocation19 + $0x2b0] sm:$0xff]
          %v4047 = vld [vmem:[#allocation19 + $0x2b8] sm:$0xff]
          %v4048 = vld [vmem:[#allocation19 + $0x2c0] sm:$0xff]
          %v4049 = vld [vmem:[#allocation19 + $0x2c8] sm:$0xff]
          %v4050 = vld [vmem:[#allocation19 + $0x2d0] sm:$0xff]
          %v4051 = vld [vmem:[#allocation19 + $0x2d8] sm:$0xff]
          %v4052 = vld [vmem:[#allocation19 + $0x2e0] sm:$0xff]
          %v4053 = vld [vmem:[#allocation19 + $0x2e8] sm:$0xff]
          %v4054 = vld [vmem:[#allocation19 + $0x2f0] sm:$0xff]
          %v4055 = vld [vmem:[#allocation19 + $0x2f8] sm:$0xff]
          %v4056 = vld [vmem:[#allocation19 + $0x300] sm:$0xff]
          %v4057 = vld [vmem:[#allocation19 + $0x308] sm:$0xff]
          %v4058 = vld [vmem:[#allocation19 + $0x310] sm:$0xff]
          %v4059 = vld [vmem:[#allocation19 + $0x318] sm:$0xff]
          %v4060 = vld [vmem:[#allocation19 + $0x320] sm:$0xff]
          %v4061 = vld [vmem:[#allocation19 + $0x328] sm:$0xff]
          %v4062 = vld [vmem:[#allocation19 + $0x330] sm:$0xff]
          %v4063 = vld [vmem:[#allocation19 + $0x338] sm:$0xff]
          %v4064 = vld [vmem:[#allocation19 + $0x340] sm:$0xff]
          %v4065 = vld [vmem:[#allocation19 + $0x348] sm:$0xff]
          %v4066 = vld [vmem:[#allocation19 + $0x350] sm:$0xff]
          %v4067 = vld [vmem:[#allocation19 + $0x358] sm:$0xff]
          %v4068 = vld [vmem:[#allocation19 + $0x360] sm:$0xff]
          %v4069 = vld [vmem:[#allocation19 + $0x368] sm:$0xff]
          %v4070 = vld [vmem:[#allocation19 + $0x370] sm:$0xff]
          %v4071 = vld [vmem:[#allocation19 + $0x378] sm:$0xff]
          %v4072 = vld [vmem:[#allocation19 + $0x380] sm:$0xff]
          %v4073 = vld [vmem:[#allocation19 + $0x388] sm:$0xff]
          %v4074 = vld [vmem:[#allocation19 + $0x390] sm:$0xff]
          %v4075 = vld [vmem:[#allocation19 + $0x398] sm:$0xff]
          %v4076 = vld [vmem:[#allocation19 + $0x3a0] sm:$0xff]
          %v4077 = vld [vmem:[#allocation19 + $0x3a8] sm:$0xff]
          %v4078 = vld [vmem:[#allocation19 + $0x3b0] sm:$0xff]
          %v4079 = vld [vmem:[#allocation19 + $0x3b8] sm:$0xff]
          %v4080 = vld [vmem:[#allocation19 + $0x3c0] sm:$0xff]
          %v4081 = vld [vmem:[#allocation19 + $0x3c8] sm:$0xff]
          %v4082 = vld [vmem:[#allocation19 + $0x3d0] sm:$0xff]
          %v4083 = vld [vmem:[#allocation19 + $0x3d8] sm:$0xff]
          %v4084 = vld [vmem:[#allocation19 + $0x3e0] sm:$0xff]
          %v4085 = vld [vmem:[#allocation19 + $0x3e8] sm:$0xff]
          %v4086 = vld [vmem:[#allocation19 + $0x3f0] sm:$0xff]
          %v4087 = vld [vmem:[#allocation19 + $0x3f8] sm:$0xff]
          %v4088 = vld [vmem:[%s15] sm:$0xff]
          %v4090 = vlaneseq
          %v4091 = vshrl.u32 %v4090, 7
          %v4092 = vsub.s32 0, %v4091
          %v4093 = vrot.slane %v4088, %v4092
          %v4094 = vlaneseq
          %v4095 = vshrl.u32 %v4094, 7
          %v4096 = vsub.s32 1, %v4095
          %v4097 = vrot.slane %v4088, %v4096
          %v4098 = vlaneseq
          %v4099 = vshrl.u32 %v4098, 7
          %v4100 = vsub.s32 2, %v4099
          %v4101 = vrot.slane %v4088, %v4100
          %v4102 = vlaneseq
          %v4103 = vshrl.u32 %v4102, 7
          %v4104 = vsub.s32 3, %v4103
          %v4105 = vrot.slane %v4088, %v4104
          %v4106 = vlaneseq
          %v4107 = vshrl.u32 %v4106, 7
          %v4108 = vsub.s32 4, %v4107
          %v4109 = vrot.slane %v4088, %v4108
          %v4110 = vlaneseq
          %v4111 = vshrl.u32 %v4110, 7
          %v4112 = vsub.s32 5, %v4111
          %v4113 = vrot.slane %v4088, %v4112
          %v4114 = vlaneseq
          %v4115 = vshrl.u32 %v4114, 7
          %v4116 = vsub.s32 6, %v4115
          %v4117 = vrot.slane %v4088, %v4116
          %v4118 = vlaneseq
          %v4119 = vshrl.u32 %v4118, 7
          %v4120 = vsub.s32 7, %v4119
          %v4121 = vrot.slane %v4088, %v4120
          %v4258 = vunpack.c.l.b16 %v3960
          %v4259 = vunpack.c.h.b16 %v3960
          %v4260 = vunpack.c.l.b16 %v3961
          %v4261 = vunpack.c.h.b16 %v3961
          %v4262 = vunpack.c.l.b16 %v3962
          %v4263 = vunpack.c.h.b16 %v3962
          %v4264 = vunpack.c.l.b16 %v3963
          %v4265 = vunpack.c.h.b16 %v3963
          %v4266 = vunpack.c.l.b16 %v3964
          %v4267 = vunpack.c.h.b16 %v3964
          %v4268 = vunpack.c.l.b16 %v3965
          %v4269 = vunpack.c.h.b16 %v3965
          %v4270 = vunpack.c.l.b16 %v3966
          %v4271 = vunpack.c.h.b16 %v3966
          %v4272 = vunpack.c.l.b16 %v3967
          %v4273 = vunpack.c.h.b16 %v3967
          %v4274 = vunpack.c.l.b16 %v3968
          %v4275 = vunpack.c.h.b16 %v3968
          %v4276 = vunpack.c.l.b16 %v3969
          %v4277 = vunpack.c.h.b16 %v3969
          %v4278 = vunpack.c.l.b16 %v3970
          %v4279 = vunpack.c.h.b16 %v3970
          %v4280 = vunpack.c.l.b16 %v3971
          %v4281 = vunpack.c.h.b16 %v3971
          %v4282 = vunpack.c.l.b16 %v3972
          %v4283 = vunpack.c.h.b16 %v3972
          %v4284 = vunpack.c.l.b16 %v3973
          %v4285 = vunpack.c.h.b16 %v3973
          %v4286 = vunpack.c.l.b16 %v3974
          %v4287 = vunpack.c.h.b16 %v3974
          %v4288 = vunpack.c.l.b16 %v3975
          %v4289 = vunpack.c.h.b16 %v3975
          %v4290 = vunpack.c.l.b16 %v3976
          %v4291 = vunpack.c.h.b16 %v3976
          %v4292 = vunpack.c.l.b16 %v3977
          %v4293 = vunpack.c.h.b16 %v3977
          %v4294 = vunpack.c.l.b16 %v3978
          %v4295 = vunpack.c.h.b16 %v3978
          %v4296 = vunpack.c.l.b16 %v3979
          %v4297 = vunpack.c.h.b16 %v3979
          %v4298 = vunpack.c.l.b16 %v3980
          %v4299 = vunpack.c.h.b16 %v3980
          %v4300 = vunpack.c.l.b16 %v3981
          %v4301 = vunpack.c.h.b16 %v3981
          %v4302 = vunpack.c.l.b16 %v3982
          %v4303 = vunpack.c.h.b16 %v3982
          %v4304 = vunpack.c.l.b16 %v3983
          %v4305 = vunpack.c.h.b16 %v3983
          %v4306 = vunpack.c.l.b16 %v3984
          %v4307 = vunpack.c.h.b16 %v3984
          %v4308 = vunpack.c.l.b16 %v3985
          %v4309 = vunpack.c.h.b16 %v3985
          %v4310 = vunpack.c.l.b16 %v3986
          %v4311 = vunpack.c.h.b16 %v3986
          %v4312 = vunpack.c.l.b16 %v3987
          %v4313 = vunpack.c.h.b16 %v3987
          %v4314 = vunpack.c.l.b16 %v3988
          %v4315 = vunpack.c.h.b16 %v3988
          %v4316 = vunpack.c.l.b16 %v3989
          %v4317 = vunpack.c.h.b16 %v3989
          %v4318 = vunpack.c.l.b16 %v3990
          %v4319 = vunpack.c.h.b16 %v3990
          %v4320 = vunpack.c.l.b16 %v3991
          %v4321 = vunpack.c.h.b16 %v3991
          %v4322 = vunpack.c.l.b16 %v3992
          %v4323 = vunpack.c.h.b16 %v3992
          %v4324 = vunpack.c.l.b16 %v3993
          %v4325 = vunpack.c.h.b16 %v3993
          %v4326 = vunpack.c.l.b16 %v3994
          %v4327 = vunpack.c.h.b16 %v3994
          %v4328 = vunpack.c.l.b16 %v3995
          %v4329 = vunpack.c.h.b16 %v3995
          %v4330 = vunpack.c.l.b16 %v3996
          %v4331 = vunpack.c.h.b16 %v3996
          %v4332 = vunpack.c.l.b16 %v3997
          %v4333 = vunpack.c.h.b16 %v3997
          %v4334 = vunpack.c.l.b16 %v3998
          %v4335 = vunpack.c.h.b16 %v3998
          %v4336 = vunpack.c.l.b16 %v3999
          %v4337 = vunpack.c.h.b16 %v3999
          %v4338 = vunpack.c.l.b16 %v4000
          %v4339 = vunpack.c.h.b16 %v4000
          %v4340 = vunpack.c.l.b16 %v4001
          %v4341 = vunpack.c.h.b16 %v4001
          %v4342 = vunpack.c.l.b16 %v4002
          %v4343 = vunpack.c.h.b16 %v4002
          %v4344 = vunpack.c.l.b16 %v4003
          %v4345 = vunpack.c.h.b16 %v4003
          %v4346 = vunpack.c.l.b16 %v4004
          %v4347 = vunpack.c.h.b16 %v4004
          %v4348 = vunpack.c.l.b16 %v4005
          %v4349 = vunpack.c.h.b16 %v4005
          %v4350 = vunpack.c.l.b16 %v4006
          %v4351 = vunpack.c.h.b16 %v4006
          %v4352 = vunpack.c.l.b16 %v4007
          %v4353 = vunpack.c.h.b16 %v4007
          %v4354 = vunpack.c.l.b16 %v4008
          %v4355 = vunpack.c.h.b16 %v4008
          %v4356 = vunpack.c.l.b16 %v4009
          %v4357 = vunpack.c.h.b16 %v4009
          %v4358 = vunpack.c.l.b16 %v4010
          %v4359 = vunpack.c.h.b16 %v4010
          %v4360 = vunpack.c.l.b16 %v4011
          %v4361 = vunpack.c.h.b16 %v4011
          %v4362 = vunpack.c.l.b16 %v4012
          %v4363 = vunpack.c.h.b16 %v4012
          %v4364 = vunpack.c.l.b16 %v4013
          %v4365 = vunpack.c.h.b16 %v4013
          %v4366 = vunpack.c.l.b16 %v4014
          %v4367 = vunpack.c.h.b16 %v4014
          %v4368 = vunpack.c.l.b16 %v4015
          %v4369 = vunpack.c.h.b16 %v4015
          %v4370 = vunpack.c.l.b16 %v4016
          %v4371 = vunpack.c.h.b16 %v4016
          %v4372 = vunpack.c.l.b16 %v4017
          %v4373 = vunpack.c.h.b16 %v4017
          %v4374 = vunpack.c.l.b16 %v4018
          %v4375 = vunpack.c.h.b16 %v4018
          %v4376 = vunpack.c.l.b16 %v4019
          %v4377 = vunpack.c.h.b16 %v4019
          %v4378 = vunpack.c.l.b16 %v4020
          %v4379 = vunpack.c.h.b16 %v4020
          %v4380 = vunpack.c.l.b16 %v4021
          %v4381 = vunpack.c.h.b16 %v4021
          %v4382 = vunpack.c.l.b16 %v4022
          %v4383 = vunpack.c.h.b16 %v4022
          %v4384 = vunpack.c.l.b16 %v4023
          %v4385 = vunpack.c.h.b16 %v4023
          %v4386 = vunpack.c.l.b16 %v4024
          %v4387 = vunpack.c.h.b16 %v4024
          %v4388 = vunpack.c.l.b16 %v4025
          %v4389 = vunpack.c.h.b16 %v4025
          %v4390 = vunpack.c.l.b16 %v4026
          %v4391 = vunpack.c.h.b16 %v4026
          %v4392 = vunpack.c.l.b16 %v4027
          %v4393 = vunpack.c.h.b16 %v4027
          %v4394 = vunpack.c.l.b16 %v4028
          %v4395 = vunpack.c.h.b16 %v4028
          %v4396 = vunpack.c.l.b16 %v4029
          %v4397 = vunpack.c.h.b16 %v4029
          %v4398 = vunpack.c.l.b16 %v4030
          %v4399 = vunpack.c.h.b16 %v4030
          %v4400 = vunpack.c.l.b16 %v4031
          %v4401 = vunpack.c.h.b16 %v4031
          %v4402 = vunpack.c.l.b16 %v4032
          %v4403 = vunpack.c.h.b16 %v4032
          %v4404 = vunpack.c.l.b16 %v4033
          %v4405 = vunpack.c.h.b16 %v4033
          %v4406 = vunpack.c.l.b16 %v4034
          %v4407 = vunpack.c.h.b16 %v4034
          %v4408 = vunpack.c.l.b16 %v4035
          %v4409 = vunpack.c.h.b16 %v4035
          %v4410 = vunpack.c.l.b16 %v4036
          %v4411 = vunpack.c.h.b16 %v4036
          %v4412 = vunpack.c.l.b16 %v4037
          %v4413 = vunpack.c.h.b16 %v4037
          %v4414 = vunpack.c.l.b16 %v4038
          %v4415 = vunpack.c.h.b16 %v4038
          %v4416 = vunpack.c.l.b16 %v4039
          %v4417 = vunpack.c.h.b16 %v4039
          %v4418 = vunpack.c.l.b16 %v4040
          %v4419 = vunpack.c.h.b16 %v4040
          %v4420 = vunpack.c.l.b16 %v4041
          %v4421 = vunpack.c.h.b16 %v4041
          %v4422 = vunpack.c.l.b16 %v4042
          %v4423 = vunpack.c.h.b16 %v4042
          %v4424 = vunpack.c.l.b16 %v4043
          %v4425 = vunpack.c.h.b16 %v4043
          %v4426 = vunpack.c.l.b16 %v4044
          %v4427 = vunpack.c.h.b16 %v4044
          %v4428 = vunpack.c.l.b16 %v4045
          %v4429 = vunpack.c.h.b16 %v4045
          %v4430 = vunpack.c.l.b16 %v4046
          %v4431 = vunpack.c.h.b16 %v4046
          %v4432 = vunpack.c.l.b16 %v4047
          %v4433 = vunpack.c.h.b16 %v4047
          %v4434 = vunpack.c.l.b16 %v4048
          %v4435 = vunpack.c.h.b16 %v4048
          %v4436 = vunpack.c.l.b16 %v4049
          %v4437 = vunpack.c.h.b16 %v4049
          %v4438 = vunpack.c.l.b16 %v4050
          %v4439 = vunpack.c.h.b16 %v4050
          %v4440 = vunpack.c.l.b16 %v4051
          %v4441 = vunpack.c.h.b16 %v4051
          %v4442 = vunpack.c.l.b16 %v4052
          %v4443 = vunpack.c.h.b16 %v4052
          %v4444 = vunpack.c.l.b16 %v4053
          %v4445 = vunpack.c.h.b16 %v4053
          %v4446 = vunpack.c.l.b16 %v4054
          %v4447 = vunpack.c.h.b16 %v4054
          %v4448 = vunpack.c.l.b16 %v4055
          %v4449 = vunpack.c.h.b16 %v4055
          %v4450 = vunpack.c.l.b16 %v4056
          %v4451 = vunpack.c.h.b16 %v4056
          %v4452 = vunpack.c.l.b16 %v4057
          %v4453 = vunpack.c.h.b16 %v4057
          %v4454 = vunpack.c.l.b16 %v4058
          %v4455 = vunpack.c.h.b16 %v4058
          %v4456 = vunpack.c.l.b16 %v4059
          %v4457 = vunpack.c.h.b16 %v4059
          %v4458 = vunpack.c.l.b16 %v4060
          %v4459 = vunpack.c.h.b16 %v4060
          %v4460 = vunpack.c.l.b16 %v4061
          %v4461 = vunpack.c.h.b16 %v4061
          %v4462 = vunpack.c.l.b16 %v4062
          %v4463 = vunpack.c.h.b16 %v4062
          %v4464 = vunpack.c.l.b16 %v4063
          %v4465 = vunpack.c.h.b16 %v4063
          %v4466 = vunpack.c.l.b16 %v4064
          %v4467 = vunpack.c.h.b16 %v4064
          %v4468 = vunpack.c.l.b16 %v4065
          %v4469 = vunpack.c.h.b16 %v4065
          %v4470 = vunpack.c.l.b16 %v4066
          %v4471 = vunpack.c.h.b16 %v4066
          %v4472 = vunpack.c.l.b16 %v4067
          %v4473 = vunpack.c.h.b16 %v4067
          %v4474 = vunpack.c.l.b16 %v4068
          %v4475 = vunpack.c.h.b16 %v4068
          %v4476 = vunpack.c.l.b16 %v4069
          %v4477 = vunpack.c.h.b16 %v4069
          %v4478 = vunpack.c.l.b16 %v4070
          %v4479 = vunpack.c.h.b16 %v4070
          %v4480 = vunpack.c.l.b16 %v4071
          %v4481 = vunpack.c.h.b16 %v4071
          %v4482 = vunpack.c.l.b16 %v4072
          %v4483 = vunpack.c.h.b16 %v4072
          %v4484 = vunpack.c.l.b16 %v4073
          %v4485 = vunpack.c.h.b16 %v4073
          %v4486 = vunpack.c.l.b16 %v4074
          %v4487 = vunpack.c.h.b16 %v4074
          %v4488 = vunpack.c.l.b16 %v4075
          %v4489 = vunpack.c.h.b16 %v4075
          %v4490 = vunpack.c.l.b16 %v4076
          %v4491 = vunpack.c.h.b16 %v4076
          %v4492 = vunpack.c.l.b16 %v4077
          %v4493 = vunpack.c.h.b16 %v4077
          %v4494 = vunpack.c.l.b16 %v4078
          %v4495 = vunpack.c.h.b16 %v4078
          %v4496 = vunpack.c.l.b16 %v4079
          %v4497 = vunpack.c.h.b16 %v4079
          %v4498 = vunpack.c.l.b16 %v4080
          %v4499 = vunpack.c.h.b16 %v4080
          %v4500 = vunpack.c.l.b16 %v4081
          %v4501 = vunpack.c.h.b16 %v4081
          %v4502 = vunpack.c.l.b16 %v4082
          %v4503 = vunpack.c.h.b16 %v4082
          %v4504 = vunpack.c.l.b16 %v4083
          %v4505 = vunpack.c.h.b16 %v4083
          %v4506 = vunpack.c.l.b16 %v4084
          %v4507 = vunpack.c.h.b16 %v4084
          %v4508 = vunpack.c.l.b16 %v4085
          %v4509 = vunpack.c.h.b16 %v4085
          %v4510 = vunpack.c.l.b16 %v4086
          %v4511 = vunpack.c.h.b16 %v4086
          %v4512 = vunpack.c.l.b16 %v4087
          %v4513 = vunpack.c.h.b16 %v4087
          %v4514 = vpack.c.b16 %v4266, %v4258
          %v4515 = vpack.c.b16 %v4267, %v4259
          %v4516 = vpack.c.b16 %v4268, %v4260
          %v4517 = vpack.c.b16 %v4269, %v4261
          %v4518 = vpack.c.b16 %v4270, %v4262
          %v4519 = vpack.c.b16 %v4271, %v4263
          %v4520 = vpack.c.b16 %v4272, %v4264
          %v4521 = vpack.c.b16 %v4273, %v4265
          %v4522 = vpack.c.b16 %v4282, %v4274
          %v4523 = vpack.c.b16 %v4283, %v4275
          %v4524 = vpack.c.b16 %v4284, %v4276
          %v4525 = vpack.c.b16 %v4285, %v4277
          %v4526 = vpack.c.b16 %v4286, %v4278
          %v4527 = vpack.c.b16 %v4287, %v4279
          %v4528 = vpack.c.b16 %v4288, %v4280
          %v4529 = vpack.c.b16 %v4289, %v4281
          %v4530 = vpack.c.b16 %v4298, %v4290
          %v4531 = vpack.c.b16 %v4299, %v4291
          %v4532 = vpack.c.b16 %v4300, %v4292
          %v4533 = vpack.c.b16 %v4301, %v4293
          %v4534 = vpack.c.b16 %v4302, %v4294
          %v4535 = vpack.c.b16 %v4303, %v4295
          %v4536 = vpack.c.b16 %v4304, %v4296
          %v4537 = vpack.c.b16 %v4305, %v4297
          %v4538 = vpack.c.b16 %v4314, %v4306
          %v4539 = vpack.c.b16 %v4315, %v4307
          %v4540 = vpack.c.b16 %v4316, %v4308
          %v4541 = vpack.c.b16 %v4317, %v4309
          %v4542 = vpack.c.b16 %v4318, %v4310
          %v4543 = vpack.c.b16 %v4319, %v4311
          %v4544 = vpack.c.b16 %v4320, %v4312
          %v4545 = vpack.c.b16 %v4321, %v4313
          %v4546 = vpack.c.b16 %v4330, %v4322
          %v4547 = vpack.c.b16 %v4331, %v4323
          %v4548 = vpack.c.b16 %v4332, %v4324
          %v4549 = vpack.c.b16 %v4333, %v4325
          %v4550 = vpack.c.b16 %v4334, %v4326
          %v4551 = vpack.c.b16 %v4335, %v4327
          %v4552 = vpack.c.b16 %v4336, %v4328
          %v4553 = vpack.c.b16 %v4337, %v4329
          %v4554 = vpack.c.b16 %v4346, %v4338
          %v4555 = vpack.c.b16 %v4347, %v4339
          %v4556 = vpack.c.b16 %v4348, %v4340
          %v4557 = vpack.c.b16 %v4349, %v4341
          %v4558 = vpack.c.b16 %v4350, %v4342
          %v4559 = vpack.c.b16 %v4351, %v4343
          %v4560 = vpack.c.b16 %v4352, %v4344
          %v4561 = vpack.c.b16 %v4353, %v4345
          %v4562 = vpack.c.b16 %v4362, %v4354
          %v4563 = vpack.c.b16 %v4363, %v4355
          %v4564 = vpack.c.b16 %v4364, %v4356
          %v4565 = vpack.c.b16 %v4365, %v4357
          %v4566 = vpack.c.b16 %v4366, %v4358
          %v4567 = vpack.c.b16 %v4367, %v4359
          %v4568 = vpack.c.b16 %v4368, %v4360
          %v4569 = vpack.c.b16 %v4369, %v4361
          %v4570 = vpack.c.b16 %v4378, %v4370
          %v4571 = vpack.c.b16 %v4379, %v4371
          %v4572 = vpack.c.b16 %v4380, %v4372
          %v4573 = vpack.c.b16 %v4381, %v4373
          %v4574 = vpack.c.b16 %v4382, %v4374
          %v4575 = vpack.c.b16 %v4383, %v4375
          %v4576 = vpack.c.b16 %v4384, %v4376
          %v4577 = vpack.c.b16 %v4385, %v4377
          %v4578 = vpack.c.b16 %v4394, %v4386
          %v4579 = vpack.c.b16 %v4395, %v4387
          %v4580 = vpack.c.b16 %v4396, %v4388
          %v4581 = vpack.c.b16 %v4397, %v4389
          %v4582 = vpack.c.b16 %v4398, %v4390
          %v4583 = vpack.c.b16 %v4399, %v4391
          %v4584 = vpack.c.b16 %v4400, %v4392
          %v4585 = vpack.c.b16 %v4401, %v4393
          %v4586 = vpack.c.b16 %v4410, %v4402
          %v4587 = vpack.c.b16 %v4411, %v4403
          %v4588 = vpack.c.b16 %v4412, %v4404
          %v4589 = vpack.c.b16 %v4413, %v4405
          %v4590 = vpack.c.b16 %v4414, %v4406
          %v4591 = vpack.c.b16 %v4415, %v4407
          %v4592 = vpack.c.b16 %v4416, %v4408
          %v4593 = vpack.c.b16 %v4417, %v4409
          %v4594 = vpack.c.b16 %v4426, %v4418
          %v4595 = vpack.c.b16 %v4427, %v4419
          %v4596 = vpack.c.b16 %v4428, %v4420
          %v4597 = vpack.c.b16 %v4429, %v4421
          %v4598 = vpack.c.b16 %v4430, %v4422
          %v4599 = vpack.c.b16 %v4431, %v4423
          %v4600 = vpack.c.b16 %v4432, %v4424
          %v4601 = vpack.c.b16 %v4433, %v4425
          %v4602 = vpack.c.b16 %v4442, %v4434
          %v4603 = vpack.c.b16 %v4443, %v4435
          %v4604 = vpack.c.b16 %v4444, %v4436
          %v4605 = vpack.c.b16 %v4445, %v4437
          %v4606 = vpack.c.b16 %v4446, %v4438
          %v4607 = vpack.c.b16 %v4447, %v4439
          %v4608 = vpack.c.b16 %v4448, %v4440
          %v4609 = vpack.c.b16 %v4449, %v4441
          %v4610 = vpack.c.b16 %v4458, %v4450
          %v4611 = vpack.c.b16 %v4459, %v4451
          %v4612 = vpack.c.b16 %v4460, %v4452
          %v4613 = vpack.c.b16 %v4461, %v4453
          %v4614 = vpack.c.b16 %v4462, %v4454
          %v4615 = vpack.c.b16 %v4463, %v4455
          %v4616 = vpack.c.b16 %v4464, %v4456
          %v4617 = vpack.c.b16 %v4465, %v4457
          %v4618 = vpack.c.b16 %v4474, %v4466
          %v4619 = vpack.c.b16 %v4475, %v4467
          %v4620 = vpack.c.b16 %v4476, %v4468
          %v4621 = vpack.c.b16 %v4477, %v4469
          %v4622 = vpack.c.b16 %v4478, %v4470
          %v4623 = vpack.c.b16 %v4479, %v4471
          %v4624 = vpack.c.b16 %v4480, %v4472
          %v4625 = vpack.c.b16 %v4481, %v4473
          %v4626 = vpack.c.b16 %v4490, %v4482
          %v4627 = vpack.c.b16 %v4491, %v4483
          %v4628 = vpack.c.b16 %v4492, %v4484
          %v4629 = vpack.c.b16 %v4493, %v4485
          %v4630 = vpack.c.b16 %v4494, %v4486
          %v4631 = vpack.c.b16 %v4495, %v4487
          %v4632 = vpack.c.b16 %v4496, %v4488
          %v4633 = vpack.c.b16 %v4497, %v4489
          %v4634 = vpack.c.b16 %v4506, %v4498
          %v4635 = vpack.c.b16 %v4507, %v4499
          %v4636 = vpack.c.b16 %v4508, %v4500
          %v4637 = vpack.c.b16 %v4509, %v4501
          %v4638 = vpack.c.b16 %v4510, %v4502
          %v4639 = vpack.c.b16 %v4511, %v4503
          %v4640 = vpack.c.b16 %v4512, %v4504
          %v4641 = vpack.c.b16 %v4513, %v4505
          %4770 = vmatprep.subr.bf16.mxu0 %v4515
          %4771 = vmatpush1.bf16.msra.mxu0 %v4514
          %4772 = vmatprep.subr.bf16.mxu0 %v4523
          %4773 = vmatpush1.bf16.msra.mxu0 %v4522
          %4774 = vmatprep.subr.bf16.mxu0 %v4531
          %4775 = vmatpush1.bf16.msra.mxu0 %v4530
          %4776 = vmatprep.subr.bf16.mxu0 %v4539
          %4777 = vmatpush1.bf16.msra.mxu0 %v4538
          %4778 = vmatprep.subr.bf16.mxu0 %v4547
          %4779 = vmatpush1.bf16.msra.mxu0 %v4546
          %4780 = vmatprep.subr.bf16.mxu0 %v4555
          %4781 = vmatpush1.bf16.msra.mxu0 %v4554
          %4782 = vmatprep.subr.bf16.mxu0 %v4563
          %4783 = vmatpush1.bf16.msra.mxu0 %v4562
          %4784 = vmatprep.subr.bf16.mxu0 %v4571
          %4785 = vmatpush1.bf16.msra.mxu0 %v4570
          %4786 = vmatprep.subr.bf16.mxu0 %v4579
          %4787 = vmatpush1.bf16.msra.mxu0 %v4578
          %4788 = vmatprep.subr.bf16.mxu0 %v4587
          %4789 = vmatpush1.bf16.msra.mxu0 %v4586
          %4790 = vmatprep.subr.bf16.mxu0 %v4595
          %4791 = vmatpush1.bf16.msra.mxu0 %v4594
          %4792 = vmatprep.subr.bf16.mxu0 %v4603
          %4793 = vmatpush1.bf16.msra.mxu0 %v4602
          %4794 = vmatprep.subr.bf16.mxu0 %v4611
          %4795 = vmatpush1.bf16.msra.mxu0 %v4610
          %4796 = vmatprep.subr.bf16.mxu0 %v4619
          %4797 = vmatpush1.bf16.msra.mxu0 %v4618
          %4798 = vmatprep.subr.bf16.mxu0 %v4627
          %4799 = vmatpush1.bf16.msra.mxu0 %v4626
          %4800 = vmatprep.subr.bf16.mxu0 %v4635
          %4801 = vmatpush1.bf16.msra.mxu0 %v4634
          %4802 = vmatprep.mubr.bf16.mxu0 %v3959
          %4803 = vmatmul.mubr.bf16.gmra.mrb[0].mxu0 %v3958
          %v4804 = vpop.f32.mrb[0].mxu0
          %v4805 = vadd.f32 %v4093, %v4804
          %v4806 = vpop.f32.mrb[0].mxu0
          %v4807 = vadd.f32 %v4097, %v4806
          %v4808 = vpop.f32.mrb[0].mxu0
          %v4809 = vadd.f32 %v4093, %v4808
          %v4810 = vpop.f32.mrb[0].mxu0
          %v4811 = vadd.f32 %v4097, %v4810
          %4812 = vdwg.mxu0
          %4813 = vmatprep.subr.bf16.mxu0 %v4517
          %4814 = vmatpush1.bf16.msra.mxu0 %v4516
          %4815 = vmatprep.subr.bf16.mxu0 %v4525
          %4816 = vmatpush1.bf16.msra.mxu0 %v4524
          %4817 = vmatprep.subr.bf16.mxu0 %v4533
          %4818 = vmatpush1.bf16.msra.mxu0 %v4532
          %4819 = vmatprep.subr.bf16.mxu0 %v4541
          %4820 = vmatpush1.bf16.msra.mxu0 %v4540
          %4821 = vmatprep.subr.bf16.mxu0 %v4549
          %4822 = vmatpush1.bf16.msra.mxu0 %v4548
          %4823 = vmatprep.subr.bf16.mxu0 %v4557
          %4824 = vmatpush1.bf16.msra.mxu0 %v4556
          %4825 = vmatprep.subr.bf16.mxu0 %v4565
          %4826 = vmatpush1.bf16.msra.mxu0 %v4564
          %4827 = vmatprep.subr.bf16.mxu0 %v4573
          %4828 = vmatpush1.bf16.msra.mxu0 %v4572
          %4829 = vmatprep.subr.bf16.mxu0 %v4581
          %4830 = vmatpush1.bf16.msra.mxu0 %v4580
          %4831 = vmatprep.subr.bf16.mxu0 %v4589
          %4832 = vmatpush1.bf16.msra.mxu0 %v4588
          %4833 = vmatprep.subr.bf16.mxu0 %v4597
          %4834 = vmatpush1.bf16.msra.mxu0 %v4596
          %4835 = vmatprep.subr.bf16.mxu0 %v4605
          %4836 = vmatpush1.bf16.msra.mxu0 %v4604
          %4837 = vmatprep.subr.bf16.mxu0 %v4613
          %4838 = vmatpush1.bf16.msra.mxu0 %v4612
          %4839 = vmatprep.subr.bf16.mxu0 %v4621
          %4840 = vmatpush1.bf16.msra.mxu0 %v4620
          %4841 = vmatprep.subr.bf16.mxu0 %v4629
          %4842 = vmatpush1.bf16.msra.mxu0 %v4628
          %4843 = vmatprep.subr.bf16.mxu0 %v4637
          %4844 = vmatpush1.bf16.msra.mxu0 %v4636
          %4845 = vmatprep.mubr.bf16.mxu0 %v3959
          %4846 = vmatmul.mubr.bf16.gmra.mrb[0].mxu0 %v3958
          %v4847 = vpop.f32.mrb[0].mxu0
          %v4848 = vadd.f32 %v4101, %v4847
          %v4849 = vpop.f32.mrb[0].mxu0
          %v4850 = vadd.f32 %v4105, %v4849
          %v4851 = vpop.f32.mrb[0].mxu0
          %v4852 = vadd.f32 %v4101, %v4851
          %v4853 = vpop.f32.mrb[0].mxu0
          %v4854 = vadd.f32 %v4105, %v4853
          %4855 = vdwg.mxu0
          %4856 = vmatprep.subr.bf16.mxu0 %v4519
          %4857 = vmatpush1.bf16.msra.mxu0 %v4518
          %4858 = vmatprep.subr.bf16.mxu0 %v4527
          %4859 = vmatpush1.bf16.msra.mxu0 %v4526
          %4860 = vmatprep.subr.bf16.mxu0 %v4535
          %4861 = vmatpush1.bf16.msra.mxu0 %v4534
          %4862 = vmatprep.subr.bf16.mxu0 %v4543
          %4863 = vmatpush1.bf16.msra.mxu0 %v4542
          %4864 = vmatprep.subr.bf16.mxu0 %v4551
          %4865 = vmatpush1.bf16.msra.mxu0 %v4550
          %4866 = vmatprep.subr.bf16.mxu0 %v4559
          %4867 = vmatpush1.bf16.msra.mxu0 %v4558
          %4868 = vmatprep.subr.bf16.mxu0 %v4567
          %4869 = vmatpush1.bf16.msra.mxu0 %v4566
          %4870 = vmatprep.subr.bf16.mxu0 %v4575
          %4871 = vmatpush1.bf16.msra.mxu0 %v4574
          %4872 = vmatprep.subr.bf16.mxu0 %v4583
          %4873 = vmatpush1.bf16.msra.mxu0 %v4582
          %4874 = vmatprep.subr.bf16.mxu0 %v4591
          %4875 = vmatpush1.bf16.msra.mxu0 %v4590
          %4876 = vmatprep.subr.bf16.mxu0 %v4599
          %4877 = vmatpush1.bf16.msra.mxu0 %v4598
          %4878 = vmatprep.subr.bf16.mxu0 %v4607
          %4879 = vmatpush1.bf16.msra.mxu0 %v4606
          %4880 = vmatprep.subr.bf16.mxu0 %v4615
          %4881 = vmatpush1.bf16.msra.mxu0 %v4614
          %4882 = vmatprep.subr.bf16.mxu0 %v4623
          %4883 = vmatpush1.bf16.msra.mxu0 %v4622
          %4884 = vmatprep.subr.bf16.mxu0 %v4631
          %4885 = vmatpush1.bf16.msra.mxu0 %v4630
          %4886 = vmatprep.subr.bf16.mxu0 %v4639
          %4887 = vmatpush1.bf16.msra.mxu0 %v4638
          %4888 = vmatprep.mubr.bf16.mxu0 %v3959
          %4889 = vmatmul.mubr.bf16.gmra.mrb[0].mxu0 %v3958
          %v4890 = vpop.f32.mrb[0].mxu0
          %v4891 = vadd.f32 %v4109, %v4890
          %v4892 = vpop.f32.mrb[0].mxu0
          %v4893 = vadd.f32 %v4113, %v4892
          %v4894 = vpop.f32.mrb[0].mxu0
          %v4895 = vadd.f32 %v4109, %v4894
          %v4896 = vpop.f32.mrb[0].mxu0
          %v4897 = vadd.f32 %v4113, %v4896
          %4898 = vdwg.mxu0
          %4899 = vmatprep.subr.bf16.mxu0 %v4521
          %4900 = vmatpush1.bf16.msra.mxu0 %v4520
          %4901 = vmatprep.subr.bf16.mxu0 %v4529
          %4902 = vmatpush1.bf16.msra.mxu0 %v4528
          %4903 = vmatprep.subr.bf16.mxu0 %v4537
          %4904 = vmatpush1.bf16.msra.mxu0 %v4536
          %4905 = vmatprep.subr.bf16.mxu0 %v4545
          %4906 = vmatpush1.bf16.msra.mxu0 %v4544
          %4907 = vmatprep.subr.bf16.mxu0 %v4553
          %4908 = vmatpush1.bf16.msra.mxu0 %v4552
          %4909 = vmatprep.subr.bf16.mxu0 %v4561
          %4910 = vmatpush1.bf16.msra.mxu0 %v4560
          %4911 = vmatprep.subr.bf16.mxu0 %v4569
          %4912 = vmatpush1.bf16.msra.mxu0 %v4568
          %4913 = vmatprep.subr.bf16.mxu0 %v4577
          %4914 = vmatpush1.bf16.msra.mxu0 %v4576
          %4915 = vmatprep.subr.bf16.mxu0 %v4585
          %4916 = vmatpush1.bf16.msra.mxu0 %v4584
          %4917 = vmatprep.subr.bf16.mxu0 %v4593
          %4918 = vmatpush1.bf16.msra.mxu0 %v4592
          %4919 = vmatprep.subr.bf16.mxu0 %v4601
          %4920 = vmatpush1.bf16.msra.mxu0 %v4600
          %4921 = vmatprep.subr.bf16.mxu0 %v4609
          %4922 = vmatpush1.bf16.msra.mxu0 %v4608
          %4923 = vmatprep.subr.bf16.mxu0 %v4617
          %4924 = vmatpush1.bf16.msra.mxu0 %v4616
          %4925 = vmatprep.subr.bf16.mxu0 %v4625
          %4926 = vmatpush1.bf16.msra.mxu0 %v4624
          %4927 = vmatprep.subr.bf16.mxu0 %v4633
          %4928 = vmatpush1.bf16.msra.mxu0 %v4632
          %4929 = vmatprep.subr.bf16.mxu0 %v4641
          %4930 = vmatpush1.bf16.msra.mxu0 %v4640
          %4931 = vmatprep.mubr.bf16.mxu0 %v3959
          %4932 = vmatmul.mubr.bf16.gmra.mrb[0].mxu0 %v3958
          %v4933 = vpop.f32.mrb[0].mxu0
          %v4934 = vadd.f32 %v4117, %v4933
          %v4935 = vpop.f32.mrb[0].mxu0
          %v4936 = vadd.f32 %v4121, %v4935
          %v4937 = vpop.f32.mrb[0].mxu0
          %v4938 = vadd.f32 %v4117, %v4937
          %v4939 = vpop.f32.mrb[0].mxu0
          %v4940 = vadd.f32 %v4121, %v4939
          %4941 = vdwg.mxu0
          %v4942 = vmax.f32 %v4805, 0.0
          %v4943 = vmax.f32 %v4807, 0.0
          %v4944 = vmax.f32 %v4848, 0.0
          %v4945 = vmax.f32 %v4850, 0.0
          %v4946 = vmax.f32 %v4891, 0.0
          %v4947 = vmax.f32 %v4893, 0.0
          %v4948 = vmax.f32 %v4934, 0.0
          %v4949 = vmax.f32 %v4936, 0.0
          %v4950 = vmax.f32 %v4809, 0.0
          %v4951 = vmax.f32 %v4811, 0.0
          %v4952 = vmax.f32 %v4852, 0.0
          %v4953 = vmax.f32 %v4854, 0.0
          %v4954 = vmax.f32 %v4895, 0.0
          %v4955 = vmax.f32 %v4897, 0.0
          %v4956 = vmax.f32 %v4938, 0.0
          %v4957 = vmax.f32 %v4940, 0.0
          %v4958 = vpack.c.bf16 %v4950, %v4942
          %v4959 = vpack.c.bf16 %v4951, %v4943
          %v4960 = vpack.c.bf16 %v4952, %v4944
          %v4961 = vpack.c.bf16 %v4953, %v4945
          %v4962 = vpack.c.bf16 %v4954, %v4946
          %v4963 = vpack.c.bf16 %v4955, %v4947
          %v4964 = vpack.c.bf16 %v4956, %v4948
          %v4965 = vpack.c.bf16 %v4957, %v4949
          %v4966 = vld [vmem:[#allocation20] sm:$0xff]
          %v4967 = vld [vmem:[#allocation20 + $0x8] sm:$0xff]
          %v4968 = vld [vmem:[#allocation20 + $0x10] sm:$0xff]
          %v4969 = vld [vmem:[#allocation20 + $0x18] sm:$0xff]
          %v4970 = vld [vmem:[#allocation20 + $0x20] sm:$0xff]
          %v4971 = vld [vmem:[#allocation20 + $0x28] sm:$0xff]
          %v4972 = vld [vmem:[#allocation20 + $0x30] sm:$0xff]
          %v4973 = vld [vmem:[#allocation20 + $0x38] sm:$0xff]
          %v4974 = vld [vmem:[#allocation20 + $0x40] sm:$0xff]
          %v4975 = vld [vmem:[#allocation20 + $0x48] sm:$0xff]
          %v4976 = vld [vmem:[#allocation20 + $0x50] sm:$0xff]
          %v4977 = vld [vmem:[#allocation20 + $0x58] sm:$0xff]
          %v4978 = vld [vmem:[#allocation20 + $0x60] sm:$0xff]
          %v4979 = vld [vmem:[#allocation20 + $0x68] sm:$0xff]
          %v4980 = vld [vmem:[#allocation20 + $0x70] sm:$0xff]
          %v4981 = vld [vmem:[#allocation20 + $0x78] sm:$0xff]
          %v4982 = vld [vmem:[#allocation20 + $0x80] sm:$0xff]
          %v4983 = vld [vmem:[#allocation20 + $0x88] sm:$0xff]
          %v4984 = vld [vmem:[#allocation20 + $0x90] sm:$0xff]
          %v4985 = vld [vmem:[#allocation20 + $0x98] sm:$0xff]
          %v4986 = vld [vmem:[#allocation20 + $0xa0] sm:$0xff]
          %v4987 = vld [vmem:[#allocation20 + $0xa8] sm:$0xff]
          %v4988 = vld [vmem:[#allocation20 + $0xb0] sm:$0xff]
          %v4989 = vld [vmem:[#allocation20 + $0xb8] sm:$0xff]
          %v4990 = vld [vmem:[#allocation20 + $0xc0] sm:$0xff]
          %v4991 = vld [vmem:[#allocation20 + $0xc8] sm:$0xff]
          %v4992 = vld [vmem:[#allocation20 + $0xd0] sm:$0xff]
          %v4993 = vld [vmem:[#allocation20 + $0xd8] sm:$0xff]
          %v4994 = vld [vmem:[#allocation20 + $0xe0] sm:$0xff]
          %v4995 = vld [vmem:[#allocation20 + $0xe8] sm:$0xff]
          %v4996 = vld [vmem:[#allocation20 + $0xf0] sm:$0xff]
          %v4997 = vld [vmem:[#allocation20 + $0xf8] sm:$0xff]
          %v4998 = vld [vmem:[#allocation20 + $0x100] sm:$0xff]
          %v4999 = vld [vmem:[#allocation20 + $0x108] sm:$0xff]
          %v5000 = vld [vmem:[#allocation20 + $0x110] sm:$0xff]
          %v5001 = vld [vmem:[#allocation20 + $0x118] sm:$0xff]
          %v5002 = vld [vmem:[#allocation20 + $0x120] sm:$0xff]
          %v5003 = vld [vmem:[#allocation20 + $0x128] sm:$0xff]
          %v5004 = vld [vmem:[#allocation20 + $0x130] sm:$0xff]
          %v5005 = vld [vmem:[#allocation20 + $0x138] sm:$0xff]
          %v5006 = vld [vmem:[#allocation20 + $0x140] sm:$0xff]
          %v5007 = vld [vmem:[#allocation20 + $0x148] sm:$0xff]
          %v5008 = vld [vmem:[#allocation20 + $0x150] sm:$0xff]
          %v5009 = vld [vmem:[#allocation20 + $0x158] sm:$0xff]
          %v5010 = vld [vmem:[#allocation20 + $0x160] sm:$0xff]
          %v5011 = vld [vmem:[#allocation20 + $0x168] sm:$0xff]
          %v5012 = vld [vmem:[#allocation20 + $0x170] sm:$0xff]
          %v5013 = vld [vmem:[#allocation20 + $0x178] sm:$0xff]
          %v5014 = vld [vmem:[#allocation20 + $0x180] sm:$0xff]
          %v5015 = vld [vmem:[#allocation20 + $0x188] sm:$0xff]
          %v5016 = vld [vmem:[#allocation20 + $0x190] sm:$0xff]
          %v5017 = vld [vmem:[#allocation20 + $0x198] sm:$0xff]
          %v5018 = vld [vmem:[#allocation20 + $0x1a0] sm:$0xff]
          %v5019 = vld [vmem:[#allocation20 + $0x1a8] sm:$0xff]
          %v5020 = vld [vmem:[#allocation20 + $0x1b0] sm:$0xff]
          %v5021 = vld [vmem:[#allocation20 + $0x1b8] sm:$0xff]
          %v5022 = vld [vmem:[#allocation20 + $0x1c0] sm:$0xff]
          %v5023 = vld [vmem:[#allocation20 + $0x1c8] sm:$0xff]
          %v5024 = vld [vmem:[#allocation20 + $0x1d0] sm:$0xff]
          %v5025 = vld [vmem:[#allocation20 + $0x1d8] sm:$0xff]
          %v5026 = vld [vmem:[#allocation20 + $0x1e0] sm:$0xff]
          %v5027 = vld [vmem:[#allocation20 + $0x1e8] sm:$0xff]
          %v5028 = vld [vmem:[#allocation20 + $0x1f0] sm:$0xff]
          %v5029 = vld [vmem:[#allocation20 + $0x1f8] sm:$0xff]
          %v5030 = vld [vmem:[#allocation20 + $0x200] sm:$0xff]
          %v5031 = vld [vmem:[#allocation20 + $0x208] sm:$0xff]
          %v5032 = vld [vmem:[#allocation20 + $0x210] sm:$0xff]
          %v5033 = vld [vmem:[#allocation20 + $0x218] sm:$0xff]
          %v5034 = vld [vmem:[#allocation20 + $0x220] sm:$0xff]
          %v5035 = vld [vmem:[#allocation20 + $0x228] sm:$0xff]
          %v5036 = vld [vmem:[#allocation20 + $0x230] sm:$0xff]
          %v5037 = vld [vmem:[#allocation20 + $0x238] sm:$0xff]
          %v5038 = vld [vmem:[#allocation20 + $0x240] sm:$0xff]
          %v5039 = vld [vmem:[#allocation20 + $0x248] sm:$0xff]
          %v5040 = vld [vmem:[#allocation20 + $0x250] sm:$0xff]
          %v5041 = vld [vmem:[#allocation20 + $0x258] sm:$0xff]
          %v5042 = vld [vmem:[#allocation20 + $0x260] sm:$0xff]
          %v5043 = vld [vmem:[#allocation20 + $0x268] sm:$0xff]
          %v5044 = vld [vmem:[#allocation20 + $0x270] sm:$0xff]
          %v5045 = vld [vmem:[#allocation20 + $0x278] sm:$0xff]
          %v5046 = vld [vmem:[#allocation20 + $0x280] sm:$0xff]
          %v5047 = vld [vmem:[#allocation20 + $0x288] sm:$0xff]
          %v5048 = vld [vmem:[#allocation20 + $0x290] sm:$0xff]
          %v5049 = vld [vmem:[#allocation20 + $0x298] sm:$0xff]
          %v5050 = vld [vmem:[#allocation20 + $0x2a0] sm:$0xff]
          %v5051 = vld [vmem:[#allocation20 + $0x2a8] sm:$0xff]
          %v5052 = vld [vmem:[#allocation20 + $0x2b0] sm:$0xff]
          %v5053 = vld [vmem:[#allocation20 + $0x2b8] sm:$0xff]
          %v5054 = vld [vmem:[#allocation20 + $0x2c0] sm:$0xff]
          %v5055 = vld [vmem:[#allocation20 + $0x2c8] sm:$0xff]
          %v5056 = vld [vmem:[#allocation20 + $0x2d0] sm:$0xff]
          %v5057 = vld [vmem:[#allocation20 + $0x2d8] sm:$0xff]
          %v5058 = vld [vmem:[#allocation20 + $0x2e0] sm:$0xff]
          %v5059 = vld [vmem:[#allocation20 + $0x2e8] sm:$0xff]
          %v5060 = vld [vmem:[#allocation20 + $0x2f0] sm:$0xff]
          %v5061 = vld [vmem:[#allocation20 + $0x2f8] sm:$0xff]
          %v5062 = vld [vmem:[#allocation20 + $0x300] sm:$0xff]
          %v5063 = vld [vmem:[#allocation20 + $0x308] sm:$0xff]
          %v5064 = vld [vmem:[#allocation20 + $0x310] sm:$0xff]
          %v5065 = vld [vmem:[#allocation20 + $0x318] sm:$0xff]
          %v5066 = vld [vmem:[#allocation20 + $0x320] sm:$0xff]
          %v5067 = vld [vmem:[#allocation20 + $0x328] sm:$0xff]
          %v5068 = vld [vmem:[#allocation20 + $0x330] sm:$0xff]
          %v5069 = vld [vmem:[#allocation20 + $0x338] sm:$0xff]
          %v5070 = vld [vmem:[#allocation20 + $0x340] sm:$0xff]
          %v5071 = vld [vmem:[#allocation20 + $0x348] sm:$0xff]
          %v5072 = vld [vmem:[#allocation20 + $0x350] sm:$0xff]
          %v5073 = vld [vmem:[#allocation20 + $0x358] sm:$0xff]
          %v5074 = vld [vmem:[#allocation20 + $0x360] sm:$0xff]
          %v5075 = vld [vmem:[#allocation20 + $0x368] sm:$0xff]
          %v5076 = vld [vmem:[#allocation20 + $0x370] sm:$0xff]
          %v5077 = vld [vmem:[#allocation20 + $0x378] sm:$0xff]
          %v5078 = vld [vmem:[#allocation20 + $0x380] sm:$0xff]
          %v5079 = vld [vmem:[#allocation20 + $0x388] sm:$0xff]
          %v5080 = vld [vmem:[#allocation20 + $0x390] sm:$0xff]
          %v5081 = vld [vmem:[#allocation20 + $0x398] sm:$0xff]
          %v5082 = vld [vmem:[#allocation20 + $0x3a0] sm:$0xff]
          %v5083 = vld [vmem:[#allocation20 + $0x3a8] sm:$0xff]
          %v5084 = vld [vmem:[#allocation20 + $0x3b0] sm:$0xff]
          %v5085 = vld [vmem:[#allocation20 + $0x3b8] sm:$0xff]
          %v5086 = vld [vmem:[#allocation20 + $0x3c0] sm:$0xff]
          %v5087 = vld [vmem:[#allocation20 + $0x3c8] sm:$0xff]
          %v5088 = vld [vmem:[#allocation20 + $0x3d0] sm:$0xff]
          %v5089 = vld [vmem:[#allocation20 + $0x3d8] sm:$0xff]
          %v5090 = vld [vmem:[#allocation20 + $0x3e0] sm:$0xff]
          %v5091 = vld [vmem:[#allocation20 + $0x3e8] sm:$0xff]
          %v5092 = vld [vmem:[#allocation20 + $0x3f0] sm:$0xff]
          %v5093 = vld [vmem:[#allocation20 + $0x3f8] sm:$0xff]
          %v5094 = vld [vmem:[#allocation20 + $0x400] sm:$0xff]
          %v5095 = vld [vmem:[#allocation20 + $0x408] sm:$0xff]
          %v5096 = vld [vmem:[#allocation20 + $0x410] sm:$0xff]
          %v5097 = vld [vmem:[#allocation20 + $0x418] sm:$0xff]
          %v5098 = vld [vmem:[#allocation20 + $0x420] sm:$0xff]
          %v5099 = vld [vmem:[#allocation20 + $0x428] sm:$0xff]
          %v5100 = vld [vmem:[#allocation20 + $0x430] sm:$0xff]
          %v5101 = vld [vmem:[#allocation20 + $0x438] sm:$0xff]
          %v5102 = vld [vmem:[#allocation20 + $0x440] sm:$0xff]
          %v5103 = vld [vmem:[#allocation20 + $0x448] sm:$0xff]
          %v5104 = vld [vmem:[#allocation20 + $0x450] sm:$0xff]
          %v5105 = vld [vmem:[#allocation20 + $0x458] sm:$0xff]
          %v5106 = vld [vmem:[#allocation20 + $0x460] sm:$0xff]
          %v5107 = vld [vmem:[#allocation20 + $0x468] sm:$0xff]
          %v5108 = vld [vmem:[#allocation20 + $0x470] sm:$0xff]
          %v5109 = vld [vmem:[#allocation20 + $0x478] sm:$0xff]
          %v5110 = vld [vmem:[#allocation20 + $0x480] sm:$0xff]
          %v5111 = vld [vmem:[#allocation20 + $0x488] sm:$0xff]
          %v5112 = vld [vmem:[#allocation20 + $0x490] sm:$0xff]
          %v5113 = vld [vmem:[#allocation20 + $0x498] sm:$0xff]
          %v5114 = vld [vmem:[#allocation20 + $0x4a0] sm:$0xff]
          %v5115 = vld [vmem:[#allocation20 + $0x4a8] sm:$0xff]
          %v5116 = vld [vmem:[#allocation20 + $0x4b0] sm:$0xff]
          %v5117 = vld [vmem:[#allocation20 + $0x4b8] sm:$0xff]
          %v5118 = vld [vmem:[#allocation20 + $0x4c0] sm:$0xff]
          %v5119 = vld [vmem:[#allocation20 + $0x4c8] sm:$0xff]
          %v5120 = vld [vmem:[#allocation20 + $0x4d0] sm:$0xff]
          %v5121 = vld [vmem:[#allocation20 + $0x4d8] sm:$0xff]
          %v5122 = vld [vmem:[#allocation20 + $0x4e0] sm:$0xff]
          %v5123 = vld [vmem:[#allocation20 + $0x4e8] sm:$0xff]
          %v5124 = vld [vmem:[#allocation20 + $0x4f0] sm:$0xff]
          %v5125 = vld [vmem:[#allocation20 + $0x4f8] sm:$0xff]
          %v5126 = vld [vmem:[#allocation20 + $0x500] sm:$0xff]
          %v5127 = vld [vmem:[#allocation20 + $0x508] sm:$0xff]
          %v5128 = vld [vmem:[#allocation20 + $0x510] sm:$0xff]
          %v5129 = vld [vmem:[#allocation20 + $0x518] sm:$0xff]
          %v5130 = vld [vmem:[#allocation20 + $0x520] sm:$0xff]
          %v5131 = vld [vmem:[#allocation20 + $0x528] sm:$0xff]
          %v5132 = vld [vmem:[#allocation20 + $0x530] sm:$0xff]
          %v5133 = vld [vmem:[#allocation20 + $0x538] sm:$0xff]
          %v5134 = vld [vmem:[#allocation20 + $0x540] sm:$0xff]
          %v5135 = vld [vmem:[#allocation20 + $0x548] sm:$0xff]
          %v5136 = vld [vmem:[#allocation20 + $0x550] sm:$0xff]
          %v5137 = vld [vmem:[#allocation20 + $0x558] sm:$0xff]
          %v5138 = vld [vmem:[#allocation20 + $0x560] sm:$0xff]
          %v5139 = vld [vmem:[#allocation20 + $0x568] sm:$0xff]
          %v5140 = vld [vmem:[#allocation20 + $0x570] sm:$0xff]
          %v5141 = vld [vmem:[#allocation20 + $0x578] sm:$0xff]
          %v5142 = vld [vmem:[#allocation20 + $0x580] sm:$0xff]
          %v5143 = vld [vmem:[#allocation20 + $0x588] sm:$0xff]
          %v5144 = vld [vmem:[#allocation20 + $0x590] sm:$0xff]
          %v5145 = vld [vmem:[#allocation20 + $0x598] sm:$0xff]
          %v5146 = vld [vmem:[#allocation20 + $0x5a0] sm:$0xff]
          %v5147 = vld [vmem:[#allocation20 + $0x5a8] sm:$0xff]
          %v5148 = vld [vmem:[#allocation20 + $0x5b0] sm:$0xff]
          %v5149 = vld [vmem:[#allocation20 + $0x5b8] sm:$0xff]
          %v5150 = vld [vmem:[#allocation20 + $0x5c0] sm:$0xff]
          %v5151 = vld [vmem:[#allocation20 + $0x5c8] sm:$0xff]
          %v5152 = vld [vmem:[#allocation20 + $0x5d0] sm:$0xff]
          %v5153 = vld [vmem:[#allocation20 + $0x5d8] sm:$0xff]
          %v5154 = vld [vmem:[#allocation20 + $0x5e0] sm:$0xff]
          %v5155 = vld [vmem:[#allocation20 + $0x5e8] sm:$0xff]
          %v5156 = vld [vmem:[#allocation20 + $0x5f0] sm:$0xff]
          %v5157 = vld [vmem:[#allocation20 + $0x5f8] sm:$0xff]
          %v5158 = vld [vmem:[#allocation20 + $0x600] sm:$0xff]
          %v5159 = vld [vmem:[#allocation20 + $0x608] sm:$0xff]
          %v5160 = vld [vmem:[#allocation20 + $0x610] sm:$0xff]
          %v5161 = vld [vmem:[#allocation20 + $0x618] sm:$0xff]
          %v5162 = vld [vmem:[#allocation20 + $0x620] sm:$0xff]
          %v5163 = vld [vmem:[#allocation20 + $0x628] sm:$0xff]
          %v5164 = vld [vmem:[#allocation20 + $0x630] sm:$0xff]
          %v5165 = vld [vmem:[#allocation20 + $0x638] sm:$0xff]
          %v5166 = vld [vmem:[#allocation20 + $0x640] sm:$0xff]
          %v5167 = vld [vmem:[#allocation20 + $0x648] sm:$0xff]
          %v5168 = vld [vmem:[#allocation20 + $0x650] sm:$0xff]
          %v5169 = vld [vmem:[#allocation20 + $0x658] sm:$0xff]
          %v5170 = vld [vmem:[#allocation20 + $0x660] sm:$0xff]
          %v5171 = vld [vmem:[#allocation20 + $0x668] sm:$0xff]
          %v5172 = vld [vmem:[#allocation20 + $0x670] sm:$0xff]
          %v5173 = vld [vmem:[#allocation20 + $0x678] sm:$0xff]
          %v5174 = vld [vmem:[#allocation20 + $0x680] sm:$0xff]
          %v5175 = vld [vmem:[#allocation20 + $0x688] sm:$0xff]
          %v5176 = vld [vmem:[#allocation20 + $0x690] sm:$0xff]
          %v5177 = vld [vmem:[#allocation20 + $0x698] sm:$0xff]
          %v5178 = vld [vmem:[#allocation20 + $0x6a0] sm:$0xff]
          %v5179 = vld [vmem:[#allocation20 + $0x6a8] sm:$0xff]
          %v5180 = vld [vmem:[#allocation20 + $0x6b0] sm:$0xff]
          %v5181 = vld [vmem:[#allocation20 + $0x6b8] sm:$0xff]
          %v5182 = vld [vmem:[#allocation20 + $0x6c0] sm:$0xff]
          %v5183 = vld [vmem:[#allocation20 + $0x6c8] sm:$0xff]
          %v5184 = vld [vmem:[#allocation20 + $0x6d0] sm:$0xff]
          %v5185 = vld [vmem:[#allocation20 + $0x6d8] sm:$0xff]
          %v5186 = vld [vmem:[#allocation20 + $0x6e0] sm:$0xff]
          %v5187 = vld [vmem:[#allocation20 + $0x6e8] sm:$0xff]
          %v5188 = vld [vmem:[#allocation20 + $0x6f0] sm:$0xff]
          %v5189 = vld [vmem:[#allocation20 + $0x6f8] sm:$0xff]
          %v5190 = vld [vmem:[#allocation20 + $0x700] sm:$0xff]
          %v5191 = vld [vmem:[#allocation20 + $0x708] sm:$0xff]
          %v5192 = vld [vmem:[#allocation20 + $0x710] sm:$0xff]
          %v5193 = vld [vmem:[#allocation20 + $0x718] sm:$0xff]
          %v5194 = vld [vmem:[#allocation20 + $0x720] sm:$0xff]
          %v5195 = vld [vmem:[#allocation20 + $0x728] sm:$0xff]
          %v5196 = vld [vmem:[#allocation20 + $0x730] sm:$0xff]
          %v5197 = vld [vmem:[#allocation20 + $0x738] sm:$0xff]
          %v5198 = vld [vmem:[#allocation20 + $0x740] sm:$0xff]
          %v5199 = vld [vmem:[#allocation20 + $0x748] sm:$0xff]
          %v5200 = vld [vmem:[#allocation20 + $0x750] sm:$0xff]
          %v5201 = vld [vmem:[#allocation20 + $0x758] sm:$0xff]
          %v5202 = vld [vmem:[#allocation20 + $0x760] sm:$0xff]
          %v5203 = vld [vmem:[#allocation20 + $0x768] sm:$0xff]
          %v5204 = vld [vmem:[#allocation20 + $0x770] sm:$0xff]
          %v5205 = vld [vmem:[#allocation20 + $0x778] sm:$0xff]
          %v5206 = vld [vmem:[#allocation20 + $0x780] sm:$0xff]
          %v5207 = vld [vmem:[#allocation20 + $0x788] sm:$0xff]
          %v5208 = vld [vmem:[#allocation20 + $0x790] sm:$0xff]
          %v5209 = vld [vmem:[#allocation20 + $0x798] sm:$0xff]
          %v5210 = vld [vmem:[#allocation20 + $0x7a0] sm:$0xff]
          %v5211 = vld [vmem:[#allocation20 + $0x7a8] sm:$0xff]
          %v5212 = vld [vmem:[#allocation20 + $0x7b0] sm:$0xff]
          %v5213 = vld [vmem:[#allocation20 + $0x7b8] sm:$0xff]
          %v5214 = vld [vmem:[#allocation20 + $0x7c0] sm:$0xff]
          %v5215 = vld [vmem:[#allocation20 + $0x7c8] sm:$0xff]
          %v5216 = vld [vmem:[#allocation20 + $0x7d0] sm:$0xff]
          %v5217 = vld [vmem:[#allocation20 + $0x7d8] sm:$0xff]
          %v5218 = vld [vmem:[#allocation20 + $0x7e0] sm:$0xff]
          %v5219 = vld [vmem:[#allocation20 + $0x7e8] sm:$0xff]
          %v5220 = vld [vmem:[#allocation20 + $0x7f0] sm:$0xff]
          %v5221 = vld [vmem:[#allocation20 + $0x7f8] sm:$0xff]
          %v5222 = vld [vmem:[%s17] sm:$0xf]
          %v5224 = vlaneseq
          %v5225 = vshrl.u32 %v5224, 7
          %v5226 = vsub.s32 0, %v5225
          %v5227 = vrot.slane %v5222, %v5226
          %v5228 = vlaneseq
          %v5229 = vshrl.u32 %v5228, 7
          %v5230 = vsub.s32 1, %v5229
          %v5231 = vrot.slane %v5222, %v5230
          %v5232 = vlaneseq
          %v5233 = vshrl.u32 %v5232, 7
          %v5234 = vsub.s32 2, %v5233
          %v5235 = vrot.slane %v5222, %v5234
          %v5236 = vlaneseq
          %v5237 = vshrl.u32 %v5236, 7
          %v5238 = vsub.s32 3, %v5237
          %v5239 = vrot.slane %v5222, %v5238
          %v5500 = vunpack.c.l.b16 %v4966
          %v5501 = vunpack.c.h.b16 %v4966
          %v5502 = vunpack.c.l.b16 %v4967
          %v5503 = vunpack.c.h.b16 %v4967
          %v5504 = vunpack.c.l.b16 %v4968
          %v5505 = vunpack.c.h.b16 %v4968
          %v5506 = vunpack.c.l.b16 %v4969
          %v5507 = vunpack.c.h.b16 %v4969
          %v5508 = vunpack.c.l.b16 %v4970
          %v5509 = vunpack.c.h.b16 %v4970
          %v5510 = vunpack.c.l.b16 %v4971
          %v5511 = vunpack.c.h.b16 %v4971
          %v5512 = vunpack.c.l.b16 %v4972
          %v5513 = vunpack.c.h.b16 %v4972
          %v5514 = vunpack.c.l.b16 %v4973
          %v5515 = vunpack.c.h.b16 %v4973
          %v5516 = vunpack.c.l.b16 %v4974
          %v5517 = vunpack.c.h.b16 %v4974
          %v5518 = vunpack.c.l.b16 %v4975
          %v5519 = vunpack.c.h.b16 %v4975
          %v5520 = vunpack.c.l.b16 %v4976
          %v5521 = vunpack.c.h.b16 %v4976
          %v5522 = vunpack.c.l.b16 %v4977
          %v5523 = vunpack.c.h.b16 %v4977
          %v5524 = vunpack.c.l.b16 %v4978
          %v5525 = vunpack.c.h.b16 %v4978
          %v5526 = vunpack.c.l.b16 %v4979
          %v5527 = vunpack.c.h.b16 %v4979
          %v5528 = vunpack.c.l.b16 %v4980
          %v5529 = vunpack.c.h.b16 %v4980
          %v5530 = vunpack.c.l.b16 %v4981
          %v5531 = vunpack.c.h.b16 %v4981
          %v5532 = vunpack.c.l.b16 %v4982
          %v5533 = vunpack.c.h.b16 %v4982
          %v5534 = vunpack.c.l.b16 %v4983
          %v5535 = vunpack.c.h.b16 %v4983
          %v5536 = vunpack.c.l.b16 %v4984
          %v5537 = vunpack.c.h.b16 %v4984
          %v5538 = vunpack.c.l.b16 %v4985
          %v5539 = vunpack.c.h.b16 %v4985
          %v5540 = vunpack.c.l.b16 %v4986
          %v5541 = vunpack.c.h.b16 %v4986
          %v5542 = vunpack.c.l.b16 %v4987
          %v5543 = vunpack.c.h.b16 %v4987
          %v5544 = vunpack.c.l.b16 %v4988
          %v5545 = vunpack.c.h.b16 %v4988
          %v5546 = vunpack.c.l.b16 %v4989
          %v5547 = vunpack.c.h.b16 %v4989
          %v5548 = vunpack.c.l.b16 %v4990
          %v5549 = vunpack.c.h.b16 %v4990
          %v5550 = vunpack.c.l.b16 %v4991
          %v5551 = vunpack.c.h.b16 %v4991
          %v5552 = vunpack.c.l.b16 %v4992
          %v5553 = vunpack.c.h.b16 %v4992
          %v5554 = vunpack.c.l.b16 %v4993
          %v5555 = vunpack.c.h.b16 %v4993
          %v5556 = vunpack.c.l.b16 %v4994
          %v5557 = vunpack.c.h.b16 %v4994
          %v5558 = vunpack.c.l.b16 %v4995
          %v5559 = vunpack.c.h.b16 %v4995
          %v5560 = vunpack.c.l.b16 %v4996
          %v5561 = vunpack.c.h.b16 %v4996
          %v5562 = vunpack.c.l.b16 %v4997
          %v5563 = vunpack.c.h.b16 %v4997
          %v5564 = vunpack.c.l.b16 %v4998
          %v5565 = vunpack.c.h.b16 %v4998
          %v5566 = vunpack.c.l.b16 %v4999
          %v5567 = vunpack.c.h.b16 %v4999
          %v5568 = vunpack.c.l.b16 %v5000
          %v5569 = vunpack.c.h.b16 %v5000
          %v5570 = vunpack.c.l.b16 %v5001
          %v5571 = vunpack.c.h.b16 %v5001
          %v5572 = vunpack.c.l.b16 %v5002
          %v5573 = vunpack.c.h.b16 %v5002
          %v5574 = vunpack.c.l.b16 %v5003
          %v5575 = vunpack.c.h.b16 %v5003
          %v5576 = vunpack.c.l.b16 %v5004
          %v5577 = vunpack.c.h.b16 %v5004
          %v5578 = vunpack.c.l.b16 %v5005
          %v5579 = vunpack.c.h.b16 %v5005
          %v5580 = vunpack.c.l.b16 %v5006
          %v5581 = vunpack.c.h.b16 %v5006
          %v5582 = vunpack.c.l.b16 %v5007
          %v5583 = vunpack.c.h.b16 %v5007
          %v5584 = vunpack.c.l.b16 %v5008
          %v5585 = vunpack.c.h.b16 %v5008
          %v5586 = vunpack.c.l.b16 %v5009
          %v5587 = vunpack.c.h.b16 %v5009
          %v5588 = vunpack.c.l.b16 %v5010
          %v5589 = vunpack.c.h.b16 %v5010
          %v5590 = vunpack.c.l.b16 %v5011
          %v5591 = vunpack.c.h.b16 %v5011
          %v5592 = vunpack.c.l.b16 %v5012
          %v5593 = vunpack.c.h.b16 %v5012
          %v5594 = vunpack.c.l.b16 %v5013
          %v5595 = vunpack.c.h.b16 %v5013
          %v5596 = vunpack.c.l.b16 %v5014
          %v5597 = vunpack.c.h.b16 %v5014
          %v5598 = vunpack.c.l.b16 %v5015
          %v5599 = vunpack.c.h.b16 %v5015
          %v5600 = vunpack.c.l.b16 %v5016
          %v5601 = vunpack.c.h.b16 %v5016
          %v5602 = vunpack.c.l.b16 %v5017
          %v5603 = vunpack.c.h.b16 %v5017
          %v5604 = vunpack.c.l.b16 %v5018
          %v5605 = vunpack.c.h.b16 %v5018
          %v5606 = vunpack.c.l.b16 %v5019
          %v5607 = vunpack.c.h.b16 %v5019
          %v5608 = vunpack.c.l.b16 %v5020
          %v5609 = vunpack.c.h.b16 %v5020
          %v5610 = vunpack.c.l.b16 %v5021
          %v5611 = vunpack.c.h.b16 %v5021
          %v5612 = vunpack.c.l.b16 %v5022
          %v5613 = vunpack.c.h.b16 %v5022
          %v5614 = vunpack.c.l.b16 %v5023
          %v5615 = vunpack.c.h.b16 %v5023
          %v5616 = vunpack.c.l.b16 %v5024
          %v5617 = vunpack.c.h.b16 %v5024
          %v5618 = vunpack.c.l.b16 %v5025
          %v5619 = vunpack.c.h.b16 %v5025
          %v5620 = vunpack.c.l.b16 %v5026
          %v5621 = vunpack.c.h.b16 %v5026
          %v5622 = vunpack.c.l.b16 %v5027
          %v5623 = vunpack.c.h.b16 %v5027
          %v5624 = vunpack.c.l.b16 %v5028
          %v5625 = vunpack.c.h.b16 %v5028
          %v5626 = vunpack.c.l.b16 %v5029
          %v5627 = vunpack.c.h.b16 %v5029
          %v5628 = vunpack.c.l.b16 %v5030
          %v5629 = vunpack.c.h.b16 %v5030
          %v5630 = vunpack.c.l.b16 %v5031
          %v5631 = vunpack.c.h.b16 %v5031
          %v5632 = vunpack.c.l.b16 %v5032
          %v5633 = vunpack.c.h.b16 %v5032
          %v5634 = vunpack.c.l.b16 %v5033
          %v5635 = vunpack.c.h.b16 %v5033
          %v5636 = vunpack.c.l.b16 %v5034
          %v5637 = vunpack.c.h.b16 %v5034
          %v5638 = vunpack.c.l.b16 %v5035
          %v5639 = vunpack.c.h.b16 %v5035
          %v5640 = vunpack.c.l.b16 %v5036
          %v5641 = vunpack.c.h.b16 %v5036
          %v5642 = vunpack.c.l.b16 %v5037
          %v5643 = vunpack.c.h.b16 %v5037
          %v5644 = vunpack.c.l.b16 %v5038
          %v5645 = vunpack.c.h.b16 %v5038
          %v5646 = vunpack.c.l.b16 %v5039
          %v5647 = vunpack.c.h.b16 %v5039
          %v5648 = vunpack.c.l.b16 %v5040
          %v5649 = vunpack.c.h.b16 %v5040
          %v5650 = vunpack.c.l.b16 %v5041
          %v5651 = vunpack.c.h.b16 %v5041
          %v5652 = vunpack.c.l.b16 %v5042
          %v5653 = vunpack.c.h.b16 %v5042
          %v5654 = vunpack.c.l.b16 %v5043
          %v5655 = vunpack.c.h.b16 %v5043
          %v5656 = vunpack.c.l.b16 %v5044
          %v5657 = vunpack.c.h.b16 %v5044
          %v5658 = vunpack.c.l.b16 %v5045
          %v5659 = vunpack.c.h.b16 %v5045
          %v5660 = vunpack.c.l.b16 %v5046
          %v5661 = vunpack.c.h.b16 %v5046
          %v5662 = vunpack.c.l.b16 %v5047
          %v5663 = vunpack.c.h.b16 %v5047
          %v5664 = vunpack.c.l.b16 %v5048
          %v5665 = vunpack.c.h.b16 %v5048
          %v5666 = vunpack.c.l.b16 %v5049
          %v5667 = vunpack.c.h.b16 %v5049
          %v5668 = vunpack.c.l.b16 %v5050
          %v5669 = vunpack.c.h.b16 %v5050
          %v5670 = vunpack.c.l.b16 %v5051
          %v5671 = vunpack.c.h.b16 %v5051
          %v5672 = vunpack.c.l.b16 %v5052
          %v5673 = vunpack.c.h.b16 %v5052
          %v5674 = vunpack.c.l.b16 %v5053
          %v5675 = vunpack.c.h.b16 %v5053
          %v5676 = vunpack.c.l.b16 %v5054
          %v5677 = vunpack.c.h.b16 %v5054
          %v5678 = vunpack.c.l.b16 %v5055
          %v5679 = vunpack.c.h.b16 %v5055
          %v5680 = vunpack.c.l.b16 %v5056
          %v5681 = vunpack.c.h.b16 %v5056
          %v5682 = vunpack.c.l.b16 %v5057
          %v5683 = vunpack.c.h.b16 %v5057
          %v5684 = vunpack.c.l.b16 %v5058
          %v5685 = vunpack.c.h.b16 %v5058
          %v5686 = vunpack.c.l.b16 %v5059
          %v5687 = vunpack.c.h.b16 %v5059
          %v5688 = vunpack.c.l.b16 %v5060
          %v5689 = vunpack.c.h.b16 %v5060
          %v5690 = vunpack.c.l.b16 %v5061
          %v5691 = vunpack.c.h.b16 %v5061
          %v5692 = vunpack.c.l.b16 %v5062
          %v5693 = vunpack.c.h.b16 %v5062
          %v5694 = vunpack.c.l.b16 %v5063
          %v5695 = vunpack.c.h.b16 %v5063
          %v5696 = vunpack.c.l.b16 %v5064
          %v5697 = vunpack.c.h.b16 %v5064
          %v5698 = vunpack.c.l.b16 %v5065
          %v5699 = vunpack.c.h.b16 %v5065
          %v5700 = vunpack.c.l.b16 %v5066
          %v5701 = vunpack.c.h.b16 %v5066
          %v5702 = vunpack.c.l.b16 %v5067
          %v5703 = vunpack.c.h.b16 %v5067
          %v5704 = vunpack.c.l.b16 %v5068
          %v5705 = vunpack.c.h.b16 %v5068
          %v5706 = vunpack.c.l.b16 %v5069
          %v5707 = vunpack.c.h.b16 %v5069
          %v5708 = vunpack.c.l.b16 %v5070
          %v5709 = vunpack.c.h.b16 %v5070
          %v5710 = vunpack.c.l.b16 %v5071
          %v5711 = vunpack.c.h.b16 %v5071
          %v5712 = vunpack.c.l.b16 %v5072
          %v5713 = vunpack.c.h.b16 %v5072
          %v5714 = vunpack.c.l.b16 %v5073
          %v5715 = vunpack.c.h.b16 %v5073
          %v5716 = vunpack.c.l.b16 %v5074
          %v5717 = vunpack.c.h.b16 %v5074
          %v5718 = vunpack.c.l.b16 %v5075
          %v5719 = vunpack.c.h.b16 %v5075
          %v5720 = vunpack.c.l.b16 %v5076
          %v5721 = vunpack.c.h.b16 %v5076
          %v5722 = vunpack.c.l.b16 %v5077
          %v5723 = vunpack.c.h.b16 %v5077
          %v5724 = vunpack.c.l.b16 %v5078
          %v5725 = vunpack.c.h.b16 %v5078
          %v5726 = vunpack.c.l.b16 %v5079
          %v5727 = vunpack.c.h.b16 %v5079
          %v5728 = vunpack.c.l.b16 %v5080
          %v5729 = vunpack.c.h.b16 %v5080
          %v5730 = vunpack.c.l.b16 %v5081
          %v5731 = vunpack.c.h.b16 %v5081
          %v5732 = vunpack.c.l.b16 %v5082
          %v5733 = vunpack.c.h.b16 %v5082
          %v5734 = vunpack.c.l.b16 %v5083
          %v5735 = vunpack.c.h.b16 %v5083
          %v5736 = vunpack.c.l.b16 %v5084
          %v5737 = vunpack.c.h.b16 %v5084
          %v5738 = vunpack.c.l.b16 %v5085
          %v5739 = vunpack.c.h.b16 %v5085
          %v5740 = vunpack.c.l.b16 %v5086
          %v5741 = vunpack.c.h.b16 %v5086
          %v5742 = vunpack.c.l.b16 %v5087
          %v5743 = vunpack.c.h.b16 %v5087
          %v5744 = vunpack.c.l.b16 %v5088
          %v5745 = vunpack.c.h.b16 %v5088
          %v5746 = vunpack.c.l.b16 %v5089
          %v5747 = vunpack.c.h.b16 %v5089
          %v5748 = vunpack.c.l.b16 %v5090
          %v5749 = vunpack.c.h.b16 %v5090
          %v5750 = vunpack.c.l.b16 %v5091
          %v5751 = vunpack.c.h.b16 %v5091
          %v5752 = vunpack.c.l.b16 %v5092
          %v5753 = vunpack.c.h.b16 %v5092
          %v5754 = vunpack.c.l.b16 %v5093
          %v5755 = vunpack.c.h.b16 %v5093
          %v5756 = vunpack.c.l.b16 %v5094
          %v5757 = vunpack.c.h.b16 %v5094
          %v5758 = vunpack.c.l.b16 %v5095
          %v5759 = vunpack.c.h.b16 %v5095
          %v5760 = vunpack.c.l.b16 %v5096
          %v5761 = vunpack.c.h.b16 %v5096
          %v5762 = vunpack.c.l.b16 %v5097
          %v5763 = vunpack.c.h.b16 %v5097
          %v5764 = vunpack.c.l.b16 %v5098
          %v5765 = vunpack.c.h.b16 %v5098
          %v5766 = vunpack.c.l.b16 %v5099
          %v5767 = vunpack.c.h.b16 %v5099
          %v5768 = vunpack.c.l.b16 %v5100
          %v5769 = vunpack.c.h.b16 %v5100
          %v5770 = vunpack.c.l.b16 %v5101
          %v5771 = vunpack.c.h.b16 %v5101
          %v5772 = vunpack.c.l.b16 %v5102
          %v5773 = vunpack.c.h.b16 %v5102
          %v5774 = vunpack.c.l.b16 %v5103
          %v5775 = vunpack.c.h.b16 %v5103
          %v5776 = vunpack.c.l.b16 %v5104
          %v5777 = vunpack.c.h.b16 %v5104
          %v5778 = vunpack.c.l.b16 %v5105
          %v5779 = vunpack.c.h.b16 %v5105
          %v5780 = vunpack.c.l.b16 %v5106
          %v5781 = vunpack.c.h.b16 %v5106
          %v5782 = vunpack.c.l.b16 %v5107
          %v5783 = vunpack.c.h.b16 %v5107
          %v5784 = vunpack.c.l.b16 %v5108
          %v5785 = vunpack.c.h.b16 %v5108
          %v5786 = vunpack.c.l.b16 %v5109
          %v5787 = vunpack.c.h.b16 %v5109
          %v5788 = vunpack.c.l.b16 %v5110
          %v5789 = vunpack.c.h.b16 %v5110
          %v5790 = vunpack.c.l.b16 %v5111
          %v5791 = vunpack.c.h.b16 %v5111
          %v5792 = vunpack.c.l.b16 %v5112
          %v5793 = vunpack.c.h.b16 %v5112
          %v5794 = vunpack.c.l.b16 %v5113
          %v5795 = vunpack.c.h.b16 %v5113
          %v5796 = vunpack.c.l.b16 %v5114
          %v5797 = vunpack.c.h.b16 %v5114
          %v5798 = vunpack.c.l.b16 %v5115
          %v5799 = vunpack.c.h.b16 %v5115
          %v5800 = vunpack.c.l.b16 %v5116
          %v5801 = vunpack.c.h.b16 %v5116
          %v5802 = vunpack.c.l.b16 %v5117
          %v5803 = vunpack.c.h.b16 %v5117
          %v5804 = vunpack.c.l.b16 %v5118
          %v5805 = vunpack.c.h.b16 %v5118
          %v5806 = vunpack.c.l.b16 %v5119
          %v5807 = vunpack.c.h.b16 %v5119
          %v5808 = vunpack.c.l.b16 %v5120
          %v5809 = vunpack.c.h.b16 %v5120
          %v5810 = vunpack.c.l.b16 %v5121
          %v5811 = vunpack.c.h.b16 %v5121
          %v5812 = vunpack.c.l.b16 %v5122
          %v5813 = vunpack.c.h.b16 %v5122
          %v5814 = vunpack.c.l.b16 %v5123
          %v5815 = vunpack.c.h.b16 %v5123
          %v5816 = vunpack.c.l.b16 %v5124
          %v5817 = vunpack.c.h.b16 %v5124
          %v5818 = vunpack.c.l.b16 %v5125
          %v5819 = vunpack.c.h.b16 %v5125
          %v5820 = vunpack.c.l.b16 %v5126
          %v5821 = vunpack.c.h.b16 %v5126
          %v5822 = vunpack.c.l.b16 %v5127
          %v5823 = vunpack.c.h.b16 %v5127
          %v5824 = vunpack.c.l.b16 %v5128
          %v5825 = vunpack.c.h.b16 %v5128
          %v5826 = vunpack.c.l.b16 %v5129
          %v5827 = vunpack.c.h.b16 %v5129
          %v5828 = vunpack.c.l.b16 %v5130
          %v5829 = vunpack.c.h.b16 %v5130
          %v5830 = vunpack.c.l.b16 %v5131
          %v5831 = vunpack.c.h.b16 %v5131
          %v5832 = vunpack.c.l.b16 %v5132
          %v5833 = vunpack.c.h.b16 %v5132
          %v5834 = vunpack.c.l.b16 %v5133
          %v5835 = vunpack.c.h.b16 %v5133
          %v5836 = vunpack.c.l.b16 %v5134
          %v5837 = vunpack.c.h.b16 %v5134
          %v5838 = vunpack.c.l.b16 %v5135
          %v5839 = vunpack.c.h.b16 %v5135
          %v5840 = vunpack.c.l.b16 %v5136
          %v5841 = vunpack.c.h.b16 %v5136
          %v5842 = vunpack.c.l.b16 %v5137
          %v5843 = vunpack.c.h.b16 %v5137
          %v5844 = vunpack.c.l.b16 %v5138
          %v5845 = vunpack.c.h.b16 %v5138
          %v5846 = vunpack.c.l.b16 %v5139
          %v5847 = vunpack.c.h.b16 %v5139
          %v5848 = vunpack.c.l.b16 %v5140
          %v5849 = vunpack.c.h.b16 %v5140
          %v5850 = vunpack.c.l.b16 %v5141
          %v5851 = vunpack.c.h.b16 %v5141
          %v5852 = vunpack.c.l.b16 %v5142
          %v5853 = vunpack.c.h.b16 %v5142
          %v5854 = vunpack.c.l.b16 %v5143
          %v5855 = vunpack.c.h.b16 %v5143
          %v5856 = vunpack.c.l.b16 %v5144
          %v5857 = vunpack.c.h.b16 %v5144
          %v5858 = vunpack.c.l.b16 %v5145
          %v5859 = vunpack.c.h.b16 %v5145
          %v5860 = vunpack.c.l.b16 %v5146
          %v5861 = vunpack.c.h.b16 %v5146
          %v5862 = vunpack.c.l.b16 %v5147
          %v5863 = vunpack.c.h.b16 %v5147
          %v5864 = vunpack.c.l.b16 %v5148
          %v5865 = vunpack.c.h.b16 %v5148
          %v5866 = vunpack.c.l.b16 %v5149
          %v5867 = vunpack.c.h.b16 %v5149
          %v5868 = vunpack.c.l.b16 %v5150
          %v5869 = vunpack.c.h.b16 %v5150
          %v5870 = vunpack.c.l.b16 %v5151
          %v5871 = vunpack.c.h.b16 %v5151
          %v5872 = vunpack.c.l.b16 %v5152
          %v5873 = vunpack.c.h.b16 %v5152
          %v5874 = vunpack.c.l.b16 %v5153
          %v5875 = vunpack.c.h.b16 %v5153
          %v5876 = vunpack.c.l.b16 %v5154
          %v5877 = vunpack.c.h.b16 %v5154
          %v5878 = vunpack.c.l.b16 %v5155
          %v5879 = vunpack.c.h.b16 %v5155
          %v5880 = vunpack.c.l.b16 %v5156
          %v5881 = vunpack.c.h.b16 %v5156
          %v5882 = vunpack.c.l.b16 %v5157
          %v5883 = vunpack.c.h.b16 %v5157
          %v5884 = vunpack.c.l.b16 %v5158
          %v5885 = vunpack.c.h.b16 %v5158
          %v5886 = vunpack.c.l.b16 %v5159
          %v5887 = vunpack.c.h.b16 %v5159
          %v5888 = vunpack.c.l.b16 %v5160
          %v5889 = vunpack.c.h.b16 %v5160
          %v5890 = vunpack.c.l.b16 %v5161
          %v5891 = vunpack.c.h.b16 %v5161
          %v5892 = vunpack.c.l.b16 %v5162
          %v5893 = vunpack.c.h.b16 %v5162
          %v5894 = vunpack.c.l.b16 %v5163
          %v5895 = vunpack.c.h.b16 %v5163
          %v5896 = vunpack.c.l.b16 %v5164
          %v5897 = vunpack.c.h.b16 %v5164
          %v5898 = vunpack.c.l.b16 %v5165
          %v5899 = vunpack.c.h.b16 %v5165
          %v5900 = vunpack.c.l.b16 %v5166
          %v5901 = vunpack.c.h.b16 %v5166
          %v5902 = vunpack.c.l.b16 %v5167
          %v5903 = vunpack.c.h.b16 %v5167
          %v5904 = vunpack.c.l.b16 %v5168
          %v5905 = vunpack.c.h.b16 %v5168
          %v5906 = vunpack.c.l.b16 %v5169
          %v5907 = vunpack.c.h.b16 %v5169
          %v5908 = vunpack.c.l.b16 %v5170
          %v5909 = vunpack.c.h.b16 %v5170
          %v5910 = vunpack.c.l.b16 %v5171
          %v5911 = vunpack.c.h.b16 %v5171
          %v5912 = vunpack.c.l.b16 %v5172
          %v5913 = vunpack.c.h.b16 %v5172
          %v5914 = vunpack.c.l.b16 %v5173
          %v5915 = vunpack.c.h.b16 %v5173
          %v5916 = vunpack.c.l.b16 %v5174
          %v5917 = vunpack.c.h.b16 %v5174
          %v5918 = vunpack.c.l.b16 %v5175
          %v5919 = vunpack.c.h.b16 %v5175
          %v5920 = vunpack.c.l.b16 %v5176
          %v5921 = vunpack.c.h.b16 %v5176
          %v5922 = vunpack.c.l.b16 %v5177
          %v5923 = vunpack.c.h.b16 %v5177
          %v5924 = vunpack.c.l.b16 %v5178
          %v5925 = vunpack.c.h.b16 %v5178
          %v5926 = vunpack.c.l.b16 %v5179
          %v5927 = vunpack.c.h.b16 %v5179
          %v5928 = vunpack.c.l.b16 %v5180
          %v5929 = vunpack.c.h.b16 %v5180
          %v5930 = vunpack.c.l.b16 %v5181
          %v5931 = vunpack.c.h.b16 %v5181
          %v5932 = vunpack.c.l.b16 %v5182
          %v5933 = vunpack.c.h.b16 %v5182
          %v5934 = vunpack.c.l.b16 %v5183
          %v5935 = vunpack.c.h.b16 %v5183
          %v5936 = vunpack.c.l.b16 %v5184
          %v5937 = vunpack.c.h.b16 %v5184
          %v5938 = vunpack.c.l.b16 %v5185
          %v5939 = vunpack.c.h.b16 %v5185
          %v5940 = vunpack.c.l.b16 %v5186
          %v5941 = vunpack.c.h.b16 %v5186
          %v5942 = vunpack.c.l.b16 %v5187
          %v5943 = vunpack.c.h.b16 %v5187
          %v5944 = vunpack.c.l.b16 %v5188
          %v5945 = vunpack.c.h.b16 %v5188
          %v5946 = vunpack.c.l.b16 %v5189
          %v5947 = vunpack.c.h.b16 %v5189
          %v5948 = vunpack.c.l.b16 %v5190
          %v5949 = vunpack.c.h.b16 %v5190
          %v5950 = vunpack.c.l.b16 %v5191
          %v5951 = vunpack.c.h.b16 %v5191
          %v5952 = vunpack.c.l.b16 %v5192
          %v5953 = vunpack.c.h.b16 %v5192
          %v5954 = vunpack.c.l.b16 %v5193
          %v5955 = vunpack.c.h.b16 %v5193
          %v5956 = vunpack.c.l.b16 %v5194
          %v5957 = vunpack.c.h.b16 %v5194
          %v5958 = vunpack.c.l.b16 %v5195
          %v5959 = vunpack.c.h.b16 %v5195
          %v5960 = vunpack.c.l.b16 %v5196
          %v5961 = vunpack.c.h.b16 %v5196
          %v5962 = vunpack.c.l.b16 %v5197
          %v5963 = vunpack.c.h.b16 %v5197
          %v5964 = vunpack.c.l.b16 %v5198
          %v5965 = vunpack.c.h.b16 %v5198
          %v5966 = vunpack.c.l.b16 %v5199
          %v5967 = vunpack.c.h.b16 %v5199
          %v5968 = vunpack.c.l.b16 %v5200
          %v5969 = vunpack.c.h.b16 %v5200
          %v5970 = vunpack.c.l.b16 %v5201
          %v5971 = vunpack.c.h.b16 %v5201
          %v5972 = vunpack.c.l.b16 %v5202
          %v5973 = vunpack.c.h.b16 %v5202
          %v5974 = vunpack.c.l.b16 %v5203
          %v5975 = vunpack.c.h.b16 %v5203
          %v5976 = vunpack.c.l.b16 %v5204
          %v5977 = vunpack.c.h.b16 %v5204
          %v5978 = vunpack.c.l.b16 %v5205
          %v5979 = vunpack.c.h.b16 %v5205
          %v5980 = vunpack.c.l.b16 %v5206
          %v5981 = vunpack.c.h.b16 %v5206
          %v5982 = vunpack.c.l.b16 %v5207
          %v5983 = vunpack.c.h.b16 %v5207
          %v5984 = vunpack.c.l.b16 %v5208
          %v5985 = vunpack.c.h.b16 %v5208
          %v5986 = vunpack.c.l.b16 %v5209
          %v5987 = vunpack.c.h.b16 %v5209
          %v5988 = vunpack.c.l.b16 %v5210
          %v5989 = vunpack.c.h.b16 %v5210
          %v5990 = vunpack.c.l.b16 %v5211
          %v5991 = vunpack.c.h.b16 %v5211
          %v5992 = vunpack.c.l.b16 %v5212
          %v5993 = vunpack.c.h.b16 %v5212
          %v5994 = vunpack.c.l.b16 %v5213
          %v5995 = vunpack.c.h.b16 %v5213
          %v5996 = vunpack.c.l.b16 %v5214
          %v5997 = vunpack.c.h.b16 %v5214
          %v5998 = vunpack.c.l.b16 %v5215
          %v5999 = vunpack.c.h.b16 %v5215
          %v6000 = vunpack.c.l.b16 %v5216
          %v6001 = vunpack.c.h.b16 %v5216
          %v6002 = vunpack.c.l.b16 %v5217
          %v6003 = vunpack.c.h.b16 %v5217
          %v6004 = vunpack.c.l.b16 %v5218
          %v6005 = vunpack.c.h.b16 %v5218
          %v6006 = vunpack.c.l.b16 %v5219
          %v6007 = vunpack.c.h.b16 %v5219
          %v6008 = vunpack.c.l.b16 %v5220
          %v6009 = vunpack.c.h.b16 %v5220
          %v6010 = vunpack.c.l.b16 %v5221
          %v6011 = vunpack.c.h.b16 %v5221
          %v6012 = vpack.c.b16 %v5504, %v5500
          %v6013 = vpack.c.b16 %v5505, %v5501
          %v6014 = vpack.c.b16 %v5506, %v5502
          %v6015 = vpack.c.b16 %v5507, %v5503
          %v6016 = vpack.c.b16 %v5512, %v5508
          %v6017 = vpack.c.b16 %v5513, %v5509
          %v6018 = vpack.c.b16 %v5514, %v5510
          %v6019 = vpack.c.b16 %v5515, %v5511
          %v6020 = vpack.c.b16 %v5520, %v5516
          %v6021 = vpack.c.b16 %v5521, %v5517
          %v6022 = vpack.c.b16 %v5522, %v5518
          %v6023 = vpack.c.b16 %v5523, %v5519
          %v6024 = vpack.c.b16 %v5528, %v5524
          %v6025 = vpack.c.b16 %v5529, %v5525
          %v6026 = vpack.c.b16 %v5530, %v5526
          %v6027 = vpack.c.b16 %v5531, %v5527
          %v6028 = vpack.c.b16 %v5536, %v5532
          %v6029 = vpack.c.b16 %v5537, %v5533
          %v6030 = vpack.c.b16 %v5538, %v5534
          %v6031 = vpack.c.b16 %v5539, %v5535
          %v6032 = vpack.c.b16 %v5544, %v5540
          %v6033 = vpack.c.b16 %v5545, %v5541
          %v6034 = vpack.c.b16 %v5546, %v5542
          %v6035 = vpack.c.b16 %v5547, %v5543
          %v6036 = vpack.c.b16 %v5552, %v5548
          %v6037 = vpack.c.b16 %v5553, %v5549
          %v6038 = vpack.c.b16 %v5554, %v5550
          %v6039 = vpack.c.b16 %v5555, %v5551
          %v6040 = vpack.c.b16 %v5560, %v5556
          %v6041 = vpack.c.b16 %v5561, %v5557
          %v6042 = vpack.c.b16 %v5562, %v5558
          %v6043 = vpack.c.b16 %v5563, %v5559
          %v6044 = vpack.c.b16 %v5568, %v5564
          %v6045 = vpack.c.b16 %v5569, %v5565
          %v6046 = vpack.c.b16 %v5570, %v5566
          %v6047 = vpack.c.b16 %v5571, %v5567
          %v6048 = vpack.c.b16 %v5576, %v5572
          %v6049 = vpack.c.b16 %v5577, %v5573
          %v6050 = vpack.c.b16 %v5578, %v5574
          %v6051 = vpack.c.b16 %v5579, %v5575
          %v6052 = vpack.c.b16 %v5584, %v5580
          %v6053 = vpack.c.b16 %v5585, %v5581
          %v6054 = vpack.c.b16 %v5586, %v5582
          %v6055 = vpack.c.b16 %v5587, %v5583
          %v6056 = vpack.c.b16 %v5592, %v5588
          %v6057 = vpack.c.b16 %v5593, %v5589
          %v6058 = vpack.c.b16 %v5594, %v5590
          %v6059 = vpack.c.b16 %v5595, %v5591
          %v6060 = vpack.c.b16 %v5600, %v5596
          %v6061 = vpack.c.b16 %v5601, %v5597
          %v6062 = vpack.c.b16 %v5602, %v5598
          %v6063 = vpack.c.b16 %v5603, %v5599
          %v6064 = vpack.c.b16 %v5608, %v5604
          %v6065 = vpack.c.b16 %v5609, %v5605
          %v6066 = vpack.c.b16 %v5610, %v5606
          %v6067 = vpack.c.b16 %v5611, %v5607
          %v6068 = vpack.c.b16 %v5616, %v5612
          %v6069 = vpack.c.b16 %v5617, %v5613
          %v6070 = vpack.c.b16 %v5618, %v5614
          %v6071 = vpack.c.b16 %v5619, %v5615
          %v6072 = vpack.c.b16 %v5624, %v5620
          %v6073 = vpack.c.b16 %v5625, %v5621
          %v6074 = vpack.c.b16 %v5626, %v5622
          %v6075 = vpack.c.b16 %v5627, %v5623
          %v6076 = vpack.c.b16 %v5632, %v5628
          %v6077 = vpack.c.b16 %v5633, %v5629
          %v6078 = vpack.c.b16 %v5634, %v5630
          %v6079 = vpack.c.b16 %v5635, %v5631
          %v6080 = vpack.c.b16 %v5640, %v5636
          %v6081 = vpack.c.b16 %v5641, %v5637
          %v6082 = vpack.c.b16 %v5642, %v5638
          %v6083 = vpack.c.b16 %v5643, %v5639
          %v6084 = vpack.c.b16 %v5648, %v5644
          %v6085 = vpack.c.b16 %v5649, %v5645
          %v6086 = vpack.c.b16 %v5650, %v5646
          %v6087 = vpack.c.b16 %v5651, %v5647
          %v6088 = vpack.c.b16 %v5656, %v5652
          %v6089 = vpack.c.b16 %v5657, %v5653
          %v6090 = vpack.c.b16 %v5658, %v5654
          %v6091 = vpack.c.b16 %v5659, %v5655
          %v6092 = vpack.c.b16 %v5664, %v5660
          %v6093 = vpack.c.b16 %v5665, %v5661
          %v6094 = vpack.c.b16 %v5666, %v5662
          %v6095 = vpack.c.b16 %v5667, %v5663
          %v6096 = vpack.c.b16 %v5672, %v5668
          %v6097 = vpack.c.b16 %v5673, %v5669
          %v6098 = vpack.c.b16 %v5674, %v5670
          %v6099 = vpack.c.b16 %v5675, %v5671
          %v6100 = vpack.c.b16 %v5680, %v5676
          %v6101 = vpack.c.b16 %v5681, %v5677
          %v6102 = vpack.c.b16 %v5682, %v5678
          %v6103 = vpack.c.b16 %v5683, %v5679
          %v6104 = vpack.c.b16 %v5688, %v5684
          %v6105 = vpack.c.b16 %v5689, %v5685
          %v6106 = vpack.c.b16 %v5690, %v5686
          %v6107 = vpack.c.b16 %v5691, %v5687
          %v6108 = vpack.c.b16 %v5696, %v5692
          %v6109 = vpack.c.b16 %v5697, %v5693
          %v6110 = vpack.c.b16 %v5698, %v5694
          %v6111 = vpack.c.b16 %v5699, %v5695
          %v6112 = vpack.c.b16 %v5704, %v5700
          %v6113 = vpack.c.b16 %v5705, %v5701
          %v6114 = vpack.c.b16 %v5706, %v5702
          %v6115 = vpack.c.b16 %v5707, %v5703
          %v6116 = vpack.c.b16 %v5712, %v5708
          %v6117 = vpack.c.b16 %v5713, %v5709
          %v6118 = vpack.c.b16 %v5714, %v5710
          %v6119 = vpack.c.b16 %v5715, %v5711
          %v6120 = vpack.c.b16 %v5720, %v5716
          %v6121 = vpack.c.b16 %v5721, %v5717
          %v6122 = vpack.c.b16 %v5722, %v5718
          %v6123 = vpack.c.b16 %v5723, %v5719
          %v6124 = vpack.c.b16 %v5728, %v5724
          %v6125 = vpack.c.b16 %v5729, %v5725
          %v6126 = vpack.c.b16 %v5730, %v5726
          %v6127 = vpack.c.b16 %v5731, %v5727
          %v6128 = vpack.c.b16 %v5736, %v5732
          %v6129 = vpack.c.b16 %v5737, %v5733
          %v6130 = vpack.c.b16 %v5738, %v5734
          %v6131 = vpack.c.b16 %v5739, %v5735
          %v6132 = vpack.c.b16 %v5744, %v5740
          %v6133 = vpack.c.b16 %v5745, %v5741
          %v6134 = vpack.c.b16 %v5746, %v5742
          %v6135 = vpack.c.b16 %v5747, %v5743
          %v6136 = vpack.c.b16 %v5752, %v5748
          %v6137 = vpack.c.b16 %v5753, %v5749
          %v6138 = vpack.c.b16 %v5754, %v5750
          %v6139 = vpack.c.b16 %v5755, %v5751
          %v6140 = vpack.c.b16 %v5760, %v5756
          %v6141 = vpack.c.b16 %v5761, %v5757
          %v6142 = vpack.c.b16 %v5762, %v5758
          %v6143 = vpack.c.b16 %v5763, %v5759
          %v6144 = vpack.c.b16 %v5768, %v5764
          %v6145 = vpack.c.b16 %v5769, %v5765
          %v6146 = vpack.c.b16 %v5770, %v5766
          %v6147 = vpack.c.b16 %v5771, %v5767
          %v6148 = vpack.c.b16 %v5776, %v5772
          %v6149 = vpack.c.b16 %v5777, %v5773
          %v6150 = vpack.c.b16 %v5778, %v5774
          %v6151 = vpack.c.b16 %v5779, %v5775
          %v6152 = vpack.c.b16 %v5784, %v5780
          %v6153 = vpack.c.b16 %v5785, %v5781
          %v6154 = vpack.c.b16 %v5786, %v5782
          %v6155 = vpack.c.b16 %v5787, %v5783
          %v6156 = vpack.c.b16 %v5792, %v5788
          %v6157 = vpack.c.b16 %v5793, %v5789
          %v6158 = vpack.c.b16 %v5794, %v5790
          %v6159 = vpack.c.b16 %v5795, %v5791
          %v6160 = vpack.c.b16 %v5800, %v5796
          %v6161 = vpack.c.b16 %v5801, %v5797
          %v6162 = vpack.c.b16 %v5802, %v5798
          %v6163 = vpack.c.b16 %v5803, %v5799
          %v6164 = vpack.c.b16 %v5808, %v5804
          %v6165 = vpack.c.b16 %v5809, %v5805
          %v6166 = vpack.c.b16 %v5810, %v5806
          %v6167 = vpack.c.b16 %v5811, %v5807
          %v6168 = vpack.c.b16 %v5816, %v5812
          %v6169 = vpack.c.b16 %v5817, %v5813
          %v6170 = vpack.c.b16 %v5818, %v5814
          %v6171 = vpack.c.b16 %v5819, %v5815
          %v6172 = vpack.c.b16 %v5824, %v5820
          %v6173 = vpack.c.b16 %v5825, %v5821
          %v6174 = vpack.c.b16 %v5826, %v5822
          %v6175 = vpack.c.b16 %v5827, %v5823
          %v6176 = vpack.c.b16 %v5832, %v5828
          %v6177 = vpack.c.b16 %v5833, %v5829
          %v6178 = vpack.c.b16 %v5834, %v5830
          %v6179 = vpack.c.b16 %v5835, %v5831
          %v6180 = vpack.c.b16 %v5840, %v5836
          %v6181 = vpack.c.b16 %v5841, %v5837
          %v6182 = vpack.c.b16 %v5842, %v5838
          %v6183 = vpack.c.b16 %v5843, %v5839
          %v6184 = vpack.c.b16 %v5848, %v5844
          %v6185 = vpack.c.b16 %v5849, %v5845
          %v6186 = vpack.c.b16 %v5850, %v5846
          %v6187 = vpack.c.b16 %v5851, %v5847
          %v6188 = vpack.c.b16 %v5856, %v5852
          %v6189 = vpack.c.b16 %v5857, %v5853
          %v6190 = vpack.c.b16 %v5858, %v5854
          %v6191 = vpack.c.b16 %v5859, %v5855
          %v6192 = vpack.c.b16 %v5864, %v5860
          %v6193 = vpack.c.b16 %v5865, %v5861
          %v6194 = vpack.c.b16 %v5866, %v5862
          %v6195 = vpack.c.b16 %v5867, %v5863
          %v6196 = vpack.c.b16 %v5872, %v5868
          %v6197 = vpack.c.b16 %v5873, %v5869
          %v6198 = vpack.c.b16 %v5874, %v5870
          %v6199 = vpack.c.b16 %v5875, %v5871
          %v6200 = vpack.c.b16 %v5880, %v5876
          %v6201 = vpack.c.b16 %v5881, %v5877
          %v6202 = vpack.c.b16 %v5882, %v5878
          %v6203 = vpack.c.b16 %v5883, %v5879
          %v6204 = vpack.c.b16 %v5888, %v5884
          %v6205 = vpack.c.b16 %v5889, %v5885
          %v6206 = vpack.c.b16 %v5890, %v5886
          %v6207 = vpack.c.b16 %v5891, %v5887
          %v6208 = vpack.c.b16 %v5896, %v5892
          %v6209 = vpack.c.b16 %v5897, %v5893
          %v6210 = vpack.c.b16 %v5898, %v5894
          %v6211 = vpack.c.b16 %v5899, %v5895
          %v6212 = vpack.c.b16 %v5904, %v5900
          %v6213 = vpack.c.b16 %v5905, %v5901
          %v6214 = vpack.c.b16 %v5906, %v5902
          %v6215 = vpack.c.b16 %v5907, %v5903
          %v6216 = vpack.c.b16 %v5912, %v5908
          %v6217 = vpack.c.b16 %v5913, %v5909
          %v6218 = vpack.c.b16 %v5914, %v5910
          %v6219 = vpack.c.b16 %v5915, %v5911
          %v6220 = vpack.c.b16 %v5920, %v5916
          %v6221 = vpack.c.b16 %v5921, %v5917
          %v6222 = vpack.c.b16 %v5922, %v5918
          %v6223 = vpack.c.b16 %v5923, %v5919
          %v6224 = vpack.c.b16 %v5928, %v5924
          %v6225 = vpack.c.b16 %v5929, %v5925
          %v6226 = vpack.c.b16 %v5930, %v5926
          %v6227 = vpack.c.b16 %v5931, %v5927
          %v6228 = vpack.c.b16 %v5936, %v5932
          %v6229 = vpack.c.b16 %v5937, %v5933
          %v6230 = vpack.c.b16 %v5938, %v5934
          %v6231 = vpack.c.b16 %v5939, %v5935
          %v6232 = vpack.c.b16 %v5944, %v5940
          %v6233 = vpack.c.b16 %v5945, %v5941
          %v6234 = vpack.c.b16 %v5946, %v5942
          %v6235 = vpack.c.b16 %v5947, %v5943
          %v6236 = vpack.c.b16 %v5952, %v5948
          %v6237 = vpack.c.b16 %v5953, %v5949
          %v6238 = vpack.c.b16 %v5954, %v5950
          %v6239 = vpack.c.b16 %v5955, %v5951
          %v6240 = vpack.c.b16 %v5960, %v5956
          %v6241 = vpack.c.b16 %v5961, %v5957
          %v6242 = vpack.c.b16 %v5962, %v5958
          %v6243 = vpack.c.b16 %v5963, %v5959
          %v6244 = vpack.c.b16 %v5968, %v5964
          %v6245 = vpack.c.b16 %v5969, %v5965
          %v6246 = vpack.c.b16 %v5970, %v5966
          %v6247 = vpack.c.b16 %v5971, %v5967
          %v6248 = vpack.c.b16 %v5976, %v5972
          %v6249 = vpack.c.b16 %v5977, %v5973
          %v6250 = vpack.c.b16 %v5978, %v5974
          %v6251 = vpack.c.b16 %v5979, %v5975
          %v6252 = vpack.c.b16 %v5984, %v5980
          %v6253 = vpack.c.b16 %v5985, %v5981
          %v6254 = vpack.c.b16 %v5986, %v5982
          %v6255 = vpack.c.b16 %v5987, %v5983
          %v6256 = vpack.c.b16 %v5992, %v5988
          %v6257 = vpack.c.b16 %v5993, %v5989
          %v6258 = vpack.c.b16 %v5994, %v5990
          %v6259 = vpack.c.b16 %v5995, %v5991
          %v6260 = vpack.c.b16 %v6000, %v5996
          %v6261 = vpack.c.b16 %v6001, %v5997
          %v6262 = vpack.c.b16 %v6002, %v5998
          %v6263 = vpack.c.b16 %v6003, %v5999
          %v6264 = vpack.c.b16 %v6008, %v6004
          %v6265 = vpack.c.b16 %v6009, %v6005
          %v6266 = vpack.c.b16 %v6010, %v6006
          %v6267 = vpack.c.b16 %v6011, %v6007
          %6524 = vmatprep.subr.bf16.mxu0 %v6013
          %6525 = vmatpush1.bf16.msra.mxu0 %v6012
          %6526 = vmatprep.subr.bf16.mxu0 %v6017
          %6527 = vmatpush1.bf16.msra.mxu0 %v6016
          %6528 = vmatprep.subr.bf16.mxu0 %v6021
          %6529 = vmatpush1.bf16.msra.mxu0 %v6020
          %6530 = vmatprep.subr.bf16.mxu0 %v6025
          %6531 = vmatpush1.bf16.msra.mxu0 %v6024
          %6532 = vmatprep.subr.bf16.mxu0 %v6029
          %6533 = vmatpush1.bf16.msra.mxu0 %v6028
          %6534 = vmatprep.subr.bf16.mxu0 %v6033
          %6535 = vmatpush1.bf16.msra.mxu0 %v6032
          %6536 = vmatprep.subr.bf16.mxu0 %v6037
          %6537 = vmatpush1.bf16.msra.mxu0 %v6036
          %6538 = vmatprep.subr.bf16.mxu0 %v6041
          %6539 = vmatpush1.bf16.msra.mxu0 %v6040
          %6540 = vmatprep.subr.bf16.mxu0 %v6045
          %6541 = vmatpush1.bf16.msra.mxu0 %v6044
          %6542 = vmatprep.subr.bf16.mxu0 %v6049
          %6543 = vmatpush1.bf16.msra.mxu0 %v6048
          %6544 = vmatprep.subr.bf16.mxu0 %v6053
          %6545 = vmatpush1.bf16.msra.mxu0 %v6052
          %6546 = vmatprep.subr.bf16.mxu0 %v6057
          %6547 = vmatpush1.bf16.msra.mxu0 %v6056
          %6548 = vmatprep.subr.bf16.mxu0 %v6061
          %6549 = vmatpush1.bf16.msra.mxu0 %v6060
          %6550 = vmatprep.subr.bf16.mxu0 %v6065
          %6551 = vmatpush1.bf16.msra.mxu0 %v6064
          %6552 = vmatprep.subr.bf16.mxu0 %v6069
          %6553 = vmatpush1.bf16.msra.mxu0 %v6068
          %6554 = vmatprep.subr.bf16.mxu0 %v6073
          %6555 = vmatpush1.bf16.msra.mxu0 %v6072
          %6556 = vmatprep.mubr.bf16.mxu0 %v4959
          %6557 = vmatmul.mubr.bf16.gmra.mrb[0].mxu0 %v4958
          %v6558 = vpop.f32.mrb[0].mxu0
          %v6559 = vadd.f32 %v5227, %v6558
          %v6560 = vpop.f32.mrb[0].mxu0
          %v6561 = vadd.f32 %v5231, %v6560
          %v6562 = vpop.f32.mrb[0].mxu0
          %v6563 = vadd.f32 %v5227, %v6562
          %v6564 = vpop.f32.mrb[0].mxu0
          %v6565 = vadd.f32 %v5231, %v6564
          %6566 = vdwg.mxu0
          %6567 = vmatprep.subr.bf16.mxu0 %v6077
          %6568 = vmatpush1.bf16.msra.mxu0 %v6076
          %6569 = vmatprep.subr.bf16.mxu0 %v6081
          %6570 = vmatpush1.bf16.msra.mxu0 %v6080
          %6571 = vmatprep.subr.bf16.mxu0 %v6085
          %6572 = vmatpush1.bf16.msra.mxu0 %v6084
          %6573 = vmatprep.subr.bf16.mxu0 %v6089
          %6574 = vmatpush1.bf16.msra.mxu0 %v6088
          %6575 = vmatprep.subr.bf16.mxu0 %v6093
          %6576 = vmatpush1.bf16.msra.mxu0 %v6092
          %6577 = vmatprep.subr.bf16.mxu0 %v6097
          %6578 = vmatpush1.bf16.msra.mxu0 %v6096
          %6579 = vmatprep.subr.bf16.mxu0 %v6101
          %6580 = vmatpush1.bf16.msra.mxu0 %v6100
          %6581 = vmatprep.subr.bf16.mxu0 %v6105
          %6582 = vmatpush1.bf16.msra.mxu0 %v6104
          %6583 = vmatprep.subr.bf16.mxu0 %v6109
          %6584 = vmatpush1.bf16.msra.mxu0 %v6108
          %6585 = vmatprep.subr.bf16.mxu0 %v6113
          %6586 = vmatpush1.bf16.msra.mxu0 %v6112
          %6587 = vmatprep.subr.bf16.mxu0 %v6117
          %6588 = vmatpush1.bf16.msra.mxu0 %v6116
          %6589 = vmatprep.subr.bf16.mxu0 %v6121
          %6590 = vmatpush1.bf16.msra.mxu0 %v6120
          %6591 = vmatprep.subr.bf16.mxu0 %v6125
          %6592 = vmatpush1.bf16.msra.mxu0 %v6124
          %6593 = vmatprep.subr.bf16.mxu0 %v6129
          %6594 = vmatpush1.bf16.msra.mxu0 %v6128
          %6595 = vmatprep.subr.bf16.mxu0 %v6133
          %6596 = vmatpush1.bf16.msra.mxu0 %v6132
          %6597 = vmatprep.subr.bf16.mxu0 %v6137
          %6598 = vmatpush1.bf16.msra.mxu0 %v6136
          %6599 = vmatprep.mubr.bf16.mxu0 %v4961
          %6600 = vmatmul.mubr.bf16.gmra.mrb[0].mxu0 %v4960
          %v6601 = vpop.f32.mrb[0].mxu0
          %v6602 = vadd.f32 %v6559, %v6601
          %v6603 = vpop.f32.mrb[0].mxu0
          %v6604 = vadd.f32 %v6561, %v6603
          %v6605 = vpop.f32.mrb[0].mxu0
          %v6606 = vadd.f32 %v6563, %v6605
          %v6607 = vpop.f32.mrb[0].mxu0
          %v6608 = vadd.f32 %v6565, %v6607
          %6609 = vdwg.mxu0
          %6610 = vmatprep.subr.bf16.mxu0 %v6141
          %6611 = vmatpush1.bf16.msra.mxu0 %v6140
          %6612 = vmatprep.subr.bf16.mxu0 %v6145
          %6613 = vmatpush1.bf16.msra.mxu0 %v6144
          %6614 = vmatprep.subr.bf16.mxu0 %v6149
          %6615 = vmatpush1.bf16.msra.mxu0 %v6148
          %6616 = vmatprep.subr.bf16.mxu0 %v6153
          %6617 = vmatpush1.bf16.msra.mxu0 %v6152
          %6618 = vmatprep.subr.bf16.mxu0 %v6157
          %6619 = vmatpush1.bf16.msra.mxu0 %v6156
          %6620 = vmatprep.subr.bf16.mxu0 %v6161
          %6621 = vmatpush1.bf16.msra.mxu0 %v6160
          %6622 = vmatprep.subr.bf16.mxu0 %v6165
          %6623 = vmatpush1.bf16.msra.mxu0 %v6164
          %6624 = vmatprep.subr.bf16.mxu0 %v6169
          %6625 = vmatpush1.bf16.msra.mxu0 %v6168
          %6626 = vmatprep.subr.bf16.mxu0 %v6173
          %6627 = vmatpush1.bf16.msra.mxu0 %v6172
          %6628 = vmatprep.subr.bf16.mxu0 %v6177
          %6629 = vmatpush1.bf16.msra.mxu0 %v6176
          %6630 = vmatprep.subr.bf16.mxu0 %v6181
          %6631 = vmatpush1.bf16.msra.mxu0 %v6180
          %6632 = vmatprep.subr.bf16.mxu0 %v6185
          %6633 = vmatpush1.bf16.msra.mxu0 %v6184
          %6634 = vmatprep.subr.bf16.mxu0 %v6189
          %6635 = vmatpush1.bf16.msra.mxu0 %v6188
          %6636 = vmatprep.subr.bf16.mxu0 %v6193
          %6637 = vmatpush1.bf16.msra.mxu0 %v6192
          %6638 = vmatprep.subr.bf16.mxu0 %v6197
          %6639 = vmatpush1.bf16.msra.mxu0 %v6196
          %6640 = vmatprep.subr.bf16.mxu0 %v6201
          %6641 = vmatpush1.bf16.msra.mxu0 %v6200
          %6642 = vmatprep.mubr.bf16.mxu0 %v4963
          %6643 = vmatmul.mubr.bf16.gmra.mrb[0].mxu0 %v4962
          %v6644 = vpop.f32.mrb[0].mxu0
          %v6645 = vadd.f32 %v6602, %v6644
          %v6646 = vpop.f32.mrb[0].mxu0
          %v6647 = vadd.f32 %v6604, %v6646
          %v6648 = vpop.f32.mrb[0].mxu0
          %v6649 = vadd.f32 %v6606, %v6648
          %v6650 = vpop.f32.mrb[0].mxu0
          %v6651 = vadd.f32 %v6608, %v6650
          %6652 = vdwg.mxu0
          %6653 = vmatprep.subr.bf16.mxu0 %v6205
          %6654 = vmatpush1.bf16.msra.mxu0 %v6204
          %6655 = vmatprep.subr.bf16.mxu0 %v6209
          %6656 = vmatpush1.bf16.msra.mxu0 %v6208
          %6657 = vmatprep.subr.bf16.mxu0 %v6213
          %6658 = vmatpush1.bf16.msra.mxu0 %v6212
          %6659 = vmatprep.subr.bf16.mxu0 %v6217
          %6660 = vmatpush1.bf16.msra.mxu0 %v6216
          %6661 = vmatprep.subr.bf16.mxu0 %v6221
          %6662 = vmatpush1.bf16.msra.mxu0 %v6220
          %6663 = vmatprep.subr.bf16.mxu0 %v6225
          %6664 = vmatpush1.bf16.msra.mxu0 %v6224
          %6665 = vmatprep.subr.bf16.mxu0 %v6229
          %6666 = vmatpush1.bf16.msra.mxu0 %v6228
          %6667 = vmatprep.subr.bf16.mxu0 %v6233
          %6668 = vmatpush1.bf16.msra.mxu0 %v6232
          %6669 = vmatprep.subr.bf16.mxu0 %v6237
          %6670 = vmatpush1.bf16.msra.mxu0 %v6236
          %6671 = vmatprep.subr.bf16.mxu0 %v6241
          %6672 = vmatpush1.bf16.msra.mxu0 %v6240
          %6673 = vmatprep.subr.bf16.mxu0 %v6245
          %6674 = vmatpush1.bf16.msra.mxu0 %v6244
          %6675 = vmatprep.subr.bf16.mxu0 %v6249
          %6676 = vmatpush1.bf16.msra.mxu0 %v6248
          %6677 = vmatprep.subr.bf16.mxu0 %v6253
          %6678 = vmatpush1.bf16.msra.mxu0 %v6252
          %6679 = vmatprep.subr.bf16.mxu0 %v6257
          %6680 = vmatpush1.bf16.msra.mxu0 %v6256
          %6681 = vmatprep.subr.bf16.mxu0 %v6261
          %6682 = vmatpush1.bf16.msra.mxu0 %v6260
          %6683 = vmatprep.subr.bf16.mxu0 %v6265
          %6684 = vmatpush1.bf16.msra.mxu0 %v6264
          %6685 = vmatprep.mubr.bf16.mxu0 %v4965
          %6686 = vmatmul.mubr.bf16.gmra.mrb[0].mxu0 %v4964
          %v6687 = vpop.f32.mrb[0].mxu0
          %v6688 = vadd.f32 %v6645, %v6687
          %v6689 = vpop.f32.mrb[0].mxu0
          %v6690 = vadd.f32 %v6647, %v6689
          %v6691 = vpop.f32.mrb[0].mxu0
          %v6692 = vadd.f32 %v6649, %v6691
          %v6693 = vpop.f32.mrb[0].mxu0
          %v6694 = vadd.f32 %v6651, %v6693
          %6695 = vdwg.mxu0
          %6696 = vmatprep.subr.bf16.mxu0 %v6015
          %6697 = vmatpush1.bf16.msra.mxu0 %v6014
          %6698 = vmatprep.subr.bf16.mxu0 %v6019
          %6699 = vmatpush1.bf16.msra.mxu0 %v6018
          %6700 = vmatprep.subr.bf16.mxu0 %v6023
          %6701 = vmatpush1.bf16.msra.mxu0 %v6022
          %6702 = vmatprep.subr.bf16.mxu0 %v6027
          %6703 = vmatpush1.bf16.msra.mxu0 %v6026
          %6704 = vmatprep.subr.bf16.mxu0 %v6031
          %6705 = vmatpush1.bf16.msra.mxu0 %v6030
          %6706 = vmatprep.subr.bf16.mxu0 %v6035
          %6707 = vmatpush1.bf16.msra.mxu0 %v6034
          %6708 = vmatprep.subr.bf16.mxu0 %v6039
          %6709 = vmatpush1.bf16.msra.mxu0 %v6038
          %6710 = vmatprep.subr.bf16.mxu0 %v6043
          %6711 = vmatpush1.bf16.msra.mxu0 %v6042
          %6712 = vmatprep.subr.bf16.mxu0 %v6047
          %6713 = vmatpush1.bf16.msra.mxu0 %v6046
          %6714 = vmatprep.subr.bf16.mxu0 %v6051
          %6715 = vmatpush1.bf16.msra.mxu0 %v6050
          %6716 = vmatprep.subr.bf16.mxu0 %v6055
          %6717 = vmatpush1.bf16.msra.mxu0 %v6054
          %6718 = vmatprep.subr.bf16.mxu0 %v6059
          %6719 = vmatpush1.bf16.msra.mxu0 %v6058
          %6720 = vmatprep.subr.bf16.mxu0 %v6063
          %6721 = vmatpush1.bf16.msra.mxu0 %v6062
          %6722 = vmatprep.subr.bf16.mxu0 %v6067
          %6723 = vmatpush1.bf16.msra.mxu0 %v6066
          %6724 = vmatprep.subr.bf16.mxu0 %v6071
          %6725 = vmatpush1.bf16.msra.mxu0 %v6070
          %6726 = vmatprep.subr.bf16.mxu0 %v6075
          %6727 = vmatpush1.bf16.msra.mxu0 %v6074
          %6728 = vmatprep.mubr.bf16.mxu0 %v4959
          %6729 = vmatmul.mubr.bf16.gmra.mrb[0].mxu0 %v4958
          %v6730 = vpop.f32.mrb[0].mxu0
          %v6731 = vadd.f32 %v5235, %v6730
          %v6732 = vpop.f32.mrb[0].mxu0
          %v6733 = vadd.f32 %v5239, %v6732
          %v6734 = vpop.f32.mrb[0].mxu0
          %v6735 = vadd.f32 %v5235, %v6734
          %v6736 = vpop.f32.mrb[0].mxu0
          %v6737 = vadd.f32 %v5239, %v6736
          %6738 = vdwg.mxu0
          %6739 = vmatprep.subr.bf16.mxu0 %v6079
          %6740 = vmatpush1.bf16.msra.mxu0 %v6078
          %6741 = vmatprep.subr.bf16.mxu0 %v6083
          %6742 = vmatpush1.bf16.msra.mxu0 %v6082
          %6743 = vmatprep.subr.bf16.mxu0 %v6087
          %6744 = vmatpush1.bf16.msra.mxu0 %v6086
          %6745 = vmatprep.subr.bf16.mxu0 %v6091
          %6746 = vmatpush1.bf16.msra.mxu0 %v6090
          %6747 = vmatprep.subr.bf16.mxu0 %v6095
          %6748 = vmatpush1.bf16.msra.mxu0 %v6094
          %6749 = vmatprep.subr.bf16.mxu0 %v6099
          %6750 = vmatpush1.bf16.msra.mxu0 %v6098
          %6751 = vmatprep.subr.bf16.mxu0 %v6103
          %6752 = vmatpush1.bf16.msra.mxu0 %v6102
          %6753 = vmatprep.subr.bf16.mxu0 %v6107
          %6754 = vmatpush1.bf16.msra.mxu0 %v6106
          %6755 = vmatprep.subr.bf16.mxu0 %v6111
          %6756 = vmatpush1.bf16.msra.mxu0 %v6110
          %6757 = vmatprep.subr.bf16.mxu0 %v6115
          %6758 = vmatpush1.bf16.msra.mxu0 %v6114
          %6759 = vmatprep.subr.bf16.mxu0 %v6119
          %6760 = vmatpush1.bf16.msra.mxu0 %v6118
          %6761 = vmatprep.subr.bf16.mxu0 %v6123
          %6762 = vmatpush1.bf16.msra.mxu0 %v6122
          %6763 = vmatprep.subr.bf16.mxu0 %v6127
          %6764 = vmatpush1.bf16.msra.mxu0 %v6126
          %6765 = vmatprep.subr.bf16.mxu0 %v6131
          %6766 = vmatpush1.bf16.msra.mxu0 %v6130
          %6767 = vmatprep.subr.bf16.mxu0 %v6135
          %6768 = vmatpush1.bf16.msra.mxu0 %v6134
          %6769 = vmatprep.subr.bf16.mxu0 %v6139
          %6770 = vmatpush1.bf16.msra.mxu0 %v6138
          %6771 = vmatprep.mubr.bf16.mxu0 %v4961
          %6772 = vmatmul.mubr.bf16.gmra.mrb[0].mxu0 %v4960
          %v6773 = vpop.f32.mrb[0].mxu0
          %v6774 = vadd.f32 %v6731, %v6773
          %v6775 = vpop.f32.mrb[0].mxu0
          %v6776 = vadd.f32 %v6733, %v6775
          %v6777 = vpop.f32.mrb[0].mxu0
          %v6778 = vadd.f32 %v6735, %v6777
          %v6779 = vpop.f32.mrb[0].mxu0
          %v6780 = vadd.f32 %v6737, %v6779
          %6781 = vdwg.mxu0
          %6782 = vmatprep.subr.bf16.mxu0 %v6143
          %6783 = vmatpush1.bf16.msra.mxu0 %v6142
          %6784 = vmatprep.subr.bf16.mxu0 %v6147
          %6785 = vmatpush1.bf16.msra.mxu0 %v6146
          %6786 = vmatprep.subr.bf16.mxu0 %v6151
          %6787 = vmatpush1.bf16.msra.mxu0 %v6150
          %6788 = vmatprep.subr.bf16.mxu0 %v6155
          %6789 = vmatpush1.bf16.msra.mxu0 %v6154
          %6790 = vmatprep.subr.bf16.mxu0 %v6159
          %6791 = vmatpush1.bf16.msra.mxu0 %v6158
          %6792 = vmatprep.subr.bf16.mxu0 %v6163
          %6793 = vmatpush1.bf16.msra.mxu0 %v6162
          %6794 = vmatprep.subr.bf16.mxu0 %v6167
          %6795 = vmatpush1.bf16.msra.mxu0 %v6166
          %6796 = vmatprep.subr.bf16.mxu0 %v6171
          %6797 = vmatpush1.bf16.msra.mxu0 %v6170
          %6798 = vmatprep.subr.bf16.mxu0 %v6175
          %6799 = vmatpush1.bf16.msra.mxu0 %v6174
          %6800 = vmatprep.subr.bf16.mxu0 %v6179
          %6801 = vmatpush1.bf16.msra.mxu0 %v6178
          %6802 = vmatprep.subr.bf16.mxu0 %v6183
          %6803 = vmatpush1.bf16.msra.mxu0 %v6182
          %6804 = vmatprep.subr.bf16.mxu0 %v6187
          %6805 = vmatpush1.bf16.msra.mxu0 %v6186
          %6806 = vmatprep.subr.bf16.mxu0 %v6191
          %6807 = vmatpush1.bf16.msra.mxu0 %v6190
          %6808 = vmatprep.subr.bf16.mxu0 %v6195
          %6809 = vmatpush1.bf16.msra.mxu0 %v6194
          %6810 = vmatprep.subr.bf16.mxu0 %v6199
          %6811 = vmatpush1.bf16.msra.mxu0 %v6198
          %6812 = vmatprep.subr.bf16.mxu0 %v6203
          %6813 = vmatpush1.bf16.msra.mxu0 %v6202
          %6814 = vmatprep.mubr.bf16.mxu0 %v4963
          %6815 = vmatmul.mubr.bf16.gmra.mrb[0].mxu0 %v4962
          %v6816 = vpop.f32.mrb[0].mxu0
          %v6817 = vadd.f32 %v6774, %v6816
          %v6818 = vpop.f32.mrb[0].mxu0
          %v6819 = vadd.f32 %v6776, %v6818
          %v6820 = vpop.f32.mrb[0].mxu0
          %v6821 = vadd.f32 %v6778, %v6820
          %v6822 = vpop.f32.mrb[0].mxu0
          %v6823 = vadd.f32 %v6780, %v6822
          %6824 = vdwg.mxu0
          %6825 = vmatprep.subr.bf16.mxu0 %v6207
          %6826 = vmatpush1.bf16.msra.mxu0 %v6206
          %6827 = vmatprep.subr.bf16.mxu0 %v6211
          %6828 = vmatpush1.bf16.msra.mxu0 %v6210
          %6829 = vmatprep.subr.bf16.mxu0 %v6215
          %6830 = vmatpush1.bf16.msra.mxu0 %v6214
          %6831 = vmatprep.subr.bf16.mxu0 %v6219
          %6832 = vmatpush1.bf16.msra.mxu0 %v6218
          %6833 = vmatprep.subr.bf16.mxu0 %v6223
          %6834 = vmatpush1.bf16.msra.mxu0 %v6222
          %6835 = vmatprep.subr.bf16.mxu0 %v6227
          %6836 = vmatpush1.bf16.msra.mxu0 %v6226
          %6837 = vmatprep.subr.bf16.mxu0 %v6231
          %6838 = vmatpush1.bf16.msra.mxu0 %v6230
          %6839 = vmatprep.subr.bf16.mxu0 %v6235
          %6840 = vmatpush1.bf16.msra.mxu0 %v6234
          %6841 = vmatprep.subr.bf16.mxu0 %v6239
          %6842 = vmatpush1.bf16.msra.mxu0 %v6238
          %6843 = vmatprep.subr.bf16.mxu0 %v6243
          %6844 = vmatpush1.bf16.msra.mxu0 %v6242
          %6845 = vmatprep.subr.bf16.mxu0 %v6247
          %6846 = vmatpush1.bf16.msra.mxu0 %v6246
          %6847 = vmatprep.subr.bf16.mxu0 %v6251
          %6848 = vmatpush1.bf16.msra.mxu0 %v6250
          %6849 = vmatprep.subr.bf16.mxu0 %v6255
          %6850 = vmatpush1.bf16.msra.mxu0 %v6254
          %6851 = vmatprep.subr.bf16.mxu0 %v6259
          %6852 = vmatpush1.bf16.msra.mxu0 %v6258
          %6853 = vmatprep.subr.bf16.mxu0 %v6263
          %6854 = vmatpush1.bf16.msra.mxu0 %v6262
          %6855 = vmatprep.subr.bf16.mxu0 %v6267
          %6856 = vmatpush1.bf16.msra.mxu0 %v6266
          %6857 = vmatprep.mubr.bf16.mxu0 %v4965
          %6858 = vmatmul.mubr.bf16.gmra.mrb[0].mxu0 %v4964
          %v6859 = vpop.f32.mrb[0].mxu0
          %v6860 = vadd.f32 %v6817, %v6859
          %v6861 = vpop.f32.mrb[0].mxu0
          %v6862 = vadd.f32 %v6819, %v6861
          %v6863 = vpop.f32.mrb[0].mxu0
          %v6864 = vadd.f32 %v6821, %v6863
          %v6865 = vpop.f32.mrb[0].mxu0
          %v6866 = vadd.f32 %v6823, %v6865
          %6867 = vdwg.mxu0
          %v6868 = vmax.f32 %v6688, 0.0
          %v6869 = vmax.f32 %v6690, 0.0
          %v6870 = vmax.f32 %v6860, 0.0
          %v6871 = vmax.f32 %v6862, 0.0
          %v6872 = vmax.f32 %v6692, 0.0
          %v6873 = vmax.f32 %v6694, 0.0
          %v6874 = vmax.f32 %v6864, 0.0
          %v6875 = vmax.f32 %v6866, 0.0
          %v6876 = vpack.c.bf16 %v6872, %v6868
          %v6877 = vpack.c.bf16 %v6873, %v6869
          %v6878 = vpack.c.bf16 %v6874, %v6870
          %v6879 = vpack.c.bf16 %v6875, %v6871
          %v6880 = vld [vmem:[#allocation22] sm:$0xf]
          %v6881 = vld [vmem:[#allocation22 + $0x4] sm:$0xf]
          %v6882 = vld [vmem:[#allocation22 + $0x8] sm:$0xf]
          %v6883 = vld [vmem:[#allocation22 + $0xc] sm:$0xf]
          %v6884 = vld [vmem:[#allocation22 + $0x10] sm:$0xf]
          %v6885 = vld [vmem:[#allocation22 + $0x14] sm:$0xf]
          %v6886 = vld [vmem:[#allocation22 + $0x18] sm:$0xf]
          %v6887 = vld [vmem:[#allocation22 + $0x1c] sm:$0xf]
          %v6888 = vld [vmem:[#allocation22 + $0x20] sm:$0xf]
          %v6889 = vld [vmem:[#allocation22 + $0x24] sm:$0xf]
          %v6890 = vld [vmem:[#allocation22 + $0x28] sm:$0xf]
          %v6891 = vld [vmem:[#allocation22 + $0x2c] sm:$0xf]
          %v6892 = vld [vmem:[#allocation22 + $0x30] sm:$0xf]
          %v6893 = vld [vmem:[#allocation22 + $0x34] sm:$0xf]
          %v6894 = vld [vmem:[#allocation22 + $0x38] sm:$0xf]
          %v6895 = vld [vmem:[#allocation22 + $0x3c] sm:$0xf]
          %v6896 = vld [vmem:[#allocation22 + $0x40] sm:$0xf]
          %v6897 = vld [vmem:[#allocation22 + $0x44] sm:$0xf]
          %v6898 = vld [vmem:[#allocation22 + $0x48] sm:$0xf]
          %v6899 = vld [vmem:[#allocation22 + $0x4c] sm:$0xf]
          %v6900 = vld [vmem:[#allocation22 + $0x50] sm:$0xf]
          %v6901 = vld [vmem:[#allocation22 + $0x54] sm:$0xf]
          %v6902 = vld [vmem:[#allocation22 + $0x58] sm:$0xf]
          %v6903 = vld [vmem:[#allocation22 + $0x5c] sm:$0xf]
          %v6904 = vld [vmem:[#allocation22 + $0x60] sm:$0xf]
          %v6905 = vld [vmem:[#allocation22 + $0x64] sm:$0xf]
          %v6906 = vld [vmem:[#allocation22 + $0x68] sm:$0xf]
          %v6907 = vld [vmem:[#allocation22 + $0x6c] sm:$0xf]
          %v6908 = vld [vmem:[#allocation22 + $0x70] sm:$0xf]
          %v6909 = vld [vmem:[#allocation22 + $0x74] sm:$0xf]
          %v6910 = vld [vmem:[#allocation22 + $0x78] sm:$0xf]
          %v6911 = vld [vmem:[#allocation22 + $0x7c] sm:$0xf]
          %v6912 = vld [vmem:[#allocation22 + $0x80] sm:$0xf]
          %v6913 = vld [vmem:[#allocation22 + $0x84] sm:$0xf]
          %v6914 = vld [vmem:[#allocation22 + $0x88] sm:$0xf]
          %v6915 = vld [vmem:[#allocation22 + $0x8c] sm:$0xf]
          %v6916 = vld [vmem:[#allocation22 + $0x90] sm:$0xf]
          %v6917 = vld [vmem:[#allocation22 + $0x94] sm:$0xf]
          %v6918 = vld [vmem:[#allocation22 + $0x98] sm:$0xf]
          %v6919 = vld [vmem:[#allocation22 + $0x9c] sm:$0xf]
          %v6920 = vld [vmem:[#allocation22 + $0xa0] sm:$0xf]
          %v6921 = vld [vmem:[#allocation22 + $0xa4] sm:$0xf]
          %v6922 = vld [vmem:[#allocation22 + $0xa8] sm:$0xf]
          %v6923 = vld [vmem:[#allocation22 + $0xac] sm:$0xf]
          %v6924 = vld [vmem:[#allocation22 + $0xb0] sm:$0xf]
          %v6925 = vld [vmem:[#allocation22 + $0xb4] sm:$0xf]
          %v6926 = vld [vmem:[#allocation22 + $0xb8] sm:$0xf]
          %v6927 = vld [vmem:[#allocation22 + $0xbc] sm:$0xf]
          %v6928 = vld [vmem:[#allocation22 + $0xc0] sm:$0xf]
          %v6929 = vld [vmem:[#allocation22 + $0xc4] sm:$0xf]
          %v6930 = vld [vmem:[#allocation22 + $0xc8] sm:$0xf]
          %v6931 = vld [vmem:[#allocation22 + $0xcc] sm:$0xf]
          %v6932 = vld [vmem:[#allocation22 + $0xd0] sm:$0xf]
          %v6933 = vld [vmem:[#allocation22 + $0xd4] sm:$0xf]
          %v6934 = vld [vmem:[#allocation22 + $0xd8] sm:$0xf]
          %v6935 = vld [vmem:[#allocation22 + $0xdc] sm:$0xf]
          %v6936 = vld [vmem:[#allocation22 + $0xe0] sm:$0xf]
          %v6937 = vld [vmem:[#allocation22 + $0xe4] sm:$0xf]
          %v6938 = vld [vmem:[#allocation22 + $0xe8] sm:$0xf]
          %v6939 = vld [vmem:[#allocation22 + $0xec] sm:$0xf]
          %v6940 = vld [vmem:[#allocation22 + $0xf0] sm:$0xf]
          %v6941 = vld [vmem:[#allocation22 + $0xf4] sm:$0xf]
          %v6942 = vld [vmem:[#allocation22 + $0xf8] sm:$0xf]
          %v6943 = vld [vmem:[#allocation22 + $0xfc] sm:$0xf]
          %v6944 = vld [vmem:[%s19] sm:$0x1]
          %v6946 = vlaneseq
          %v6947 = vshrl.u32 %v6946, 7
          %v6948 = vsub.s32 0, %v6947
          %v6949 = vrot.slane %v6944, %v6948
          %v7015 = vunpack.c.l.b16 %v6880
          %v7016 = vunpack.c.l.b16 %v6881
          %v7017 = vunpack.c.l.b16 %v6882
          %v7018 = vunpack.c.l.b16 %v6883
          %v7019 = vunpack.c.l.b16 %v6884
          %v7020 = vunpack.c.l.b16 %v6885
          %v7021 = vunpack.c.l.b16 %v6886
          %v7022 = vunpack.c.l.b16 %v6887
          %v7023 = vunpack.c.l.b16 %v6888
          %v7024 = vunpack.c.l.b16 %v6889
          %v7025 = vunpack.c.l.b16 %v6890
          %v7026 = vunpack.c.l.b16 %v6891
          %v7027 = vunpack.c.l.b16 %v6892
          %v7028 = vunpack.c.l.b16 %v6893
          %v7029 = vunpack.c.l.b16 %v6894
          %v7030 = vunpack.c.l.b16 %v6895
          %v7031 = vunpack.c.l.b16 %v6896
          %v7032 = vunpack.c.l.b16 %v6897
          %v7033 = vunpack.c.l.b16 %v6898
          %v7034 = vunpack.c.l.b16 %v6899
          %v7035 = vunpack.c.l.b16 %v6900
          %v7036 = vunpack.c.l.b16 %v6901
          %v7037 = vunpack.c.l.b16 %v6902
          %v7038 = vunpack.c.l.b16 %v6903
          %v7039 = vunpack.c.l.b16 %v6904
          %v7040 = vunpack.c.l.b16 %v6905
          %v7041 = vunpack.c.l.b16 %v6906
          %v7042 = vunpack.c.l.b16 %v6907
          %v7043 = vunpack.c.l.b16 %v6908
          %v7044 = vunpack.c.l.b16 %v6909
          %v7045 = vunpack.c.l.b16 %v6910
          %v7046 = vunpack.c.l.b16 %v6911
          %v7047 = vunpack.c.l.b16 %v6912
          %v7048 = vunpack.c.l.b16 %v6913
          %v7049 = vunpack.c.l.b16 %v6914
          %v7050 = vunpack.c.l.b16 %v6915
          %v7051 = vunpack.c.l.b16 %v6916
          %v7052 = vunpack.c.l.b16 %v6917
          %v7053 = vunpack.c.l.b16 %v6918
          %v7054 = vunpack.c.l.b16 %v6919
          %v7055 = vunpack.c.l.b16 %v6920
          %v7056 = vunpack.c.l.b16 %v6921
          %v7057 = vunpack.c.l.b16 %v6922
          %v7058 = vunpack.c.l.b16 %v6923
          %v7059 = vunpack.c.l.b16 %v6924
          %v7060 = vunpack.c.l.b16 %v6925
          %v7061 = vunpack.c.l.b16 %v6926
          %v7062 = vunpack.c.l.b16 %v6927
          %v7063 = vunpack.c.l.b16 %v6928
          %v7064 = vunpack.c.l.b16 %v6929
          %v7065 = vunpack.c.l.b16 %v6930
          %v7066 = vunpack.c.l.b16 %v6931
          %v7067 = vunpack.c.l.b16 %v6932
          %v7068 = vunpack.c.l.b16 %v6933
          %v7069 = vunpack.c.l.b16 %v6934
          %v7070 = vunpack.c.l.b16 %v6935
          %v7071 = vunpack.c.l.b16 %v6936
          %v7072 = vunpack.c.l.b16 %v6937
          %v7073 = vunpack.c.l.b16 %v6938
          %v7074 = vunpack.c.l.b16 %v6939
          %v7075 = vunpack.c.l.b16 %v6940
          %v7076 = vunpack.c.l.b16 %v6941
          %v7077 = vunpack.c.l.b16 %v6942
          %v7078 = vunpack.c.l.b16 %v6943
          %v7079 = vpack.c.b16 %v7016, %v7015
          %v7080 = vpack.c.b16 %v7018, %v7017
          %v7081 = vpack.c.b16 %v7020, %v7019
          %v7082 = vpack.c.b16 %v7022, %v7021
          %v7083 = vpack.c.b16 %v7024, %v7023
          %v7084 = vpack.c.b16 %v7026, %v7025
          %v7085 = vpack.c.b16 %v7028, %v7027
          %v7086 = vpack.c.b16 %v7030, %v7029
          %v7087 = vpack.c.b16 %v7032, %v7031
          %v7088 = vpack.c.b16 %v7034, %v7033
          %v7089 = vpack.c.b16 %v7036, %v7035
          %v7090 = vpack.c.b16 %v7038, %v7037
          %v7091 = vpack.c.b16 %v7040, %v7039
          %v7092 = vpack.c.b16 %v7042, %v7041
          %v7093 = vpack.c.b16 %v7044, %v7043
          %v7094 = vpack.c.b16 %v7046, %v7045
          %v7095 = vpack.c.b16 %v7048, %v7047
          %v7096 = vpack.c.b16 %v7050, %v7049
          %v7097 = vpack.c.b16 %v7052, %v7051
          %v7098 = vpack.c.b16 %v7054, %v7053
          %v7099 = vpack.c.b16 %v7056, %v7055
          %v7100 = vpack.c.b16 %v7058, %v7057
          %v7101 = vpack.c.b16 %v7060, %v7059
          %v7102 = vpack.c.b16 %v7062, %v7061
          %v7103 = vpack.c.b16 %v7064, %v7063
          %v7104 = vpack.c.b16 %v7066, %v7065
          %v7105 = vpack.c.b16 %v7068, %v7067
          %v7106 = vpack.c.b16 %v7070, %v7069
          %v7107 = vpack.c.b16 %v7072, %v7071
          %v7108 = vpack.c.b16 %v7074, %v7073
          %v7109 = vpack.c.b16 %v7076, %v7075
          %v7110 = vpack.c.b16 %v7078, %v7077
          %7143 = vmatprep.subr.bf16.mxu0 0
          %7144 = vmatpush1.bf16.msra.mxu0 %v7079
          %7145 = vmatprep.subr.bf16.mxu0 0
          %7146 = vmatpush1.bf16.msra.mxu0 %v7080
          %7147 = vmatprep.subr.bf16.mxu0 0
          %7148 = vmatpush1.bf16.msra.mxu0 %v7081
          %7149 = vmatprep.subr.bf16.mxu0 0
          %7150 = vmatpush1.bf16.msra.mxu0 %v7082
          %7151 = vmatprep.subr.bf16.mxu0 0
          %7152 = vmatpush1.bf16.msra.mxu0 %v7083
          %7153 = vmatprep.subr.bf16.mxu0 0
          %7154 = vmatpush1.bf16.msra.mxu0 %v7084
          %7155 = vmatprep.subr.bf16.mxu0 0
          %7156 = vmatpush1.bf16.msra.mxu0 %v7085
          %7157 = vmatprep.subr.bf16.mxu0 0
          %7158 = vmatpush1.bf16.msra.mxu0 %v7086
          %7159 = vmatprep.subr.bf16.mxu0 0
          %7160 = vmatpush1.bf16.msra.mxu0 %v7087
          %7161 = vmatprep.subr.bf16.mxu0 0
          %7162 = vmatpush1.bf16.msra.mxu0 %v7088
          %7163 = vmatprep.subr.bf16.mxu0 0
          %7164 = vmatpush1.bf16.msra.mxu0 %v7089
          %7165 = vmatprep.subr.bf16.mxu0 0
          %7166 = vmatpush1.bf16.msra.mxu0 %v7090
          %7167 = vmatprep.subr.bf16.mxu0 0
          %7168 = vmatpush1.bf16.msra.mxu0 %v7091
          %7169 = vmatprep.subr.bf16.mxu0 0
          %7170 = vmatpush1.bf16.msra.mxu0 %v7092
          %7171 = vmatprep.subr.bf16.mxu0 0
          %7172 = vmatpush1.bf16.msra.mxu0 %v7093
          %7173 = vmatprep.subr.bf16.mxu0 0
          %7174 = vmatpush1.bf16.msra.mxu0 %v7094
          %7175 = vmatprep.mubr.bf16.mxu0 %v6877
          %7176 = vmatmul.mubr.bf16.gmra.mrb[0].mxu0 %v6876
          %v7177 = vpop.f32.mrb[0].mxu0
          %v7178 = vadd.f32 %v6949, %v7177
          %v7179 = vpop.f32.mrb[0].mxu0
          %v7180 = vpop.f32.mrb[0].mxu0
          %v7181 = vadd.f32 %v6949, %v7180
          %v7182 = vpop.f32.mrb[0].mxu0
          %7183 = vdwg.mxu0
          %7184 = vmatprep.subr.bf16.mxu0 0
          %7185 = vmatpush1.bf16.msra.mxu0 %v7095
          %7186 = vmatprep.subr.bf16.mxu0 0
          %7187 = vmatpush1.bf16.msra.mxu0 %v7096
          %7188 = vmatprep.subr.bf16.mxu0 0
          %7189 = vmatpush1.bf16.msra.mxu0 %v7097
          %7190 = vmatprep.subr.bf16.mxu0 0
          %7191 = vmatpush1.bf16.msra.mxu0 %v7098
          %7192 = vmatprep.subr.bf16.mxu0 0
          %7193 = vmatpush1.bf16.msra.mxu0 %v7099
          %7194 = vmatprep.subr.bf16.mxu0 0
          %7195 = vmatpush1.bf16.msra.mxu0 %v7100
          %7196 = vmatprep.subr.bf16.mxu0 0
          %7197 = vmatpush1.bf16.msra.mxu0 %v7101
          %7198 = vmatprep.subr.bf16.mxu0 0
          %7199 = vmatpush1.bf16.msra.mxu0 %v7102
          %7200 = vmatprep.subr.bf16.mxu0 0
          %7201 = vmatpush1.bf16.msra.mxu0 %v7103
          %7202 = vmatprep.subr.bf16.mxu0 0
          %7203 = vmatpush1.bf16.msra.mxu0 %v7104
          %7204 = vmatprep.subr.bf16.mxu0 0
          %7205 = vmatpush1.bf16.msra.mxu0 %v7105
          %7206 = vmatprep.subr.bf16.mxu0 0
          %7207 = vmatpush1.bf16.msra.mxu0 %v7106
          %7208 = vmatprep.subr.bf16.mxu0 0
          %7209 = vmatpush1.bf16.msra.mxu0 %v7107
          %7210 = vmatprep.subr.bf16.mxu0 0
          %7211 = vmatpush1.bf16.msra.mxu0 %v7108
          %7212 = vmatprep.subr.bf16.mxu0 0
          %7213 = vmatpush1.bf16.msra.mxu0 %v7109
          %7214 = vmatprep.subr.bf16.mxu0 0
          %7215 = vmatpush1.bf16.msra.mxu0 %v7110
          %7216 = vmatprep.mubr.bf16.mxu0 %v6879
          %7217 = vmatmul.mubr.bf16.gmra.mrb[0].mxu0 %v6878
          %v7218 = vpop.f32.mrb[0].mxu0
          %v7219 = vadd.f32 %v7178, %v7218
          %v7220 = vpop.f32.mrb[0].mxu0
          %v7221 = vpop.f32.mrb[0].mxu0
          %v7222 = vadd.f32 %v7181, %v7221
          %v7223 = vpop.f32.mrb[0].mxu0
          %7224 = vdwg.mxu0
          %7225 = vst [vmem:[%s20] sm:$0xff] %v7219
          %7226 = vst [vmem:[%s20 + $0x8] sm:$0xff] %v7222
        $region164: #{gng_forward.1} parent=99 // pred_fallthru
          _
        // Predicated region
        $region165: #{gng_forward.1} parent=99 // pred_check
          %p7227 = pneg %p553
        $region166: #{gng_forward.1} parent=99 // pred_check_branch
          %7229 = sbr.rel (%p7227) target = $region168
        $region167: #{gng_forward.1} parent=99 // pred_region
          _
        $region168: #{gng_forward.1} parent=99 // pred_fallthru
          _
        // Predicated region
        $region169: #{gng_forward.1} parent=99 // pred_check
          %p7230 = pneg %p553
        $region170: #{gng_forward.1} parent=99 // pred_check_branch
          %7232 = sbr.rel (%p7230) target = $region172
        $region171: #{gng_forward.1} parent=99 // pred_region
          _
        $region172: #{gng_forward.1} parent=99 // pred_fallthru
          _
      $region100: #{gng_forward.1} parent=5 // pred_fallthru
        _
      %p7233 = scmp.le.s32.totalorder 2, %s45
      // Predicated region
      $region173: #{gng_forward.1} parent=5 // pred_check
        %p7234 = pneg %p7233
      $region174: #{gng_forward.1} parent=5 // pred_check_branch
        %7236 = sbr.rel (%p7234) target = $region176
      $region175: #{gng_forward.1} parent=5 // pred_region
        %s7237 = ssub.s32 %s45, 2
      $region176: #{gng_forward.1} parent=5 // pred_fallthru
        _
    $region6: #{gng_forward.1} parent=1 // loop_footer
      %s49 = sadd.s32 1, %s45
    $region7: #{gng_forward.1} parent=1 // loop_footer_branch
      %44 = sbr.rel target = $region3
    $region8: #{gng_forward.1} parent=1 // loop_exit
      _
    %7238 = vsyncpa [#allocation4], 1
    %s7239 = scalar_lea.sflag [#allocation4], 1
    %7240 = vsyncpa %s7239, 1
    %7241 = vsyncpa [#allocation6], 1
    %s7242 = scalar_lea.sflag [#allocation6], 1
    %7243 = vsyncpa %s7242, 1
    %7244 = vsyncpa [#allocation9], 1
    %s7245 = scalar_lea.sflag [#allocation9], 1
    %7246 = vsyncpa %s7245, 1
    %7247 = vsyncpa [#allocation12], 1
    %s7248 = scalar_lea.sflag [#allocation12], 1
    %7249 = vsyncpa %s7248, 1
    %7250 = vsyncpa [#allocation15], 1
    %s7251 = scalar_lea.sflag [#allocation15], 1
    %7252 = vsyncpa %s7251, 1
    %7253 = vsyncpa [#allocation18], 1
    %s7254 = scalar_lea.sflag [#allocation18], 1
    %7255 = vsyncpa %s7254, 1
    %7256 = vsyncpa [#allocation21], 1

</llo_original>
